<compile_context>
chip_gen: v5e
topology: v5e:2x2
jax: 0.10.0
libtpu: 0.0.40
codegen_flags: <defaults>
</compile_context>

<pallas_src>
import jax
import jax.numpy as jnp
from jax.experimental import pallas as pl
from jax.experimental.pallas import tpu as pltpu


# ----------------------------------------------------------------------------
# Fused kernel: conv1+bn1+relu -> maxpool2x2 -> conv2+relu -> conv3+bn3+relu
# One grid step = Nb images; everything stays in VMEM.
# ----------------------------------------------------------------------------
def _fused_convstack_kernel(x_ref,
                            w1_ref, s1_ref, t1_ref,
                            w2_ref, b2_ref,
                            w3_ref, s3_ref, t3_ref,
                            o_ref,
                            slab1, slab2, slab3,
                            pad0, pad1, pad2, y1s):
    # x_ref  : (Nb, H, W, Cin) f32      NHWC image block
    # w*_ref : (9*Cin, Cout) bf16       im2col-reshaped conv weights
    # s*/t*/b2: (1, Cout) f32           fused BN scale/shift (+ conv2 bias)
    # o_ref  : (Nb*Ho*Wo, c3) bf16      rows in (n, ho, wo) order, lanes = c3
    # slab*  : bf16 VMEM im2col slabs; pad*: f32 halo-padded inputs
    # y1s    : f32 VMEM staging buffer for the 2x2 maxpool
    Nb, H, W, Cin = x_ref.shape
    Ho, Wo = H // 2, W // 2
    c1 = w1_ref.shape[1]
    c2 = w2_ref.shape[1]
    c3 = w3_ref.shape[1]

    def zero_border(pad):
        # Zero only the 1-element halo border (interior is fully overwritten
        # every step).  Done per step so each TensorCore's private scratch is
        # initialized even under megacore partitioning of the batch axis.
        nb, hp2, wp2, c = pad.shape
        zrow = jnp.zeros((nb, 1, wp2, c), pad.dtype)
        zcol = jnp.zeros((nb, hp2, 1, c), pad.dtype)
        pad[:, 0:1, :, :] = zrow
        pad[:, hp2 - 1:hp2, :, :] = zrow
        pad[:, :, 0:1, :] = zcol
        pad[:, :, wp2 - 1:wp2, :] = zcol

    def conv3x3(pad, slab, w_ref, hout, wout, cin):
        # Build the (Nb*hout*wout, 9*cin) bf16 im2col slab (9 column-block
        # stores, cast at store time), then one MXU matmul (K = 9*cin).
        for dy in range(3):
            for dx in range(3):
                t = dy * 3 + dx
                patch = pad[:, dy:dy + hout, dx:dx + wout, :]
                slab[:, t * cin:(t + 1) * cin] = patch.reshape(
                    Nb * hout * wout, cin).astype(jnp.bfloat16)
        return jnp.dot(slab[...], w_ref[...],
                       preferred_element_type=jnp.float32)

    zero_border(pad0)
    zero_border(pad1)
    zero_border(pad2)

    # ---- conv1 + bn1 + relu (halo padding done in VMEM)
    pad0[:, 1:H + 1, 1:W + 1, :] = x_ref[...]
    y1 = conv3x3(pad0, slab1, w1_ref, H, W, Cin)            # (Nb*H*W, c1) f32
    y1 = jnp.maximum(y1 * s1_ref[...] + t1_ref[...], 0.0)

    # ---- 2x2 maxpool, stride 2, in f32 on the VPU:
    # stage y1 as (Nb*H, W, c1), take even/odd-w sublane-strided views,
    # then fold the h-pairs with a free leading-dim reshape.
    y1s[...] = y1.reshape(Nb * H, W, c1)
    w_even = y1s[:, pl.ds(0, Wo, stride=2), :]              # (Nb*H, Wo, c1)
    w_odd = y1s[:, pl.ds(1, Wo, stride=2), :]
    mw = jnp.maximum(w_even, w_odd).reshape(Nb * Ho, 2, Wo, c1)
    pooled = jnp.maximum(mw[:, 0], mw[:, 1])                # (Nb*Ho, Wo, c1)

    # ---- conv2 + relu
    pad1[:, 1:Ho + 1, 1:Wo + 1, :] = pooled.reshape(Nb, Ho, Wo, c1)
    y2 = conv3x3(pad1, slab2, w2_ref, Ho, Wo, c1)           # (Nb*HoWo, c2)
    y2 = jnp.maximum(y2 + b2_ref[...], 0.0)

    # ---- conv3 + bn3 + relu
    pad2[:, 1:Ho + 1, 1:Wo + 1, :] = y2.reshape(Nb, Ho, Wo, c2)
    y3 = conv3x3(pad2, slab3, w3_ref, Ho, Wo, c2)           # (Nb*HoWo, c3)
    y3 = jnp.maximum(y3 * s3_ref[...] + t3_ref[...], 0.0)

    o_ref[...] = y3.astype(o_ref.dtype)


# ----------------------------------------------------------------------------
# Fully-connected layer: bf16 operands, accumulate into the resident output.
# Single grid step at small F; K-tiled only when F is large.
# ----------------------------------------------------------------------------
def _fc_kernel(x_ref, w_ref, b_ref, o_ref):
    k = pl.program_id(0)

    @pl.when(k == 0)
    def _():
        o_ref[...] = jnp.zeros_like(o_ref)

    o_ref[...] += jnp.dot(x_ref[...], w_ref[...],
                          preferred_element_type=jnp.float32)

    @pl.when(k == pl.num_programs(0) - 1)
    def _():
        o_ref[...] += b_ref[...]


def linear(x, w, b):
    N, F = x.shape
    K = w.shape[1]
    tk = F if F <= 16384 else (16384 if F % 16384 == 0 else F)
    return pl.pallas_call(
        _fc_kernel,
        out_shape=jax.ShapeDtypeStruct((N, K), jnp.float32),
        grid_spec=pltpu.PrefetchScalarGridSpec(
            num_scalar_prefetch=0,
            grid=(F // tk,),
            in_specs=[
                pl.BlockSpec((N, tk), lambda k: (0, k)),
                pl.BlockSpec((tk, K), lambda k: (k, 0)),
                pl.BlockSpec((1, K), lambda k: (0, 0)),
            ],
            out_specs=pl.BlockSpec((N, K), lambda k: (0, 0)),
        ),
        compiler_params=pltpu.CompilerParams(
            dimension_semantics=("arbitrary",)),
    )(x, w, b)


# ----------------------------------------------------------------------------
# Parameter init (deterministic, synthetic), one-time kernel-param prep,
# and the forward pass.
# ----------------------------------------------------------------------------
def init_params(key, num_classes, fc_in):
    ks = jax.random.split(key, 16)

    def conv_w(k, cin, cout):
        return jax.random.normal(k, (3, 3, cin, cout), jnp.float32) / jnp.sqrt(9.0 * cin)

    p = {}
    p["w1"] = conv_w(ks[0], 3, 12)
    p["b1"] = 0.1 * jax.random.normal(ks[1], (12,), jnp.float32)
    p["bn1_gamma"] = 1.0 + 0.1 * jax.random.normal(ks[2], (12,), jnp.float32)
    p["bn1_beta"] = 0.1 * jax.random.normal(ks[3], (12,), jnp.float32)
    p["bn1_mean"] = 0.1 * jax.random.normal(ks[4], (12,), jnp.float32)
    p["bn1_var"] = jnp.abs(jax.random.normal(ks[5], (12,), jnp.float32)) + 0.5
    p["w2"] = conv_w(ks[6], 12, 20)
    p["b2"] = 0.1 * jax.random.normal(ks[7], (20,), jnp.float32)
    p["w3"] = conv_w(ks[8], 20, 32)
    p["b3"] = 0.1 * jax.random.normal(ks[9], (32,), jnp.float32)
    p["bn3_gamma"] = 1.0 + 0.1 * jax.random.normal(ks[10], (32,), jnp.float32)
    p["bn3_beta"] = 0.1 * jax.random.normal(ks[11], (32,), jnp.float32)
    p["bn3_mean"] = 0.1 * jax.random.normal(ks[12], (32,), jnp.float32)
    p["bn3_var"] = jnp.abs(jax.random.normal(ks[13], (32,), jnp.float32)) + 0.5
    p["fc_w"] = jax.random.normal(ks[14], (fc_in, num_classes), jnp.float32) / jnp.sqrt(1.0 * fc_in)
    p["fc_b"] = 0.1 * jax.random.normal(ks[15], (num_classes,), jnp.float32)
    return p


def _fc_weight_nhwc(fc_w, Hp, Wp, C):
    """Permute fc weight rows from PyTorch (C,H,W)-flatten order to NHWC order."""
    i = jnp.arange(Hp * Wp * C)
    h = i // (Wp * C)
    r = i % (Wp * C)
    w = r // C
    c = r % C
    return fc_w[c * (Hp * Wp) + h * Wp + w]


def prepare_params(params, H, W, eps=1e-5):
    """One-time conversion of PyTorch-style params into kernel-ready form:
    BN folded into per-channel affine, conv weights im2col-reshaped + bf16,
    fc weight row-permuted to NHWC order + bf16."""
    Ho, Wo = H // 2, W // 2
    Cin, c1 = params["w1"].shape[2], params["w1"].shape[3]
    c2 = params["w2"].shape[3]
    c3 = params["w3"].shape[3]

    s1 = params["bn1_gamma"] / jnp.sqrt(params["bn1_var"] + eps)
    t1 = params["bn1_beta"] + (params["b1"] - params["bn1_mean"]) * s1
    s3 = params["bn3_gamma"] / jnp.sqrt(params["bn3_var"] + eps)
    t3 = params["bn3_beta"] + (params["b3"] - params["bn3_mean"]) * s3

    return {
        "w1": params["w1"].reshape(9 * Cin, c1).astype(jnp.bfloat16),
        "s1": s1.reshape(1, c1), "t1": t1.reshape(1, c1),
        "w2": params["w2"].reshape(9 * c1, c2).astype(jnp.bfloat16),
        "b2": params["b2"].reshape(1, c2),
        "w3": params["w3"].reshape(9 * c2, c3).astype(jnp.bfloat16),
        "s3": s3.reshape(1, c3), "t3": t3.reshape(1, c3),
        "fc_w": _fc_weight_nhwc(params["fc_w"], Ho, Wo, c3).astype(jnp.bfloat16),
        "fc_b": params["fc_b"].reshape(1, -1).astype(jnp.float32),
    }


def _pick_batch_block(n, max_nb=8):
    nb = min(n, max_nb)
    while n % nb:
        nb -= 1
    return nb


def convnet_forward(kparams, x_nchw):
    # x_nchw: (N, 3, H, W), PyTorch layout.  Kernels run NHWC (C on lanes).
    x = jnp.transpose(x_nchw, (0, 2, 3, 1)).astype(jnp.float32)
    N, H, W, Cin = x.shape
    assert H % 2 == 0 and W % 8 == 0 and (W // 2) % 8 == 0, "layout-friendly sizes"
    Ho, Wo = H // 2, W // 2
    HoWo = Ho * Wo
    c1 = kparams["w1"].shape[1]
    c2 = kparams["w2"].shape[1]
    c3 = kparams["w3"].shape[1]

    Nb = _pick_batch_block(N)          # images per grid step

    y = pl.pallas_call(
        _fused_convstack_kernel,
        out_shape=jax.ShapeDtypeStruct((N * HoWo, c3), jnp.bfloat16),
        grid_spec=pltpu.PrefetchScalarGridSpec(
            num_scalar_prefetch=0,
            grid=(N // Nb,),
            in_specs=[
                pl.BlockSpec((Nb, H, W, Cin), lambda n: (n, 0, 0, 0)),
                pl.BlockSpec((9 * Cin, c1), lambda n: (0, 0)),
                pl.BlockSpec((1, c1), lambda n: (0, 0)),
                pl.BlockSpec((1, c1), lambda n: (0, 0)),
                pl.BlockSpec((9 * c1, c2), lambda n: (0, 0)),
                pl.BlockSpec((1, c2), lambda n: (0, 0)),
                pl.BlockSpec((9 * c2, c3), lambda n: (0, 0)),
                pl.BlockSpec((1, c3), lambda n: (0, 0)),
                pl.BlockSpec((1, c3), lambda n: (0, 0)),
            ],
            out_specs=pl.BlockSpec((Nb * HoWo, c3), lambda n: (n, 0)),
            scratch_shapes=[
                pltpu.VMEM((Nb * H * W, 9 * Cin), jnp.bfloat16),     # im2col conv1
                pltpu.VMEM((Nb * HoWo, 9 * c1), jnp.bfloat16),       # im2col conv2
                pltpu.VMEM((Nb * HoWo, 9 * c2), jnp.bfloat16),       # im2col conv3
                pltpu.VMEM((Nb, H + 2, W + 2, Cin), jnp.float32),    # halo pad conv1
                pltpu.VMEM((Nb, Ho + 2, Wo + 2, c1), jnp.float32),   # halo pad conv2
                pltpu.VMEM((Nb, Ho + 2, Wo + 2, c2), jnp.float32),   # halo pad conv3
                pltpu.VMEM((Nb * H, W, c1), jnp.float32),            # maxpool staging
            ]),
        compiler_params=pltpu.CompilerParams(
            dimension_semantics=("parallel",)),
    )(x, kparams["w1"], kparams["s1"], kparams["t1"],
      kparams["w2"], kparams["b2"],
      kparams["w3"], kparams["s3"], kparams["t3"])

    # Free reshape: (N*HoWo, c3) rows are already in per-image NHWC order, so
    # this equals the PyTorch (C,H,W) flatten via the permuted fc weight.
    flat = y.reshape(N, HoWo * c3)
    return linear(flat, kparams["fc_w"], kparams["fc_b"])


# Pure-JAX reference for verification (no Pallas, full f32 precision).
def _reference_forward(params, x_nchw, eps=1e-5):
    x = jnp.transpose(x_nchw, (0, 2, 3, 1)).astype(jnp.float32)

    def conv(z, w, b):
        y = jax.lax.conv_general_dilated(
            z, w, window_strides=(1, 1), padding="SAME",
            dimension_numbers=("NHWC", "HWIO", "NHWC"),
            precision=jax.lax.Precision.HIGHEST)
        return y + b

    def bn(y, g, bt, m, v):
        return (y - m) / jnp.sqrt(v + eps) * g + bt

    y = jax.nn.relu(bn(conv(x, params["w1"], params["b1"]),
                       params["bn1_gamma"], params["bn1_beta"],
                       params["bn1_mean"], params["bn1_var"]))
    y = jax.lax.reduce_window(y, -jnp.inf, jax.lax.max,
                              (1, 2, 2, 1), (1, 2, 2, 1), "VALID")
    y = jax.nn.relu(conv(y, params["w2"], params["b2"]))
    y = jax.nn.relu(bn(conv(y, params["w3"], params["b3"]),
                       params["bn3_gamma"], params["bn3_beta"],
                       params["bn3_mean"], params["bn3_var"]))
    flat = jnp.transpose(y, (0, 3, 1, 2)).reshape(y.shape[0], -1)
    return jnp.dot(flat, params["fc_w"],
                   precision=jax.lax.Precision.HIGHEST) + params["fc_b"]


if __name__ == "__main__":
    # TODO(synk): predict()/torchvision transforms (PIL image loading, resize,
    # normalize) are host-side preprocessing, not part of the kernel.
    num_classes = 2
    N, C, H, W = 2, 3, 16, 16                      # small shapes (orig: 256x256)
    fc_in = 32 * (H // 2) * (W // 2)               # == 32*128*128 at full size

    key = jax.random.PRNGKey(0)
    kx, kp = jax.random.split(key)
    x = jax.random.normal(kx, (N, C, H, W), jnp.float32)
    params = init_params(kp, num_classes, fc_in)
    kparams = prepare_params(params, H, W)         # one-time weight prep

    out = jax.block_until_ready(convnet_forward(kparams, x))
    ref = jax.block_until_ready(_reference_forward(params, x))

    assert out.shape == (N, num_classes), out.shape
    # Tolerance accounts for bf16 MXU operands (f32 accumulation) in the conv
    # stack and fc; the reference runs full f32 at Precision.HIGHEST.
    assert bool(jnp.allclose(out, ref, rtol=5e-2, atol=5e-2)), (out, ref)
    print("KERNEL_OK")
</pallas_src>

<mosaic_0001>
module attributes {stable_mosaic.version = 11 : i64} {
  func.func @_fused_convstack_kernel(%arg0: i32, %arg1: memref<2x16x16x3xf32, #tpu.memory_space<vmem>>, %arg2: memref<27x12xbf16, #tpu.memory_space<vmem>>, %arg3: memref<1x12xf32, #tpu.memory_space<vmem>>, %arg4: memref<1x12xf32, #tpu.memory_space<vmem>>, %arg5: memref<108x20xbf16, #tpu.memory_space<vmem>>, %arg6: memref<1x20xf32, #tpu.memory_space<vmem>>, %arg7: memref<180x32xbf16, #tpu.memory_space<vmem>>, %arg8: memref<1x32xf32, #tpu.memory_space<vmem>>, %arg9: memref<1x32xf32, #tpu.memory_space<vmem>>, %arg10: memref<128x32xbf16, #tpu.memory_space<vmem>>, %arg11: memref<512x27xbf16, #tpu.memory_space<vmem>>, %arg12: memref<128x108xbf16, #tpu.memory_space<vmem>>, %arg13: memref<128x180xbf16, #tpu.memory_space<vmem>>, %arg14: memref<2x18x18x3xf32, #tpu.memory_space<vmem>>, %arg15: memref<2x10x10x12xf32, #tpu.memory_space<vmem>>, %arg16: memref<2x10x10x20xf32, #tpu.memory_space<vmem>>, %arg17: memref<32x16x12xf32, #tpu.memory_space<vmem>>) attributes {dimension_semantics = [#tpu.dimension_semantics<parallel>], iteration_bounds = array<i64: 1>, scalar_prefetch = 0 : i64, scratch_operands = 7 : i64, tpu.core_type = #tpu.core_type<tc>, window_params = [{transform_indices = @transform_0, window_bounds = array<i64: 2, 16, 16, 3>}, {pipeline_mode = #tpu.pipeline_mode<synchronous>, transform_indices = @transform_1, window_bounds = array<i64: 27, 12>}, {pipeline_mode = #tpu.pipeline_mode<synchronous>, transform_indices = @transform_2, window_bounds = array<i64: 1, 12>}, {pipeline_mode = #tpu.pipeline_mode<synchronous>, transform_indices = @transform_3, window_bounds = array<i64: 1, 12>}, {pipeline_mode = #tpu.pipeline_mode<synchronous>, transform_indices = @transform_4, window_bounds = array<i64: 108, 20>}, {pipeline_mode = #tpu.pipeline_mode<synchronous>, transform_indices = @transform_5, window_bounds = array<i64: 1, 20>}, {pipeline_mode = #tpu.pipeline_mode<synchronous>, transform_indices = @transform_6, window_bounds = array<i64: 180, 32>}, {pipeline_mode = #tpu.pipeline_mode<synchronous>, transform_indices = @transform_7, window_bounds = array<i64: 1, 32>}, {pipeline_mode = #tpu.pipeline_mode<synchronous>, transform_indices = @transform_8, window_bounds = array<i64: 1, 32>}, {transform_indices = @transform_9, window_bounds = array<i64: 128, 32>}]} {
    %cst = arith.constant 0.000000e+00 : f32
    %0 = vector.broadcast %cst : f32 to vector<2x1x18x3xf32>
    %cst_0 = arith.constant 0.000000e+00 : f32
    %1 = vector.broadcast %cst_0 : f32 to vector<2x18x1x3xf32>
    %c0 = arith.constant 0 : index
    %c0_1 = arith.constant 0 : index
    %c0_2 = arith.constant 0 : index
    %c0_3 = arith.constant 0 : index
    %2 = vector.load %arg14[%c0, %c0_1, %c0_2, %c0_3] : memref<2x18x18x3xf32, #tpu.memory_space<vmem>>, vector<2x1x18x3xf32>
    tpu.vector_store %arg14[%c0, %c0_1, %c0_2, %c0_3], %0 {strides = array<i32>} : memref<2x18x18x3xf32, #tpu.memory_space<vmem>>, vector<2x1x18x3xf32>,
    %c0_4 = arith.constant 0 : index
    %c17 = arith.constant 17 : index
    %c0_5 = arith.constant 0 : index
    %c0_6 = arith.constant 0 : index
    %3 = vector.load %arg14[%c0_4, %c17, %c0_5, %c0_6] : memref<2x18x18x3xf32, #tpu.memory_space<vmem>>, vector<2x1x18x3xf32>
    tpu.vector_store %arg14[%c0_4, %c17, %c0_5, %c0_6], %0 {strides = array<i32>} : memref<2x18x18x3xf32, #tpu.memory_space<vmem>>, vector<2x1x18x3xf32>,
    %c0_7 = arith.constant 0 : index
    %c0_8 = arith.constant 0 : index
    %c0_9 = arith.constant 0 : index
    %c0_10 = arith.constant 0 : index
    %4 = vector.load %arg14[%c0_7, %c0_8, %c0_9, %c0_10] : memref<2x18x18x3xf32, #tpu.memory_space<vmem>>, vector<2x18x1x3xf32>
    tpu.vector_store %arg14[%c0_7, %c0_8, %c0_9, %c0_10], %1 {strides = array<i32>} : memref<2x18x18x3xf32, #tpu.memory_space<vmem>>, vector<2x18x1x3xf32>,
    %c0_11 = arith.constant 0 : index
    %c0_12 = arith.constant 0 : index
    %c17_13 = arith.constant 17 : index
    %c0_14 = arith.constant 0 : index
    %5 = vector.load %arg14[%c0_11, %c0_12, %c17_13, %c0_14] : memref<2x18x18x3xf32, #tpu.memory_space<vmem>>, vector<2x18x1x3xf32>
    tpu.vector_store %arg14[%c0_11, %c0_12, %c17_13, %c0_14], %1 {strides = array<i32>} : memref<2x18x18x3xf32, #tpu.memory_space<vmem>>, vector<2x18x1x3xf32>,
    %cst_15 = arith.constant 0.000000e+00 : f32
    %6 = vector.broadcast %cst_15 : f32 to vector<2x1x10x12xf32>
    %cst_16 = arith.constant 0.000000e+00 : f32
    %7 = vector.broadcast %cst_16 : f32 to vector<2x10x1x12xf32>
    %c0_17 = arith.constant 0 : index
    %c0_18 = arith.constant 0 : index
    %c0_19 = arith.constant 0 : index
    %c0_20 = arith.constant 0 : index
    %8 = vector.load %arg15[%c0_17, %c0_18, %c0_19, %c0_20] : memref<2x10x10x12xf32, #tpu.memory_space<vmem>>, vector<2x1x10x12xf32>
    tpu.vector_store %arg15[%c0_17, %c0_18, %c0_19, %c0_20], %6 {strides = array<i32>} : memref<2x10x10x12xf32, #tpu.memory_space<vmem>>, vector<2x1x10x12xf32>,
    %c0_21 = arith.constant 0 : index
    %c9 = arith.constant 9 : index
    %c0_22 = arith.constant 0 : index
    %c0_23 = arith.constant 0 : index
    %9 = vector.load %arg15[%c0_21, %c9, %c0_22, %c0_23] : memref<2x10x10x12xf32, #tpu.memory_space<vmem>>, vector<2x1x10x12xf32>
    tpu.vector_store %arg15[%c0_21, %c9, %c0_22, %c0_23], %6 {strides = array<i32>} : memref<2x10x10x12xf32, #tpu.memory_space<vmem>>, vector<2x1x10x12xf32>,
    %c0_24 = arith.constant 0 : index
    %c0_25 = arith.constant 0 : index
    %c0_26 = arith.constant 0 : index
    %c0_27 = arith.constant 0 : index
    %10 = vector.load %arg15[%c0_24, %c0_25, %c0_26, %c0_27] : memref<2x10x10x12xf32, #tpu.memory_space<vmem>>, vector<2x10x1x12xf32>
    tpu.vector_store %arg15[%c0_24, %c0_25, %c0_26, %c0_27], %7 {strides = array<i32>} : memref<2x10x10x12xf32, #tpu.memory_space<vmem>>, vector<2x10x1x12xf32>,
    %c0_28 = arith.constant 0 : index
    %c0_29 = arith.constant 0 : index
    %c9_30 = arith.constant 9 : index
    %c0_31 = arith.constant 0 : index
    %11 = vector.load %arg15[%c0_28, %c0_29, %c9_30, %c0_31] : memref<2x10x10x12xf32, #tpu.memory_space<vmem>>, vector<2x10x1x12xf32>
    tpu.vector_store %arg15[%c0_28, %c0_29, %c9_30, %c0_31], %7 {strides = array<i32>} : memref<2x10x10x12xf32, #tpu.memory_space<vmem>>, vector<2x10x1x12xf32>,
    %cst_32 = arith.constant 0.000000e+00 : f32
    %12 = vector.broadcast %cst_32 : f32 to vector<2x1x10x20xf32>
    %cst_33 = arith.constant 0.000000e+00 : f32
    %13 = vector.broadcast %cst_33 : f32 to vector<2x10x1x20xf32>
    %c0_34 = arith.constant 0 : index
    %c0_35 = arith.constant 0 : index
    %c0_36 = arith.constant 0 : index
    %c0_37 = arith.constant 0 : index
    %14 = vector.load %arg16[%c0_34, %c0_35, %c0_36, %c0_37] : memref<2x10x10x20xf32, #tpu.memory_space<vmem>>, vector<2x1x10x20xf32>
    tpu.vector_store %arg16[%c0_34, %c0_35, %c0_36, %c0_37], %12 {strides = array<i32>} : memref<2x10x10x20xf32, #tpu.memory_space<vmem>>, vector<2x1x10x20xf32>,
    %c0_38 = arith.constant 0 : index
    %c9_39 = arith.constant 9 : index
    %c0_40 = arith.constant 0 : index
    %c0_41 = arith.constant 0 : index
    %15 = vector.load %arg16[%c0_38, %c9_39, %c0_40, %c0_41] : memref<2x10x10x20xf32, #tpu.memory_space<vmem>>, vector<2x1x10x20xf32>
    tpu.vector_store %arg16[%c0_38, %c9_39, %c0_40, %c0_41], %12 {strides = array<i32>} : memref<2x10x10x20xf32, #tpu.memory_space<vmem>>, vector<2x1x10x20xf32>,
    %c0_42 = arith.constant 0 : index
    %c0_43 = arith.constant 0 : index
    %c0_44 = arith.constant 0 : index
    %c0_45 = arith.constant 0 : index
    %16 = vector.load %arg16[%c0_42, %c0_43, %c0_44, %c0_45] : memref<2x10x10x20xf32, #tpu.memory_space<vmem>>, vector<2x10x1x20xf32>
    tpu.vector_store %arg16[%c0_42, %c0_43, %c0_44, %c0_45], %13 {strides = array<i32>} : memref<2x10x10x20xf32, #tpu.memory_space<vmem>>, vector<2x10x1x20xf32>,
    %c0_46 = arith.constant 0 : index
    %c0_47 = arith.constant 0 : index
    %c9_48 = arith.constant 9 : index
    %c0_49 = arith.constant 0 : index
    %17 = vector.load %arg16[%c0_46, %c0_47, %c9_48, %c0_49] : memref<2x10x10x20xf32, #tpu.memory_space<vmem>>, vector<2x10x1x20xf32>
    tpu.vector_store %arg16[%c0_46, %c0_47, %c9_48, %c0_49], %13 {strides = array<i32>} : memref<2x10x10x20xf32, #tpu.memory_space<vmem>>, vector<2x10x1x20xf32>,
    %c0_50 = arith.constant 0 : index
    %c0_51 = arith.constant 0 : index
    %c0_52 = arith.constant 0 : index
    %c0_53 = arith.constant 0 : index
    %18 = vector.load %arg1[%c0_50, %c0_51, %c0_52, %c0_53] : memref<2x16x16x3xf32, #tpu.memory_space<vmem>>, vector<2x16x16x3xf32>
    %c0_54 = arith.constant 0 : index
    %c1 = arith.constant 1 : index
    %c1_55 = arith.constant 1 : index
    %c0_56 = arith.constant 0 : index
    %19 = vector.load %arg14[%c0_54, %c1, %c1_55, %c0_56] : memref<2x18x18x3xf32, #tpu.memory_space<vmem>>, vector<2x16x16x3xf32>
    tpu.vector_store %arg14[%c0_54, %c1, %c1_55, %c0_56], %18 {strides = array<i32>} : memref<2x18x18x3xf32, #tpu.memory_space<vmem>>, vector<2x16x16x3xf32>,
    %c0_57 = arith.constant 0 : index
    %c0_58 = arith.constant 0 : index
    %c0_59 = arith.constant 0 : index
    %c0_60 = arith.constant 0 : index
    %20 = vector.load %arg14[%c0_57, %c0_58, %c0_59, %c0_60] : memref<2x18x18x3xf32, #tpu.memory_space<vmem>>, vector<2x16x16x3xf32>
    %21 = vector.shape_cast %20 : vector<2x16x16x3xf32> to vector<512x3xf32>
    %22 = arith.truncf %21 : vector<512x3xf32> to vector<512x3xbf16>
    %c0_61 = arith.constant 0 : index
    %c0_62 = arith.constant 0 : index
    %23 = vector.load %arg11[%c0_61, %c0_62] : memref<512x27xbf16, #tpu.memory_space<vmem>>, vector<512x3xbf16>
    tpu.vector_store %arg11[%c0_61, %c0_62], %22 {strides = array<i32>} : memref<512x27xbf16, #tpu.memory_space<vmem>>, vector<512x3xbf16>,
    %c0_63 = arith.constant 0 : index
    %c0_64 = arith.constant 0 : index
    %c1_65 = arith.constant 1 : index
    %c0_66 = arith.constant 0 : index
    %24 = vector.load %arg14[%c0_63, %c0_64, %c1_65, %c0_66] : memref<2x18x18x3xf32, #tpu.memory_space<vmem>>, vector<2x16x16x3xf32>
    %25 = vector.shape_cast %24 : vector<2x16x16x3xf32> to vector<512x3xf32>
    %26 = arith.truncf %25 : vector<512x3xf32> to vector<512x3xbf16>
    %c0_67 = arith.constant 0 : index
    %c3 = arith.constant 3 : index
    %27 = vector.load %arg11[%c0_67, %c3] : memref<512x27xbf16, #tpu.memory_space<vmem>>, vector<512x3xbf16>
    tpu.vector_store %arg11[%c0_67, %c3], %26 {strides = array<i32>} : memref<512x27xbf16, #tpu.memory_space<vmem>>, vector<512x3xbf16>,
    %c0_68 = arith.constant 0 : index
    %c0_69 = arith.constant 0 : index
    %c2 = arith.constant 2 : index
    %c0_70 = arith.constant 0 : index
    %28 = vector.load %arg14[%c0_68, %c0_69, %c2, %c0_70] : memref<2x18x18x3xf32, #tpu.memory_space<vmem>>, vector<2x16x16x3xf32>
    %29 = vector.shape_cast %28 : vector<2x16x16x3xf32> to vector<512x3xf32>
    %30 = arith.truncf %29 : vector<512x3xf32> to vector<512x3xbf16>
    %c0_71 = arith.constant 0 : index
    %c6 = arith.constant 6 : index
    %31 = vector.load %arg11[%c0_71, %c6] : memref<512x27xbf16, #tpu.memory_space<vmem>>, vector<512x3xbf16>
    tpu.vector_store %arg11[%c0_71, %c6], %30 {strides = array<i32>} : memref<512x27xbf16, #tpu.memory_space<vmem>>, vector<512x3xbf16>,
    %c0_72 = arith.constant 0 : index
    %c1_73 = arith.constant 1 : index
    %c0_74 = arith.constant 0 : index
    %c0_75 = arith.constant 0 : index
    %32 = vector.load %arg14[%c0_72, %c1_73, %c0_74, %c0_75] : memref<2x18x18x3xf32, #tpu.memory_space<vmem>>, vector<2x16x16x3xf32>
    %33 = vector.shape_cast %32 : vector<2x16x16x3xf32> to vector<512x3xf32>
    %34 = arith.truncf %33 : vector<512x3xf32> to vector<512x3xbf16>
    %c0_76 = arith.constant 0 : index
    %c9_77 = arith.constant 9 : index
    %35 = vector.load %arg11[%c0_76, %c9_77] : memref<512x27xbf16, #tpu.memory_space<vmem>>, vector<512x3xbf16>
    tpu.vector_store %arg11[%c0_76, %c9_77], %34 {strides = array<i32>} : memref<512x27xbf16, #tpu.memory_space<vmem>>, vector<512x3xbf16>,
    %c0_78 = arith.constant 0 : index
    %c1_79 = arith.constant 1 : index
    %c1_80 = arith.constant 1 : index
    %c0_81 = arith.constant 0 : index
    %36 = vector.load %arg14[%c0_78, %c1_79, %c1_80, %c0_81] : memref<2x18x18x3xf32, #tpu.memory_space<vmem>>, vector<2x16x16x3xf32>
    %37 = vector.shape_cast %36 : vector<2x16x16x3xf32> to vector<512x3xf32>
    %38 = arith.truncf %37 : vector<512x3xf32> to vector<512x3xbf16>
    %c0_82 = arith.constant 0 : index
    %c12 = arith.constant 12 : index
    %39 = vector.load %arg11[%c0_82, %c12] : memref<512x27xbf16, #tpu.memory_space<vmem>>, vector<512x3xbf16>
    tpu.vector_store %arg11[%c0_82, %c12], %38 {strides = array<i32>} : memref<512x27xbf16, #tpu.memory_space<vmem>>, vector<512x3xbf16>,
    %c0_83 = arith.constant 0 : index
    %c1_84 = arith.constant 1 : index
    %c2_85 = arith.constant 2 : index
    %c0_86 = arith.constant 0 : index
    %40 = vector.load %arg14[%c0_83, %c1_84, %c2_85, %c0_86] : memref<2x18x18x3xf32, #tpu.memory_space<vmem>>, vector<2x16x16x3xf32>
    %41 = vector.shape_cast %40 : vector<2x16x16x3xf32> to vector<512x3xf32>
    %42 = arith.truncf %41 : vector<512x3xf32> to vector<512x3xbf16>
    %c0_87 = arith.constant 0 : index
    %c15 = arith.constant 15 : index
    %43 = vector.load %arg11[%c0_87, %c15] : memref<512x27xbf16, #tpu.memory_space<vmem>>, vector<512x3xbf16>
    tpu.vector_store %arg11[%c0_87, %c15], %42 {strides = array<i32>} : memref<512x27xbf16, #tpu.memory_space<vmem>>, vector<512x3xbf16>,
    %c0_88 = arith.constant 0 : index
    %c2_89 = arith.constant 2 : index
    %c0_90 = arith.constant 0 : index
    %c0_91 = arith.constant 0 : index
    %44 = vector.load %arg14[%c0_88, %c2_89, %c0_90, %c0_91] : memref<2x18x18x3xf32, #tpu.memory_space<vmem>>, vector<2x16x16x3xf32>
    %45 = vector.shape_cast %44 : vector<2x16x16x3xf32> to vector<512x3xf32>
    %46 = arith.truncf %45 : vector<512x3xf32> to vector<512x3xbf16>
    %c0_92 = arith.constant 0 : index
    %c18 = arith.constant 18 : index
    %47 = vector.load %arg11[%c0_92, %c18] : memref<512x27xbf16, #tpu.memory_space<vmem>>, vector<512x3xbf16>
    tpu.vector_store %arg11[%c0_92, %c18], %46 {strides = array<i32>} : memref<512x27xbf16, #tpu.memory_space<vmem>>, vector<512x3xbf16>,
    %c0_93 = arith.constant 0 : index
    %c2_94 = arith.constant 2 : index
    %c1_95 = arith.constant 1 : index
    %c0_96 = arith.constant 0 : index
    %48 = vector.load %arg14[%c0_93, %c2_94, %c1_95, %c0_96] : memref<2x18x18x3xf32, #tpu.memory_space<vmem>>, vector<2x16x16x3xf32>
    %49 = vector.shape_cast %48 : vector<2x16x16x3xf32> to vector<512x3xf32>
    %50 = arith.truncf %49 : vector<512x3xf32> to vector<512x3xbf16>
    %c0_97 = arith.constant 0 : index
    %c21 = arith.constant 21 : index
    %51 = vector.load %arg11[%c0_97, %c21] : memref<512x27xbf16, #tpu.memory_space<vmem>>, vector<512x3xbf16>
    tpu.vector_store %arg11[%c0_97, %c21], %50 {strides = array<i32>} : memref<512x27xbf16, #tpu.memory_space<vmem>>, vector<512x3xbf16>,
    %c0_98 = arith.constant 0 : index
    %c2_99 = arith.constant 2 : index
    %c2_100 = arith.constant 2 : index
    %c0_101 = arith.constant 0 : index
    %52 = vector.load %arg14[%c0_98, %c2_99, %c2_100, %c0_101] : memref<2x18x18x3xf32, #tpu.memory_space<vmem>>, vector<2x16x16x3xf32>
    %53 = vector.shape_cast %52 : vector<2x16x16x3xf32> to vector<512x3xf32>
    %54 = arith.truncf %53 : vector<512x3xf32> to vector<512x3xbf16>
    %c0_102 = arith.constant 0 : index
    %c24 = arith.constant 24 : index
    %55 = vector.load %arg11[%c0_102, %c24] : memref<512x27xbf16, #tpu.memory_space<vmem>>, vector<512x3xbf16>
    tpu.vector_store %arg11[%c0_102, %c24], %54 {strides = array<i32>} : memref<512x27xbf16, #tpu.memory_space<vmem>>, vector<512x3xbf16>,
    %c0_103 = arith.constant 0 : index
    %c0_104 = arith.constant 0 : index
    %56 = vector.load %arg11[%c0_103, %c0_104] : memref<512x27xbf16, #tpu.memory_space<vmem>>, vector<512x27xbf16>
    %c0_105 = arith.constant 0 : index
    %c0_106 = arith.constant 0 : index
    %57 = vector.load %arg2[%c0_105, %c0_106] : memref<27x12xbf16, #tpu.memory_space<vmem>>, vector<27x12xbf16>
    %cst_107 = arith.constant dense<0.000000e+00> : vector<512x12xf32>
    %58 = tpu.matmul %56, %57, %cst_107 {dimension_numbers = #tpu.dot_dimension_numbers<[1], [0], [0], [1], [0, 0, 1, 1], [], []>} : vector<512x27xbf16>, vector<27x12xbf16>, vector<512x12xf32> -> vector<512x12xf32>
    %c0_108 = arith.constant 0 : index
    %c0_109 = arith.constant 0 : index
    %59 = vector.load %arg3[%c0_108, %c0_109] : memref<1x12xf32, #tpu.memory_space<vmem>>, vector<1x12xf32>
    %60 = vector.broadcast %59 : vector<1x12xf32> to vector<512x12xf32>
    %61 = arith.mulf %58, %60 : vector<512x12xf32>
    %c0_110 = arith.constant 0 : index
    %c0_111 = arith.constant 0 : index
    %62 = vector.load %arg4[%c0_110, %c0_111] : memref<1x12xf32, #tpu.memory_space<vmem>>, vector<1x12xf32>
    %63 = vector.broadcast %62 : vector<1x12xf32> to vector<512x12xf32>
    %64 = arith.addf %61, %63 : vector<512x12xf32>
    %cst_112 = arith.constant 0.000000e+00 : f32
    %65 = vector.broadcast %cst_112 : f32 to vector<512x12xf32>
    %66 = arith.maximumf %64, %65 : vector<512x12xf32>
    %67 = vector.shape_cast %66 : vector<512x12xf32> to vector<32x16x12xf32>
    %c0_113 = arith.constant 0 : index
    %c0_114 = arith.constant 0 : index
    %c0_115 = arith.constant 0 : index
    %68 = vector.load %arg17[%c0_113, %c0_114, %c0_115] : memref<32x16x12xf32, #tpu.memory_space<vmem>>, vector<32x16x12xf32>
    tpu.vector_store %arg17[%c0_113, %c0_114, %c0_115], %67 {strides = array<i32>} : memref<32x16x12xf32, #tpu.memory_space<vmem>>, vector<32x16x12xf32>,
    %c0_116 = arith.constant 0 : index
    %c0_117 = arith.constant 0 : index
    %c0_118 = arith.constant 0 : index
    %69 = tpu.strided_load %arg17[%c0_116, %c0_117, %c0_118] {strides = array<i32: 1, 2, 1>} : memref<32x16x12xf32, #tpu.memory_space<vmem>>, vector<32x8x12xf32>
    %c0_119 = arith.constant 0 : index
    %c1_120 = arith.constant 1 : index
    %c0_121 = arith.constant 0 : index
    %70 = tpu.strided_load %arg17[%c0_119, %c1_120, %c0_121] {strides = array<i32: 1, 2, 1>} : memref<32x16x12xf32, #tpu.memory_space<vmem>>, vector<32x8x12xf32>
    %71 = arith.maximumf %69, %70 : vector<32x8x12xf32>
    %72 = vector.shape_cast %71 : vector<32x8x12xf32> to vector<16x2x8x12xf32>
    %73 = vector.extract_strided_slice %72 {offsets = [0, 0, 0, 0], sizes = [16, 1, 8, 12], strides = [1, 1, 1, 1]} : vector<16x2x8x12xf32> to vector<16x1x8x12xf32>
    %74 = vector.shape_cast %73 : vector<16x1x8x12xf32> to vector<16x8x12xf32>
    %75 = vector.extract_strided_slice %72 {offsets = [0, 1, 0, 0], sizes = [16, 1, 8, 12], strides = [1, 1, 1, 1]} : vector<16x2x8x12xf32> to vector<16x1x8x12xf32>
    %76 = vector.shape_cast %75 : vector<16x1x8x12xf32> to vector<16x8x12xf32>
    %77 = arith.maximumf %74, %76 : vector<16x8x12xf32>
    %78 = vector.shape_cast %77 : vector<16x8x12xf32> to vector<2x8x8x12xf32>
    %c0_122 = arith.constant 0 : index
    %c1_123 = arith.constant 1 : index
    %c1_124 = arith.constant 1 : index
    %c0_125 = arith.constant 0 : index
    %79 = vector.load %arg15[%c0_122, %c1_123, %c1_124, %c0_125] : memref<2x10x10x12xf32, #tpu.memory_space<vmem>>, vector<2x8x8x12xf32>
    tpu.vector_store %arg15[%c0_122, %c1_123, %c1_124, %c0_125], %78 {strides = array<i32>} : memref<2x10x10x12xf32, #tpu.memory_space<vmem>>, vector<2x8x8x12xf32>,
    %c0_126 = arith.constant 0 : index
    %c0_127 = arith.constant 0 : index
    %c0_128 = arith.constant 0 : index
    %c0_129 = arith.constant 0 : index
    %80 = vector.load %arg15[%c0_126, %c0_127, %c0_128, %c0_129] : memref<2x10x10x12xf32, #tpu.memory_space<vmem>>, vector<2x8x8x12xf32>
    %81 = vector.shape_cast %80 : vector<2x8x8x12xf32> to vector<128x12xf32>
    %82 = arith.truncf %81 : vector<128x12xf32> to vector<128x12xbf16>
    %c0_130 = arith.constant 0 : index
    %c0_131 = arith.constant 0 : index
    %83 = vector.load %arg12[%c0_130, %c0_131] : memref<128x108xbf16, #tpu.memory_space<vmem>>, vector<128x12xbf16>
    tpu.vector_store %arg12[%c0_130, %c0_131], %82 {strides = array<i32>} : memref<128x108xbf16, #tpu.memory_space<vmem>>, vector<128x12xbf16>,
    %c0_132 = arith.constant 0 : index
    %c0_133 = arith.constant 0 : index
    %c1_134 = arith.constant 1 : index
    %c0_135 = arith.constant 0 : index
    %84 = vector.load %arg15[%c0_132, %c0_133, %c1_134, %c0_135] : memref<2x10x10x12xf32, #tpu.memory_space<vmem>>, vector<2x8x8x12xf32>
    %85 = vector.shape_cast %84 : vector<2x8x8x12xf32> to vector<128x12xf32>
    %86 = arith.truncf %85 : vector<128x12xf32> to vector<128x12xbf16>
    %c0_136 = arith.constant 0 : index
    %c12_137 = arith.constant 12 : index
    %87 = vector.load %arg12[%c0_136, %c12_137] : memref<128x108xbf16, #tpu.memory_space<vmem>>, vector<128x12xbf16>
    tpu.vector_store %arg12[%c0_136, %c12_137], %86 {strides = array<i32>} : memref<128x108xbf16, #tpu.memory_space<vmem>>, vector<128x12xbf16>,
    %c0_138 = arith.constant 0 : index
    %c0_139 = arith.constant 0 : index
    %c2_140 = arith.constant 2 : index
    %c0_141 = arith.constant 0 : index
    %88 = vector.load %arg15[%c0_138, %c0_139, %c2_140, %c0_141] : memref<2x10x10x12xf32, #tpu.memory_space<vmem>>, vector<2x8x8x12xf32>
    %89 = vector.shape_cast %88 : vector<2x8x8x12xf32> to vector<128x12xf32>
    %90 = arith.truncf %89 : vector<128x12xf32> to vector<128x12xbf16>
    %c0_142 = arith.constant 0 : index
    %c24_143 = arith.constant 24 : index
    %91 = vector.load %arg12[%c0_142, %c24_143] : memref<128x108xbf16, #tpu.memory_space<vmem>>, vector<128x12xbf16>
    tpu.vector_store %arg12[%c0_142, %c24_143], %90 {strides = array<i32>} : memref<128x108xbf16, #tpu.memory_space<vmem>>, vector<128x12xbf16>,
    %c0_144 = arith.constant 0 : index
    %c1_145 = arith.constant 1 : index
    %c0_146 = arith.constant 0 : index
    %c0_147 = arith.constant 0 : index
    %92 = vector.load %arg15[%c0_144, %c1_145, %c0_146, %c0_147] : memref<2x10x10x12xf32, #tpu.memory_space<vmem>>, vector<2x8x8x12xf32>
    %93 = vector.shape_cast %92 : vector<2x8x8x12xf32> to vector<128x12xf32>
    %94 = arith.truncf %93 : vector<128x12xf32> to vector<128x12xbf16>
    %c0_148 = arith.constant 0 : index
    %c36 = arith.constant 36 : index
    %95 = vector.load %arg12[%c0_148, %c36] : memref<128x108xbf16, #tpu.memory_space<vmem>>, vector<128x12xbf16>
    tpu.vector_store %arg12[%c0_148, %c36], %94 {strides = array<i32>} : memref<128x108xbf16, #tpu.memory_space<vmem>>, vector<128x12xbf16>,
    %c0_149 = arith.constant 0 : index
    %c1_150 = arith.constant 1 : index
    %c1_151 = arith.constant 1 : index
    %c0_152 = arith.constant 0 : index
    %96 = vector.load %arg15[%c0_149, %c1_150, %c1_151, %c0_152] : memref<2x10x10x12xf32, #tpu.memory_space<vmem>>, vector<2x8x8x12xf32>
    %97 = vector.shape_cast %96 : vector<2x8x8x12xf32> to vector<128x12xf32>
    %98 = arith.truncf %97 : vector<128x12xf32> to vector<128x12xbf16>
    %c0_153 = arith.constant 0 : index
    %c48 = arith.constant 48 : index
    %99 = vector.load %arg12[%c0_153, %c48] : memref<128x108xbf16, #tpu.memory_space<vmem>>, vector<128x12xbf16>
    tpu.vector_store %arg12[%c0_153, %c48], %98 {strides = array<i32>} : memref<128x108xbf16, #tpu.memory_space<vmem>>, vector<128x12xbf16>,
    %c0_154 = arith.constant 0 : index
    %c1_155 = arith.constant 1 : index
    %c2_156 = arith.constant 2 : index
    %c0_157 = arith.constant 0 : index
    %100 = vector.load %arg15[%c0_154, %c1_155, %c2_156, %c0_157] : memref<2x10x10x12xf32, #tpu.memory_space<vmem>>, vector<2x8x8x12xf32>
    %101 = vector.shape_cast %100 : vector<2x8x8x12xf32> to vector<128x12xf32>
    %102 = arith.truncf %101 : vector<128x12xf32> to vector<128x12xbf16>
    %c0_158 = arith.constant 0 : index
    %c60 = arith.constant 60 : index
    %103 = vector.load %arg12[%c0_158, %c60] : memref<128x108xbf16, #tpu.memory_space<vmem>>, vector<128x12xbf16>
    tpu.vector_store %arg12[%c0_158, %c60], %102 {strides = array<i32>} : memref<128x108xbf16, #tpu.memory_space<vmem>>, vector<128x12xbf16>,
    %c0_159 = arith.constant 0 : index
    %c2_160 = arith.constant 2 : index
    %c0_161 = arith.constant 0 : index
    %c0_162 = arith.constant 0 : index
    %104 = vector.load %arg15[%c0_159, %c2_160, %c0_161, %c0_162] : memref<2x10x10x12xf32, #tpu.memory_space<vmem>>, vector<2x8x8x12xf32>
    %105 = vector.shape_cast %104 : vector<2x8x8x12xf32> to vector<128x12xf32>
    %106 = arith.truncf %105 : vector<128x12xf32> to vector<128x12xbf16>
    %c0_163 = arith.constant 0 : index
    %c72 = arith.constant 72 : index
    %107 = vector.load %arg12[%c0_163, %c72] : memref<128x108xbf16, #tpu.memory_space<vmem>>, vector<128x12xbf16>
    tpu.vector_store %arg12[%c0_163, %c72], %106 {strides = array<i32>} : memref<128x108xbf16, #tpu.memory_space<vmem>>, vector<128x12xbf16>,
    %c0_164 = arith.constant 0 : index
    %c2_165 = arith.constant 2 : index
    %c1_166 = arith.constant 1 : index
    %c0_167 = arith.constant 0 : index
    %108 = vector.load %arg15[%c0_164, %c2_165, %c1_166, %c0_167] : memref<2x10x10x12xf32, #tpu.memory_space<vmem>>, vector<2x8x8x12xf32>
    %109 = vector.shape_cast %108 : vector<2x8x8x12xf32> to vector<128x12xf32>
    %110 = arith.truncf %109 : vector<128x12xf32> to vector<128x12xbf16>
    %c0_168 = arith.constant 0 : index
    %c84 = arith.constant 84 : index
    %111 = vector.load %arg12[%c0_168, %c84] : memref<128x108xbf16, #tpu.memory_space<vmem>>, vector<128x12xbf16>
    tpu.vector_store %arg12[%c0_168, %c84], %110 {strides = array<i32>} : memref<128x108xbf16, #tpu.memory_space<vmem>>, vector<128x12xbf16>,
    %c0_169 = arith.constant 0 : index
    %c2_170 = arith.constant 2 : index
    %c2_171 = arith.constant 2 : index
    %c0_172 = arith.constant 0 : index
    %112 = vector.load %arg15[%c0_169, %c2_170, %c2_171, %c0_172] : memref<2x10x10x12xf32, #tpu.memory_space<vmem>>, vector<2x8x8x12xf32>
    %113 = vector.shape_cast %112 : vector<2x8x8x12xf32> to vector<128x12xf32>
    %114 = arith.truncf %113 : vector<128x12xf32> to vector<128x12xbf16>
    %c0_173 = arith.constant 0 : index
    %c96 = arith.constant 96 : index
    %115 = vector.load %arg12[%c0_173, %c96] : memref<128x108xbf16, #tpu.memory_space<vmem>>, vector<128x12xbf16>
    tpu.vector_store %arg12[%c0_173, %c96], %114 {strides = array<i32>} : memref<128x108xbf16, #tpu.memory_space<vmem>>, vector<128x12xbf16>,
    %c0_174 = arith.constant 0 : index
    %c0_175 = arith.constant 0 : index
    %116 = vector.load %arg12[%c0_174, %c0_175] : memref<128x108xbf16, #tpu.memory_space<vmem>>, vector<128x108xbf16>
    %c0_176 = arith.constant 0 : index
    %c0_177 = arith.constant 0 : index
    %117 = vector.load %arg5[%c0_176, %c0_177] : memref<108x20xbf16, #tpu.memory_space<vmem>>, vector<108x20xbf16>
    %cst_178 = arith.constant dense<0.000000e+00> : vector<128x20xf32>
    %118 = tpu.matmul %116, %117, %cst_178 {dimension_numbers = #tpu.dot_dimension_numbers<[1], [0], [0], [1], [0, 0, 1, 1], [], []>} : vector<128x108xbf16>, vector<108x20xbf16>, vector<128x20xf32> -> vector<128x20xf32>
    %c0_179 = arith.constant 0 : index
    %c0_180 = arith.constant 0 : index
    %119 = vector.load %arg6[%c0_179, %c0_180] : memref<1x20xf32, #tpu.memory_space<vmem>>, vector<1x20xf32>
    %120 = vector.broadcast %119 : vector<1x20xf32> to vector<128x20xf32>
    %121 = arith.addf %118, %120 : vector<128x20xf32>
    %cst_181 = arith.constant 0.000000e+00 : f32
    %122 = vector.broadcast %cst_181 : f32 to vector<128x20xf32>
    %123 = arith.maximumf %121, %122 : vector<128x20xf32>
    %124 = vector.shape_cast %123 : vector<128x20xf32> to vector<2x8x8x20xf32>
    %c0_182 = arith.constant 0 : index
    %c1_183 = arith.constant 1 : index
    %c1_184 = arith.constant 1 : index
    %c0_185 = arith.constant 0 : index
    %125 = vector.load %arg16[%c0_182, %c1_183, %c1_184, %c0_185] : memref<2x10x10x20xf32, #tpu.memory_space<vmem>>, vector<2x8x8x20xf32>
    tpu.vector_store %arg16[%c0_182, %c1_183, %c1_184, %c0_185], %124 {strides = array<i32>} : memref<2x10x10x20xf32, #tpu.memory_space<vmem>>, vector<2x8x8x20xf32>,
    %c0_186 = arith.constant 0 : index
    %c0_187 = arith.constant 0 : index
    %c0_188 = arith.constant 0 : index
    %c0_189 = arith.constant 0 : index
    %126 = vector.load %arg16[%c0_186, %c0_187, %c0_188, %c0_189] : memref<2x10x10x20xf32, #tpu.memory_space<vmem>>, vector<2x8x8x20xf32>
    %127 = vector.shape_cast %126 : vector<2x8x8x20xf32> to vector<128x20xf32>
    %128 = arith.truncf %127 : vector<128x20xf32> to vector<128x20xbf16>
    %c0_190 = arith.constant 0 : index
    %c0_191 = arith.constant 0 : index
    %129 = vector.load %arg13[%c0_190, %c0_191] : memref<128x180xbf16, #tpu.memory_space<vmem>>, vector<128x20xbf16>
    tpu.vector_store %arg13[%c0_190, %c0_191], %128 {strides = array<i32>} : memref<128x180xbf16, #tpu.memory_space<vmem>>, vector<128x20xbf16>,
    %c0_192 = arith.constant 0 : index
    %c0_193 = arith.constant 0 : index
    %c1_194 = arith.constant 1 : index
    %c0_195 = arith.constant 0 : index
    %130 = vector.load %arg16[%c0_192, %c0_193, %c1_194, %c0_195] : memref<2x10x10x20xf32, #tpu.memory_space<vmem>>, vector<2x8x8x20xf32>
    %131 = vector.shape_cast %130 : vector<2x8x8x20xf32> to vector<128x20xf32>
    %132 = arith.truncf %131 : vector<128x20xf32> to vector<128x20xbf16>
    %c0_196 = arith.constant 0 : index
    %c20 = arith.constant 20 : index
    %133 = vector.load %arg13[%c0_196, %c20] : memref<128x180xbf16, #tpu.memory_space<vmem>>, vector<128x20xbf16>
    tpu.vector_store %arg13[%c0_196, %c20], %132 {strides = array<i32>} : memref<128x180xbf16, #tpu.memory_space<vmem>>, vector<128x20xbf16>,
    %c0_197 = arith.constant 0 : index
    %c0_198 = arith.constant 0 : index
    %c2_199 = arith.constant 2 : index
    %c0_200 = arith.constant 0 : index
    %134 = vector.load %arg16[%c0_197, %c0_198, %c2_199, %c0_200] : memref<2x10x10x20xf32, #tpu.memory_space<vmem>>, vector<2x8x8x20xf32>
    %135 = vector.shape_cast %134 : vector<2x8x8x20xf32> to vector<128x20xf32>
    %136 = arith.truncf %135 : vector<128x20xf32> to vector<128x20xbf16>
    %c0_201 = arith.constant 0 : index
    %c40 = arith.constant 40 : index
    %137 = vector.load %arg13[%c0_201, %c40] : memref<128x180xbf16, #tpu.memory_space<vmem>>, vector<128x20xbf16>
    tpu.vector_store %arg13[%c0_201, %c40], %136 {strides = array<i32>} : memref<128x180xbf16, #tpu.memory_space<vmem>>, vector<128x20xbf16>,
    %c0_202 = arith.constant 0 : index
    %c1_203 = arith.constant 1 : index
    %c0_204 = arith.constant 0 : index
    %c0_205 = arith.constant 0 : index
    %138 = vector.load %arg16[%c0_202, %c1_203, %c0_204, %c0_205] : memref<2x10x10x20xf32, #tpu.memory_space<vmem>>, vector<2x8x8x20xf32>
    %139 = vector.shape_cast %138 : vector<2x8x8x20xf32> to vector<128x20xf32>
    %140 = arith.truncf %139 : vector<128x20xf32> to vector<128x20xbf16>
    %c0_206 = arith.constant 0 : index
    %c60_207 = arith.constant 60 : index
    %141 = vector.load %arg13[%c0_206, %c60_207] : memref<128x180xbf16, #tpu.memory_space<vmem>>, vector<128x20xbf16>
    tpu.vector_store %arg13[%c0_206, %c60_207], %140 {strides = array<i32>} : memref<128x180xbf16, #tpu.memory_space<vmem>>, vector<128x20xbf16>,
    %c0_208 = arith.constant 0 : index
    %c1_209 = arith.constant 1 : index
    %c1_210 = arith.constant 1 : index
    %c0_211 = arith.constant 0 : index
    %142 = vector.load %arg16[%c0_208, %c1_209, %c1_210, %c0_211] : memref<2x10x10x20xf32, #tpu.memory_space<vmem>>, vector<2x8x8x20xf32>
    %143 = vector.shape_cast %142 : vector<2x8x8x20xf32> to vector<128x20xf32>
    %144 = arith.truncf %143 : vector<128x20xf32> to vector<128x20xbf16>
    %c0_212 = arith.constant 0 : index
    %c80 = arith.constant 80 : index
    %145 = vector.load %arg13[%c0_212, %c80] : memref<128x180xbf16, #tpu.memory_space<vmem>>, vector<128x20xbf16>
    tpu.vector_store %arg13[%c0_212, %c80], %144 {strides = array<i32>} : memref<128x180xbf16, #tpu.memory_space<vmem>>, vector<128x20xbf16>,
    %c0_213 = arith.constant 0 : index
    %c1_214 = arith.constant 1 : index
    %c2_215 = arith.constant 2 : index
    %c0_216 = arith.constant 0 : index
    %146 = vector.load %arg16[%c0_213, %c1_214, %c2_215, %c0_216] : memref<2x10x10x20xf32, #tpu.memory_space<vmem>>, vector<2x8x8x20xf32>
    %147 = vector.shape_cast %146 : vector<2x8x8x20xf32> to vector<128x20xf32>
    %148 = arith.truncf %147 : vector<128x20xf32> to vector<128x20xbf16>
    %c0_217 = arith.constant 0 : index
    %c100 = arith.constant 100 : index
    %149 = vector.load %arg13[%c0_217, %c100] : memref<128x180xbf16, #tpu.memory_space<vmem>>, vector<128x20xbf16>
    tpu.vector_store %arg13[%c0_217, %c100], %148 {strides = array<i32>} : memref<128x180xbf16, #tpu.memory_space<vmem>>, vector<128x20xbf16>,
    %c0_218 = arith.constant 0 : index
    %c2_219 = arith.constant 2 : index
    %c0_220 = arith.constant 0 : index
    %c0_221 = arith.constant 0 : index
    %150 = vector.load %arg16[%c0_218, %c2_219, %c0_220, %c0_221] : memref<2x10x10x20xf32, #tpu.memory_space<vmem>>, vector<2x8x8x20xf32>
    %151 = vector.shape_cast %150 : vector<2x8x8x20xf32> to vector<128x20xf32>
    %152 = arith.truncf %151 : vector<128x20xf32> to vector<128x20xbf16>
    %c0_222 = arith.constant 0 : index
    %c120 = arith.constant 120 : index
    %153 = vector.load %arg13[%c0_222, %c120] : memref<128x180xbf16, #tpu.memory_space<vmem>>, vector<128x20xbf16>
    tpu.vector_store %arg13[%c0_222, %c120], %152 {strides = array<i32>} : memref<128x180xbf16, #tpu.memory_space<vmem>>, vector<128x20xbf16>,
    %c0_223 = arith.constant 0 : index
    %c2_224 = arith.constant 2 : index
    %c1_225 = arith.constant 1 : index
    %c0_226 = arith.constant 0 : index
    %154 = vector.load %arg16[%c0_223, %c2_224, %c1_225, %c0_226] : memref<2x10x10x20xf32, #tpu.memory_space<vmem>>, vector<2x8x8x20xf32>
    %155 = vector.shape_cast %154 : vector<2x8x8x20xf32> to vector<128x20xf32>
    %156 = arith.truncf %155 : vector<128x20xf32> to vector<128x20xbf16>
    %c0_227 = arith.constant 0 : index
    %c140 = arith.constant 140 : index
    %157 = vector.load %arg13[%c0_227, %c140] : memref<128x180xbf16, #tpu.memory_space<vmem>>, vector<128x20xbf16>
    tpu.vector_store %arg13[%c0_227, %c140], %156 {strides = array<i32>} : memref<128x180xbf16, #tpu.memory_space<vmem>>, vector<128x20xbf16>,
    %c0_228 = arith.constant 0 : index
    %c2_229 = arith.constant 2 : index
    %c2_230 = arith.constant 2 : index
    %c0_231 = arith.constant 0 : index
    %158 = vector.load %arg16[%c0_228, %c2_229, %c2_230, %c0_231] : memref<2x10x10x20xf32, #tpu.memory_space<vmem>>, vector<2x8x8x20xf32>
    %159 = vector.shape_cast %158 : vector<2x8x8x20xf32> to vector<128x20xf32>
    %160 = arith.truncf %159 : vector<128x20xf32> to vector<128x20xbf16>
    %c0_232 = arith.constant 0 : index
    %c160 = arith.constant 160 : index
    %161 = vector.load %arg13[%c0_232, %c160] : memref<128x180xbf16, #tpu.memory_space<vmem>>, vector<128x20xbf16>
    tpu.vector_store %arg13[%c0_232, %c160], %160 {strides = array<i32>} : memref<128x180xbf16, #tpu.memory_space<vmem>>, vector<128x20xbf16>,
    %c0_233 = arith.constant 0 : index
    %c0_234 = arith.constant 0 : index
    %162 = vector.load %arg13[%c0_233, %c0_234] : memref<128x180xbf16, #tpu.memory_space<vmem>>, vector<128x180xbf16>
    %c0_235 = arith.constant 0 : index
    %c0_236 = arith.constant 0 : index
    %163 = vector.load %arg7[%c0_235, %c0_236] : memref<180x32xbf16, #tpu.memory_space<vmem>>, vector<180x32xbf16>
    %cst_237 = arith.constant dense<0.000000e+00> : vector<128x32xf32>
    %164 = tpu.matmul %162, %163, %cst_237 {dimension_numbers = #tpu.dot_dimension_numbers<[1], [0], [0], [1], [0, 0, 1, 1], [], []>} : vector<128x180xbf16>, vector<180x32xbf16>, vector<128x32xf32> -> vector<128x32xf32>
    %c0_238 = arith.constant 0 : index
    %c0_239 = arith.constant 0 : index
    %165 = vector.load %arg8[%c0_238, %c0_239] : memref<1x32xf32, #tpu.memory_space<vmem>>, vector<1x32xf32>
    %166 = vector.broadcast %165 : vector<1x32xf32> to vector<128x32xf32>
    %167 = arith.mulf %164, %166 : vector<128x32xf32>
    %c0_240 = arith.constant 0 : index
    %c0_241 = arith.constant 0 : index
    %168 = vector.load %arg9[%c0_240, %c0_241] : memref<1x32xf32, #tpu.memory_space<vmem>>, vector<1x32xf32>
    %169 = vector.broadcast %168 : vector<1x32xf32> to vector<128x32xf32>
    %170 = arith.addf %167, %169 : vector<128x32xf32>
    %cst_242 = arith.constant 0.000000e+00 : f32
    %171 = vector.broadcast %cst_242 : f32 to vector<128x32xf32>
    %172 = arith.maximumf %170, %171 : vector<128x32xf32>
    %173 = arith.truncf %172 : vector<128x32xf32> to vector<128x32xbf16>
    %c0_243 = arith.constant 0 : index
    %c0_244 = arith.constant 0 : index
    %174 = vector.load %arg10[%c0_243, %c0_244] : memref<128x32xbf16, #tpu.memory_space<vmem>>, vector<128x32xbf16>
    tpu.vector_store %arg10[%c0_243, %c0_244], %173 {strides = array<i32>} : memref<128x32xbf16, #tpu.memory_space<vmem>>, vector<128x32xbf16>,
    return
  }
  func.func @transform_0(%arg0: i32) -> (i32, i32, i32, i32) {
    %c0_i32 = arith.constant 0 : i32
    %c0_i32_0 = arith.constant 0 : i32
    %c0_i32_1 = arith.constant 0 : i32
    %c0_i32_2 = arith.constant 0 : i32
    return %arg0, %c0_i32, %c0_i32_0, %c0_i32_1 : i32, i32, i32, i32
  }
  func.func @transform_1(%arg0: i32) -> (i32, i32) {
    %c0_i32 = arith.constant 0 : i32
    %c0_i32_0 = arith.constant 0 : i32
    %c0_i32_1 = arith.constant 0 : i32
    return %c0_i32, %c0_i32_0 : i32, i32
  }
  func.func @transform_2(%arg0: i32) -> (i32, i32) {
    %c0_i32 = arith.constant 0 : i32
    %c0_i32_0 = arith.constant 0 : i32
    %c0_i32_1 = arith.constant 0 : i32
    return %c0_i32, %c0_i32_0 : i32, i32
  }
  func.func @transform_3(%arg0: i32) -> (i32, i32) {
    %c0_i32 = arith.constant 0 : i32
    %c0_i32_0 = arith.constant 0 : i32
    %c0_i32_1 = arith.constant 0 : i32
    return %c0_i32, %c0_i32_0 : i32, i32
  }
  func.func @transform_4(%arg0: i32) -> (i32, i32) {
    %c0_i32 = arith.constant 0 : i32
    %c0_i32_0 = arith.constant 0 : i32
    %c0_i32_1 = arith.constant 0 : i32
    return %c0_i32, %c0_i32_0 : i32, i32
  }
  func.func @transform_5(%arg0: i32) -> (i32, i32) {
    %c0_i32 = arith.constant 0 : i32
    %c0_i32_0 = arith.constant 0 : i32
    %c0_i32_1 = arith.constant 0 : i32
    return %c0_i32, %c0_i32_0 : i32, i32
  }
  func.func @transform_6(%arg0: i32) -> (i32, i32) {
    %c0_i32 = arith.constant 0 : i32
    %c0_i32_0 = arith.constant 0 : i32
    %c0_i32_1 = arith.constant 0 : i32
    return %c0_i32, %c0_i32_0 : i32, i32
  }
  func.func @transform_7(%arg0: i32) -> (i32, i32) {
    %c0_i32 = arith.constant 0 : i32
    %c0_i32_0 = arith.constant 0 : i32
    %c0_i32_1 = arith.constant 0 : i32
    return %c0_i32, %c0_i32_0 : i32, i32
  }
  func.func @transform_8(%arg0: i32) -> (i32, i32) {
    %c0_i32 = arith.constant 0 : i32
    %c0_i32_0 = arith.constant 0 : i32
    %c0_i32_1 = arith.constant 0 : i32
    return %c0_i32, %c0_i32_0 : i32, i32
  }
  func.func @transform_9(%arg0: i32) -> (i32, i32) {
    %c0_i32 = arith.constant 0 : i32
    %c0_i32_0 = arith.constant 0 : i32
    return %arg0, %c0_i32 : i32, i32
  }
}

</mosaic_0001>

<llo_original>
// kernel: tpu_custom_call.1
$region0: #{tpu_custom_call.1}
  #allocation0 [shape = 'u32[]', space=smem, size = 0x4, offset = 0x4, fixed_abs, tag = 'smem constant byte address 0x4 - core index']
  #allocation1 [shape = 'u32[72,128]{1,0:T(1,128)}', space=vmem, size = 0x9000, scoped, tag = 'internal scratch']
  #allocation2 [shape = 'bf16[512,27]{1,0:T(8,128)(2,1)}', space=vmem, size = 0x20000, scoped, tag = 'scratch operand']
  #allocation3 [shape = 'bf16[128,108]{1,0:T(8,128)(2,1)}', space=vmem, size = 0x8000, scoped, tag = 'scratch operand']
  #allocation4 [shape = 'bf16[128,180]{1,0:T(8,128)(2,1)}', space=vmem, size = 0x10000, scoped, tag = 'scratch operand']
  #allocation5 [shape = 'f32[2,18,18,3]{3,2,1,0:T(8,128)}', space=vmem, size = 0x6c000, scoped, tag = 'scratch operand']
  #allocation6 [shape = 'f32[2,10,10,12]{3,2,1,0:T(8,128)}', space=vmem, size = 0x28000, scoped, tag = 'scratch operand']
  #allocation7 [shape = 'f32[2,10,10,20]{3,2,1,0:T(8,128)}', space=vmem, size = 0x28000, scoped, tag = 'scratch operand']
  #allocation8 [shape = 'f32[32,16,12]{2,1,0:T(8,128)}', space=vmem, size = 0x40000, scoped, tag = 'scratch operand']
  %s0 = inlined_call_operand.vmem [shape: f32[2,16,16,3], index: 0, kind: input, shape index: {}]
  %s1 = inlined_call_operand.vmem [shape: bf16[27,12], index: 1, kind: input, shape index: {}]
  %s2 = inlined_call_operand.vmem [shape: f32[1,12], index: 2, kind: input, shape index: {}]
  %s3 = inlined_call_operand.vmem [shape: f32[1,12], index: 3, kind: input, shape index: {}]
  %s4 = inlined_call_operand.vmem [shape: bf16[108,20], index: 4, kind: input, shape index: {}]
  %s5 = inlined_call_operand.vmem [shape: f32[1,20], index: 5, kind: input, shape index: {}]
  %s6 = inlined_call_operand.vmem [shape: bf16[180,32], index: 6, kind: input, shape index: {}]
  %s7 = inlined_call_operand.vmem [shape: f32[1,32], index: 7, kind: input, shape index: {}]
  %s8 = inlined_call_operand.vmem [shape: f32[1,32], index: 8, kind: input, shape index: {}]
  %s9 = inlined_call_operand.vmem [shape: bf16[128,32], index: 9, kind: output, shape index: {}]
  %s10 = sld [smem:[#allocation0]]
  $region46: #{tpu_custom_call.1} parent=0
    _
  %s12 = ssub.s32 1, %s10
  %s13 = scalar_select 0, %s12, %s10
  // Predicated region
  $region2: #{tpu_custom_call.1} parent=0 // pred_check
    _
  $region3: #{tpu_custom_call.1} parent=0 // pred_check_branch
    %15 = sbr.rel (0) target = $region5
  $region4: #{tpu_custom_call.1} parent=0 // pred_region
    _
  $region5: #{tpu_custom_call.1} parent=0 // pred_fallthru
    _
  // Predicated region
  $region6: #{tpu_custom_call.1} parent=0 // pred_check
    _
  $region7: #{tpu_custom_call.1} parent=0 // pred_check_branch
    %17 = sbr.rel (0) target = $region9
  $region8: #{tpu_custom_call.1} parent=0 // pred_region
    _
  $region9: #{tpu_custom_call.1} parent=0 // pred_fallthru
    _
  // Predicated region
  $region10: #{tpu_custom_call.1} parent=0 // pred_check
    _
  $region11: #{tpu_custom_call.1} parent=0 // pred_check_branch
    %19 = sbr.rel (0) target = $region13
  $region12: #{tpu_custom_call.1} parent=0 // pred_region
    _
  $region13: #{tpu_custom_call.1} parent=0 // pred_fallthru
    _
  // Predicated region
  $region14: #{tpu_custom_call.1} parent=0 // pred_check
    _
  $region15: #{tpu_custom_call.1} parent=0 // pred_check_branch
    %21 = sbr.rel (0) target = $region17
  $region16: #{tpu_custom_call.1} parent=0 // pred_region
    _
  $region17: #{tpu_custom_call.1} parent=0 // pred_fallthru
    _
  // Predicated region
  $region18: #{tpu_custom_call.1} parent=0 // pred_check
    _
  $region19: #{tpu_custom_call.1} parent=0 // pred_check_branch
    %23 = sbr.rel (0) target = $region21
  $region20: #{tpu_custom_call.1} parent=0 // pred_region
    _
  $region21: #{tpu_custom_call.1} parent=0 // pred_fallthru
    _
  // Predicated region
  $region22: #{tpu_custom_call.1} parent=0 // pred_check
    _
  $region23: #{tpu_custom_call.1} parent=0 // pred_check_branch
    %25 = sbr.rel (0) target = $region25
  $region24: #{tpu_custom_call.1} parent=0 // pred_region
    _
  $region25: #{tpu_custom_call.1} parent=0 // pred_fallthru
    _
  // Predicated region
  $region26: #{tpu_custom_call.1} parent=0 // pred_check
    _
  $region27: #{tpu_custom_call.1} parent=0 // pred_check_branch
    %27 = sbr.rel (0) target = $region29
  $region28: #{tpu_custom_call.1} parent=0 // pred_region
    _
  $region29: #{tpu_custom_call.1} parent=0 // pred_fallthru
    _
  // Predicated region
  $region30: #{tpu_custom_call.1} parent=0 // pred_check
    _
  $region31: #{tpu_custom_call.1} parent=0 // pred_check_branch
    %29 = sbr.rel (0) target = $region33
  $region32: #{tpu_custom_call.1} parent=0 // pred_region
    _
  $region33: #{tpu_custom_call.1} parent=0 // pred_fallthru
    _
  // Predicated region
  $region34: #{tpu_custom_call.1} parent=0 // pred_check
    _
  $region35: #{tpu_custom_call.1} parent=0 // pred_check_branch
    %31 = sbr.rel (0) target = $region37
  $region36: #{tpu_custom_call.1} parent=0 // pred_region
    _
  $region37: #{tpu_custom_call.1} parent=0 // pred_fallthru
    _
  %vm33 = vcmask 23552
  %34 = vst.msk [vmem:[#allocation5] sm:$0xff] %vm33, 0.0
  %35 = vst.msk [vmem:[#allocation5 + $0x8] sm:$0xff] %vm33, 0.0
  %vm36 = vcmask 17408
  %37 = vst.msk [vmem:[#allocation5 + $0x10] sm:$0x3] %vm36, 0.0
  %38 = vst.msk [vmem:[#allocation5 + $0x1b0] sm:$0xff] %vm33, 0.0
  %39 = vst.msk [vmem:[#allocation5 + $0x1b8] sm:$0xff] %vm33, 0.0
  %40 = vst.msk [vmem:[#allocation5 + $0x1c0] sm:$0x3] %vm36, 0.0
  %s41 = scalar_lea.vmem [#allocation5], 408
  %42 = vst.msk [vmem:[%s41] sm:$0xff] %vm33, 0.0
  %43 = vst.msk [vmem:[%s41 + $0x8] sm:$0xff] %vm33, 0.0
  %44 = vst.msk [vmem:[%s41 + $0x10] sm:$0x3] %vm36, 0.0
  %45 = vst.msk [vmem:[%s41 + $0x1b0] sm:$0xff] %vm33, 0.0
  %46 = vst.msk [vmem:[%s41 + $0x1b8] sm:$0xff] %vm33, 0.0
  %47 = vst.msk [vmem:[%s41 + $0x1c0] sm:$0x3] %vm36, 0.0
  %vm48 = vcmask 16384
  %49 = vst.msk [vmem:[#allocation5] sm:$0x1] %vm48, 0.0
  %50 = vst.msk [vmem:[#allocation5 + $0x18] sm:$0x1] %vm48, 0.0
  %51 = vst.msk [vmem:[#allocation5 + $0x30] sm:$0x1] %vm48, 0.0
  %52 = vst.msk [vmem:[#allocation5 + $0x48] sm:$0x1] %vm48, 0.0
  %53 = vst.msk [vmem:[#allocation5 + $0x60] sm:$0x1] %vm48, 0.0
  %54 = vst.msk [vmem:[#allocation5 + $0x78] sm:$0x1] %vm48, 0.0
  %55 = vst.msk [vmem:[#allocation5 + $0x90] sm:$0x1] %vm48, 0.0
  %56 = vst.msk [vmem:[#allocation5 + $0xa8] sm:$0x1] %vm48, 0.0
  %57 = vst.msk [vmem:[#allocation5 + $0xc0] sm:$0x1] %vm48, 0.0
  %58 = vst.msk [vmem:[#allocation5 + $0xd8] sm:$0x1] %vm48, 0.0
  %59 = vst.msk [vmem:[#allocation5 + $0xf0] sm:$0x1] %vm48, 0.0
  %60 = vst.msk [vmem:[#allocation5 + $0x108] sm:$0x1] %vm48, 0.0
  %61 = vst.msk [vmem:[#allocation5 + $0x120] sm:$0x1] %vm48, 0.0
  %62 = vst.msk [vmem:[#allocation5 + $0x138] sm:$0x1] %vm48, 0.0
  %63 = vst.msk [vmem:[#allocation5 + $0x150] sm:$0x1] %vm48, 0.0
  %64 = vst.msk [vmem:[#allocation5 + $0x168] sm:$0x1] %vm48, 0.0
  %65 = vst.msk [vmem:[#allocation5 + $0x180] sm:$0x1] %vm48, 0.0
  %66 = vst.msk [vmem:[#allocation5 + $0x198] sm:$0x1] %vm48, 0.0
  %67 = vst.msk [vmem:[#allocation5 + $0x1b0] sm:$0x1] %vm48, 0.0
  %68 = vst.msk [vmem:[#allocation5 + $0x1c8] sm:$0x1] %vm48, 0.0
  %69 = vst.msk [vmem:[#allocation5 + $0x1e0] sm:$0x1] %vm48, 0.0
  %70 = vst.msk [vmem:[#allocation5 + $0x1f8] sm:$0x1] %vm48, 0.0
  %71 = vst.msk [vmem:[#allocation5 + $0x210] sm:$0x1] %vm48, 0.0
  %72 = vst.msk [vmem:[#allocation5 + $0x228] sm:$0x1] %vm48, 0.0
  %73 = vst.msk [vmem:[#allocation5 + $0x240] sm:$0x1] %vm48, 0.0
  %74 = vst.msk [vmem:[#allocation5 + $0x258] sm:$0x1] %vm48, 0.0
  %75 = vst.msk [vmem:[#allocation5 + $0x270] sm:$0x1] %vm48, 0.0
  %76 = vst.msk [vmem:[#allocation5 + $0x288] sm:$0x1] %vm48, 0.0
  %77 = vst.msk [vmem:[#allocation5 + $0x2a0] sm:$0x1] %vm48, 0.0
  %78 = vst.msk [vmem:[#allocation5 + $0x2b8] sm:$0x1] %vm48, 0.0
  %79 = vst.msk [vmem:[#allocation5 + $0x2d0] sm:$0x1] %vm48, 0.0
  %80 = vst.msk [vmem:[#allocation5 + $0x2e8] sm:$0x1] %vm48, 0.0
  %81 = vst.msk [vmem:[#allocation5 + $0x300] sm:$0x1] %vm48, 0.0
  %82 = vst.msk [vmem:[#allocation5 + $0x318] sm:$0x1] %vm48, 0.0
  %83 = vst.msk [vmem:[#allocation5 + $0x330] sm:$0x1] %vm48, 0.0
  %84 = vst.msk [vmem:[#allocation5 + $0x348] sm:$0x1] %vm48, 0.0
  %85 = vst.msk [vmem:[#allocation5 + $0x11] sm:$0x1] %vm48, 0.0
  %86 = vst.msk [vmem:[#allocation5 + $0x29] sm:$0x1] %vm48, 0.0
  %87 = vst.msk [vmem:[#allocation5 + $0x41] sm:$0x1] %vm48, 0.0
  %88 = vst.msk [vmem:[#allocation5 + $0x59] sm:$0x1] %vm48, 0.0
  %89 = vst.msk [vmem:[#allocation5 + $0x71] sm:$0x1] %vm48, 0.0
  %90 = vst.msk [vmem:[#allocation5 + $0x89] sm:$0x1] %vm48, 0.0
  %91 = vst.msk [vmem:[#allocation5 + $0xa1] sm:$0x1] %vm48, 0.0
  %92 = vst.msk [vmem:[#allocation5 + $0xb9] sm:$0x1] %vm48, 0.0
  %93 = vst.msk [vmem:[#allocation5 + $0xd1] sm:$0x1] %vm48, 0.0
  %94 = vst.msk [vmem:[#allocation5 + $0xe9] sm:$0x1] %vm48, 0.0
  %95 = vst.msk [vmem:[#allocation5 + $0x101] sm:$0x1] %vm48, 0.0
  %96 = vst.msk [vmem:[#allocation5 + $0x119] sm:$0x1] %vm48, 0.0
  %97 = vst.msk [vmem:[#allocation5 + $0x131] sm:$0x1] %vm48, 0.0
  %98 = vst.msk [vmem:[#allocation5 + $0x149] sm:$0x1] %vm48, 0.0
  %99 = vst.msk [vmem:[#allocation5 + $0x161] sm:$0x1] %vm48, 0.0
  %100 = vst.msk [vmem:[#allocation5 + $0x179] sm:$0x1] %vm48, 0.0
  %101 = vst.msk [vmem:[#allocation5 + $0x191] sm:$0x1] %vm48, 0.0
  %102 = vst.msk [vmem:[#allocation5 + $0x1a9] sm:$0x1] %vm48, 0.0
  %103 = vst.msk [vmem:[#allocation5 + $0x1c1] sm:$0x1] %vm48, 0.0
  %104 = vst.msk [vmem:[#allocation5 + $0x1d9] sm:$0x1] %vm48, 0.0
  %105 = vst.msk [vmem:[#allocation5 + $0x1f1] sm:$0x1] %vm48, 0.0
  %106 = vst.msk [vmem:[#allocation5 + $0x209] sm:$0x1] %vm48, 0.0
  %107 = vst.msk [vmem:[#allocation5 + $0x221] sm:$0x1] %vm48, 0.0
  %108 = vst.msk [vmem:[#allocation5 + $0x239] sm:$0x1] %vm48, 0.0
  %109 = vst.msk [vmem:[#allocation5 + $0x251] sm:$0x1] %vm48, 0.0
  %110 = vst.msk [vmem:[#allocation5 + $0x269] sm:$0x1] %vm48, 0.0
  %111 = vst.msk [vmem:[#allocation5 + $0x281] sm:$0x1] %vm48, 0.0
  %112 = vst.msk [vmem:[#allocation5 + $0x299] sm:$0x1] %vm48, 0.0
  %113 = vst.msk [vmem:[#allocation5 + $0x2b1] sm:$0x1] %vm48, 0.0
  %114 = vst.msk [vmem:[#allocation5 + $0x2c9] sm:$0x1] %vm48, 0.0
  %115 = vst.msk [vmem:[#allocation5 + $0x2e1] sm:$0x1] %vm48, 0.0
  %116 = vst.msk [vmem:[#allocation5 + $0x2f9] sm:$0x1] %vm48, 0.0
  %117 = vst.msk [vmem:[#allocation5 + $0x311] sm:$0x1] %vm48, 0.0
  %118 = vst.msk [vmem:[#allocation5 + $0x329] sm:$0x1] %vm48, 0.0
  %119 = vst.msk [vmem:[#allocation5 + $0x341] sm:$0x1] %vm48, 0.0
  %120 = vst.msk [vmem:[#allocation5 + $0x359] sm:$0x1] %vm48, 0.0
  %vm121 = vcmask 97280
  %122 = vst.msk [vmem:[#allocation6] sm:$0xff] %vm121, 0.0
  %vm123 = vcmask 91136
  %124 = vst.msk [vmem:[#allocation6 + $0x8] sm:$0x3] %vm123, 0.0
  %125 = vst.msk [vmem:[#allocation6 + $0xa0] sm:$0xff] %vm121, 0.0
  %126 = vst.msk [vmem:[#allocation6 + $0xa8] sm:$0x3] %vm123, 0.0
  %s127 = scalar_lea.vmem [#allocation6], 144
  %128 = vst.msk [vmem:[%s127] sm:$0xff] %vm121, 0.0
  %129 = vst.msk [vmem:[%s127 + $0x8] sm:$0x3] %vm123, 0.0
  %130 = vst.msk [vmem:[%s127 + $0xa0] sm:$0xff] %vm121, 0.0
  %131 = vst.msk [vmem:[%s127 + $0xa8] sm:$0x3] %vm123, 0.0
  %vm132 = vcmask 90112
  %133 = vst.msk [vmem:[#allocation6] sm:$0x1] %vm132, 0.0
  %134 = vst.msk [vmem:[#allocation6 + $0x10] sm:$0x1] %vm132, 0.0
  %135 = vst.msk [vmem:[#allocation6 + $0x20] sm:$0x1] %vm132, 0.0
  %136 = vst.msk [vmem:[#allocation6 + $0x30] sm:$0x1] %vm132, 0.0
  %137 = vst.msk [vmem:[#allocation6 + $0x40] sm:$0x1] %vm132, 0.0
  %138 = vst.msk [vmem:[#allocation6 + $0x50] sm:$0x1] %vm132, 0.0
  %139 = vst.msk [vmem:[#allocation6 + $0x60] sm:$0x1] %vm132, 0.0
  %140 = vst.msk [vmem:[#allocation6 + $0x70] sm:$0x1] %vm132, 0.0
  %141 = vst.msk [vmem:[#allocation6 + $0x80] sm:$0x1] %vm132, 0.0
  %142 = vst.msk [vmem:[#allocation6 + $0x90] sm:$0x1] %vm132, 0.0
  %143 = vst.msk [vmem:[#allocation6 + $0xa0] sm:$0x1] %vm132, 0.0
  %144 = vst.msk [vmem:[#allocation6 + $0xb0] sm:$0x1] %vm132, 0.0
  %145 = vst.msk [vmem:[#allocation6 + $0xc0] sm:$0x1] %vm132, 0.0
  %146 = vst.msk [vmem:[#allocation6 + $0xd0] sm:$0x1] %vm132, 0.0
  %147 = vst.msk [vmem:[#allocation6 + $0xe0] sm:$0x1] %vm132, 0.0
  %148 = vst.msk [vmem:[#allocation6 + $0xf0] sm:$0x1] %vm132, 0.0
  %149 = vst.msk [vmem:[#allocation6 + $0x100] sm:$0x1] %vm132, 0.0
  %150 = vst.msk [vmem:[#allocation6 + $0x110] sm:$0x1] %vm132, 0.0
  %151 = vst.msk [vmem:[#allocation6 + $0x120] sm:$0x1] %vm132, 0.0
  %152 = vst.msk [vmem:[#allocation6 + $0x130] sm:$0x1] %vm132, 0.0
  %153 = vst.msk [vmem:[#allocation6 + $0x9] sm:$0x1] %vm132, 0.0
  %154 = vst.msk [vmem:[#allocation6 + $0x19] sm:$0x1] %vm132, 0.0
  %155 = vst.msk [vmem:[#allocation6 + $0x29] sm:$0x1] %vm132, 0.0
  %156 = vst.msk [vmem:[#allocation6 + $0x39] sm:$0x1] %vm132, 0.0
  %157 = vst.msk [vmem:[#allocation6 + $0x49] sm:$0x1] %vm132, 0.0
  %158 = vst.msk [vmem:[#allocation6 + $0x59] sm:$0x1] %vm132, 0.0
  %159 = vst.msk [vmem:[#allocation6 + $0x69] sm:$0x1] %vm132, 0.0
  %160 = vst.msk [vmem:[#allocation6 + $0x79] sm:$0x1] %vm132, 0.0
  %161 = vst.msk [vmem:[#allocation6 + $0x89] sm:$0x1] %vm132, 0.0
  %162 = vst.msk [vmem:[#allocation6 + $0x99] sm:$0x1] %vm132, 0.0
  %163 = vst.msk [vmem:[#allocation6 + $0xa9] sm:$0x1] %vm132, 0.0
  %164 = vst.msk [vmem:[#allocation6 + $0xb9] sm:$0x1] %vm132, 0.0
  %165 = vst.msk [vmem:[#allocation6 + $0xc9] sm:$0x1] %vm132, 0.0
  %166 = vst.msk [vmem:[#allocation6 + $0xd9] sm:$0x1] %vm132, 0.0
  %167 = vst.msk [vmem:[#allocation6 + $0xe9] sm:$0x1] %vm132, 0.0
  %168 = vst.msk [vmem:[#allocation6 + $0xf9] sm:$0x1] %vm132, 0.0
  %169 = vst.msk [vmem:[#allocation6 + $0x109] sm:$0x1] %vm132, 0.0
  %170 = vst.msk [vmem:[#allocation6 + $0x119] sm:$0x1] %vm132, 0.0
  %171 = vst.msk [vmem:[#allocation6 + $0x129] sm:$0x1] %vm132, 0.0
  %172 = vst.msk [vmem:[#allocation6 + $0x139] sm:$0x1] %vm132, 0.0
  %vm173 = vcmask 162816
  %174 = vst.msk [vmem:[#allocation7] sm:$0xff] %vm173, 0.0
  %vm175 = vcmask 156672
  %176 = vst.msk [vmem:[#allocation7 + $0x8] sm:$0x3] %vm175, 0.0
  %177 = vst.msk [vmem:[#allocation7 + $0xa0] sm:$0xff] %vm173, 0.0
  %178 = vst.msk [vmem:[#allocation7 + $0xa8] sm:$0x3] %vm175, 0.0
  %s179 = scalar_lea.vmem [#allocation7], 144
  %180 = vst.msk [vmem:[%s179] sm:$0xff] %vm173, 0.0
  %181 = vst.msk [vmem:[%s179 + $0x8] sm:$0x3] %vm175, 0.0
  %182 = vst.msk [vmem:[%s179 + $0xa0] sm:$0xff] %vm173, 0.0
  %183 = vst.msk [vmem:[%s179 + $0xa8] sm:$0x3] %vm175, 0.0
  %vm184 = vcmask 155648
  %185 = vst.msk [vmem:[#allocation7] sm:$0x1] %vm184, 0.0
  %186 = vst.msk [vmem:[#allocation7 + $0x10] sm:$0x1] %vm184, 0.0
  %187 = vst.msk [vmem:[#allocation7 + $0x20] sm:$0x1] %vm184, 0.0
  %188 = vst.msk [vmem:[#allocation7 + $0x30] sm:$0x1] %vm184, 0.0
  %189 = vst.msk [vmem:[#allocation7 + $0x40] sm:$0x1] %vm184, 0.0
  %190 = vst.msk [vmem:[#allocation7 + $0x50] sm:$0x1] %vm184, 0.0
  %191 = vst.msk [vmem:[#allocation7 + $0x60] sm:$0x1] %vm184, 0.0
  %192 = vst.msk [vmem:[#allocation7 + $0x70] sm:$0x1] %vm184, 0.0
  %193 = vst.msk [vmem:[#allocation7 + $0x80] sm:$0x1] %vm184, 0.0
  %194 = vst.msk [vmem:[#allocation7 + $0x90] sm:$0x1] %vm184, 0.0
  %195 = vst.msk [vmem:[#allocation7 + $0xa0] sm:$0x1] %vm184, 0.0
  %196 = vst.msk [vmem:[#allocation7 + $0xb0] sm:$0x1] %vm184, 0.0
  %197 = vst.msk [vmem:[#allocation7 + $0xc0] sm:$0x1] %vm184, 0.0
  %198 = vst.msk [vmem:[#allocation7 + $0xd0] sm:$0x1] %vm184, 0.0
  %199 = vst.msk [vmem:[#allocation7 + $0xe0] sm:$0x1] %vm184, 0.0
  %200 = vst.msk [vmem:[#allocation7 + $0xf0] sm:$0x1] %vm184, 0.0
  %201 = vst.msk [vmem:[#allocation7 + $0x100] sm:$0x1] %vm184, 0.0
  %202 = vst.msk [vmem:[#allocation7 + $0x110] sm:$0x1] %vm184, 0.0
  %203 = vst.msk [vmem:[#allocation7 + $0x120] sm:$0x1] %vm184, 0.0
  %204 = vst.msk [vmem:[#allocation7 + $0x130] sm:$0x1] %vm184, 0.0
  %205 = vst.msk [vmem:[#allocation7 + $0x9] sm:$0x1] %vm184, 0.0
  %206 = vst.msk [vmem:[#allocation7 + $0x19] sm:$0x1] %vm184, 0.0
  %207 = vst.msk [vmem:[#allocation7 + $0x29] sm:$0x1] %vm184, 0.0
  %208 = vst.msk [vmem:[#allocation7 + $0x39] sm:$0x1] %vm184, 0.0
  %209 = vst.msk [vmem:[#allocation7 + $0x49] sm:$0x1] %vm184, 0.0
  %210 = vst.msk [vmem:[#allocation7 + $0x59] sm:$0x1] %vm184, 0.0
  %211 = vst.msk [vmem:[#allocation7 + $0x69] sm:$0x1] %vm184, 0.0
  %212 = vst.msk [vmem:[#allocation7 + $0x79] sm:$0x1] %vm184, 0.0
  %213 = vst.msk [vmem:[#allocation7 + $0x89] sm:$0x1] %vm184, 0.0
  %214 = vst.msk [vmem:[#allocation7 + $0x99] sm:$0x1] %vm184, 0.0
  %215 = vst.msk [vmem:[#allocation7 + $0xa9] sm:$0x1] %vm184, 0.0
  %216 = vst.msk [vmem:[#allocation7 + $0xb9] sm:$0x1] %vm184, 0.0
  %217 = vst.msk [vmem:[#allocation7 + $0xc9] sm:$0x1] %vm184, 0.0
  %218 = vst.msk [vmem:[#allocation7 + $0xd9] sm:$0x1] %vm184, 0.0
  %219 = vst.msk [vmem:[#allocation7 + $0xe9] sm:$0x1] %vm184, 0.0
  %220 = vst.msk [vmem:[#allocation7 + $0xf9] sm:$0x1] %vm184, 0.0
  %221 = vst.msk [vmem:[#allocation7 + $0x109] sm:$0x1] %vm184, 0.0
  %222 = vst.msk [vmem:[#allocation7 + $0x119] sm:$0x1] %vm184, 0.0
  %223 = vst.msk [vmem:[#allocation7 + $0x129] sm:$0x1] %vm184, 0.0
  %224 = vst.msk [vmem:[#allocation7 + $0x139] sm:$0x1] %vm184, 0.0
  %v225 = vld [vmem:[%s0] sm:$0xff]
  %v226 = vld [vmem:[%s0 + $0x8] sm:$0xff]
  %v227 = vld [vmem:[%s0 + $0x10] sm:$0xff]
  %v228 = vld [vmem:[%s0 + $0x18] sm:$0xff]
  %v229 = vld [vmem:[%s0 + $0x20] sm:$0xff]
  %v230 = vld [vmem:[%s0 + $0x28] sm:$0xff]
  %v231 = vld [vmem:[%s0 + $0x30] sm:$0xff]
  %v232 = vld [vmem:[%s0 + $0x38] sm:$0xff]
  %v233 = vld [vmem:[%s0 + $0x40] sm:$0xff]
  %v234 = vld [vmem:[%s0 + $0x48] sm:$0xff]
  %v235 = vld [vmem:[%s0 + $0x50] sm:$0xff]
  %v236 = vld [vmem:[%s0 + $0x58] sm:$0xff]
  %v237 = vld [vmem:[%s0 + $0x60] sm:$0xff]
  %v238 = vld [vmem:[%s0 + $0x68] sm:$0xff]
  %v239 = vld [vmem:[%s0 + $0x70] sm:$0xff]
  %v240 = vld [vmem:[%s0 + $0x78] sm:$0xff]
  %v241 = vld [vmem:[%s0 + $0x80] sm:$0xff]
  %v242 = vld [vmem:[%s0 + $0x88] sm:$0xff]
  %v243 = vld [vmem:[%s0 + $0x90] sm:$0xff]
  %v244 = vld [vmem:[%s0 + $0x98] sm:$0xff]
  %v245 = vld [vmem:[%s0 + $0xa0] sm:$0xff]
  %v246 = vld [vmem:[%s0 + $0xa8] sm:$0xff]
  %v247 = vld [vmem:[%s0 + $0xb0] sm:$0xff]
  %v248 = vld [vmem:[%s0 + $0xb8] sm:$0xff]
  %v249 = vld [vmem:[%s0 + $0xc0] sm:$0xff]
  %v250 = vld [vmem:[%s0 + $0xc8] sm:$0xff]
  %v251 = vld [vmem:[%s0 + $0xd0] sm:$0xff]
  %v252 = vld [vmem:[%s0 + $0xd8] sm:$0xff]
  %v253 = vld [vmem:[%s0 + $0xe0] sm:$0xff]
  %v254 = vld [vmem:[%s0 + $0xe8] sm:$0xff]
  %v255 = vld [vmem:[%s0 + $0xf0] sm:$0xff]
  %v256 = vld [vmem:[%s0 + $0xf8] sm:$0xff]
  %v257 = vld [vmem:[%s0 + $0x100] sm:$0xff]
  %v258 = vld [vmem:[%s0 + $0x108] sm:$0xff]
  %v259 = vld [vmem:[%s0 + $0x110] sm:$0xff]
  %v260 = vld [vmem:[%s0 + $0x118] sm:$0xff]
  %v261 = vld [vmem:[%s0 + $0x120] sm:$0xff]
  %v262 = vld [vmem:[%s0 + $0x128] sm:$0xff]
  %v263 = vld [vmem:[%s0 + $0x130] sm:$0xff]
  %v264 = vld [vmem:[%s0 + $0x138] sm:$0xff]
  %v265 = vld [vmem:[%s0 + $0x140] sm:$0xff]
  %v266 = vld [vmem:[%s0 + $0x148] sm:$0xff]
  %v267 = vld [vmem:[%s0 + $0x150] sm:$0xff]
  %v268 = vld [vmem:[%s0 + $0x158] sm:$0xff]
  %v269 = vld [vmem:[%s0 + $0x160] sm:$0xff]
  %v270 = vld [vmem:[%s0 + $0x168] sm:$0xff]
  %v271 = vld [vmem:[%s0 + $0x170] sm:$0xff]
  %v272 = vld [vmem:[%s0 + $0x178] sm:$0xff]
  %v273 = vld [vmem:[%s0 + $0x180] sm:$0xff]
  %v274 = vld [vmem:[%s0 + $0x188] sm:$0xff]
  %v275 = vld [vmem:[%s0 + $0x190] sm:$0xff]
  %v276 = vld [vmem:[%s0 + $0x198] sm:$0xff]
  %v277 = vld [vmem:[%s0 + $0x1a0] sm:$0xff]
  %v278 = vld [vmem:[%s0 + $0x1a8] sm:$0xff]
  %v279 = vld [vmem:[%s0 + $0x1b0] sm:$0xff]
  %v280 = vld [vmem:[%s0 + $0x1b8] sm:$0xff]
  %v281 = vld [vmem:[%s0 + $0x1c0] sm:$0xff]
  %v282 = vld [vmem:[%s0 + $0x1c8] sm:$0xff]
  %v283 = vld [vmem:[%s0 + $0x1d0] sm:$0xff]
  %v284 = vld [vmem:[%s0 + $0x1d8] sm:$0xff]
  %v285 = vld [vmem:[%s0 + $0x1e0] sm:$0xff]
  %v286 = vld [vmem:[%s0 + $0x1e8] sm:$0xff]
  %v287 = vld [vmem:[%s0 + $0x1f0] sm:$0xff]
  %v288 = vld [vmem:[%s0 + $0x1f8] sm:$0xff]
  %s289 = scalar_lea.vmem [#allocation5], 24
  %290 = vst.msk [vmem:[%s289 + $0x1] sm:$0xff] %vm33, %v225
  %291 = vst.msk [vmem:[%s289 + $0x9] sm:$0xff] %vm33, %v226
  %292 = vst.msk [vmem:[%s289 + $0x19] sm:$0xff] %vm33, %v227
  %293 = vst.msk [vmem:[%s289 + $0x21] sm:$0xff] %vm33, %v228
  %294 = vst.msk [vmem:[%s289 + $0x31] sm:$0xff] %vm33, %v229
  %295 = vst.msk [vmem:[%s289 + $0x39] sm:$0xff] %vm33, %v230
  %296 = vst.msk [vmem:[%s289 + $0x49] sm:$0xff] %vm33, %v231
  %297 = vst.msk [vmem:[%s289 + $0x51] sm:$0xff] %vm33, %v232
  %298 = vst.msk [vmem:[%s289 + $0x61] sm:$0xff] %vm33, %v233
  %299 = vst.msk [vmem:[%s289 + $0x69] sm:$0xff] %vm33, %v234
  %300 = vst.msk [vmem:[%s289 + $0x79] sm:$0xff] %vm33, %v235
  %301 = vst.msk [vmem:[%s289 + $0x81] sm:$0xff] %vm33, %v236
  %302 = vst.msk [vmem:[%s289 + $0x91] sm:$0xff] %vm33, %v237
  %303 = vst.msk [vmem:[%s289 + $0x99] sm:$0xff] %vm33, %v238
  %304 = vst.msk [vmem:[%s289 + $0xa9] sm:$0xff] %vm33, %v239
  %305 = vst.msk [vmem:[%s289 + $0xb1] sm:$0xff] %vm33, %v240
  %306 = vst.msk [vmem:[%s289 + $0xc1] sm:$0xff] %vm33, %v241
  %307 = vst.msk [vmem:[%s289 + $0xc9] sm:$0xff] %vm33, %v242
  %308 = vst.msk [vmem:[%s289 + $0xd9] sm:$0xff] %vm33, %v243
  %309 = vst.msk [vmem:[%s289 + $0xe1] sm:$0xff] %vm33, %v244
  %310 = vst.msk [vmem:[%s289 + $0xf1] sm:$0xff] %vm33, %v245
  %311 = vst.msk [vmem:[%s289 + $0xf9] sm:$0xff] %vm33, %v246
  %312 = vst.msk [vmem:[%s289 + $0x109] sm:$0xff] %vm33, %v247
  %313 = vst.msk [vmem:[%s289 + $0x111] sm:$0xff] %vm33, %v248
  %314 = vst.msk [vmem:[%s289 + $0x121] sm:$0xff] %vm33, %v249
  %315 = vst.msk [vmem:[%s289 + $0x129] sm:$0xff] %vm33, %v250
  %316 = vst.msk [vmem:[%s289 + $0x139] sm:$0xff] %vm33, %v251
  %317 = vst.msk [vmem:[%s289 + $0x141] sm:$0xff] %vm33, %v252
  %318 = vst.msk [vmem:[%s289 + $0x151] sm:$0xff] %vm33, %v253
  %319 = vst.msk [vmem:[%s289 + $0x159] sm:$0xff] %vm33, %v254
  %320 = vst.msk [vmem:[%s289 + $0x169] sm:$0xff] %vm33, %v255
  %321 = vst.msk [vmem:[%s289 + $0x171] sm:$0xff] %vm33, %v256
  %322 = vst.msk [vmem:[%s289 + $0x1b1] sm:$0xff] %vm33, %v257
  %323 = vst.msk [vmem:[%s289 + $0x1b9] sm:$0xff] %vm33, %v258
  %324 = vst.msk [vmem:[%s289 + $0x1c9] sm:$0xff] %vm33, %v259
  %325 = vst.msk [vmem:[%s289 + $0x1d1] sm:$0xff] %vm33, %v260
  %326 = vst.msk [vmem:[%s289 + $0x1e1] sm:$0xff] %vm33, %v261
  %327 = vst.msk [vmem:[%s289 + $0x1e9] sm:$0xff] %vm33, %v262
  %328 = vst.msk [vmem:[%s289 + $0x1f9] sm:$0xff] %vm33, %v263
  %329 = vst.msk [vmem:[%s289 + $0x201] sm:$0xff] %vm33, %v264
  %330 = vst.msk [vmem:[%s289 + $0x211] sm:$0xff] %vm33, %v265
  %331 = vst.msk [vmem:[%s289 + $0x219] sm:$0xff] %vm33, %v266
  %332 = vst.msk [vmem:[%s289 + $0x229] sm:$0xff] %vm33, %v267
  %333 = vst.msk [vmem:[%s289 + $0x231] sm:$0xff] %vm33, %v268
  %334 = vst.msk [vmem:[%s289 + $0x241] sm:$0xff] %vm33, %v269
  %335 = vst.msk [vmem:[%s289 + $0x249] sm:$0xff] %vm33, %v270
  %336 = vst.msk [vmem:[%s289 + $0x259] sm:$0xff] %vm33, %v271
  %337 = vst.msk [vmem:[%s289 + $0x261] sm:$0xff] %vm33, %v272
  %338 = vst.msk [vmem:[%s289 + $0x271] sm:$0xff] %vm33, %v273
  %339 = vst.msk [vmem:[%s289 + $0x279] sm:$0xff] %vm33, %v274
  %340 = vst.msk [vmem:[%s289 + $0x289] sm:$0xff] %vm33, %v275
  %341 = vst.msk [vmem:[%s289 + $0x291] sm:$0xff] %vm33, %v276
  %342 = vst.msk [vmem:[%s289 + $0x2a1] sm:$0xff] %vm33, %v277
  %343 = vst.msk [vmem:[%s289 + $0x2a9] sm:$0xff] %vm33, %v278
  %344 = vst.msk [vmem:[%s289 + $0x2b9] sm:$0xff] %vm33, %v279
  %345 = vst.msk [vmem:[%s289 + $0x2c1] sm:$0xff] %vm33, %v280
  %346 = vst.msk [vmem:[%s289 + $0x2d1] sm:$0xff] %vm33, %v281
  %347 = vst.msk [vmem:[%s289 + $0x2d9] sm:$0xff] %vm33, %v282
  %348 = vst.msk [vmem:[%s289 + $0x2e9] sm:$0xff] %vm33, %v283
  %349 = vst.msk [vmem:[%s289 + $0x2f1] sm:$0xff] %vm33, %v284
  %350 = vst.msk [vmem:[%s289 + $0x301] sm:$0xff] %vm33, %v285
  %351 = vst.msk [vmem:[%s289 + $0x309] sm:$0xff] %vm33, %v286
  %352 = vst.msk [vmem:[%s289 + $0x319] sm:$0xff] %vm33, %v287
  %353 = vst.msk [vmem:[%s289 + $0x321] sm:$0xff] %vm33, %v288
  %v354 = vld [vmem:[#allocation5] sm:$0xff]
  %v355 = vld [vmem:[#allocation5 + $0x8] sm:$0xff]
  %v356 = vld [vmem:[#allocation5 + $0x18] sm:$0xff]
  %v357 = vld [vmem:[#allocation5 + $0x20] sm:$0xff]
  %v358 = vld [vmem:[#allocation5 + $0x30] sm:$0xff]
  %v359 = vld [vmem:[#allocation5 + $0x38] sm:$0xff]
  %v360 = vld [vmem:[#allocation5 + $0x48] sm:$0xff]
  %v361 = vld [vmem:[#allocation5 + $0x50] sm:$0xff]
  %v362 = vld [vmem:[#allocation5 + $0x60] sm:$0xff]
  %v363 = vld [vmem:[#allocation5 + $0x68] sm:$0xff]
  %v364 = vld [vmem:[#allocation5 + $0x78] sm:$0xff]
  %v365 = vld [vmem:[#allocation5 + $0x80] sm:$0xff]
  %v366 = vld [vmem:[#allocation5 + $0x90] sm:$0xff]
  %v367 = vld [vmem:[#allocation5 + $0x98] sm:$0xff]
  %v368 = vld [vmem:[#allocation5 + $0xa8] sm:$0xff]
  %v369 = vld [vmem:[#allocation5 + $0xb0] sm:$0xff]
  %v370 = vld [vmem:[#allocation5 + $0xc0] sm:$0xff]
  %v371 = vld [vmem:[#allocation5 + $0xc8] sm:$0xff]
  %v372 = vld [vmem:[#allocation5 + $0xd8] sm:$0xff]
  %v373 = vld [vmem:[#allocation5 + $0xe0] sm:$0xff]
  %v374 = vld [vmem:[#allocation5 + $0xf0] sm:$0xff]
  %v375 = vld [vmem:[#allocation5 + $0xf8] sm:$0xff]
  %v376 = vld [vmem:[#allocation5 + $0x108] sm:$0xff]
  %v377 = vld [vmem:[#allocation5 + $0x110] sm:$0xff]
  %v378 = vld [vmem:[#allocation5 + $0x120] sm:$0xff]
  %v379 = vld [vmem:[#allocation5 + $0x128] sm:$0xff]
  %v380 = vld [vmem:[#allocation5 + $0x138] sm:$0xff]
  %v381 = vld [vmem:[#allocation5 + $0x140] sm:$0xff]
  %v382 = vld [vmem:[#allocation5 + $0x150] sm:$0xff]
  %v383 = vld [vmem:[#allocation5 + $0x158] sm:$0xff]
  %v384 = vld [vmem:[#allocation5 + $0x168] sm:$0xff]
  %v385 = vld [vmem:[#allocation5 + $0x170] sm:$0xff]
  %v386 = vld [vmem:[#allocation5 + $0x1b0] sm:$0xff]
  %v387 = vld [vmem:[#allocation5 + $0x1b8] sm:$0xff]
  %v388 = vld [vmem:[#allocation5 + $0x1c8] sm:$0xff]
  %v389 = vld [vmem:[#allocation5 + $0x1d0] sm:$0xff]
  %v390 = vld [vmem:[#allocation5 + $0x1e0] sm:$0xff]
  %v391 = vld [vmem:[#allocation5 + $0x1e8] sm:$0xff]
  %v392 = vld [vmem:[#allocation5 + $0x1f8] sm:$0xff]
  %v393 = vld [vmem:[#allocation5 + $0x200] sm:$0xff]
  %v394 = vld [vmem:[#allocation5 + $0x210] sm:$0xff]
  %v395 = vld [vmem:[#allocation5 + $0x218] sm:$0xff]
  %v396 = vld [vmem:[#allocation5 + $0x228] sm:$0xff]
  %v397 = vld [vmem:[#allocation5 + $0x230] sm:$0xff]
  %v398 = vld [vmem:[#allocation5 + $0x240] sm:$0xff]
  %v399 = vld [vmem:[#allocation5 + $0x248] sm:$0xff]
  %v400 = vld [vmem:[#allocation5 + $0x258] sm:$0xff]
  %v401 = vld [vmem:[#allocation5 + $0x260] sm:$0xff]
  %v402 = vld [vmem:[#allocation5 + $0x270] sm:$0xff]
  %v403 = vld [vmem:[#allocation5 + $0x278] sm:$0xff]
  %v404 = vld [vmem:[#allocation5 + $0x288] sm:$0xff]
  %v405 = vld [vmem:[#allocation5 + $0x290] sm:$0xff]
  %v406 = vld [vmem:[#allocation5 + $0x2a0] sm:$0xff]
  %v407 = vld [vmem:[#allocation5 + $0x2a8] sm:$0xff]
  %v408 = vld [vmem:[#allocation5 + $0x2b8] sm:$0xff]
  %v409 = vld [vmem:[#allocation5 + $0x2c0] sm:$0xff]
  %v410 = vld [vmem:[#allocation5 + $0x2d0] sm:$0xff]
  %v411 = vld [vmem:[#allocation5 + $0x2d8] sm:$0xff]
  %v412 = vld [vmem:[#allocation5 + $0x2e8] sm:$0xff]
  %v413 = vld [vmem:[#allocation5 + $0x2f0] sm:$0xff]
  %v414 = vld [vmem:[#allocation5 + $0x300] sm:$0xff]
  %v415 = vld [vmem:[#allocation5 + $0x308] sm:$0xff]
  %v416 = vld [vmem:[#allocation5 + $0x318] sm:$0xff]
  %v417 = vld [vmem:[#allocation5 + $0x320] sm:$0xff]
  %v418 = vpack.c.bf16 %v354, %v354
  %v419 = vpack.c.bf16 %v355, %v355
  %v420 = vpack.c.bf16 %v356, %v356
  %v421 = vpack.c.bf16 %v357, %v357
  %v422 = vpack.c.bf16 %v358, %v358
  %v423 = vpack.c.bf16 %v359, %v359
  %v424 = vpack.c.bf16 %v360, %v360
  %v425 = vpack.c.bf16 %v361, %v361
  %v426 = vpack.c.bf16 %v362, %v362
  %v427 = vpack.c.bf16 %v363, %v363
  %v428 = vpack.c.bf16 %v364, %v364
  %v429 = vpack.c.bf16 %v365, %v365
  %v430 = vpack.c.bf16 %v366, %v366
  %v431 = vpack.c.bf16 %v367, %v367
  %v432 = vpack.c.bf16 %v368, %v368
  %v433 = vpack.c.bf16 %v369, %v369
  %v434 = vpack.c.bf16 %v370, %v370
  %v435 = vpack.c.bf16 %v371, %v371
  %v436 = vpack.c.bf16 %v372, %v372
  %v437 = vpack.c.bf16 %v373, %v373
  %v438 = vpack.c.bf16 %v374, %v374
  %v439 = vpack.c.bf16 %v375, %v375
  %v440 = vpack.c.bf16 %v376, %v376
  %v441 = vpack.c.bf16 %v377, %v377
  %v442 = vpack.c.bf16 %v378, %v378
  %v443 = vpack.c.bf16 %v379, %v379
  %v444 = vpack.c.bf16 %v380, %v380
  %v445 = vpack.c.bf16 %v381, %v381
  %v446 = vpack.c.bf16 %v382, %v382
  %v447 = vpack.c.bf16 %v383, %v383
  %v448 = vpack.c.bf16 %v384, %v384
  %v449 = vpack.c.bf16 %v385, %v385
  %v450 = vpack.c.bf16 %v386, %v386
  %v451 = vpack.c.bf16 %v387, %v387
  %v452 = vpack.c.bf16 %v388, %v388
  %v453 = vpack.c.bf16 %v389, %v389
  %v454 = vpack.c.bf16 %v390, %v390
  %v455 = vpack.c.bf16 %v391, %v391
  %v456 = vpack.c.bf16 %v392, %v392
  %v457 = vpack.c.bf16 %v393, %v393
  %v458 = vpack.c.bf16 %v394, %v394
  %v459 = vpack.c.bf16 %v395, %v395
  %v460 = vpack.c.bf16 %v396, %v396
  %v461 = vpack.c.bf16 %v397, %v397
  %v462 = vpack.c.bf16 %v398, %v398
  %v463 = vpack.c.bf16 %v399, %v399
  %v464 = vpack.c.bf16 %v400, %v400
  %v465 = vpack.c.bf16 %v401, %v401
  %v466 = vpack.c.bf16 %v402, %v402
  %v467 = vpack.c.bf16 %v403, %v403
  %v468 = vpack.c.bf16 %v404, %v404
  %v469 = vpack.c.bf16 %v405, %v405
  %v470 = vpack.c.bf16 %v406, %v406
  %v471 = vpack.c.bf16 %v407, %v407
  %v472 = vpack.c.bf16 %v408, %v408
  %v473 = vpack.c.bf16 %v409, %v409
  %v474 = vpack.c.bf16 %v410, %v410
  %v475 = vpack.c.bf16 %v411, %v411
  %v476 = vpack.c.bf16 %v412, %v412
  %v477 = vpack.c.bf16 %v413, %v413
  %v478 = vpack.c.bf16 %v414, %v414
  %v479 = vpack.c.bf16 %v415, %v415
  %v480 = vpack.c.bf16 %v416, %v416
  %v481 = vpack.c.bf16 %v417, %v417
  %vm482 = vcmask 19456
  %483 = vst.msk [vmem:[#allocation2] sm:$0xf] %vm482, %v418
  %484 = vst.msk [vmem:[#allocation2 + $0x4] sm:$0xf] %vm482, %v419
  %485 = vst.msk [vmem:[#allocation2 + $0x8] sm:$0xf] %vm482, %v420
  %486 = vst.msk [vmem:[#allocation2 + $0xc] sm:$0xf] %vm482, %v421
  %487 = vst.msk [vmem:[#allocation2 + $0x10] sm:$0xf] %vm482, %v422
  %488 = vst.msk [vmem:[#allocation2 + $0x14] sm:$0xf] %vm482, %v423
  %489 = vst.msk [vmem:[#allocation2 + $0x18] sm:$0xf] %vm482, %v424
  %490 = vst.msk [vmem:[#allocation2 + $0x1c] sm:$0xf] %vm482, %v425
  %491 = vst.msk [vmem:[#allocation2 + $0x20] sm:$0xf] %vm482, %v426
  %492 = vst.msk [vmem:[#allocation2 + $0x24] sm:$0xf] %vm482, %v427
  %493 = vst.msk [vmem:[#allocation2 + $0x28] sm:$0xf] %vm482, %v428
  %494 = vst.msk [vmem:[#allocation2 + $0x2c] sm:$0xf] %vm482, %v429
  %495 = vst.msk [vmem:[#allocation2 + $0x30] sm:$0xf] %vm482, %v430
  %496 = vst.msk [vmem:[#allocation2 + $0x34] sm:$0xf] %vm482, %v431
  %497 = vst.msk [vmem:[#allocation2 + $0x38] sm:$0xf] %vm482, %v432
  %498 = vst.msk [vmem:[#allocation2 + $0x3c] sm:$0xf] %vm482, %v433
  %499 = vst.msk [vmem:[#allocation2 + $0x40] sm:$0xf] %vm482, %v434
  %500 = vst.msk [vmem:[#allocation2 + $0x44] sm:$0xf] %vm482, %v435
  %501 = vst.msk [vmem:[#allocation2 + $0x48] sm:$0xf] %vm482, %v436
  %502 = vst.msk [vmem:[#allocation2 + $0x4c] sm:$0xf] %vm482, %v437
  %503 = vst.msk [vmem:[#allocation2 + $0x50] sm:$0xf] %vm482, %v438
  %504 = vst.msk [vmem:[#allocation2 + $0x54] sm:$0xf] %vm482, %v439
  %505 = vst.msk [vmem:[#allocation2 + $0x58] sm:$0xf] %vm482, %v440
  %506 = vst.msk [vmem:[#allocation2 + $0x5c] sm:$0xf] %vm482, %v441
  %507 = vst.msk [vmem:[#allocation2 + $0x60] sm:$0xf] %vm482, %v442
  %508 = vst.msk [vmem:[#allocation2 + $0x64] sm:$0xf] %vm482, %v443
  %509 = vst.msk [vmem:[#allocation2 + $0x68] sm:$0xf] %vm482, %v444
  %510 = vst.msk [vmem:[#allocation2 + $0x6c] sm:$0xf] %vm482, %v445
  %511 = vst.msk [vmem:[#allocation2 + $0x70] sm:$0xf] %vm482, %v446
  %512 = vst.msk [vmem:[#allocation2 + $0x74] sm:$0xf] %vm482, %v447
  %513 = vst.msk [vmem:[#allocation2 + $0x78] sm:$0xf] %vm482, %v448
  %514 = vst.msk [vmem:[#allocation2 + $0x7c] sm:$0xf] %vm482, %v449
  %515 = vst.msk [vmem:[#allocation2 + $0x80] sm:$0xf] %vm482, %v450
  %516 = vst.msk [vmem:[#allocation2 + $0x84] sm:$0xf] %vm482, %v451
  %517 = vst.msk [vmem:[#allocation2 + $0x88] sm:$0xf] %vm482, %v452
  %518 = vst.msk [vmem:[#allocation2 + $0x8c] sm:$0xf] %vm482, %v453
  %519 = vst.msk [vmem:[#allocation2 + $0x90] sm:$0xf] %vm482, %v454
  %520 = vst.msk [vmem:[#allocation2 + $0x94] sm:$0xf] %vm482, %v455
  %521 = vst.msk [vmem:[#allocation2 + $0x98] sm:$0xf] %vm482, %v456
  %522 = vst.msk [vmem:[#allocation2 + $0x9c] sm:$0xf] %vm482, %v457
  %523 = vst.msk [vmem:[#allocation2 + $0xa0] sm:$0xf] %vm482, %v458
  %524 = vst.msk [vmem:[#allocation2 + $0xa4] sm:$0xf] %vm482, %v459
  %525 = vst.msk [vmem:[#allocation2 + $0xa8] sm:$0xf] %vm482, %v460
  %526 = vst.msk [vmem:[#allocation2 + $0xac] sm:$0xf] %vm482, %v461
  %527 = vst.msk [vmem:[#allocation2 + $0xb0] sm:$0xf] %vm482, %v462
  %528 = vst.msk [vmem:[#allocation2 + $0xb4] sm:$0xf] %vm482, %v463
  %529 = vst.msk [vmem:[#allocation2 + $0xb8] sm:$0xf] %vm482, %v464
  %530 = vst.msk [vmem:[#allocation2 + $0xbc] sm:$0xf] %vm482, %v465
  %531 = vst.msk [vmem:[#allocation2 + $0xc0] sm:$0xf] %vm482, %v466
  %532 = vst.msk [vmem:[#allocation2 + $0xc4] sm:$0xf] %vm482, %v467
  %533 = vst.msk [vmem:[#allocation2 + $0xc8] sm:$0xf] %vm482, %v468
  %534 = vst.msk [vmem:[#allocation2 + $0xcc] sm:$0xf] %vm482, %v469
  %535 = vst.msk [vmem:[#allocation2 + $0xd0] sm:$0xf] %vm482, %v470
  %536 = vst.msk [vmem:[#allocation2 + $0xd4] sm:$0xf] %vm482, %v471
  %537 = vst.msk [vmem:[#allocation2 + $0xd8] sm:$0xf] %vm482, %v472
  %538 = vst.msk [vmem:[#allocation2 + $0xdc] sm:$0xf] %vm482, %v473
  %539 = vst.msk [vmem:[#allocation2 + $0xe0] sm:$0xf] %vm482, %v474
  %540 = vst.msk [vmem:[#allocation2 + $0xe4] sm:$0xf] %vm482, %v475
  %541 = vst.msk [vmem:[#allocation2 + $0xe8] sm:$0xf] %vm482, %v476
  %542 = vst.msk [vmem:[#allocation2 + $0xec] sm:$0xf] %vm482, %v477
  %543 = vst.msk [vmem:[#allocation2 + $0xf0] sm:$0xf] %vm482, %v478
  %544 = vst.msk [vmem:[#allocation2 + $0xf4] sm:$0xf] %vm482, %v479
  %545 = vst.msk [vmem:[#allocation2 + $0xf8] sm:$0xf] %vm482, %v480
  %546 = vst.msk [vmem:[#allocation2 + $0xfc] sm:$0xf] %vm482, %v481
  %v547 = vld [vmem:[#allocation5 + $0x1] sm:$0xff]
  %v548 = vld [vmem:[#allocation5 + $0x9] sm:$0xff]
  %v549 = vld [vmem:[#allocation5 + $0x19] sm:$0xff]
  %v550 = vld [vmem:[#allocation5 + $0x21] sm:$0xff]
  %v551 = vld [vmem:[#allocation5 + $0x31] sm:$0xff]
  %v552 = vld [vmem:[#allocation5 + $0x39] sm:$0xff]
  %v553 = vld [vmem:[#allocation5 + $0x49] sm:$0xff]
  %v554 = vld [vmem:[#allocation5 + $0x51] sm:$0xff]
  %v555 = vld [vmem:[#allocation5 + $0x61] sm:$0xff]
  %v556 = vld [vmem:[#allocation5 + $0x69] sm:$0xff]
  %v557 = vld [vmem:[#allocation5 + $0x79] sm:$0xff]
  %v558 = vld [vmem:[#allocation5 + $0x81] sm:$0xff]
  %v559 = vld [vmem:[#allocation5 + $0x91] sm:$0xff]
  %v560 = vld [vmem:[#allocation5 + $0x99] sm:$0xff]
  %v561 = vld [vmem:[#allocation5 + $0xa9] sm:$0xff]
  %v562 = vld [vmem:[#allocation5 + $0xb1] sm:$0xff]
  %v563 = vld [vmem:[#allocation5 + $0xc1] sm:$0xff]
  %v564 = vld [vmem:[#allocation5 + $0xc9] sm:$0xff]
  %v565 = vld [vmem:[#allocation5 + $0xd9] sm:$0xff]
  %v566 = vld [vmem:[#allocation5 + $0xe1] sm:$0xff]
  %v567 = vld [vmem:[#allocation5 + $0xf1] sm:$0xff]
  %v568 = vld [vmem:[#allocation5 + $0xf9] sm:$0xff]
  %v569 = vld [vmem:[#allocation5 + $0x109] sm:$0xff]
  %v570 = vld [vmem:[#allocation5 + $0x111] sm:$0xff]
  %v571 = vld [vmem:[#allocation5 + $0x121] sm:$0xff]
  %v572 = vld [vmem:[#allocation5 + $0x129] sm:$0xff]
  %v573 = vld [vmem:[#allocation5 + $0x139] sm:$0xff]
  %v574 = vld [vmem:[#allocation5 + $0x141] sm:$0xff]
  %v575 = vld [vmem:[#allocation5 + $0x151] sm:$0xff]
  %v576 = vld [vmem:[#allocation5 + $0x159] sm:$0xff]
  %v577 = vld [vmem:[#allocation5 + $0x169] sm:$0xff]
  %v578 = vld [vmem:[#allocation5 + $0x171] sm:$0xff]
  %v579 = vld [vmem:[#allocation5 + $0x1b1] sm:$0xff]
  %v580 = vld [vmem:[#allocation5 + $0x1b9] sm:$0xff]
  %v581 = vld [vmem:[#allocation5 + $0x1c9] sm:$0xff]
  %v582 = vld [vmem:[#allocation5 + $0x1d1] sm:$0xff]
  %v583 = vld [vmem:[#allocation5 + $0x1e1] sm:$0xff]
  %v584 = vld [vmem:[#allocation5 + $0x1e9] sm:$0xff]
  %v585 = vld [vmem:[#allocation5 + $0x1f9] sm:$0xff]
  %v586 = vld [vmem:[#allocation5 + $0x201] sm:$0xff]
  %v587 = vld [vmem:[#allocation5 + $0x211] sm:$0xff]
  %v588 = vld [vmem:[#allocation5 + $0x219] sm:$0xff]
  %v589 = vld [vmem:[#allocation5 + $0x229] sm:$0xff]
  %v590 = vld [vmem:[#allocation5 + $0x231] sm:$0xff]
  %v591 = vld [vmem:[#allocation5 + $0x241] sm:$0xff]
  %v592 = vld [vmem:[#allocation5 + $0x249] sm:$0xff]
  %v593 = vld [vmem:[#allocation5 + $0x259] sm:$0xff]
  %v594 = vld [vmem:[#allocation5 + $0x261] sm:$0xff]
  %v595 = vld [vmem:[#allocation5 + $0x271] sm:$0xff]
  %v596 = vld [vmem:[#allocation5 + $0x279] sm:$0xff]
  %v597 = vld [vmem:[#allocation5 + $0x289] sm:$0xff]
  %v598 = vld [vmem:[#allocation5 + $0x291] sm:$0xff]
  %v599 = vld [vmem:[#allocation5 + $0x2a1] sm:$0xff]
  %v600 = vld [vmem:[#allocation5 + $0x2a9] sm:$0xff]
  %v601 = vld [vmem:[#allocation5 + $0x2b9] sm:$0xff]
  %v602 = vld [vmem:[#allocation5 + $0x2c1] sm:$0xff]
  %v603 = vld [vmem:[#allocation5 + $0x2d1] sm:$0xff]
  %v604 = vld [vmem:[#allocation5 + $0x2d9] sm:$0xff]
  %v605 = vld [vmem:[#allocation5 + $0x2e9] sm:$0xff]
  %v606 = vld [vmem:[#allocation5 + $0x2f1] sm:$0xff]
  %v607 = vld [vmem:[#allocation5 + $0x301] sm:$0xff]
  %v608 = vld [vmem:[#allocation5 + $0x309] sm:$0xff]
  %v609 = vld [vmem:[#allocation5 + $0x319] sm:$0xff]
  %v610 = vld [vmem:[#allocation5 + $0x321] sm:$0xff]
  %v611 = vpack.c.bf16 %v547, %v547
  %v612 = vpack.c.bf16 %v548, %v548
  %v613 = vpack.c.bf16 %v549, %v549
  %v614 = vpack.c.bf16 %v550, %v550
  %v615 = vpack.c.bf16 %v551, %v551
  %v616 = vpack.c.bf16 %v552, %v552
  %v617 = vpack.c.bf16 %v553, %v553
  %v618 = vpack.c.bf16 %v554, %v554
  %v619 = vpack.c.bf16 %v555, %v555
  %v620 = vpack.c.bf16 %v556, %v556
  %v621 = vpack.c.bf16 %v557, %v557
  %v622 = vpack.c.bf16 %v558, %v558
  %v623 = vpack.c.bf16 %v559, %v559
  %v624 = vpack.c.bf16 %v560, %v560
  %v625 = vpack.c.bf16 %v561, %v561
  %v626 = vpack.c.bf16 %v562, %v562
  %v627 = vpack.c.bf16 %v563, %v563
  %v628 = vpack.c.bf16 %v564, %v564
  %v629 = vpack.c.bf16 %v565, %v565
  %v630 = vpack.c.bf16 %v566, %v566
  %v631 = vpack.c.bf16 %v567, %v567
  %v632 = vpack.c.bf16 %v568, %v568
  %v633 = vpack.c.bf16 %v569, %v569
  %v634 = vpack.c.bf16 %v570, %v570
  %v635 = vpack.c.bf16 %v571, %v571
  %v636 = vpack.c.bf16 %v572, %v572
  %v637 = vpack.c.bf16 %v573, %v573
  %v638 = vpack.c.bf16 %v574, %v574
  %v639 = vpack.c.bf16 %v575, %v575
  %v640 = vpack.c.bf16 %v576, %v576
  %v641 = vpack.c.bf16 %v577, %v577
  %v642 = vpack.c.bf16 %v578, %v578
  %v643 = vpack.c.bf16 %v579, %v579
  %v644 = vpack.c.bf16 %v580, %v580
  %v645 = vpack.c.bf16 %v581, %v581
  %v646 = vpack.c.bf16 %v582, %v582
  %v647 = vpack.c.bf16 %v583, %v583
  %v648 = vpack.c.bf16 %v584, %v584
  %v649 = vpack.c.bf16 %v585, %v585
  %v650 = vpack.c.bf16 %v586, %v586
  %v651 = vpack.c.bf16 %v587, %v587
  %v652 = vpack.c.bf16 %v588, %v588
  %v653 = vpack.c.bf16 %v589, %v589
  %v654 = vpack.c.bf16 %v590, %v590
  %v655 = vpack.c.bf16 %v591, %v591
  %v656 = vpack.c.bf16 %v592, %v592
  %v657 = vpack.c.bf16 %v593, %v593
  %v658 = vpack.c.bf16 %v594, %v594
  %v659 = vpack.c.bf16 %v595, %v595
  %v660 = vpack.c.bf16 %v596, %v596
  %v661 = vpack.c.bf16 %v597, %v597
  %v662 = vpack.c.bf16 %v598, %v598
  %v663 = vpack.c.bf16 %v599, %v599
  %v664 = vpack.c.bf16 %v600, %v600
  %v665 = vpack.c.bf16 %v601, %v601
  %v666 = vpack.c.bf16 %v602, %v602
  %v667 = vpack.c.bf16 %v603, %v603
  %v668 = vpack.c.bf16 %v604, %v604
  %v669 = vpack.c.bf16 %v605, %v605
  %v670 = vpack.c.bf16 %v606, %v606
  %v671 = vpack.c.bf16 %v607, %v607
  %v672 = vpack.c.bf16 %v608, %v608
  %v673 = vpack.c.bf16 %v609, %v609
  %v674 = vpack.c.bf16 %v610, %v610
  %739 = vrot.lane.b32.xlu0 %v611, 3
  %v740 = vpop.permute.xlu0 %739
  %741 = vrot.lane.b32.xlu0 %v612, 3
  %v742 = vpop.permute.xlu0 %741
  %743 = vrot.lane.b32.xlu0 %v613, 3
  %v744 = vpop.permute.xlu0 %743
  %745 = vrot.lane.b32.xlu0 %v614, 3
  %v746 = vpop.permute.xlu0 %745
  %747 = vrot.lane.b32.xlu0 %v615, 3
  %v748 = vpop.permute.xlu0 %747
  %749 = vrot.lane.b32.xlu0 %v616, 3
  %v750 = vpop.permute.xlu0 %749
  %751 = vrot.lane.b32.xlu0 %v617, 3
  %v752 = vpop.permute.xlu0 %751
  %753 = vrot.lane.b32.xlu0 %v618, 3
  %v754 = vpop.permute.xlu0 %753
  %755 = vrot.lane.b32.xlu0 %v619, 3
  %v756 = vpop.permute.xlu0 %755
  %757 = vrot.lane.b32.xlu0 %v620, 3
  %v758 = vpop.permute.xlu0 %757
  %759 = vrot.lane.b32.xlu0 %v621, 3
  %v760 = vpop.permute.xlu0 %759
  %761 = vrot.lane.b32.xlu0 %v622, 3
  %v762 = vpop.permute.xlu0 %761
  %763 = vrot.lane.b32.xlu0 %v623, 3
  %v764 = vpop.permute.xlu0 %763
  %765 = vrot.lane.b32.xlu0 %v624, 3
  %v766 = vpop.permute.xlu0 %765
  %767 = vrot.lane.b32.xlu0 %v625, 3
  %v768 = vpop.permute.xlu0 %767
  %769 = vrot.lane.b32.xlu0 %v626, 3
  %v770 = vpop.permute.xlu0 %769
  %771 = vrot.lane.b32.xlu0 %v627, 3
  %v772 = vpop.permute.xlu0 %771
  %773 = vrot.lane.b32.xlu0 %v628, 3
  %v774 = vpop.permute.xlu0 %773
  %775 = vrot.lane.b32.xlu0 %v629, 3
  %v776 = vpop.permute.xlu0 %775
  %777 = vrot.lane.b32.xlu0 %v630, 3
  %v778 = vpop.permute.xlu0 %777
  %779 = vrot.lane.b32.xlu0 %v631, 3
  %v780 = vpop.permute.xlu0 %779
  %781 = vrot.lane.b32.xlu0 %v632, 3
  %v782 = vpop.permute.xlu0 %781
  %783 = vrot.lane.b32.xlu0 %v633, 3
  %v784 = vpop.permute.xlu0 %783
  %785 = vrot.lane.b32.xlu0 %v634, 3
  %v786 = vpop.permute.xlu0 %785
  %787 = vrot.lane.b32.xlu0 %v635, 3
  %v788 = vpop.permute.xlu0 %787
  %789 = vrot.lane.b32.xlu0 %v636, 3
  %v790 = vpop.permute.xlu0 %789
  %791 = vrot.lane.b32.xlu0 %v637, 3
  %v792 = vpop.permute.xlu0 %791
  %793 = vrot.lane.b32.xlu0 %v638, 3
  %v794 = vpop.permute.xlu0 %793
  %795 = vrot.lane.b32.xlu0 %v639, 3
  %v796 = vpop.permute.xlu0 %795
  %797 = vrot.lane.b32.xlu0 %v640, 3
  %v798 = vpop.permute.xlu0 %797
  %799 = vrot.lane.b32.xlu0 %v641, 3
  %v800 = vpop.permute.xlu0 %799
  %801 = vrot.lane.b32.xlu0 %v642, 3
  %v802 = vpop.permute.xlu0 %801
  %803 = vrot.lane.b32.xlu0 %v643, 3
  %v804 = vpop.permute.xlu0 %803
  %805 = vrot.lane.b32.xlu0 %v644, 3
  %v806 = vpop.permute.xlu0 %805
  %807 = vrot.lane.b32.xlu0 %v645, 3
  %v808 = vpop.permute.xlu0 %807
  %809 = vrot.lane.b32.xlu0 %v646, 3
  %v810 = vpop.permute.xlu0 %809
  %811 = vrot.lane.b32.xlu0 %v647, 3
  %v812 = vpop.permute.xlu0 %811
  %813 = vrot.lane.b32.xlu0 %v648, 3
  %v814 = vpop.permute.xlu0 %813
  %815 = vrot.lane.b32.xlu0 %v649, 3
  %v816 = vpop.permute.xlu0 %815
  %817 = vrot.lane.b32.xlu0 %v650, 3
  %v818 = vpop.permute.xlu0 %817
  %819 = vrot.lane.b32.xlu0 %v651, 3
  %v820 = vpop.permute.xlu0 %819
  %821 = vrot.lane.b32.xlu0 %v652, 3
  %v822 = vpop.permute.xlu0 %821
  %823 = vrot.lane.b32.xlu0 %v653, 3
  %v824 = vpop.permute.xlu0 %823
  %825 = vrot.lane.b32.xlu0 %v654, 3
  %v826 = vpop.permute.xlu0 %825
  %827 = vrot.lane.b32.xlu0 %v655, 3
  %v828 = vpop.permute.xlu0 %827
  %829 = vrot.lane.b32.xlu0 %v656, 3
  %v830 = vpop.permute.xlu0 %829
  %831 = vrot.lane.b32.xlu0 %v657, 3
  %v832 = vpop.permute.xlu0 %831
  %833 = vrot.lane.b32.xlu0 %v658, 3
  %v834 = vpop.permute.xlu0 %833
  %835 = vrot.lane.b32.xlu0 %v659, 3
  %v836 = vpop.permute.xlu0 %835
  %837 = vrot.lane.b32.xlu0 %v660, 3
  %v838 = vpop.permute.xlu0 %837
  %839 = vrot.lane.b32.xlu0 %v661, 3
  %v840 = vpop.permute.xlu0 %839
  %841 = vrot.lane.b32.xlu0 %v662, 3
  %v842 = vpop.permute.xlu0 %841
  %843 = vrot.lane.b32.xlu0 %v663, 3
  %v844 = vpop.permute.xlu0 %843
  %845 = vrot.lane.b32.xlu0 %v664, 3
  %v846 = vpop.permute.xlu0 %845
  %847 = vrot.lane.b32.xlu0 %v665, 3
  %v848 = vpop.permute.xlu0 %847
  %849 = vrot.lane.b32.xlu0 %v666, 3
  %v850 = vpop.permute.xlu0 %849
  %851 = vrot.lane.b32.xlu0 %v667, 3
  %v852 = vpop.permute.xlu0 %851
  %853 = vrot.lane.b32.xlu0 %v668, 3
  %v854 = vpop.permute.xlu0 %853
  %855 = vrot.lane.b32.xlu0 %v669, 3
  %v856 = vpop.permute.xlu0 %855
  %857 = vrot.lane.b32.xlu0 %v670, 3
  %v858 = vpop.permute.xlu0 %857
  %859 = vrot.lane.b32.xlu0 %v671, 3
  %v860 = vpop.permute.xlu0 %859
  %861 = vrot.lane.b32.xlu0 %v672, 3
  %v862 = vpop.permute.xlu0 %861
  %863 = vrot.lane.b32.xlu0 %v673, 3
  %v864 = vpop.permute.xlu0 %863
  %865 = vrot.lane.b32.xlu0 %v674, 3
  %v866 = vpop.permute.xlu0 %865
  %vm931 = vcmask 44056
  %932 = vst.msk [vmem:[#allocation2] sm:$0xf] %vm931, %v740
  %933 = vst.msk [vmem:[#allocation2 + $0x4] sm:$0xf] %vm931, %v742
  %934 = vst.msk [vmem:[#allocation2 + $0x8] sm:$0xf] %vm931, %v744
  %935 = vst.msk [vmem:[#allocation2 + $0xc] sm:$0xf] %vm931, %v746
  %936 = vst.msk [vmem:[#allocation2 + $0x10] sm:$0xf] %vm931, %v748
  %937 = vst.msk [vmem:[#allocation2 + $0x14] sm:$0xf] %vm931, %v750
  %938 = vst.msk [vmem:[#allocation2 + $0x18] sm:$0xf] %vm931, %v752
  %939 = vst.msk [vmem:[#allocation2 + $0x1c] sm:$0xf] %vm931, %v754
  %940 = vst.msk [vmem:[#allocation2 + $0x20] sm:$0xf] %vm931, %v756
  %941 = vst.msk [vmem:[#allocation2 + $0x24] sm:$0xf] %vm931, %v758
  %942 = vst.msk [vmem:[#allocation2 + $0x28] sm:$0xf] %vm931, %v760
  %943 = vst.msk [vmem:[#allocation2 + $0x2c] sm:$0xf] %vm931, %v762
  %944 = vst.msk [vmem:[#allocation2 + $0x30] sm:$0xf] %vm931, %v764
  %945 = vst.msk [vmem:[#allocation2 + $0x34] sm:$0xf] %vm931, %v766
  %946 = vst.msk [vmem:[#allocation2 + $0x38] sm:$0xf] %vm931, %v768
  %947 = vst.msk [vmem:[#allocation2 + $0x3c] sm:$0xf] %vm931, %v770
  %948 = vst.msk [vmem:[#allocation2 + $0x40] sm:$0xf] %vm931, %v772
  %949 = vst.msk [vmem:[#allocation2 + $0x44] sm:$0xf] %vm931, %v774
  %950 = vst.msk [vmem:[#allocation2 + $0x48] sm:$0xf] %vm931, %v776
  %951 = vst.msk [vmem:[#allocation2 + $0x4c] sm:$0xf] %vm931, %v778
  %952 = vst.msk [vmem:[#allocation2 + $0x50] sm:$0xf] %vm931, %v780
  %953 = vst.msk [vmem:[#allocation2 + $0x54] sm:$0xf] %vm931, %v782
  %954 = vst.msk [vmem:[#allocation2 + $0x58] sm:$0xf] %vm931, %v784
  %955 = vst.msk [vmem:[#allocation2 + $0x5c] sm:$0xf] %vm931, %v786
  %956 = vst.msk [vmem:[#allocation2 + $0x60] sm:$0xf] %vm931, %v788
  %957 = vst.msk [vmem:[#allocation2 + $0x64] sm:$0xf] %vm931, %v790
  %958 = vst.msk [vmem:[#allocation2 + $0x68] sm:$0xf] %vm931, %v792
  %959 = vst.msk [vmem:[#allocation2 + $0x6c] sm:$0xf] %vm931, %v794
  %960 = vst.msk [vmem:[#allocation2 + $0x70] sm:$0xf] %vm931, %v796
  %961 = vst.msk [vmem:[#allocation2 + $0x74] sm:$0xf] %vm931, %v798
  %962 = vst.msk [vmem:[#allocation2 + $0x78] sm:$0xf] %vm931, %v800
  %963 = vst.msk [vmem:[#allocation2 + $0x7c] sm:$0xf] %vm931, %v802
  %964 = vst.msk [vmem:[#allocation2 + $0x80] sm:$0xf] %vm931, %v804
  %965 = vst.msk [vmem:[#allocation2 + $0x84] sm:$0xf] %vm931, %v806
  %966 = vst.msk [vmem:[#allocation2 + $0x88] sm:$0xf] %vm931, %v808
  %967 = vst.msk [vmem:[#allocation2 + $0x8c] sm:$0xf] %vm931, %v810
  %968 = vst.msk [vmem:[#allocation2 + $0x90] sm:$0xf] %vm931, %v812
  %969 = vst.msk [vmem:[#allocation2 + $0x94] sm:$0xf] %vm931, %v814
  %970 = vst.msk [vmem:[#allocation2 + $0x98] sm:$0xf] %vm931, %v816
  %971 = vst.msk [vmem:[#allocation2 + $0x9c] sm:$0xf] %vm931, %v818
  %972 = vst.msk [vmem:[#allocation2 + $0xa0] sm:$0xf] %vm931, %v820
  %973 = vst.msk [vmem:[#allocation2 + $0xa4] sm:$0xf] %vm931, %v822
  %974 = vst.msk [vmem:[#allocation2 + $0xa8] sm:$0xf] %vm931, %v824
  %975 = vst.msk [vmem:[#allocation2 + $0xac] sm:$0xf] %vm931, %v826
  %976 = vst.msk [vmem:[#allocation2 + $0xb0] sm:$0xf] %vm931, %v828
  %977 = vst.msk [vmem:[#allocation2 + $0xb4] sm:$0xf] %vm931, %v830
  %978 = vst.msk [vmem:[#allocation2 + $0xb8] sm:$0xf] %vm931, %v832
  %979 = vst.msk [vmem:[#allocation2 + $0xbc] sm:$0xf] %vm931, %v834
  %980 = vst.msk [vmem:[#allocation2 + $0xc0] sm:$0xf] %vm931, %v836
  %981 = vst.msk [vmem:[#allocation2 + $0xc4] sm:$0xf] %vm931, %v838
  %982 = vst.msk [vmem:[#allocation2 + $0xc8] sm:$0xf] %vm931, %v840
  %983 = vst.msk [vmem:[#allocation2 + $0xcc] sm:$0xf] %vm931, %v842
  %984 = vst.msk [vmem:[#allocation2 + $0xd0] sm:$0xf] %vm931, %v844
  %985 = vst.msk [vmem:[#allocation2 + $0xd4] sm:$0xf] %vm931, %v846
  %986 = vst.msk [vmem:[#allocation2 + $0xd8] sm:$0xf] %vm931, %v848
  %987 = vst.msk [vmem:[#allocation2 + $0xdc] sm:$0xf] %vm931, %v850
  %988 = vst.msk [vmem:[#allocation2 + $0xe0] sm:$0xf] %vm931, %v852
  %989 = vst.msk [vmem:[#allocation2 + $0xe4] sm:$0xf] %vm931, %v854
  %990 = vst.msk [vmem:[#allocation2 + $0xe8] sm:$0xf] %vm931, %v856
  %991 = vst.msk [vmem:[#allocation2 + $0xec] sm:$0xf] %vm931, %v858
  %992 = vst.msk [vmem:[#allocation2 + $0xf0] sm:$0xf] %vm931, %v860
  %993 = vst.msk [vmem:[#allocation2 + $0xf4] sm:$0xf] %vm931, %v862
  %994 = vst.msk [vmem:[#allocation2 + $0xf8] sm:$0xf] %vm931, %v864
  %995 = vst.msk [vmem:[#allocation2 + $0xfc] sm:$0xf] %vm931, %v866
  %v996 = vld [vmem:[#allocation5 + $0x2] sm:$0xff]
  %v997 = vld [vmem:[#allocation5 + $0xa] sm:$0xff]
  %v998 = vld [vmem:[#allocation5 + $0x1a] sm:$0xff]
  %v999 = vld [vmem:[#allocation5 + $0x22] sm:$0xff]
  %v1000 = vld [vmem:[#allocation5 + $0x32] sm:$0xff]
  %v1001 = vld [vmem:[#allocation5 + $0x3a] sm:$0xff]
  %v1002 = vld [vmem:[#allocation5 + $0x4a] sm:$0xff]
  %v1003 = vld [vmem:[#allocation5 + $0x52] sm:$0xff]
  %v1004 = vld [vmem:[#allocation5 + $0x62] sm:$0xff]
  %v1005 = vld [vmem:[#allocation5 + $0x6a] sm:$0xff]
  %v1006 = vld [vmem:[#allocation5 + $0x7a] sm:$0xff]
  %v1007 = vld [vmem:[#allocation5 + $0x82] sm:$0xff]
  %v1008 = vld [vmem:[#allocation5 + $0x92] sm:$0xff]
  %v1009 = vld [vmem:[#allocation5 + $0x9a] sm:$0xff]
  %v1010 = vld [vmem:[#allocation5 + $0xaa] sm:$0xff]
  %v1011 = vld [vmem:[#allocation5 + $0xb2] sm:$0xff]
  %v1012 = vld [vmem:[#allocation5 + $0xc2] sm:$0xff]
  %v1013 = vld [vmem:[#allocation5 + $0xca] sm:$0xff]
  %v1014 = vld [vmem:[#allocation5 + $0xda] sm:$0xff]
  %v1015 = vld [vmem:[#allocation5 + $0xe2] sm:$0xff]
  %v1016 = vld [vmem:[#allocation5 + $0xf2] sm:$0xff]
  %v1017 = vld [vmem:[#allocation5 + $0xfa] sm:$0xff]
  %v1018 = vld [vmem:[#allocation5 + $0x10a] sm:$0xff]
  %v1019 = vld [vmem:[#allocation5 + $0x112] sm:$0xff]
  %v1020 = vld [vmem:[#allocation5 + $0x122] sm:$0xff]
  %v1021 = vld [vmem:[#allocation5 + $0x12a] sm:$0xff]
  %v1022 = vld [vmem:[#allocation5 + $0x13a] sm:$0xff]
  %v1023 = vld [vmem:[#allocation5 + $0x142] sm:$0xff]
  %v1024 = vld [vmem:[#allocation5 + $0x152] sm:$0xff]
  %v1025 = vld [vmem:[#allocation5 + $0x15a] sm:$0xff]
  %v1026 = vld [vmem:[#allocation5 + $0x16a] sm:$0xff]
  %v1027 = vld [vmem:[#allocation5 + $0x172] sm:$0xff]
  %v1028 = vld [vmem:[#allocation5 + $0x1b2] sm:$0xff]
  %v1029 = vld [vmem:[#allocation5 + $0x1ba] sm:$0xff]
  %v1030 = vld [vmem:[#allocation5 + $0x1ca] sm:$0xff]
  %v1031 = vld [vmem:[#allocation5 + $0x1d2] sm:$0xff]
  %v1032 = vld [vmem:[#allocation5 + $0x1e2] sm:$0xff]
  %v1033 = vld [vmem:[#allocation5 + $0x1ea] sm:$0xff]
  %v1034 = vld [vmem:[#allocation5 + $0x1fa] sm:$0xff]
  %v1035 = vld [vmem:[#allocation5 + $0x202] sm:$0xff]
  %v1036 = vld [vmem:[#allocation5 + $0x212] sm:$0xff]
  %v1037 = vld [vmem:[#allocation5 + $0x21a] sm:$0xff]
  %v1038 = vld [vmem:[#allocation5 + $0x22a] sm:$0xff]
  %v1039 = vld [vmem:[#allocation5 + $0x232] sm:$0xff]
  %v1040 = vld [vmem:[#allocation5 + $0x242] sm:$0xff]
  %v1041 = vld [vmem:[#allocation5 + $0x24a] sm:$0xff]
  %v1042 = vld [vmem:[#allocation5 + $0x25a] sm:$0xff]
  %v1043 = vld [vmem:[#allocation5 + $0x262] sm:$0xff]
  %v1044 = vld [vmem:[#allocation5 + $0x272] sm:$0xff]
  %v1045 = vld [vmem:[#allocation5 + $0x27a] sm:$0xff]
  %v1046 = vld [vmem:[#allocation5 + $0x28a] sm:$0xff]
  %v1047 = vld [vmem:[#allocation5 + $0x292] sm:$0xff]
  %v1048 = vld [vmem:[#allocation5 + $0x2a2] sm:$0xff]
  %v1049 = vld [vmem:[#allocation5 + $0x2aa] sm:$0xff]
  %v1050 = vld [vmem:[#allocation5 + $0x2ba] sm:$0xff]
  %v1051 = vld [vmem:[#allocation5 + $0x2c2] sm:$0xff]
  %v1052 = vld [vmem:[#allocation5 + $0x2d2] sm:$0xff]
  %v1053 = vld [vmem:[#allocation5 + $0x2da] sm:$0xff]
  %v1054 = vld [vmem:[#allocation5 + $0x2ea] sm:$0xff]
  %v1055 = vld [vmem:[#allocation5 + $0x2f2] sm:$0xff]
  %v1056 = vld [vmem:[#allocation5 + $0x302] sm:$0xff]
  %v1057 = vld [vmem:[#allocation5 + $0x30a] sm:$0xff]
  %v1058 = vld [vmem:[#allocation5 + $0x31a] sm:$0xff]
  %v1059 = vld [vmem:[#allocation5 + $0x322] sm:$0xff]
  %v1060 = vpack.c.bf16 %v996, %v996
  %v1061 = vpack.c.bf16 %v997, %v997
  %v1062 = vpack.c.bf16 %v998, %v998
  %v1063 = vpack.c.bf16 %v999, %v999
  %v1064 = vpack.c.bf16 %v1000, %v1000
  %v1065 = vpack.c.bf16 %v1001, %v1001
  %v1066 = vpack.c.bf16 %v1002, %v1002
  %v1067 = vpack.c.bf16 %v1003, %v1003
  %v1068 = vpack.c.bf16 %v1004, %v1004
  %v1069 = vpack.c.bf16 %v1005, %v1005
  %v1070 = vpack.c.bf16 %v1006, %v1006
  %v1071 = vpack.c.bf16 %v1007, %v1007
  %v1072 = vpack.c.bf16 %v1008, %v1008
  %v1073 = vpack.c.bf16 %v1009, %v1009
  %v1074 = vpack.c.bf16 %v1010, %v1010
  %v1075 = vpack.c.bf16 %v1011, %v1011
  %v1076 = vpack.c.bf16 %v1012, %v1012
  %v1077 = vpack.c.bf16 %v1013, %v1013
  %v1078 = vpack.c.bf16 %v1014, %v1014
  %v1079 = vpack.c.bf16 %v1015, %v1015
  %v1080 = vpack.c.bf16 %v1016, %v1016
  %v1081 = vpack.c.bf16 %v1017, %v1017
  %v1082 = vpack.c.bf16 %v1018, %v1018
  %v1083 = vpack.c.bf16 %v1019, %v1019
  %v1084 = vpack.c.bf16 %v1020, %v1020
  %v1085 = vpack.c.bf16 %v1021, %v1021
  %v1086 = vpack.c.bf16 %v1022, %v1022
  %v1087 = vpack.c.bf16 %v1023, %v1023
  %v1088 = vpack.c.bf16 %v1024, %v1024
  %v1089 = vpack.c.bf16 %v1025, %v1025
  %v1090 = vpack.c.bf16 %v1026, %v1026
  %v1091 = vpack.c.bf16 %v1027, %v1027
  %v1092 = vpack.c.bf16 %v1028, %v1028
  %v1093 = vpack.c.bf16 %v1029, %v1029
  %v1094 = vpack.c.bf16 %v1030, %v1030
  %v1095 = vpack.c.bf16 %v1031, %v1031
  %v1096 = vpack.c.bf16 %v1032, %v1032
  %v1097 = vpack.c.bf16 %v1033, %v1033
  %v1098 = vpack.c.bf16 %v1034, %v1034
  %v1099 = vpack.c.bf16 %v1035, %v1035
  %v1100 = vpack.c.bf16 %v1036, %v1036
  %v1101 = vpack.c.bf16 %v1037, %v1037
  %v1102 = vpack.c.bf16 %v1038, %v1038
  %v1103 = vpack.c.bf16 %v1039, %v1039
  %v1104 = vpack.c.bf16 %v1040, %v1040
  %v1105 = vpack.c.bf16 %v1041, %v1041
  %v1106 = vpack.c.bf16 %v1042, %v1042
  %v1107 = vpack.c.bf16 %v1043, %v1043
  %v1108 = vpack.c.bf16 %v1044, %v1044
  %v1109 = vpack.c.bf16 %v1045, %v1045
  %v1110 = vpack.c.bf16 %v1046, %v1046
  %v1111 = vpack.c.bf16 %v1047, %v1047
  %v1112 = vpack.c.bf16 %v1048, %v1048
  %v1113 = vpack.c.bf16 %v1049, %v1049
  %v1114 = vpack.c.bf16 %v1050, %v1050
  %v1115 = vpack.c.bf16 %v1051, %v1051
  %v1116 = vpack.c.bf16 %v1052, %v1052
  %v1117 = vpack.c.bf16 %v1053, %v1053
  %v1118 = vpack.c.bf16 %v1054, %v1054
  %v1119 = vpack.c.bf16 %v1055, %v1055
  %v1120 = vpack.c.bf16 %v1056, %v1056
  %v1121 = vpack.c.bf16 %v1057, %v1057
  %v1122 = vpack.c.bf16 %v1058, %v1058
  %v1123 = vpack.c.bf16 %v1059, %v1059
  %1188 = vrot.lane.b32.xlu0 %v1060, 6
  %v1189 = vpop.permute.xlu0 %1188
  %1190 = vrot.lane.b32.xlu0 %v1061, 6
  %v1191 = vpop.permute.xlu0 %1190
  %1192 = vrot.lane.b32.xlu0 %v1062, 6
  %v1193 = vpop.permute.xlu0 %1192
  %1194 = vrot.lane.b32.xlu0 %v1063, 6
  %v1195 = vpop.permute.xlu0 %1194
  %1196 = vrot.lane.b32.xlu0 %v1064, 6
  %v1197 = vpop.permute.xlu0 %1196
  %1198 = vrot.lane.b32.xlu0 %v1065, 6
  %v1199 = vpop.permute.xlu0 %1198
  %1200 = vrot.lane.b32.xlu0 %v1066, 6
  %v1201 = vpop.permute.xlu0 %1200
  %1202 = vrot.lane.b32.xlu0 %v1067, 6
  %v1203 = vpop.permute.xlu0 %1202
  %1204 = vrot.lane.b32.xlu0 %v1068, 6
  %v1205 = vpop.permute.xlu0 %1204
  %1206 = vrot.lane.b32.xlu0 %v1069, 6
  %v1207 = vpop.permute.xlu0 %1206
  %1208 = vrot.lane.b32.xlu0 %v1070, 6
  %v1209 = vpop.permute.xlu0 %1208
  %1210 = vrot.lane.b32.xlu0 %v1071, 6
  %v1211 = vpop.permute.xlu0 %1210
  %1212 = vrot.lane.b32.xlu0 %v1072, 6
  %v1213 = vpop.permute.xlu0 %1212
  %1214 = vrot.lane.b32.xlu0 %v1073, 6
  %v1215 = vpop.permute.xlu0 %1214
  %1216 = vrot.lane.b32.xlu0 %v1074, 6
  %v1217 = vpop.permute.xlu0 %1216
  %1218 = vrot.lane.b32.xlu0 %v1075, 6
  %v1219 = vpop.permute.xlu0 %1218
  %1220 = vrot.lane.b32.xlu0 %v1076, 6
  %v1221 = vpop.permute.xlu0 %1220
  %1222 = vrot.lane.b32.xlu0 %v1077, 6
  %v1223 = vpop.permute.xlu0 %1222
  %1224 = vrot.lane.b32.xlu0 %v1078, 6
  %v1225 = vpop.permute.xlu0 %1224
  %1226 = vrot.lane.b32.xlu0 %v1079, 6
  %v1227 = vpop.permute.xlu0 %1226
  %1228 = vrot.lane.b32.xlu0 %v1080, 6
  %v1229 = vpop.permute.xlu0 %1228
  %1230 = vrot.lane.b32.xlu0 %v1081, 6
  %v1231 = vpop.permute.xlu0 %1230
  %1232 = vrot.lane.b32.xlu0 %v1082, 6
  %v1233 = vpop.permute.xlu0 %1232
  %1234 = vrot.lane.b32.xlu0 %v1083, 6
  %v1235 = vpop.permute.xlu0 %1234
  %1236 = vrot.lane.b32.xlu0 %v1084, 6
  %v1237 = vpop.permute.xlu0 %1236
  %1238 = vrot.lane.b32.xlu0 %v1085, 6
  %v1239 = vpop.permute.xlu0 %1238
  %1240 = vrot.lane.b32.xlu0 %v1086, 6
  %v1241 = vpop.permute.xlu0 %1240
  %1242 = vrot.lane.b32.xlu0 %v1087, 6
  %v1243 = vpop.permute.xlu0 %1242
  %1244 = vrot.lane.b32.xlu0 %v1088, 6
  %v1245 = vpop.permute.xlu0 %1244
  %1246 = vrot.lane.b32.xlu0 %v1089, 6
  %v1247 = vpop.permute.xlu0 %1246
  %1248 = vrot.lane.b32.xlu0 %v1090, 6
  %v1249 = vpop.permute.xlu0 %1248
  %1250 = vrot.lane.b32.xlu0 %v1091, 6
  %v1251 = vpop.permute.xlu0 %1250
  %1252 = vrot.lane.b32.xlu0 %v1092, 6
  %v1253 = vpop.permute.xlu0 %1252
  %1254 = vrot.lane.b32.xlu0 %v1093, 6
  %v1255 = vpop.permute.xlu0 %1254
  %1256 = vrot.lane.b32.xlu0 %v1094, 6
  %v1257 = vpop.permute.xlu0 %1256
  %1258 = vrot.lane.b32.xlu0 %v1095, 6
  %v1259 = vpop.permute.xlu0 %1258
  %1260 = vrot.lane.b32.xlu0 %v1096, 6
  %v1261 = vpop.permute.xlu0 %1260
  %1262 = vrot.lane.b32.xlu0 %v1097, 6
  %v1263 = vpop.permute.xlu0 %1262
  %1264 = vrot.lane.b32.xlu0 %v1098, 6
  %v1265 = vpop.permute.xlu0 %1264
  %1266 = vrot.lane.b32.xlu0 %v1099, 6
  %v1267 = vpop.permute.xlu0 %1266
  %1268 = vrot.lane.b32.xlu0 %v1100, 6
  %v1269 = vpop.permute.xlu0 %1268
  %1270 = vrot.lane.b32.xlu0 %v1101, 6
  %v1271 = vpop.permute.xlu0 %1270
  %1272 = vrot.lane.b32.xlu0 %v1102, 6
  %v1273 = vpop.permute.xlu0 %1272
  %1274 = vrot.lane.b32.xlu0 %v1103, 6
  %v1275 = vpop.permute.xlu0 %1274
  %1276 = vrot.lane.b32.xlu0 %v1104, 6
  %v1277 = vpop.permute.xlu0 %1276
  %1278 = vrot.lane.b32.xlu0 %v1105, 6
  %v1279 = vpop.permute.xlu0 %1278
  %1280 = vrot.lane.b32.xlu0 %v1106, 6
  %v1281 = vpop.permute.xlu0 %1280
  %1282 = vrot.lane.b32.xlu0 %v1107, 6
  %v1283 = vpop.permute.xlu0 %1282
  %1284 = vrot.lane.b32.xlu0 %v1108, 6
  %v1285 = vpop.permute.xlu0 %1284
  %1286 = vrot.lane.b32.xlu0 %v1109, 6
  %v1287 = vpop.permute.xlu0 %1286
  %1288 = vrot.lane.b32.xlu0 %v1110, 6
  %v1289 = vpop.permute.xlu0 %1288
  %1290 = vrot.lane.b32.xlu0 %v1111, 6
  %v1291 = vpop.permute.xlu0 %1290
  %1292 = vrot.lane.b32.xlu0 %v1112, 6
  %v1293 = vpop.permute.xlu0 %1292
  %1294 = vrot.lane.b32.xlu0 %v1113, 6
  %v1295 = vpop.permute.xlu0 %1294
  %1296 = vrot.lane.b32.xlu0 %v1114, 6
  %v1297 = vpop.permute.xlu0 %1296
  %1298 = vrot.lane.b32.xlu0 %v1115, 6
  %v1299 = vpop.permute.xlu0 %1298
  %1300 = vrot.lane.b32.xlu0 %v1116, 6
  %v1301 = vpop.permute.xlu0 %1300
  %1302 = vrot.lane.b32.xlu0 %v1117, 6
  %v1303 = vpop.permute.xlu0 %1302
  %1304 = vrot.lane.b32.xlu0 %v1118, 6
  %v1305 = vpop.permute.xlu0 %1304
  %1306 = vrot.lane.b32.xlu0 %v1119, 6
  %v1307 = vpop.permute.xlu0 %1306
  %1308 = vrot.lane.b32.xlu0 %v1120, 6
  %v1309 = vpop.permute.xlu0 %1308
  %1310 = vrot.lane.b32.xlu0 %v1121, 6
  %v1311 = vpop.permute.xlu0 %1310
  %1312 = vrot.lane.b32.xlu0 %v1122, 6
  %v1313 = vpop.permute.xlu0 %1312
  %1314 = vrot.lane.b32.xlu0 %v1123, 6
  %v1315 = vpop.permute.xlu0 %1314
  %vm1380 = vcmask 68656
  %1381 = vst.msk [vmem:[#allocation2] sm:$0xf] %vm1380, %v1189
  %1382 = vst.msk [vmem:[#allocation2 + $0x4] sm:$0xf] %vm1380, %v1191
  %1383 = vst.msk [vmem:[#allocation2 + $0x8] sm:$0xf] %vm1380, %v1193
  %1384 = vst.msk [vmem:[#allocation2 + $0xc] sm:$0xf] %vm1380, %v1195
  %1385 = vst.msk [vmem:[#allocation2 + $0x10] sm:$0xf] %vm1380, %v1197
  %1386 = vst.msk [vmem:[#allocation2 + $0x14] sm:$0xf] %vm1380, %v1199
  %1387 = vst.msk [vmem:[#allocation2 + $0x18] sm:$0xf] %vm1380, %v1201
  %1388 = vst.msk [vmem:[#allocation2 + $0x1c] sm:$0xf] %vm1380, %v1203
  %1389 = vst.msk [vmem:[#allocation2 + $0x20] sm:$0xf] %vm1380, %v1205
  %1390 = vst.msk [vmem:[#allocation2 + $0x24] sm:$0xf] %vm1380, %v1207
  %1391 = vst.msk [vmem:[#allocation2 + $0x28] sm:$0xf] %vm1380, %v1209
  %1392 = vst.msk [vmem:[#allocation2 + $0x2c] sm:$0xf] %vm1380, %v1211
  %1393 = vst.msk [vmem:[#allocation2 + $0x30] sm:$0xf] %vm1380, %v1213
  %1394 = vst.msk [vmem:[#allocation2 + $0x34] sm:$0xf] %vm1380, %v1215
  %1395 = vst.msk [vmem:[#allocation2 + $0x38] sm:$0xf] %vm1380, %v1217
  %1396 = vst.msk [vmem:[#allocation2 + $0x3c] sm:$0xf] %vm1380, %v1219
  %1397 = vst.msk [vmem:[#allocation2 + $0x40] sm:$0xf] %vm1380, %v1221
  %1398 = vst.msk [vmem:[#allocation2 + $0x44] sm:$0xf] %vm1380, %v1223
  %1399 = vst.msk [vmem:[#allocation2 + $0x48] sm:$0xf] %vm1380, %v1225
  %1400 = vst.msk [vmem:[#allocation2 + $0x4c] sm:$0xf] %vm1380, %v1227
  %1401 = vst.msk [vmem:[#allocation2 + $0x50] sm:$0xf] %vm1380, %v1229
  %1402 = vst.msk [vmem:[#allocation2 + $0x54] sm:$0xf] %vm1380, %v1231
  %1403 = vst.msk [vmem:[#allocation2 + $0x58] sm:$0xf] %vm1380, %v1233
  %1404 = vst.msk [vmem:[#allocation2 + $0x5c] sm:$0xf] %vm1380, %v1235
  %1405 = vst.msk [vmem:[#allocation2 + $0x60] sm:$0xf] %vm1380, %v1237
  %1406 = vst.msk [vmem:[#allocation2 + $0x64] sm:$0xf] %vm1380, %v1239
  %1407 = vst.msk [vmem:[#allocation2 + $0x68] sm:$0xf] %vm1380, %v1241
  %1408 = vst.msk [vmem:[#allocation2 + $0x6c] sm:$0xf] %vm1380, %v1243
  %1409 = vst.msk [vmem:[#allocation2 + $0x70] sm:$0xf] %vm1380, %v1245
  %1410 = vst.msk [vmem:[#allocation2 + $0x74] sm:$0xf] %vm1380, %v1247
  %1411 = vst.msk [vmem:[#allocation2 + $0x78] sm:$0xf] %vm1380, %v1249
  %1412 = vst.msk [vmem:[#allocation2 + $0x7c] sm:$0xf] %vm1380, %v1251
  %1413 = vst.msk [vmem:[#allocation2 + $0x80] sm:$0xf] %vm1380, %v1253
  %1414 = vst.msk [vmem:[#allocation2 + $0x84] sm:$0xf] %vm1380, %v1255
  %1415 = vst.msk [vmem:[#allocation2 + $0x88] sm:$0xf] %vm1380, %v1257
  %1416 = vst.msk [vmem:[#allocation2 + $0x8c] sm:$0xf] %vm1380, %v1259
  %1417 = vst.msk [vmem:[#allocation2 + $0x90] sm:$0xf] %vm1380, %v1261
  %1418 = vst.msk [vmem:[#allocation2 + $0x94] sm:$0xf] %vm1380, %v1263
  %1419 = vst.msk [vmem:[#allocation2 + $0x98] sm:$0xf] %vm1380, %v1265
  %1420 = vst.msk [vmem:[#allocation2 + $0x9c] sm:$0xf] %vm1380, %v1267
  %1421 = vst.msk [vmem:[#allocation2 + $0xa0] sm:$0xf] %vm1380, %v1269
  %1422 = vst.msk [vmem:[#allocation2 + $0xa4] sm:$0xf] %vm1380, %v1271
  %1423 = vst.msk [vmem:[#allocation2 + $0xa8] sm:$0xf] %vm1380, %v1273
  %1424 = vst.msk [vmem:[#allocation2 + $0xac] sm:$0xf] %vm1380, %v1275
  %1425 = vst.msk [vmem:[#allocation2 + $0xb0] sm:$0xf] %vm1380, %v1277
  %1426 = vst.msk [vmem:[#allocation2 + $0xb4] sm:$0xf] %vm1380, %v1279
  %1427 = vst.msk [vmem:[#allocation2 + $0xb8] sm:$0xf] %vm1380, %v1281
  %1428 = vst.msk [vmem:[#allocation2 + $0xbc] sm:$0xf] %vm1380, %v1283
  %1429 = vst.msk [vmem:[#allocation2 + $0xc0] sm:$0xf] %vm1380, %v1285
  %1430 = vst.msk [vmem:[#allocation2 + $0xc4] sm:$0xf] %vm1380, %v1287
  %1431 = vst.msk [vmem:[#allocation2 + $0xc8] sm:$0xf] %vm1380, %v1289
  %1432 = vst.msk [vmem:[#allocation2 + $0xcc] sm:$0xf] %vm1380, %v1291
  %1433 = vst.msk [vmem:[#allocation2 + $0xd0] sm:$0xf] %vm1380, %v1293
  %1434 = vst.msk [vmem:[#allocation2 + $0xd4] sm:$0xf] %vm1380, %v1295
  %1435 = vst.msk [vmem:[#allocation2 + $0xd8] sm:$0xf] %vm1380, %v1297
  %1436 = vst.msk [vmem:[#allocation2 + $0xdc] sm:$0xf] %vm1380, %v1299
  %1437 = vst.msk [vmem:[#allocation2 + $0xe0] sm:$0xf] %vm1380, %v1301
  %1438 = vst.msk [vmem:[#allocation2 + $0xe4] sm:$0xf] %vm1380, %v1303
  %1439 = vst.msk [vmem:[#allocation2 + $0xe8] sm:$0xf] %vm1380, %v1305
  %1440 = vst.msk [vmem:[#allocation2 + $0xec] sm:$0xf] %vm1380, %v1307
  %1441 = vst.msk [vmem:[#allocation2 + $0xf0] sm:$0xf] %vm1380, %v1309
  %1442 = vst.msk [vmem:[#allocation2 + $0xf4] sm:$0xf] %vm1380, %v1311
  %1443 = vst.msk [vmem:[#allocation2 + $0xf8] sm:$0xf] %vm1380, %v1313
  %1444 = vst.msk [vmem:[#allocation2 + $0xfc] sm:$0xf] %vm1380, %v1315
  %v1445 = vld [vmem:[%s289] sm:$0xff]
  %v1446 = vld [vmem:[%s289 + $0x8] sm:$0xff]
  %v1447 = vld [vmem:[%s289 + $0x18] sm:$0xff]
  %v1448 = vld [vmem:[%s289 + $0x20] sm:$0xff]
  %v1449 = vld [vmem:[%s289 + $0x30] sm:$0xff]
  %v1450 = vld [vmem:[%s289 + $0x38] sm:$0xff]
  %v1451 = vld [vmem:[%s289 + $0x48] sm:$0xff]
  %v1452 = vld [vmem:[%s289 + $0x50] sm:$0xff]
  %v1453 = vld [vmem:[%s289 + $0x60] sm:$0xff]
  %v1454 = vld [vmem:[%s289 + $0x68] sm:$0xff]
  %v1455 = vld [vmem:[%s289 + $0x78] sm:$0xff]
  %v1456 = vld [vmem:[%s289 + $0x80] sm:$0xff]
  %v1457 = vld [vmem:[%s289 + $0x90] sm:$0xff]
  %v1458 = vld [vmem:[%s289 + $0x98] sm:$0xff]
  %v1459 = vld [vmem:[%s289 + $0xa8] sm:$0xff]
  %v1460 = vld [vmem:[%s289 + $0xb0] sm:$0xff]
  %v1461 = vld [vmem:[%s289 + $0xc0] sm:$0xff]
  %v1462 = vld [vmem:[%s289 + $0xc8] sm:$0xff]
  %v1463 = vld [vmem:[%s289 + $0xd8] sm:$0xff]
  %v1464 = vld [vmem:[%s289 + $0xe0] sm:$0xff]
  %v1465 = vld [vmem:[%s289 + $0xf0] sm:$0xff]
  %v1466 = vld [vmem:[%s289 + $0xf8] sm:$0xff]
  %v1467 = vld [vmem:[%s289 + $0x108] sm:$0xff]
  %v1468 = vld [vmem:[%s289 + $0x110] sm:$0xff]
  %v1469 = vld [vmem:[%s289 + $0x120] sm:$0xff]
  %v1470 = vld [vmem:[%s289 + $0x128] sm:$0xff]
  %v1471 = vld [vmem:[%s289 + $0x138] sm:$0xff]
  %v1472 = vld [vmem:[%s289 + $0x140] sm:$0xff]
  %v1473 = vld [vmem:[%s289 + $0x150] sm:$0xff]
  %v1474 = vld [vmem:[%s289 + $0x158] sm:$0xff]
  %v1475 = vld [vmem:[%s289 + $0x168] sm:$0xff]
  %v1476 = vld [vmem:[%s289 + $0x170] sm:$0xff]
  %v1477 = vld [vmem:[%s289 + $0x1b0] sm:$0xff]
  %v1478 = vld [vmem:[%s289 + $0x1b8] sm:$0xff]
  %v1479 = vld [vmem:[%s289 + $0x1c8] sm:$0xff]
  %v1480 = vld [vmem:[%s289 + $0x1d0] sm:$0xff]
  %v1481 = vld [vmem:[%s289 + $0x1e0] sm:$0xff]
  %v1482 = vld [vmem:[%s289 + $0x1e8] sm:$0xff]
  %v1483 = vld [vmem:[%s289 + $0x1f8] sm:$0xff]
  %v1484 = vld [vmem:[%s289 + $0x200] sm:$0xff]
  %v1485 = vld [vmem:[%s289 + $0x210] sm:$0xff]
  %v1486 = vld [vmem:[%s289 + $0x218] sm:$0xff]
  %v1487 = vld [vmem:[%s289 + $0x228] sm:$0xff]
  %v1488 = vld [vmem:[%s289 + $0x230] sm:$0xff]
  %v1489 = vld [vmem:[%s289 + $0x240] sm:$0xff]
  %v1490 = vld [vmem:[%s289 + $0x248] sm:$0xff]
  %v1491 = vld [vmem:[%s289 + $0x258] sm:$0xff]
  %v1492 = vld [vmem:[%s289 + $0x260] sm:$0xff]
  %v1493 = vld [vmem:[%s289 + $0x270] sm:$0xff]
  %v1494 = vld [vmem:[%s289 + $0x278] sm:$0xff]
  %v1495 = vld [vmem:[%s289 + $0x288] sm:$0xff]
  %v1496 = vld [vmem:[%s289 + $0x290] sm:$0xff]
  %v1497 = vld [vmem:[%s289 + $0x2a0] sm:$0xff]
  %v1498 = vld [vmem:[%s289 + $0x2a8] sm:$0xff]
  %v1499 = vld [vmem:[%s289 + $0x2b8] sm:$0xff]
  %v1500 = vld [vmem:[%s289 + $0x2c0] sm:$0xff]
  %v1501 = vld [vmem:[%s289 + $0x2d0] sm:$0xff]
  %v1502 = vld [vmem:[%s289 + $0x2d8] sm:$0xff]
  %v1503 = vld [vmem:[%s289 + $0x2e8] sm:$0xff]
  %v1504 = vld [vmem:[%s289 + $0x2f0] sm:$0xff]
  %v1505 = vld [vmem:[%s289 + $0x300] sm:$0xff]
  %v1506 = vld [vmem:[%s289 + $0x308] sm:$0xff]
  %v1507 = vld [vmem:[%s289 + $0x318] sm:$0xff]
  %v1508 = vld [vmem:[%s289 + $0x320] sm:$0xff]
  %v1509 = vpack.c.bf16 %v1445, %v1445
  %v1510 = vpack.c.bf16 %v1446, %v1446
  %v1511 = vpack.c.bf16 %v1447, %v1447
  %v1512 = vpack.c.bf16 %v1448, %v1448
  %v1513 = vpack.c.bf16 %v1449, %v1449
  %v1514 = vpack.c.bf16 %v1450, %v1450
  %v1515 = vpack.c.bf16 %v1451, %v1451
  %v1516 = vpack.c.bf16 %v1452, %v1452
  %v1517 = vpack.c.bf16 %v1453, %v1453
  %v1518 = vpack.c.bf16 %v1454, %v1454
  %v1519 = vpack.c.bf16 %v1455, %v1455
  %v1520 = vpack.c.bf16 %v1456, %v1456
  %v1521 = vpack.c.bf16 %v1457, %v1457
  %v1522 = vpack.c.bf16 %v1458, %v1458
  %v1523 = vpack.c.bf16 %v1459, %v1459
  %v1524 = vpack.c.bf16 %v1460, %v1460
  %v1525 = vpack.c.bf16 %v1461, %v1461
  %v1526 = vpack.c.bf16 %v1462, %v1462
  %v1527 = vpack.c.bf16 %v1463, %v1463
  %v1528 = vpack.c.bf16 %v1464, %v1464
  %v1529 = vpack.c.bf16 %v1465, %v1465
  %v1530 = vpack.c.bf16 %v1466, %v1466
  %v1531 = vpack.c.bf16 %v1467, %v1467
  %v1532 = vpack.c.bf16 %v1468, %v1468
  %v1533 = vpack.c.bf16 %v1469, %v1469
  %v1534 = vpack.c.bf16 %v1470, %v1470
  %v1535 = vpack.c.bf16 %v1471, %v1471
  %v1536 = vpack.c.bf16 %v1472, %v1472
  %v1537 = vpack.c.bf16 %v1473, %v1473
  %v1538 = vpack.c.bf16 %v1474, %v1474
  %v1539 = vpack.c.bf16 %v1475, %v1475
  %v1540 = vpack.c.bf16 %v1476, %v1476
  %v1541 = vpack.c.bf16 %v1477, %v1477
  %v1542 = vpack.c.bf16 %v1478, %v1478
  %v1543 = vpack.c.bf16 %v1479, %v1479
  %v1544 = vpack.c.bf16 %v1480, %v1480
  %v1545 = vpack.c.bf16 %v1481, %v1481
  %v1546 = vpack.c.bf16 %v1482, %v1482
  %v1547 = vpack.c.bf16 %v1483, %v1483
  %v1548 = vpack.c.bf16 %v1484, %v1484
  %v1549 = vpack.c.bf16 %v1485, %v1485
  %v1550 = vpack.c.bf16 %v1486, %v1486
  %v1551 = vpack.c.bf16 %v1487, %v1487
  %v1552 = vpack.c.bf16 %v1488, %v1488
  %v1553 = vpack.c.bf16 %v1489, %v1489
  %v1554 = vpack.c.bf16 %v1490, %v1490
  %v1555 = vpack.c.bf16 %v1491, %v1491
  %v1556 = vpack.c.bf16 %v1492, %v1492
  %v1557 = vpack.c.bf16 %v1493, %v1493
  %v1558 = vpack.c.bf16 %v1494, %v1494
  %v1559 = vpack.c.bf16 %v1495, %v1495
  %v1560 = vpack.c.bf16 %v1496, %v1496
  %v1561 = vpack.c.bf16 %v1497, %v1497
  %v1562 = vpack.c.bf16 %v1498, %v1498
  %v1563 = vpack.c.bf16 %v1499, %v1499
  %v1564 = vpack.c.bf16 %v1500, %v1500
  %v1565 = vpack.c.bf16 %v1501, %v1501
  %v1566 = vpack.c.bf16 %v1502, %v1502
  %v1567 = vpack.c.bf16 %v1503, %v1503
  %v1568 = vpack.c.bf16 %v1504, %v1504
  %v1569 = vpack.c.bf16 %v1505, %v1505
  %v1570 = vpack.c.bf16 %v1506, %v1506
  %v1571 = vpack.c.bf16 %v1507, %v1507
  %v1572 = vpack.c.bf16 %v1508, %v1508
  %1637 = vrot.lane.b32.xlu0 %v1509, 9
  %v1638 = vpop.permute.xlu0 %1637
  %1639 = vrot.lane.b32.xlu0 %v1510, 9
  %v1640 = vpop.permute.xlu0 %1639
  %1641 = vrot.lane.b32.xlu0 %v1511, 9
  %v1642 = vpop.permute.xlu0 %1641
  %1643 = vrot.lane.b32.xlu0 %v1512, 9
  %v1644 = vpop.permute.xlu0 %1643
  %1645 = vrot.lane.b32.xlu0 %v1513, 9
  %v1646 = vpop.permute.xlu0 %1645
  %1647 = vrot.lane.b32.xlu0 %v1514, 9
  %v1648 = vpop.permute.xlu0 %1647
  %1649 = vrot.lane.b32.xlu0 %v1515, 9
  %v1650 = vpop.permute.xlu0 %1649
  %1651 = vrot.lane.b32.xlu0 %v1516, 9
  %v1652 = vpop.permute.xlu0 %1651
  %1653 = vrot.lane.b32.xlu0 %v1517, 9
  %v1654 = vpop.permute.xlu0 %1653
  %1655 = vrot.lane.b32.xlu0 %v1518, 9
  %v1656 = vpop.permute.xlu0 %1655
  %1657 = vrot.lane.b32.xlu0 %v1519, 9
  %v1658 = vpop.permute.xlu0 %1657
  %1659 = vrot.lane.b32.xlu0 %v1520, 9
  %v1660 = vpop.permute.xlu0 %1659
  %1661 = vrot.lane.b32.xlu0 %v1521, 9
  %v1662 = vpop.permute.xlu0 %1661
  %1663 = vrot.lane.b32.xlu0 %v1522, 9
  %v1664 = vpop.permute.xlu0 %1663
  %1665 = vrot.lane.b32.xlu0 %v1523, 9
  %v1666 = vpop.permute.xlu0 %1665
  %1667 = vrot.lane.b32.xlu0 %v1524, 9
  %v1668 = vpop.permute.xlu0 %1667
  %1669 = vrot.lane.b32.xlu0 %v1525, 9
  %v1670 = vpop.permute.xlu0 %1669
  %1671 = vrot.lane.b32.xlu0 %v1526, 9
  %v1672 = vpop.permute.xlu0 %1671
  %1673 = vrot.lane.b32.xlu0 %v1527, 9
  %v1674 = vpop.permute.xlu0 %1673
  %1675 = vrot.lane.b32.xlu0 %v1528, 9
  %v1676 = vpop.permute.xlu0 %1675
  %1677 = vrot.lane.b32.xlu0 %v1529, 9
  %v1678 = vpop.permute.xlu0 %1677
  %1679 = vrot.lane.b32.xlu0 %v1530, 9
  %v1680 = vpop.permute.xlu0 %1679
  %1681 = vrot.lane.b32.xlu0 %v1531, 9
  %v1682 = vpop.permute.xlu0 %1681
  %1683 = vrot.lane.b32.xlu0 %v1532, 9
  %v1684 = vpop.permute.xlu0 %1683
  %1685 = vrot.lane.b32.xlu0 %v1533, 9
  %v1686 = vpop.permute.xlu0 %1685
  %1687 = vrot.lane.b32.xlu0 %v1534, 9
  %v1688 = vpop.permute.xlu0 %1687
  %1689 = vrot.lane.b32.xlu0 %v1535, 9
  %v1690 = vpop.permute.xlu0 %1689
  %1691 = vrot.lane.b32.xlu0 %v1536, 9
  %v1692 = vpop.permute.xlu0 %1691
  %1693 = vrot.lane.b32.xlu0 %v1537, 9
  %v1694 = vpop.permute.xlu0 %1693
  %1695 = vrot.lane.b32.xlu0 %v1538, 9
  %v1696 = vpop.permute.xlu0 %1695
  %1697 = vrot.lane.b32.xlu0 %v1539, 9
  %v1698 = vpop.permute.xlu0 %1697
  %1699 = vrot.lane.b32.xlu0 %v1540, 9
  %v1700 = vpop.permute.xlu0 %1699
  %1701 = vrot.lane.b32.xlu0 %v1541, 9
  %v1702 = vpop.permute.xlu0 %1701
  %1703 = vrot.lane.b32.xlu0 %v1542, 9
  %v1704 = vpop.permute.xlu0 %1703
  %1705 = vrot.lane.b32.xlu0 %v1543, 9
  %v1706 = vpop.permute.xlu0 %1705
  %1707 = vrot.lane.b32.xlu0 %v1544, 9
  %v1708 = vpop.permute.xlu0 %1707
  %1709 = vrot.lane.b32.xlu0 %v1545, 9
  %v1710 = vpop.permute.xlu0 %1709
  %1711 = vrot.lane.b32.xlu0 %v1546, 9
  %v1712 = vpop.permute.xlu0 %1711
  %1713 = vrot.lane.b32.xlu0 %v1547, 9
  %v1714 = vpop.permute.xlu0 %1713
  %1715 = vrot.lane.b32.xlu0 %v1548, 9
  %v1716 = vpop.permute.xlu0 %1715
  %1717 = vrot.lane.b32.xlu0 %v1549, 9
  %v1718 = vpop.permute.xlu0 %1717
  %1719 = vrot.lane.b32.xlu0 %v1550, 9
  %v1720 = vpop.permute.xlu0 %1719
  %1721 = vrot.lane.b32.xlu0 %v1551, 9
  %v1722 = vpop.permute.xlu0 %1721
  %1723 = vrot.lane.b32.xlu0 %v1552, 9
  %v1724 = vpop.permute.xlu0 %1723
  %1725 = vrot.lane.b32.xlu0 %v1553, 9
  %v1726 = vpop.permute.xlu0 %1725
  %1727 = vrot.lane.b32.xlu0 %v1554, 9
  %v1728 = vpop.permute.xlu0 %1727
  %1729 = vrot.lane.b32.xlu0 %v1555, 9
  %v1730 = vpop.permute.xlu0 %1729
  %1731 = vrot.lane.b32.xlu0 %v1556, 9
  %v1732 = vpop.permute.xlu0 %1731
  %1733 = vrot.lane.b32.xlu0 %v1557, 9
  %v1734 = vpop.permute.xlu0 %1733
  %1735 = vrot.lane.b32.xlu0 %v1558, 9
  %v1736 = vpop.permute.xlu0 %1735
  %1737 = vrot.lane.b32.xlu0 %v1559, 9
  %v1738 = vpop.permute.xlu0 %1737
  %1739 = vrot.lane.b32.xlu0 %v1560, 9
  %v1740 = vpop.permute.xlu0 %1739
  %1741 = vrot.lane.b32.xlu0 %v1561, 9
  %v1742 = vpop.permute.xlu0 %1741
  %1743 = vrot.lane.b32.xlu0 %v1562, 9
  %v1744 = vpop.permute.xlu0 %1743
  %1745 = vrot.lane.b32.xlu0 %v1563, 9
  %v1746 = vpop.permute.xlu0 %1745
  %1747 = vrot.lane.b32.xlu0 %v1564, 9
  %v1748 = vpop.permute.xlu0 %1747
  %1749 = vrot.lane.b32.xlu0 %v1565, 9
  %v1750 = vpop.permute.xlu0 %1749
  %1751 = vrot.lane.b32.xlu0 %v1566, 9
  %v1752 = vpop.permute.xlu0 %1751
  %1753 = vrot.lane.b32.xlu0 %v1567, 9
  %v1754 = vpop.permute.xlu0 %1753
  %1755 = vrot.lane.b32.xlu0 %v1568, 9
  %v1756 = vpop.permute.xlu0 %1755
  %1757 = vrot.lane.b32.xlu0 %v1569, 9
  %v1758 = vpop.permute.xlu0 %1757
  %1759 = vrot.lane.b32.xlu0 %v1570, 9
  %v1760 = vpop.permute.xlu0 %1759
  %1761 = vrot.lane.b32.xlu0 %v1571, 9
  %v1762 = vpop.permute.xlu0 %1761
  %1763 = vrot.lane.b32.xlu0 %v1572, 9
  %v1764 = vpop.permute.xlu0 %1763
  %vm1829 = vcmask 93256
  %1830 = vst.msk [vmem:[#allocation2] sm:$0xf] %vm1829, %v1638
  %1831 = vst.msk [vmem:[#allocation2 + $0x4] sm:$0xf] %vm1829, %v1640
  %1832 = vst.msk [vmem:[#allocation2 + $0x8] sm:$0xf] %vm1829, %v1642
  %1833 = vst.msk [vmem:[#allocation2 + $0xc] sm:$0xf] %vm1829, %v1644
  %1834 = vst.msk [vmem:[#allocation2 + $0x10] sm:$0xf] %vm1829, %v1646
  %1835 = vst.msk [vmem:[#allocation2 + $0x14] sm:$0xf] %vm1829, %v1648
  %1836 = vst.msk [vmem:[#allocation2 + $0x18] sm:$0xf] %vm1829, %v1650
  %1837 = vst.msk [vmem:[#allocation2 + $0x1c] sm:$0xf] %vm1829, %v1652
  %1838 = vst.msk [vmem:[#allocation2 + $0x20] sm:$0xf] %vm1829, %v1654
  %1839 = vst.msk [vmem:[#allocation2 + $0x24] sm:$0xf] %vm1829, %v1656
  %1840 = vst.msk [vmem:[#allocation2 + $0x28] sm:$0xf] %vm1829, %v1658
  %1841 = vst.msk [vmem:[#allocation2 + $0x2c] sm:$0xf] %vm1829, %v1660
  %1842 = vst.msk [vmem:[#allocation2 + $0x30] sm:$0xf] %vm1829, %v1662
  %1843 = vst.msk [vmem:[#allocation2 + $0x34] sm:$0xf] %vm1829, %v1664
  %1844 = vst.msk [vmem:[#allocation2 + $0x38] sm:$0xf] %vm1829, %v1666
  %1845 = vst.msk [vmem:[#allocation2 + $0x3c] sm:$0xf] %vm1829, %v1668
  %1846 = vst.msk [vmem:[#allocation2 + $0x40] sm:$0xf] %vm1829, %v1670
  %1847 = vst.msk [vmem:[#allocation2 + $0x44] sm:$0xf] %vm1829, %v1672
  %1848 = vst.msk [vmem:[#allocation2 + $0x48] sm:$0xf] %vm1829, %v1674
  %1849 = vst.msk [vmem:[#allocation2 + $0x4c] sm:$0xf] %vm1829, %v1676
  %1850 = vst.msk [vmem:[#allocation2 + $0x50] sm:$0xf] %vm1829, %v1678
  %1851 = vst.msk [vmem:[#allocation2 + $0x54] sm:$0xf] %vm1829, %v1680
  %1852 = vst.msk [vmem:[#allocation2 + $0x58] sm:$0xf] %vm1829, %v1682
  %1853 = vst.msk [vmem:[#allocation2 + $0x5c] sm:$0xf] %vm1829, %v1684
  %1854 = vst.msk [vmem:[#allocation2 + $0x60] sm:$0xf] %vm1829, %v1686
  %1855 = vst.msk [vmem:[#allocation2 + $0x64] sm:$0xf] %vm1829, %v1688
  %1856 = vst.msk [vmem:[#allocation2 + $0x68] sm:$0xf] %vm1829, %v1690
  %1857 = vst.msk [vmem:[#allocation2 + $0x6c] sm:$0xf] %vm1829, %v1692
  %1858 = vst.msk [vmem:[#allocation2 + $0x70] sm:$0xf] %vm1829, %v1694
  %1859 = vst.msk [vmem:[#allocation2 + $0x74] sm:$0xf] %vm1829, %v1696
  %1860 = vst.msk [vmem:[#allocation2 + $0x78] sm:$0xf] %vm1829, %v1698
  %1861 = vst.msk [vmem:[#allocation2 + $0x7c] sm:$0xf] %vm1829, %v1700
  %1862 = vst.msk [vmem:[#allocation2 + $0x80] sm:$0xf] %vm1829, %v1702
  %1863 = vst.msk [vmem:[#allocation2 + $0x84] sm:$0xf] %vm1829, %v1704
  %1864 = vst.msk [vmem:[#allocation2 + $0x88] sm:$0xf] %vm1829, %v1706
  %1865 = vst.msk [vmem:[#allocation2 + $0x8c] sm:$0xf] %vm1829, %v1708
  %1866 = vst.msk [vmem:[#allocation2 + $0x90] sm:$0xf] %vm1829, %v1710
  %1867 = vst.msk [vmem:[#allocation2 + $0x94] sm:$0xf] %vm1829, %v1712
  %1868 = vst.msk [vmem:[#allocation2 + $0x98] sm:$0xf] %vm1829, %v1714
  %1869 = vst.msk [vmem:[#allocation2 + $0x9c] sm:$0xf] %vm1829, %v1716
  %1870 = vst.msk [vmem:[#allocation2 + $0xa0] sm:$0xf] %vm1829, %v1718
  %1871 = vst.msk [vmem:[#allocation2 + $0xa4] sm:$0xf] %vm1829, %v1720
  %1872 = vst.msk [vmem:[#allocation2 + $0xa8] sm:$0xf] %vm1829, %v1722
  %1873 = vst.msk [vmem:[#allocation2 + $0xac] sm:$0xf] %vm1829, %v1724
  %1874 = vst.msk [vmem:[#allocation2 + $0xb0] sm:$0xf] %vm1829, %v1726
  %1875 = vst.msk [vmem:[#allocation2 + $0xb4] sm:$0xf] %vm1829, %v1728
  %1876 = vst.msk [vmem:[#allocation2 + $0xb8] sm:$0xf] %vm1829, %v1730
  %1877 = vst.msk [vmem:[#allocation2 + $0xbc] sm:$0xf] %vm1829, %v1732
  %1878 = vst.msk [vmem:[#allocation2 + $0xc0] sm:$0xf] %vm1829, %v1734
  %1879 = vst.msk [vmem:[#allocation2 + $0xc4] sm:$0xf] %vm1829, %v1736
  %1880 = vst.msk [vmem:[#allocation2 + $0xc8] sm:$0xf] %vm1829, %v1738
  %1881 = vst.msk [vmem:[#allocation2 + $0xcc] sm:$0xf] %vm1829, %v1740
  %1882 = vst.msk [vmem:[#allocation2 + $0xd0] sm:$0xf] %vm1829, %v1742
  %1883 = vst.msk [vmem:[#allocation2 + $0xd4] sm:$0xf] %vm1829, %v1744
  %1884 = vst.msk [vmem:[#allocation2 + $0xd8] sm:$0xf] %vm1829, %v1746
  %1885 = vst.msk [vmem:[#allocation2 + $0xdc] sm:$0xf] %vm1829, %v1748
  %1886 = vst.msk [vmem:[#allocation2 + $0xe0] sm:$0xf] %vm1829, %v1750
  %1887 = vst.msk [vmem:[#allocation2 + $0xe4] sm:$0xf] %vm1829, %v1752
  %1888 = vst.msk [vmem:[#allocation2 + $0xe8] sm:$0xf] %vm1829, %v1754
  %1889 = vst.msk [vmem:[#allocation2 + $0xec] sm:$0xf] %vm1829, %v1756
  %1890 = vst.msk [vmem:[#allocation2 + $0xf0] sm:$0xf] %vm1829, %v1758
  %1891 = vst.msk [vmem:[#allocation2 + $0xf4] sm:$0xf] %vm1829, %v1760
  %1892 = vst.msk [vmem:[#allocation2 + $0xf8] sm:$0xf] %vm1829, %v1762
  %1893 = vst.msk [vmem:[#allocation2 + $0xfc] sm:$0xf] %vm1829, %v1764
  %v1894 = vld [vmem:[%s289 + $0x1] sm:$0xff]
  %v1895 = vld [vmem:[%s289 + $0x9] sm:$0xff]
  %v1896 = vld [vmem:[%s289 + $0x19] sm:$0xff]
  %v1897 = vld [vmem:[%s289 + $0x21] sm:$0xff]
  %v1898 = vld [vmem:[%s289 + $0x31] sm:$0xff]
  %v1899 = vld [vmem:[%s289 + $0x39] sm:$0xff]
  %v1900 = vld [vmem:[%s289 + $0x49] sm:$0xff]
  %v1901 = vld [vmem:[%s289 + $0x51] sm:$0xff]
  %v1902 = vld [vmem:[%s289 + $0x61] sm:$0xff]
  %v1903 = vld [vmem:[%s289 + $0x69] sm:$0xff]
  %v1904 = vld [vmem:[%s289 + $0x79] sm:$0xff]
  %v1905 = vld [vmem:[%s289 + $0x81] sm:$0xff]
  %v1906 = vld [vmem:[%s289 + $0x91] sm:$0xff]
  %v1907 = vld [vmem:[%s289 + $0x99] sm:$0xff]
  %v1908 = vld [vmem:[%s289 + $0xa9] sm:$0xff]
  %v1909 = vld [vmem:[%s289 + $0xb1] sm:$0xff]
  %v1910 = vld [vmem:[%s289 + $0xc1] sm:$0xff]
  %v1911 = vld [vmem:[%s289 + $0xc9] sm:$0xff]
  %v1912 = vld [vmem:[%s289 + $0xd9] sm:$0xff]
  %v1913 = vld [vmem:[%s289 + $0xe1] sm:$0xff]
  %v1914 = vld [vmem:[%s289 + $0xf1] sm:$0xff]
  %v1915 = vld [vmem:[%s289 + $0xf9] sm:$0xff]
  %v1916 = vld [vmem:[%s289 + $0x109] sm:$0xff]
  %v1917 = vld [vmem:[%s289 + $0x111] sm:$0xff]
  %v1918 = vld [vmem:[%s289 + $0x121] sm:$0xff]
  %v1919 = vld [vmem:[%s289 + $0x129] sm:$0xff]
  %v1920 = vld [vmem:[%s289 + $0x139] sm:$0xff]
  %v1921 = vld [vmem:[%s289 + $0x141] sm:$0xff]
  %v1922 = vld [vmem:[%s289 + $0x151] sm:$0xff]
  %v1923 = vld [vmem:[%s289 + $0x159] sm:$0xff]
  %v1924 = vld [vmem:[%s289 + $0x169] sm:$0xff]
  %v1925 = vld [vmem:[%s289 + $0x171] sm:$0xff]
  %v1926 = vld [vmem:[%s289 + $0x1b1] sm:$0xff]
  %v1927 = vld [vmem:[%s289 + $0x1b9] sm:$0xff]
  %v1928 = vld [vmem:[%s289 + $0x1c9] sm:$0xff]
  %v1929 = vld [vmem:[%s289 + $0x1d1] sm:$0xff]
  %v1930 = vld [vmem:[%s289 + $0x1e1] sm:$0xff]
  %v1931 = vld [vmem:[%s289 + $0x1e9] sm:$0xff]
  %v1932 = vld [vmem:[%s289 + $0x1f9] sm:$0xff]
  %v1933 = vld [vmem:[%s289 + $0x201] sm:$0xff]
  %v1934 = vld [vmem:[%s289 + $0x211] sm:$0xff]
  %v1935 = vld [vmem:[%s289 + $0x219] sm:$0xff]
  %v1936 = vld [vmem:[%s289 + $0x229] sm:$0xff]
  %v1937 = vld [vmem:[%s289 + $0x231] sm:$0xff]
  %v1938 = vld [vmem:[%s289 + $0x241] sm:$0xff]
  %v1939 = vld [vmem:[%s289 + $0x249] sm:$0xff]
  %v1940 = vld [vmem:[%s289 + $0x259] sm:$0xff]
  %v1941 = vld [vmem:[%s289 + $0x261] sm:$0xff]
  %v1942 = vld [vmem:[%s289 + $0x271] sm:$0xff]
  %v1943 = vld [vmem:[%s289 + $0x279] sm:$0xff]
  %v1944 = vld [vmem:[%s289 + $0x289] sm:$0xff]
  %v1945 = vld [vmem:[%s289 + $0x291] sm:$0xff]
  %v1946 = vld [vmem:[%s289 + $0x2a1] sm:$0xff]
  %v1947 = vld [vmem:[%s289 + $0x2a9] sm:$0xff]
  %v1948 = vld [vmem:[%s289 + $0x2b9] sm:$0xff]
  %v1949 = vld [vmem:[%s289 + $0x2c1] sm:$0xff]
  %v1950 = vld [vmem:[%s289 + $0x2d1] sm:$0xff]
  %v1951 = vld [vmem:[%s289 + $0x2d9] sm:$0xff]
  %v1952 = vld [vmem:[%s289 + $0x2e9] sm:$0xff]
  %v1953 = vld [vmem:[%s289 + $0x2f1] sm:$0xff]
  %v1954 = vld [vmem:[%s289 + $0x301] sm:$0xff]
  %v1955 = vld [vmem:[%s289 + $0x309] sm:$0xff]
  %v1956 = vld [vmem:[%s289 + $0x319] sm:$0xff]
  %v1957 = vld [vmem:[%s289 + $0x321] sm:$0xff]
  %v1958 = vpack.c.bf16 %v1894, %v1894
  %v1959 = vpack.c.bf16 %v1895, %v1895
  %v1960 = vpack.c.bf16 %v1896, %v1896
  %v1961 = vpack.c.bf16 %v1897, %v1897
  %v1962 = vpack.c.bf16 %v1898, %v1898
  %v1963 = vpack.c.bf16 %v1899, %v1899
  %v1964 = vpack.c.bf16 %v1900, %v1900
  %v1965 = vpack.c.bf16 %v1901, %v1901
  %v1966 = vpack.c.bf16 %v1902, %v1902
  %v1967 = vpack.c.bf16 %v1903, %v1903
  %v1968 = vpack.c.bf16 %v1904, %v1904
  %v1969 = vpack.c.bf16 %v1905, %v1905
  %v1970 = vpack.c.bf16 %v1906, %v1906
  %v1971 = vpack.c.bf16 %v1907, %v1907
  %v1972 = vpack.c.bf16 %v1908, %v1908
  %v1973 = vpack.c.bf16 %v1909, %v1909
  %v1974 = vpack.c.bf16 %v1910, %v1910
  %v1975 = vpack.c.bf16 %v1911, %v1911
  %v1976 = vpack.c.bf16 %v1912, %v1912
  %v1977 = vpack.c.bf16 %v1913, %v1913
  %v1978 = vpack.c.bf16 %v1914, %v1914
  %v1979 = vpack.c.bf16 %v1915, %v1915
  %v1980 = vpack.c.bf16 %v1916, %v1916
  %v1981 = vpack.c.bf16 %v1917, %v1917
  %v1982 = vpack.c.bf16 %v1918, %v1918
  %v1983 = vpack.c.bf16 %v1919, %v1919
  %v1984 = vpack.c.bf16 %v1920, %v1920
  %v1985 = vpack.c.bf16 %v1921, %v1921
  %v1986 = vpack.c.bf16 %v1922, %v1922
  %v1987 = vpack.c.bf16 %v1923, %v1923
  %v1988 = vpack.c.bf16 %v1924, %v1924
  %v1989 = vpack.c.bf16 %v1925, %v1925
  %v1990 = vpack.c.bf16 %v1926, %v1926
  %v1991 = vpack.c.bf16 %v1927, %v1927
  %v1992 = vpack.c.bf16 %v1928, %v1928
  %v1993 = vpack.c.bf16 %v1929, %v1929
  %v1994 = vpack.c.bf16 %v1930, %v1930
  %v1995 = vpack.c.bf16 %v1931, %v1931
  %v1996 = vpack.c.bf16 %v1932, %v1932
  %v1997 = vpack.c.bf16 %v1933, %v1933
  %v1998 = vpack.c.bf16 %v1934, %v1934
  %v1999 = vpack.c.bf16 %v1935, %v1935
  %v2000 = vpack.c.bf16 %v1936, %v1936
  %v2001 = vpack.c.bf16 %v1937, %v1937
  %v2002 = vpack.c.bf16 %v1938, %v1938
  %v2003 = vpack.c.bf16 %v1939, %v1939
  %v2004 = vpack.c.bf16 %v1940, %v1940
  %v2005 = vpack.c.bf16 %v1941, %v1941
  %v2006 = vpack.c.bf16 %v1942, %v1942
  %v2007 = vpack.c.bf16 %v1943, %v1943
  %v2008 = vpack.c.bf16 %v1944, %v1944
  %v2009 = vpack.c.bf16 %v1945, %v1945
  %v2010 = vpack.c.bf16 %v1946, %v1946
  %v2011 = vpack.c.bf16 %v1947, %v1947
  %v2012 = vpack.c.bf16 %v1948, %v1948
  %v2013 = vpack.c.bf16 %v1949, %v1949
  %v2014 = vpack.c.bf16 %v1950, %v1950
  %v2015 = vpack.c.bf16 %v1951, %v1951
  %v2016 = vpack.c.bf16 %v1952, %v1952
  %v2017 = vpack.c.bf16 %v1953, %v1953
  %v2018 = vpack.c.bf16 %v1954, %v1954
  %v2019 = vpack.c.bf16 %v1955, %v1955
  %v2020 = vpack.c.bf16 %v1956, %v1956
  %v2021 = vpack.c.bf16 %v1957, %v1957
  %2086 = vrot.lane.b32.xlu0 %v1958, 12
  %v2087 = vpop.permute.xlu0 %2086
  %2088 = vrot.lane.b32.xlu0 %v1959, 12
  %v2089 = vpop.permute.xlu0 %2088
  %2090 = vrot.lane.b32.xlu0 %v1960, 12
  %v2091 = vpop.permute.xlu0 %2090
  %2092 = vrot.lane.b32.xlu0 %v1961, 12
  %v2093 = vpop.permute.xlu0 %2092
  %2094 = vrot.lane.b32.xlu0 %v1962, 12
  %v2095 = vpop.permute.xlu0 %2094
  %2096 = vrot.lane.b32.xlu0 %v1963, 12
  %v2097 = vpop.permute.xlu0 %2096
  %2098 = vrot.lane.b32.xlu0 %v1964, 12
  %v2099 = vpop.permute.xlu0 %2098
  %2100 = vrot.lane.b32.xlu0 %v1965, 12
  %v2101 = vpop.permute.xlu0 %2100
  %2102 = vrot.lane.b32.xlu0 %v1966, 12
  %v2103 = vpop.permute.xlu0 %2102
  %2104 = vrot.lane.b32.xlu0 %v1967, 12
  %v2105 = vpop.permute.xlu0 %2104
  %2106 = vrot.lane.b32.xlu0 %v1968, 12
  %v2107 = vpop.permute.xlu0 %2106
  %2108 = vrot.lane.b32.xlu0 %v1969, 12
  %v2109 = vpop.permute.xlu0 %2108
  %2110 = vrot.lane.b32.xlu0 %v1970, 12
  %v2111 = vpop.permute.xlu0 %2110
  %2112 = vrot.lane.b32.xlu0 %v1971, 12
  %v2113 = vpop.permute.xlu0 %2112
  %2114 = vrot.lane.b32.xlu0 %v1972, 12
  %v2115 = vpop.permute.xlu0 %2114
  %2116 = vrot.lane.b32.xlu0 %v1973, 12
  %v2117 = vpop.permute.xlu0 %2116
  %2118 = vrot.lane.b32.xlu0 %v1974, 12
  %v2119 = vpop.permute.xlu0 %2118
  %2120 = vrot.lane.b32.xlu0 %v1975, 12
  %v2121 = vpop.permute.xlu0 %2120
  %2122 = vrot.lane.b32.xlu0 %v1976, 12
  %v2123 = vpop.permute.xlu0 %2122
  %2124 = vrot.lane.b32.xlu0 %v1977, 12
  %v2125 = vpop.permute.xlu0 %2124
  %2126 = vrot.lane.b32.xlu0 %v1978, 12
  %v2127 = vpop.permute.xlu0 %2126
  %2128 = vrot.lane.b32.xlu0 %v1979, 12
  %v2129 = vpop.permute.xlu0 %2128
  %2130 = vrot.lane.b32.xlu0 %v1980, 12
  %v2131 = vpop.permute.xlu0 %2130
  %2132 = vrot.lane.b32.xlu0 %v1981, 12
  %v2133 = vpop.permute.xlu0 %2132
  %2134 = vrot.lane.b32.xlu0 %v1982, 12
  %v2135 = vpop.permute.xlu0 %2134
  %2136 = vrot.lane.b32.xlu0 %v1983, 12
  %v2137 = vpop.permute.xlu0 %2136
  %2138 = vrot.lane.b32.xlu0 %v1984, 12
  %v2139 = vpop.permute.xlu0 %2138
  %2140 = vrot.lane.b32.xlu0 %v1985, 12
  %v2141 = vpop.permute.xlu0 %2140
  %2142 = vrot.lane.b32.xlu0 %v1986, 12
  %v2143 = vpop.permute.xlu0 %2142
  %2144 = vrot.lane.b32.xlu0 %v1987, 12
  %v2145 = vpop.permute.xlu0 %2144
  %2146 = vrot.lane.b32.xlu0 %v1988, 12
  %v2147 = vpop.permute.xlu0 %2146
  %2148 = vrot.lane.b32.xlu0 %v1989, 12
  %v2149 = vpop.permute.xlu0 %2148
  %2150 = vrot.lane.b32.xlu0 %v1990, 12
  %v2151 = vpop.permute.xlu0 %2150
  %2152 = vrot.lane.b32.xlu0 %v1991, 12
  %v2153 = vpop.permute.xlu0 %2152
  %2154 = vrot.lane.b32.xlu0 %v1992, 12
  %v2155 = vpop.permute.xlu0 %2154
  %2156 = vrot.lane.b32.xlu0 %v1993, 12
  %v2157 = vpop.permute.xlu0 %2156
  %2158 = vrot.lane.b32.xlu0 %v1994, 12
  %v2159 = vpop.permute.xlu0 %2158
  %2160 = vrot.lane.b32.xlu0 %v1995, 12
  %v2161 = vpop.permute.xlu0 %2160
  %2162 = vrot.lane.b32.xlu0 %v1996, 12
  %v2163 = vpop.permute.xlu0 %2162
  %2164 = vrot.lane.b32.xlu0 %v1997, 12
  %v2165 = vpop.permute.xlu0 %2164
  %2166 = vrot.lane.b32.xlu0 %v1998, 12
  %v2167 = vpop.permute.xlu0 %2166
  %2168 = vrot.lane.b32.xlu0 %v1999, 12
  %v2169 = vpop.permute.xlu0 %2168
  %2170 = vrot.lane.b32.xlu0 %v2000, 12
  %v2171 = vpop.permute.xlu0 %2170
  %2172 = vrot.lane.b32.xlu0 %v2001, 12
  %v2173 = vpop.permute.xlu0 %2172
  %2174 = vrot.lane.b32.xlu0 %v2002, 12
  %v2175 = vpop.permute.xlu0 %2174
  %2176 = vrot.lane.b32.xlu0 %v2003, 12
  %v2177 = vpop.permute.xlu0 %2176
  %2178 = vrot.lane.b32.xlu0 %v2004, 12
  %v2179 = vpop.permute.xlu0 %2178
  %2180 = vrot.lane.b32.xlu0 %v2005, 12
  %v2181 = vpop.permute.xlu0 %2180
  %2182 = vrot.lane.b32.xlu0 %v2006, 12
  %v2183 = vpop.permute.xlu0 %2182
  %2184 = vrot.lane.b32.xlu0 %v2007, 12
  %v2185 = vpop.permute.xlu0 %2184
  %2186 = vrot.lane.b32.xlu0 %v2008, 12
  %v2187 = vpop.permute.xlu0 %2186
  %2188 = vrot.lane.b32.xlu0 %v2009, 12
  %v2189 = vpop.permute.xlu0 %2188
  %2190 = vrot.lane.b32.xlu0 %v2010, 12
  %v2191 = vpop.permute.xlu0 %2190
  %2192 = vrot.lane.b32.xlu0 %v2011, 12
  %v2193 = vpop.permute.xlu0 %2192
  %2194 = vrot.lane.b32.xlu0 %v2012, 12
  %v2195 = vpop.permute.xlu0 %2194
  %2196 = vrot.lane.b32.xlu0 %v2013, 12
  %v2197 = vpop.permute.xlu0 %2196
  %2198 = vrot.lane.b32.xlu0 %v2014, 12
  %v2199 = vpop.permute.xlu0 %2198
  %2200 = vrot.lane.b32.xlu0 %v2015, 12
  %v2201 = vpop.permute.xlu0 %2200
  %2202 = vrot.lane.b32.xlu0 %v2016, 12
  %v2203 = vpop.permute.xlu0 %2202
  %2204 = vrot.lane.b32.xlu0 %v2017, 12
  %v2205 = vpop.permute.xlu0 %2204
  %2206 = vrot.lane.b32.xlu0 %v2018, 12
  %v2207 = vpop.permute.xlu0 %2206
  %2208 = vrot.lane.b32.xlu0 %v2019, 12
  %v2209 = vpop.permute.xlu0 %2208
  %2210 = vrot.lane.b32.xlu0 %v2020, 12
  %v2211 = vpop.permute.xlu0 %2210
  %2212 = vrot.lane.b32.xlu0 %v2021, 12
  %v2213 = vpop.permute.xlu0 %2212
  %vm2278 = vcmask 117856
  %2279 = vst.msk [vmem:[#allocation2] sm:$0xf] %vm2278, %v2087
  %2280 = vst.msk [vmem:[#allocation2 + $0x4] sm:$0xf] %vm2278, %v2089
  %2281 = vst.msk [vmem:[#allocation2 + $0x8] sm:$0xf] %vm2278, %v2091
  %2282 = vst.msk [vmem:[#allocation2 + $0xc] sm:$0xf] %vm2278, %v2093
  %2283 = vst.msk [vmem:[#allocation2 + $0x10] sm:$0xf] %vm2278, %v2095
  %2284 = vst.msk [vmem:[#allocation2 + $0x14] sm:$0xf] %vm2278, %v2097
  %2285 = vst.msk [vmem:[#allocation2 + $0x18] sm:$0xf] %vm2278, %v2099
  %2286 = vst.msk [vmem:[#allocation2 + $0x1c] sm:$0xf] %vm2278, %v2101
  %2287 = vst.msk [vmem:[#allocation2 + $0x20] sm:$0xf] %vm2278, %v2103
  %2288 = vst.msk [vmem:[#allocation2 + $0x24] sm:$0xf] %vm2278, %v2105
  %2289 = vst.msk [vmem:[#allocation2 + $0x28] sm:$0xf] %vm2278, %v2107
  %2290 = vst.msk [vmem:[#allocation2 + $0x2c] sm:$0xf] %vm2278, %v2109
  %2291 = vst.msk [vmem:[#allocation2 + $0x30] sm:$0xf] %vm2278, %v2111
  %2292 = vst.msk [vmem:[#allocation2 + $0x34] sm:$0xf] %vm2278, %v2113
  %2293 = vst.msk [vmem:[#allocation2 + $0x38] sm:$0xf] %vm2278, %v2115
  %2294 = vst.msk [vmem:[#allocation2 + $0x3c] sm:$0xf] %vm2278, %v2117
  %2295 = vst.msk [vmem:[#allocation2 + $0x40] sm:$0xf] %vm2278, %v2119
  %2296 = vst.msk [vmem:[#allocation2 + $0x44] sm:$0xf] %vm2278, %v2121
  %2297 = vst.msk [vmem:[#allocation2 + $0x48] sm:$0xf] %vm2278, %v2123
  %2298 = vst.msk [vmem:[#allocation2 + $0x4c] sm:$0xf] %vm2278, %v2125
  %2299 = vst.msk [vmem:[#allocation2 + $0x50] sm:$0xf] %vm2278, %v2127
  %2300 = vst.msk [vmem:[#allocation2 + $0x54] sm:$0xf] %vm2278, %v2129
  %2301 = vst.msk [vmem:[#allocation2 + $0x58] sm:$0xf] %vm2278, %v2131
  %2302 = vst.msk [vmem:[#allocation2 + $0x5c] sm:$0xf] %vm2278, %v2133
  %2303 = vst.msk [vmem:[#allocation2 + $0x60] sm:$0xf] %vm2278, %v2135
  %2304 = vst.msk [vmem:[#allocation2 + $0x64] sm:$0xf] %vm2278, %v2137
  %2305 = vst.msk [vmem:[#allocation2 + $0x68] sm:$0xf] %vm2278, %v2139
  %2306 = vst.msk [vmem:[#allocation2 + $0x6c] sm:$0xf] %vm2278, %v2141
  %2307 = vst.msk [vmem:[#allocation2 + $0x70] sm:$0xf] %vm2278, %v2143
  %2308 = vst.msk [vmem:[#allocation2 + $0x74] sm:$0xf] %vm2278, %v2145
  %2309 = vst.msk [vmem:[#allocation2 + $0x78] sm:$0xf] %vm2278, %v2147
  %2310 = vst.msk [vmem:[#allocation2 + $0x7c] sm:$0xf] %vm2278, %v2149
  %2311 = vst.msk [vmem:[#allocation2 + $0x80] sm:$0xf] %vm2278, %v2151
  %2312 = vst.msk [vmem:[#allocation2 + $0x84] sm:$0xf] %vm2278, %v2153
  %2313 = vst.msk [vmem:[#allocation2 + $0x88] sm:$0xf] %vm2278, %v2155
  %2314 = vst.msk [vmem:[#allocation2 + $0x8c] sm:$0xf] %vm2278, %v2157
  %2315 = vst.msk [vmem:[#allocation2 + $0x90] sm:$0xf] %vm2278, %v2159
  %2316 = vst.msk [vmem:[#allocation2 + $0x94] sm:$0xf] %vm2278, %v2161
  %2317 = vst.msk [vmem:[#allocation2 + $0x98] sm:$0xf] %vm2278, %v2163
  %2318 = vst.msk [vmem:[#allocation2 + $0x9c] sm:$0xf] %vm2278, %v2165
  %2319 = vst.msk [vmem:[#allocation2 + $0xa0] sm:$0xf] %vm2278, %v2167
  %2320 = vst.msk [vmem:[#allocation2 + $0xa4] sm:$0xf] %vm2278, %v2169
  %2321 = vst.msk [vmem:[#allocation2 + $0xa8] sm:$0xf] %vm2278, %v2171
  %2322 = vst.msk [vmem:[#allocation2 + $0xac] sm:$0xf] %vm2278, %v2173
  %2323 = vst.msk [vmem:[#allocation2 + $0xb0] sm:$0xf] %vm2278, %v2175
  %2324 = vst.msk [vmem:[#allocation2 + $0xb4] sm:$0xf] %vm2278, %v2177
  %2325 = vst.msk [vmem:[#allocation2 + $0xb8] sm:$0xf] %vm2278, %v2179
  %2326 = vst.msk [vmem:[#allocation2 + $0xbc] sm:$0xf] %vm2278, %v2181
  %2327 = vst.msk [vmem:[#allocation2 + $0xc0] sm:$0xf] %vm2278, %v2183
  %2328 = vst.msk [vmem:[#allocation2 + $0xc4] sm:$0xf] %vm2278, %v2185
  %2329 = vst.msk [vmem:[#allocation2 + $0xc8] sm:$0xf] %vm2278, %v2187
  %2330 = vst.msk [vmem:[#allocation2 + $0xcc] sm:$0xf] %vm2278, %v2189
  %2331 = vst.msk [vmem:[#allocation2 + $0xd0] sm:$0xf] %vm2278, %v2191
  %2332 = vst.msk [vmem:[#allocation2 + $0xd4] sm:$0xf] %vm2278, %v2193
  %2333 = vst.msk [vmem:[#allocation2 + $0xd8] sm:$0xf] %vm2278, %v2195
  %2334 = vst.msk [vmem:[#allocation2 + $0xdc] sm:$0xf] %vm2278, %v2197
  %2335 = vst.msk [vmem:[#allocation2 + $0xe0] sm:$0xf] %vm2278, %v2199
  %2336 = vst.msk [vmem:[#allocation2 + $0xe4] sm:$0xf] %vm2278, %v2201
  %2337 = vst.msk [vmem:[#allocation2 + $0xe8] sm:$0xf] %vm2278, %v2203
  %2338 = vst.msk [vmem:[#allocation2 + $0xec] sm:$0xf] %vm2278, %v2205
  %2339 = vst.msk [vmem:[#allocation2 + $0xf0] sm:$0xf] %vm2278, %v2207
  %2340 = vst.msk [vmem:[#allocation2 + $0xf4] sm:$0xf] %vm2278, %v2209
  %2341 = vst.msk [vmem:[#allocation2 + $0xf8] sm:$0xf] %vm2278, %v2211
  %2342 = vst.msk [vmem:[#allocation2 + $0xfc] sm:$0xf] %vm2278, %v2213
  %v2343 = vld [vmem:[%s289 + $0x2] sm:$0xff]
  %v2344 = vld [vmem:[%s289 + $0xa] sm:$0xff]
  %v2345 = vld [vmem:[%s289 + $0x1a] sm:$0xff]
  %v2346 = vld [vmem:[%s289 + $0x22] sm:$0xff]
  %v2347 = vld [vmem:[%s289 + $0x32] sm:$0xff]
  %v2348 = vld [vmem:[%s289 + $0x3a] sm:$0xff]
  %v2349 = vld [vmem:[%s289 + $0x4a] sm:$0xff]
  %v2350 = vld [vmem:[%s289 + $0x52] sm:$0xff]
  %v2351 = vld [vmem:[%s289 + $0x62] sm:$0xff]
  %v2352 = vld [vmem:[%s289 + $0x6a] sm:$0xff]
  %v2353 = vld [vmem:[%s289 + $0x7a] sm:$0xff]
  %v2354 = vld [vmem:[%s289 + $0x82] sm:$0xff]
  %v2355 = vld [vmem:[%s289 + $0x92] sm:$0xff]
  %v2356 = vld [vmem:[%s289 + $0x9a] sm:$0xff]
  %v2357 = vld [vmem:[%s289 + $0xaa] sm:$0xff]
  %v2358 = vld [vmem:[%s289 + $0xb2] sm:$0xff]
  %v2359 = vld [vmem:[%s289 + $0xc2] sm:$0xff]
  %v2360 = vld [vmem:[%s289 + $0xca] sm:$0xff]
  %v2361 = vld [vmem:[%s289 + $0xda] sm:$0xff]
  %v2362 = vld [vmem:[%s289 + $0xe2] sm:$0xff]
  %v2363 = vld [vmem:[%s289 + $0xf2] sm:$0xff]
  %v2364 = vld [vmem:[%s289 + $0xfa] sm:$0xff]
  %v2365 = vld [vmem:[%s289 + $0x10a] sm:$0xff]
  %v2366 = vld [vmem:[%s289 + $0x112] sm:$0xff]
  %v2367 = vld [vmem:[%s289 + $0x122] sm:$0xff]
  %v2368 = vld [vmem:[%s289 + $0x12a] sm:$0xff]
  %v2369 = vld [vmem:[%s289 + $0x13a] sm:$0xff]
  %v2370 = vld [vmem:[%s289 + $0x142] sm:$0xff]
  %v2371 = vld [vmem:[%s289 + $0x152] sm:$0xff]
  %v2372 = vld [vmem:[%s289 + $0x15a] sm:$0xff]
  %v2373 = vld [vmem:[%s289 + $0x16a] sm:$0xff]
  %v2374 = vld [vmem:[%s289 + $0x172] sm:$0xff]
  %v2375 = vld [vmem:[%s289 + $0x1b2] sm:$0xff]
  %v2376 = vld [vmem:[%s289 + $0x1ba] sm:$0xff]
  %v2377 = vld [vmem:[%s289 + $0x1ca] sm:$0xff]
  %v2378 = vld [vmem:[%s289 + $0x1d2] sm:$0xff]
  %v2379 = vld [vmem:[%s289 + $0x1e2] sm:$0xff]
  %v2380 = vld [vmem:[%s289 + $0x1ea] sm:$0xff]
  %v2381 = vld [vmem:[%s289 + $0x1fa] sm:$0xff]
  %v2382 = vld [vmem:[%s289 + $0x202] sm:$0xff]
  %v2383 = vld [vmem:[%s289 + $0x212] sm:$0xff]
  %v2384 = vld [vmem:[%s289 + $0x21a] sm:$0xff]
  %v2385 = vld [vmem:[%s289 + $0x22a] sm:$0xff]
  %v2386 = vld [vmem:[%s289 + $0x232] sm:$0xff]
  %v2387 = vld [vmem:[%s289 + $0x242] sm:$0xff]
  %v2388 = vld [vmem:[%s289 + $0x24a] sm:$0xff]
  %v2389 = vld [vmem:[%s289 + $0x25a] sm:$0xff]
  %v2390 = vld [vmem:[%s289 + $0x262] sm:$0xff]
  %v2391 = vld [vmem:[%s289 + $0x272] sm:$0xff]
  %v2392 = vld [vmem:[%s289 + $0x27a] sm:$0xff]
  %v2393 = vld [vmem:[%s289 + $0x28a] sm:$0xff]
  %v2394 = vld [vmem:[%s289 + $0x292] sm:$0xff]
  %v2395 = vld [vmem:[%s289 + $0x2a2] sm:$0xff]
  %v2396 = vld [vmem:[%s289 + $0x2aa] sm:$0xff]
  %v2397 = vld [vmem:[%s289 + $0x2ba] sm:$0xff]
  %v2398 = vld [vmem:[%s289 + $0x2c2] sm:$0xff]
  %v2399 = vld [vmem:[%s289 + $0x2d2] sm:$0xff]
  %v2400 = vld [vmem:[%s289 + $0x2da] sm:$0xff]
  %v2401 = vld [vmem:[%s289 + $0x2ea] sm:$0xff]
  %v2402 = vld [vmem:[%s289 + $0x2f2] sm:$0xff]
  %v2403 = vld [vmem:[%s289 + $0x302] sm:$0xff]
  %v2404 = vld [vmem:[%s289 + $0x30a] sm:$0xff]
  %v2405 = vld [vmem:[%s289 + $0x31a] sm:$0xff]
  %v2406 = vld [vmem:[%s289 + $0x322] sm:$0xff]
  %v2407 = vpack.c.bf16 %v2343, %v2343
  %v2408 = vpack.c.bf16 %v2344, %v2344
  %v2409 = vpack.c.bf16 %v2345, %v2345
  %v2410 = vpack.c.bf16 %v2346, %v2346
  %v2411 = vpack.c.bf16 %v2347, %v2347
  %v2412 = vpack.c.bf16 %v2348, %v2348
  %v2413 = vpack.c.bf16 %v2349, %v2349
  %v2414 = vpack.c.bf16 %v2350, %v2350
  %v2415 = vpack.c.bf16 %v2351, %v2351
  %v2416 = vpack.c.bf16 %v2352, %v2352
  %v2417 = vpack.c.bf16 %v2353, %v2353
  %v2418 = vpack.c.bf16 %v2354, %v2354
  %v2419 = vpack.c.bf16 %v2355, %v2355
  %v2420 = vpack.c.bf16 %v2356, %v2356
  %v2421 = vpack.c.bf16 %v2357, %v2357
  %v2422 = vpack.c.bf16 %v2358, %v2358
  %v2423 = vpack.c.bf16 %v2359, %v2359
  %v2424 = vpack.c.bf16 %v2360, %v2360
  %v2425 = vpack.c.bf16 %v2361, %v2361
  %v2426 = vpack.c.bf16 %v2362, %v2362
  %v2427 = vpack.c.bf16 %v2363, %v2363
  %v2428 = vpack.c.bf16 %v2364, %v2364
  %v2429 = vpack.c.bf16 %v2365, %v2365
  %v2430 = vpack.c.bf16 %v2366, %v2366
  %v2431 = vpack.c.bf16 %v2367, %v2367
  %v2432 = vpack.c.bf16 %v2368, %v2368
  %v2433 = vpack.c.bf16 %v2369, %v2369
  %v2434 = vpack.c.bf16 %v2370, %v2370
  %v2435 = vpack.c.bf16 %v2371, %v2371
  %v2436 = vpack.c.bf16 %v2372, %v2372
  %v2437 = vpack.c.bf16 %v2373, %v2373
  %v2438 = vpack.c.bf16 %v2374, %v2374
  %v2439 = vpack.c.bf16 %v2375, %v2375
  %v2440 = vpack.c.bf16 %v2376, %v2376
  %v2441 = vpack.c.bf16 %v2377, %v2377
  %v2442 = vpack.c.bf16 %v2378, %v2378
  %v2443 = vpack.c.bf16 %v2379, %v2379
  %v2444 = vpack.c.bf16 %v2380, %v2380
  %v2445 = vpack.c.bf16 %v2381, %v2381
  %v2446 = vpack.c.bf16 %v2382, %v2382
  %v2447 = vpack.c.bf16 %v2383, %v2383
  %v2448 = vpack.c.bf16 %v2384, %v2384
  %v2449 = vpack.c.bf16 %v2385, %v2385
  %v2450 = vpack.c.bf16 %v2386, %v2386
  %v2451 = vpack.c.bf16 %v2387, %v2387
  %v2452 = vpack.c.bf16 %v2388, %v2388
  %v2453 = vpack.c.bf16 %v2389, %v2389
  %v2454 = vpack.c.bf16 %v2390, %v2390
  %v2455 = vpack.c.bf16 %v2391, %v2391
  %v2456 = vpack.c.bf16 %v2392, %v2392
  %v2457 = vpack.c.bf16 %v2393, %v2393
  %v2458 = vpack.c.bf16 %v2394, %v2394
  %v2459 = vpack.c.bf16 %v2395, %v2395
  %v2460 = vpack.c.bf16 %v2396, %v2396
  %v2461 = vpack.c.bf16 %v2397, %v2397
  %v2462 = vpack.c.bf16 %v2398, %v2398
  %v2463 = vpack.c.bf16 %v2399, %v2399
  %v2464 = vpack.c.bf16 %v2400, %v2400
  %v2465 = vpack.c.bf16 %v2401, %v2401
  %v2466 = vpack.c.bf16 %v2402, %v2402
  %v2467 = vpack.c.bf16 %v2403, %v2403
  %v2468 = vpack.c.bf16 %v2404, %v2404
  %v2469 = vpack.c.bf16 %v2405, %v2405
  %v2470 = vpack.c.bf16 %v2406, %v2406
  %2535 = vrot.lane.b32.xlu0 %v2407, 15
  %v2536 = vpop.permute.xlu0 %2535
  %2537 = vrot.lane.b32.xlu0 %v2408, 15
  %v2538 = vpop.permute.xlu0 %2537
  %2539 = vrot.lane.b32.xlu0 %v2409, 15
  %v2540 = vpop.permute.xlu0 %2539
  %2541 = vrot.lane.b32.xlu0 %v2410, 15
  %v2542 = vpop.permute.xlu0 %2541
  %2543 = vrot.lane.b32.xlu0 %v2411, 15
  %v2544 = vpop.permute.xlu0 %2543
  %2545 = vrot.lane.b32.xlu0 %v2412, 15
  %v2546 = vpop.permute.xlu0 %2545
  %2547 = vrot.lane.b32.xlu0 %v2413, 15
  %v2548 = vpop.permute.xlu0 %2547
  %2549 = vrot.lane.b32.xlu0 %v2414, 15
  %v2550 = vpop.permute.xlu0 %2549
  %2551 = vrot.lane.b32.xlu0 %v2415, 15
  %v2552 = vpop.permute.xlu0 %2551
  %2553 = vrot.lane.b32.xlu0 %v2416, 15
  %v2554 = vpop.permute.xlu0 %2553
  %2555 = vrot.lane.b32.xlu0 %v2417, 15
  %v2556 = vpop.permute.xlu0 %2555
  %2557 = vrot.lane.b32.xlu0 %v2418, 15
  %v2558 = vpop.permute.xlu0 %2557
  %2559 = vrot.lane.b32.xlu0 %v2419, 15
  %v2560 = vpop.permute.xlu0 %2559
  %2561 = vrot.lane.b32.xlu0 %v2420, 15
  %v2562 = vpop.permute.xlu0 %2561
  %2563 = vrot.lane.b32.xlu0 %v2421, 15
  %v2564 = vpop.permute.xlu0 %2563
  %2565 = vrot.lane.b32.xlu0 %v2422, 15
  %v2566 = vpop.permute.xlu0 %2565
  %2567 = vrot.lane.b32.xlu0 %v2423, 15
  %v2568 = vpop.permute.xlu0 %2567
  %2569 = vrot.lane.b32.xlu0 %v2424, 15
  %v2570 = vpop.permute.xlu0 %2569
  %2571 = vrot.lane.b32.xlu0 %v2425, 15
  %v2572 = vpop.permute.xlu0 %2571
  %2573 = vrot.lane.b32.xlu0 %v2426, 15
  %v2574 = vpop.permute.xlu0 %2573
  %2575 = vrot.lane.b32.xlu0 %v2427, 15
  %v2576 = vpop.permute.xlu0 %2575
  %2577 = vrot.lane.b32.xlu0 %v2428, 15
  %v2578 = vpop.permute.xlu0 %2577
  %2579 = vrot.lane.b32.xlu0 %v2429, 15
  %v2580 = vpop.permute.xlu0 %2579
  %2581 = vrot.lane.b32.xlu0 %v2430, 15
  %v2582 = vpop.permute.xlu0 %2581
  %2583 = vrot.lane.b32.xlu0 %v2431, 15
  %v2584 = vpop.permute.xlu0 %2583
  %2585 = vrot.lane.b32.xlu0 %v2432, 15
  %v2586 = vpop.permute.xlu0 %2585
  %2587 = vrot.lane.b32.xlu0 %v2433, 15
  %v2588 = vpop.permute.xlu0 %2587
  %2589 = vrot.lane.b32.xlu0 %v2434, 15
  %v2590 = vpop.permute.xlu0 %2589
  %2591 = vrot.lane.b32.xlu0 %v2435, 15
  %v2592 = vpop.permute.xlu0 %2591
  %2593 = vrot.lane.b32.xlu0 %v2436, 15
  %v2594 = vpop.permute.xlu0 %2593
  %2595 = vrot.lane.b32.xlu0 %v2437, 15
  %v2596 = vpop.permute.xlu0 %2595
  %2597 = vrot.lane.b32.xlu0 %v2438, 15
  %v2598 = vpop.permute.xlu0 %2597
  %2599 = vrot.lane.b32.xlu0 %v2439, 15
  %v2600 = vpop.permute.xlu0 %2599
  %2601 = vrot.lane.b32.xlu0 %v2440, 15
  %v2602 = vpop.permute.xlu0 %2601
  %2603 = vrot.lane.b32.xlu0 %v2441, 15
  %v2604 = vpop.permute.xlu0 %2603
  %2605 = vrot.lane.b32.xlu0 %v2442, 15
  %v2606 = vpop.permute.xlu0 %2605
  %2607 = vrot.lane.b32.xlu0 %v2443, 15
  %v2608 = vpop.permute.xlu0 %2607
  %2609 = vrot.lane.b32.xlu0 %v2444, 15
  %v2610 = vpop.permute.xlu0 %2609
  %2611 = vrot.lane.b32.xlu0 %v2445, 15
  %v2612 = vpop.permute.xlu0 %2611
  %2613 = vrot.lane.b32.xlu0 %v2446, 15
  %v2614 = vpop.permute.xlu0 %2613
  %2615 = vrot.lane.b32.xlu0 %v2447, 15
  %v2616 = vpop.permute.xlu0 %2615
  %2617 = vrot.lane.b32.xlu0 %v2448, 15
  %v2618 = vpop.permute.xlu0 %2617
  %2619 = vrot.lane.b32.xlu0 %v2449, 15
  %v2620 = vpop.permute.xlu0 %2619
  %2621 = vrot.lane.b32.xlu0 %v2450, 15
  %v2622 = vpop.permute.xlu0 %2621
  %2623 = vrot.lane.b32.xlu0 %v2451, 15
  %v2624 = vpop.permute.xlu0 %2623
  %2625 = vrot.lane.b32.xlu0 %v2452, 15
  %v2626 = vpop.permute.xlu0 %2625
  %2627 = vrot.lane.b32.xlu0 %v2453, 15
  %v2628 = vpop.permute.xlu0 %2627
  %2629 = vrot.lane.b32.xlu0 %v2454, 15
  %v2630 = vpop.permute.xlu0 %2629
  %2631 = vrot.lane.b32.xlu0 %v2455, 15
  %v2632 = vpop.permute.xlu0 %2631
  %2633 = vrot.lane.b32.xlu0 %v2456, 15
  %v2634 = vpop.permute.xlu0 %2633
  %2635 = vrot.lane.b32.xlu0 %v2457, 15
  %v2636 = vpop.permute.xlu0 %2635
  %2637 = vrot.lane.b32.xlu0 %v2458, 15
  %v2638 = vpop.permute.xlu0 %2637
  %2639 = vrot.lane.b32.xlu0 %v2459, 15
  %v2640 = vpop.permute.xlu0 %2639
  %2641 = vrot.lane.b32.xlu0 %v2460, 15
  %v2642 = vpop.permute.xlu0 %2641
  %2643 = vrot.lane.b32.xlu0 %v2461, 15
  %v2644 = vpop.permute.xlu0 %2643
  %2645 = vrot.lane.b32.xlu0 %v2462, 15
  %v2646 = vpop.permute.xlu0 %2645
  %2647 = vrot.lane.b32.xlu0 %v2463, 15
  %v2648 = vpop.permute.xlu0 %2647
  %2649 = vrot.lane.b32.xlu0 %v2464, 15
  %v2650 = vpop.permute.xlu0 %2649
  %2651 = vrot.lane.b32.xlu0 %v2465, 15
  %v2652 = vpop.permute.xlu0 %2651
  %2653 = vrot.lane.b32.xlu0 %v2466, 15
  %v2654 = vpop.permute.xlu0 %2653
  %2655 = vrot.lane.b32.xlu0 %v2467, 15
  %v2656 = vpop.permute.xlu0 %2655
  %2657 = vrot.lane.b32.xlu0 %v2468, 15
  %v2658 = vpop.permute.xlu0 %2657
  %2659 = vrot.lane.b32.xlu0 %v2469, 15
  %v2660 = vpop.permute.xlu0 %2659
  %2661 = vrot.lane.b32.xlu0 %v2470, 15
  %v2662 = vpop.permute.xlu0 %2661
  %vm2727 = vcmask 142456
  %2728 = vst.msk [vmem:[#allocation2] sm:$0xf] %vm2727, %v2536
  %2729 = vst.msk [vmem:[#allocation2 + $0x4] sm:$0xf] %vm2727, %v2538
  %2730 = vst.msk [vmem:[#allocation2 + $0x8] sm:$0xf] %vm2727, %v2540
  %2731 = vst.msk [vmem:[#allocation2 + $0xc] sm:$0xf] %vm2727, %v2542
  %2732 = vst.msk [vmem:[#allocation2 + $0x10] sm:$0xf] %vm2727, %v2544
  %2733 = vst.msk [vmem:[#allocation2 + $0x14] sm:$0xf] %vm2727, %v2546
  %2734 = vst.msk [vmem:[#allocation2 + $0x18] sm:$0xf] %vm2727, %v2548
  %2735 = vst.msk [vmem:[#allocation2 + $0x1c] sm:$0xf] %vm2727, %v2550
  %2736 = vst.msk [vmem:[#allocation2 + $0x20] sm:$0xf] %vm2727, %v2552
  %2737 = vst.msk [vmem:[#allocation2 + $0x24] sm:$0xf] %vm2727, %v2554
  %2738 = vst.msk [vmem:[#allocation2 + $0x28] sm:$0xf] %vm2727, %v2556
  %2739 = vst.msk [vmem:[#allocation2 + $0x2c] sm:$0xf] %vm2727, %v2558
  %2740 = vst.msk [vmem:[#allocation2 + $0x30] sm:$0xf] %vm2727, %v2560
  %2741 = vst.msk [vmem:[#allocation2 + $0x34] sm:$0xf] %vm2727, %v2562
  %2742 = vst.msk [vmem:[#allocation2 + $0x38] sm:$0xf] %vm2727, %v2564
  %2743 = vst.msk [vmem:[#allocation2 + $0x3c] sm:$0xf] %vm2727, %v2566
  %2744 = vst.msk [vmem:[#allocation2 + $0x40] sm:$0xf] %vm2727, %v2568
  %2745 = vst.msk [vmem:[#allocation2 + $0x44] sm:$0xf] %vm2727, %v2570
  %2746 = vst.msk [vmem:[#allocation2 + $0x48] sm:$0xf] %vm2727, %v2572
  %2747 = vst.msk [vmem:[#allocation2 + $0x4c] sm:$0xf] %vm2727, %v2574
  %2748 = vst.msk [vmem:[#allocation2 + $0x50] sm:$0xf] %vm2727, %v2576
  %2749 = vst.msk [vmem:[#allocation2 + $0x54] sm:$0xf] %vm2727, %v2578
  %2750 = vst.msk [vmem:[#allocation2 + $0x58] sm:$0xf] %vm2727, %v2580
  %2751 = vst.msk [vmem:[#allocation2 + $0x5c] sm:$0xf] %vm2727, %v2582
  %2752 = vst.msk [vmem:[#allocation2 + $0x60] sm:$0xf] %vm2727, %v2584
  %2753 = vst.msk [vmem:[#allocation2 + $0x64] sm:$0xf] %vm2727, %v2586
  %2754 = vst.msk [vmem:[#allocation2 + $0x68] sm:$0xf] %vm2727, %v2588
  %2755 = vst.msk [vmem:[#allocation2 + $0x6c] sm:$0xf] %vm2727, %v2590
  %2756 = vst.msk [vmem:[#allocation2 + $0x70] sm:$0xf] %vm2727, %v2592
  %2757 = vst.msk [vmem:[#allocation2 + $0x74] sm:$0xf] %vm2727, %v2594
  %2758 = vst.msk [vmem:[#allocation2 + $0x78] sm:$0xf] %vm2727, %v2596
  %2759 = vst.msk [vmem:[#allocation2 + $0x7c] sm:$0xf] %vm2727, %v2598
  %2760 = vst.msk [vmem:[#allocation2 + $0x80] sm:$0xf] %vm2727, %v2600
  %2761 = vst.msk [vmem:[#allocation2 + $0x84] sm:$0xf] %vm2727, %v2602
  %2762 = vst.msk [vmem:[#allocation2 + $0x88] sm:$0xf] %vm2727, %v2604
  %2763 = vst.msk [vmem:[#allocation2 + $0x8c] sm:$0xf] %vm2727, %v2606
  %2764 = vst.msk [vmem:[#allocation2 + $0x90] sm:$0xf] %vm2727, %v2608
  %2765 = vst.msk [vmem:[#allocation2 + $0x94] sm:$0xf] %vm2727, %v2610
  %2766 = vst.msk [vmem:[#allocation2 + $0x98] sm:$0xf] %vm2727, %v2612
  %2767 = vst.msk [vmem:[#allocation2 + $0x9c] sm:$0xf] %vm2727, %v2614
  %2768 = vst.msk [vmem:[#allocation2 + $0xa0] sm:$0xf] %vm2727, %v2616
  %2769 = vst.msk [vmem:[#allocation2 + $0xa4] sm:$0xf] %vm2727, %v2618
  %2770 = vst.msk [vmem:[#allocation2 + $0xa8] sm:$0xf] %vm2727, %v2620
  %2771 = vst.msk [vmem:[#allocation2 + $0xac] sm:$0xf] %vm2727, %v2622
  %2772 = vst.msk [vmem:[#allocation2 + $0xb0] sm:$0xf] %vm2727, %v2624
  %2773 = vst.msk [vmem:[#allocation2 + $0xb4] sm:$0xf] %vm2727, %v2626
  %2774 = vst.msk [vmem:[#allocation2 + $0xb8] sm:$0xf] %vm2727, %v2628
  %2775 = vst.msk [vmem:[#allocation2 + $0xbc] sm:$0xf] %vm2727, %v2630
  %2776 = vst.msk [vmem:[#allocation2 + $0xc0] sm:$0xf] %vm2727, %v2632
  %2777 = vst.msk [vmem:[#allocation2 + $0xc4] sm:$0xf] %vm2727, %v2634
  %2778 = vst.msk [vmem:[#allocation2 + $0xc8] sm:$0xf] %vm2727, %v2636
  %2779 = vst.msk [vmem:[#allocation2 + $0xcc] sm:$0xf] %vm2727, %v2638
  %2780 = vst.msk [vmem:[#allocation2 + $0xd0] sm:$0xf] %vm2727, %v2640
  %2781 = vst.msk [vmem:[#allocation2 + $0xd4] sm:$0xf] %vm2727, %v2642
  %2782 = vst.msk [vmem:[#allocation2 + $0xd8] sm:$0xf] %vm2727, %v2644
  %2783 = vst.msk [vmem:[#allocation2 + $0xdc] sm:$0xf] %vm2727, %v2646
  %2784 = vst.msk [vmem:[#allocation2 + $0xe0] sm:$0xf] %vm2727, %v2648
  %2785 = vst.msk [vmem:[#allocation2 + $0xe4] sm:$0xf] %vm2727, %v2650
  %2786 = vst.msk [vmem:[#allocation2 + $0xe8] sm:$0xf] %vm2727, %v2652
  %2787 = vst.msk [vmem:[#allocation2 + $0xec] sm:$0xf] %vm2727, %v2654
  %2788 = vst.msk [vmem:[#allocation2 + $0xf0] sm:$0xf] %vm2727, %v2656
  %2789 = vst.msk [vmem:[#allocation2 + $0xf4] sm:$0xf] %vm2727, %v2658
  %2790 = vst.msk [vmem:[#allocation2 + $0xf8] sm:$0xf] %vm2727, %v2660
  %2791 = vst.msk [vmem:[#allocation2 + $0xfc] sm:$0xf] %vm2727, %v2662
  %s2792 = scalar_lea.vmem [#allocation5], 48
  %v2793 = vld [vmem:[%s2792] sm:$0xff]
  %v2794 = vld [vmem:[%s2792 + $0x8] sm:$0xff]
  %v2795 = vld [vmem:[%s2792 + $0x18] sm:$0xff]
  %v2796 = vld [vmem:[%s2792 + $0x20] sm:$0xff]
  %v2797 = vld [vmem:[%s2792 + $0x30] sm:$0xff]
  %v2798 = vld [vmem:[%s2792 + $0x38] sm:$0xff]
  %v2799 = vld [vmem:[%s2792 + $0x48] sm:$0xff]
  %v2800 = vld [vmem:[%s2792 + $0x50] sm:$0xff]
  %v2801 = vld [vmem:[%s2792 + $0x60] sm:$0xff]
  %v2802 = vld [vmem:[%s2792 + $0x68] sm:$0xff]
  %v2803 = vld [vmem:[%s2792 + $0x78] sm:$0xff]
  %v2804 = vld [vmem:[%s2792 + $0x80] sm:$0xff]
  %v2805 = vld [vmem:[%s2792 + $0x90] sm:$0xff]
  %v2806 = vld [vmem:[%s2792 + $0x98] sm:$0xff]
  %v2807 = vld [vmem:[%s2792 + $0xa8] sm:$0xff]
  %v2808 = vld [vmem:[%s2792 + $0xb0] sm:$0xff]
  %v2809 = vld [vmem:[%s2792 + $0xc0] sm:$0xff]
  %v2810 = vld [vmem:[%s2792 + $0xc8] sm:$0xff]
  %v2811 = vld [vmem:[%s2792 + $0xd8] sm:$0xff]
  %v2812 = vld [vmem:[%s2792 + $0xe0] sm:$0xff]
  %v2813 = vld [vmem:[%s2792 + $0xf0] sm:$0xff]
  %v2814 = vld [vmem:[%s2792 + $0xf8] sm:$0xff]
  %v2815 = vld [vmem:[%s2792 + $0x108] sm:$0xff]
  %v2816 = vld [vmem:[%s2792 + $0x110] sm:$0xff]
  %v2817 = vld [vmem:[%s2792 + $0x120] sm:$0xff]
  %v2818 = vld [vmem:[%s2792 + $0x128] sm:$0xff]
  %v2819 = vld [vmem:[%s2792 + $0x138] sm:$0xff]
  %v2820 = vld [vmem:[%s2792 + $0x140] sm:$0xff]
  %v2821 = vld [vmem:[%s2792 + $0x150] sm:$0xff]
  %v2822 = vld [vmem:[%s2792 + $0x158] sm:$0xff]
  %v2823 = vld [vmem:[%s2792 + $0x168] sm:$0xff]
  %v2824 = vld [vmem:[%s2792 + $0x170] sm:$0xff]
  %v2825 = vld [vmem:[%s2792 + $0x1b0] sm:$0xff]
  %v2826 = vld [vmem:[%s2792 + $0x1b8] sm:$0xff]
  %v2827 = vld [vmem:[%s2792 + $0x1c8] sm:$0xff]
  %v2828 = vld [vmem:[%s2792 + $0x1d0] sm:$0xff]
  %v2829 = vld [vmem:[%s2792 + $0x1e0] sm:$0xff]
  %v2830 = vld [vmem:[%s2792 + $0x1e8] sm:$0xff]
  %v2831 = vld [vmem:[%s2792 + $0x1f8] sm:$0xff]
  %v2832 = vld [vmem:[%s2792 + $0x200] sm:$0xff]
  %v2833 = vld [vmem:[%s2792 + $0x210] sm:$0xff]
  %v2834 = vld [vmem:[%s2792 + $0x218] sm:$0xff]
  %v2835 = vld [vmem:[%s2792 + $0x228] sm:$0xff]
  %v2836 = vld [vmem:[%s2792 + $0x230] sm:$0xff]
  %v2837 = vld [vmem:[%s2792 + $0x240] sm:$0xff]
  %v2838 = vld [vmem:[%s2792 + $0x248] sm:$0xff]
  %v2839 = vld [vmem:[%s2792 + $0x258] sm:$0xff]
  %v2840 = vld [vmem:[%s2792 + $0x260] sm:$0xff]
  %v2841 = vld [vmem:[%s2792 + $0x270] sm:$0xff]
  %v2842 = vld [vmem:[%s2792 + $0x278] sm:$0xff]
  %v2843 = vld [vmem:[%s2792 + $0x288] sm:$0xff]
  %v2844 = vld [vmem:[%s2792 + $0x290] sm:$0xff]
  %v2845 = vld [vmem:[%s2792 + $0x2a0] sm:$0xff]
  %v2846 = vld [vmem:[%s2792 + $0x2a8] sm:$0xff]
  %v2847 = vld [vmem:[%s2792 + $0x2b8] sm:$0xff]
  %v2848 = vld [vmem:[%s2792 + $0x2c0] sm:$0xff]
  %v2849 = vld [vmem:[%s2792 + $0x2d0] sm:$0xff]
  %v2850 = vld [vmem:[%s2792 + $0x2d8] sm:$0xff]
  %v2851 = vld [vmem:[%s2792 + $0x2e8] sm:$0xff]
  %v2852 = vld [vmem:[%s2792 + $0x2f0] sm:$0xff]
  %v2853 = vld [vmem:[%s2792 + $0x300] sm:$0xff]
  %v2854 = vld [vmem:[%s2792 + $0x308] sm:$0xff]
  %v2855 = vld [vmem:[%s2792 + $0x318] sm:$0xff]
  %v2856 = vld [vmem:[%s2792 + $0x320] sm:$0xff]
  %v2857 = vpack.c.bf16 %v2793, %v2793
  %v2858 = vpack.c.bf16 %v2794, %v2794
  %v2859 = vpack.c.bf16 %v2795, %v2795
  %v2860 = vpack.c.bf16 %v2796, %v2796
  %v2861 = vpack.c.bf16 %v2797, %v2797
  %v2862 = vpack.c.bf16 %v2798, %v2798
  %v2863 = vpack.c.bf16 %v2799, %v2799
  %v2864 = vpack.c.bf16 %v2800, %v2800
  %v2865 = vpack.c.bf16 %v2801, %v2801
  %v2866 = vpack.c.bf16 %v2802, %v2802
  %v2867 = vpack.c.bf16 %v2803, %v2803
  %v2868 = vpack.c.bf16 %v2804, %v2804
  %v2869 = vpack.c.bf16 %v2805, %v2805
  %v2870 = vpack.c.bf16 %v2806, %v2806
  %v2871 = vpack.c.bf16 %v2807, %v2807
  %v2872 = vpack.c.bf16 %v2808, %v2808
  %v2873 = vpack.c.bf16 %v2809, %v2809
  %v2874 = vpack.c.bf16 %v2810, %v2810
  %v2875 = vpack.c.bf16 %v2811, %v2811
  %v2876 = vpack.c.bf16 %v2812, %v2812
  %v2877 = vpack.c.bf16 %v2813, %v2813
  %v2878 = vpack.c.bf16 %v2814, %v2814
  %v2879 = vpack.c.bf16 %v2815, %v2815
  %v2880 = vpack.c.bf16 %v2816, %v2816
  %v2881 = vpack.c.bf16 %v2817, %v2817
  %v2882 = vpack.c.bf16 %v2818, %v2818
  %v2883 = vpack.c.bf16 %v2819, %v2819
  %v2884 = vpack.c.bf16 %v2820, %v2820
  %v2885 = vpack.c.bf16 %v2821, %v2821
  %v2886 = vpack.c.bf16 %v2822, %v2822
  %v2887 = vpack.c.bf16 %v2823, %v2823
  %v2888 = vpack.c.bf16 %v2824, %v2824
  %v2889 = vpack.c.bf16 %v2825, %v2825
  %v2890 = vpack.c.bf16 %v2826, %v2826
  %v2891 = vpack.c.bf16 %v2827, %v2827
  %v2892 = vpack.c.bf16 %v2828, %v2828
  %v2893 = vpack.c.bf16 %v2829, %v2829
  %v2894 = vpack.c.bf16 %v2830, %v2830
  %v2895 = vpack.c.bf16 %v2831, %v2831
  %v2896 = vpack.c.bf16 %v2832, %v2832
  %v2897 = vpack.c.bf16 %v2833, %v2833
  %v2898 = vpack.c.bf16 %v2834, %v2834
  %v2899 = vpack.c.bf16 %v2835, %v2835
  %v2900 = vpack.c.bf16 %v2836, %v2836
  %v2901 = vpack.c.bf16 %v2837, %v2837
  %v2902 = vpack.c.bf16 %v2838, %v2838
  %v2903 = vpack.c.bf16 %v2839, %v2839
  %v2904 = vpack.c.bf16 %v2840, %v2840
  %v2905 = vpack.c.bf16 %v2841, %v2841
  %v2906 = vpack.c.bf16 %v2842, %v2842
  %v2907 = vpack.c.bf16 %v2843, %v2843
  %v2908 = vpack.c.bf16 %v2844, %v2844
  %v2909 = vpack.c.bf16 %v2845, %v2845
  %v2910 = vpack.c.bf16 %v2846, %v2846
  %v2911 = vpack.c.bf16 %v2847, %v2847
  %v2912 = vpack.c.bf16 %v2848, %v2848
  %v2913 = vpack.c.bf16 %v2849, %v2849
  %v2914 = vpack.c.bf16 %v2850, %v2850
  %v2915 = vpack.c.bf16 %v2851, %v2851
  %v2916 = vpack.c.bf16 %v2852, %v2852
  %v2917 = vpack.c.bf16 %v2853, %v2853
  %v2918 = vpack.c.bf16 %v2854, %v2854
  %v2919 = vpack.c.bf16 %v2855, %v2855
  %v2920 = vpack.c.bf16 %v2856, %v2856
  %2985 = vrot.lane.b32.xlu0 %v2857, 18
  %v2986 = vpop.permute.xlu0 %2985
  %2987 = vrot.lane.b32.xlu0 %v2858, 18
  %v2988 = vpop.permute.xlu0 %2987
  %2989 = vrot.lane.b32.xlu0 %v2859, 18
  %v2990 = vpop.permute.xlu0 %2989
  %2991 = vrot.lane.b32.xlu0 %v2860, 18
  %v2992 = vpop.permute.xlu0 %2991
  %2993 = vrot.lane.b32.xlu0 %v2861, 18
  %v2994 = vpop.permute.xlu0 %2993
  %2995 = vrot.lane.b32.xlu0 %v2862, 18
  %v2996 = vpop.permute.xlu0 %2995
  %2997 = vrot.lane.b32.xlu0 %v2863, 18
  %v2998 = vpop.permute.xlu0 %2997
  %2999 = vrot.lane.b32.xlu0 %v2864, 18
  %v3000 = vpop.permute.xlu0 %2999
  %3001 = vrot.lane.b32.xlu0 %v2865, 18
  %v3002 = vpop.permute.xlu0 %3001
  %3003 = vrot.lane.b32.xlu0 %v2866, 18
  %v3004 = vpop.permute.xlu0 %3003
  %3005 = vrot.lane.b32.xlu0 %v2867, 18
  %v3006 = vpop.permute.xlu0 %3005
  %3007 = vrot.lane.b32.xlu0 %v2868, 18
  %v3008 = vpop.permute.xlu0 %3007
  %3009 = vrot.lane.b32.xlu0 %v2869, 18
  %v3010 = vpop.permute.xlu0 %3009
  %3011 = vrot.lane.b32.xlu0 %v2870, 18
  %v3012 = vpop.permute.xlu0 %3011
  %3013 = vrot.lane.b32.xlu0 %v2871, 18
  %v3014 = vpop.permute.xlu0 %3013
  %3015 = vrot.lane.b32.xlu0 %v2872, 18
  %v3016 = vpop.permute.xlu0 %3015
  %3017 = vrot.lane.b32.xlu0 %v2873, 18
  %v3018 = vpop.permute.xlu0 %3017
  %3019 = vrot.lane.b32.xlu0 %v2874, 18
  %v3020 = vpop.permute.xlu0 %3019
  %3021 = vrot.lane.b32.xlu0 %v2875, 18
  %v3022 = vpop.permute.xlu0 %3021
  %3023 = vrot.lane.b32.xlu0 %v2876, 18
  %v3024 = vpop.permute.xlu0 %3023
  %3025 = vrot.lane.b32.xlu0 %v2877, 18
  %v3026 = vpop.permute.xlu0 %3025
  %3027 = vrot.lane.b32.xlu0 %v2878, 18
  %v3028 = vpop.permute.xlu0 %3027
  %3029 = vrot.lane.b32.xlu0 %v2879, 18
  %v3030 = vpop.permute.xlu0 %3029
  %3031 = vrot.lane.b32.xlu0 %v2880, 18
  %v3032 = vpop.permute.xlu0 %3031
  %3033 = vrot.lane.b32.xlu0 %v2881, 18
  %v3034 = vpop.permute.xlu0 %3033
  %3035 = vrot.lane.b32.xlu0 %v2882, 18
  %v3036 = vpop.permute.xlu0 %3035
  %3037 = vrot.lane.b32.xlu0 %v2883, 18
  %v3038 = vpop.permute.xlu0 %3037
  %3039 = vrot.lane.b32.xlu0 %v2884, 18
  %v3040 = vpop.permute.xlu0 %3039
  %3041 = vrot.lane.b32.xlu0 %v2885, 18
  %v3042 = vpop.permute.xlu0 %3041
  %3043 = vrot.lane.b32.xlu0 %v2886, 18
  %v3044 = vpop.permute.xlu0 %3043
  %3045 = vrot.lane.b32.xlu0 %v2887, 18
  %v3046 = vpop.permute.xlu0 %3045
  %3047 = vrot.lane.b32.xlu0 %v2888, 18
  %v3048 = vpop.permute.xlu0 %3047
  %3049 = vrot.lane.b32.xlu0 %v2889, 18
  %v3050 = vpop.permute.xlu0 %3049
  %3051 = vrot.lane.b32.xlu0 %v2890, 18
  %v3052 = vpop.permute.xlu0 %3051
  %3053 = vrot.lane.b32.xlu0 %v2891, 18
  %v3054 = vpop.permute.xlu0 %3053
  %3055 = vrot.lane.b32.xlu0 %v2892, 18
  %v3056 = vpop.permute.xlu0 %3055
  %3057 = vrot.lane.b32.xlu0 %v2893, 18
  %v3058 = vpop.permute.xlu0 %3057
  %3059 = vrot.lane.b32.xlu0 %v2894, 18
  %v3060 = vpop.permute.xlu0 %3059
  %3061 = vrot.lane.b32.xlu0 %v2895, 18
  %v3062 = vpop.permute.xlu0 %3061
  %3063 = vrot.lane.b32.xlu0 %v2896, 18
  %v3064 = vpop.permute.xlu0 %3063
  %3065 = vrot.lane.b32.xlu0 %v2897, 18
  %v3066 = vpop.permute.xlu0 %3065
  %3067 = vrot.lane.b32.xlu0 %v2898, 18
  %v3068 = vpop.permute.xlu0 %3067
  %3069 = vrot.lane.b32.xlu0 %v2899, 18
  %v3070 = vpop.permute.xlu0 %3069
  %3071 = vrot.lane.b32.xlu0 %v2900, 18
  %v3072 = vpop.permute.xlu0 %3071
  %3073 = vrot.lane.b32.xlu0 %v2901, 18
  %v3074 = vpop.permute.xlu0 %3073
  %3075 = vrot.lane.b32.xlu0 %v2902, 18
  %v3076 = vpop.permute.xlu0 %3075
  %3077 = vrot.lane.b32.xlu0 %v2903, 18
  %v3078 = vpop.permute.xlu0 %3077
  %3079 = vrot.lane.b32.xlu0 %v2904, 18
  %v3080 = vpop.permute.xlu0 %3079
  %3081 = vrot.lane.b32.xlu0 %v2905, 18
  %v3082 = vpop.permute.xlu0 %3081
  %3083 = vrot.lane.b32.xlu0 %v2906, 18
  %v3084 = vpop.permute.xlu0 %3083
  %3085 = vrot.lane.b32.xlu0 %v2907, 18
  %v3086 = vpop.permute.xlu0 %3085
  %3087 = vrot.lane.b32.xlu0 %v2908, 18
  %v3088 = vpop.permute.xlu0 %3087
  %3089 = vrot.lane.b32.xlu0 %v2909, 18
  %v3090 = vpop.permute.xlu0 %3089
  %3091 = vrot.lane.b32.xlu0 %v2910, 18
  %v3092 = vpop.permute.xlu0 %3091
  %3093 = vrot.lane.b32.xlu0 %v2911, 18
  %v3094 = vpop.permute.xlu0 %3093
  %3095 = vrot.lane.b32.xlu0 %v2912, 18
  %v3096 = vpop.permute.xlu0 %3095
  %3097 = vrot.lane.b32.xlu0 %v2913, 18
  %v3098 = vpop.permute.xlu0 %3097
  %3099 = vrot.lane.b32.xlu0 %v2914, 18
  %v3100 = vpop.permute.xlu0 %3099
  %3101 = vrot.lane.b32.xlu0 %v2915, 18
  %v3102 = vpop.permute.xlu0 %3101
  %3103 = vrot.lane.b32.xlu0 %v2916, 18
  %v3104 = vpop.permute.xlu0 %3103
  %3105 = vrot.lane.b32.xlu0 %v2917, 18
  %v3106 = vpop.permute.xlu0 %3105
  %3107 = vrot.lane.b32.xlu0 %v2918, 18
  %v3108 = vpop.permute.xlu0 %3107
  %3109 = vrot.lane.b32.xlu0 %v2919, 18
  %v3110 = vpop.permute.xlu0 %3109
  %3111 = vrot.lane.b32.xlu0 %v2920, 18
  %v3112 = vpop.permute.xlu0 %3111
  %vm3177 = vcmask 167056
  %3178 = vst.msk [vmem:[#allocation2] sm:$0xf] %vm3177, %v2986
  %3179 = vst.msk [vmem:[#allocation2 + $0x4] sm:$0xf] %vm3177, %v2988
  %3180 = vst.msk [vmem:[#allocation2 + $0x8] sm:$0xf] %vm3177, %v2990
  %3181 = vst.msk [vmem:[#allocation2 + $0xc] sm:$0xf] %vm3177, %v2992
  %3182 = vst.msk [vmem:[#allocation2 + $0x10] sm:$0xf] %vm3177, %v2994
  %3183 = vst.msk [vmem:[#allocation2 + $0x14] sm:$0xf] %vm3177, %v2996
  %3184 = vst.msk [vmem:[#allocation2 + $0x18] sm:$0xf] %vm3177, %v2998
  %3185 = vst.msk [vmem:[#allocation2 + $0x1c] sm:$0xf] %vm3177, %v3000
  %3186 = vst.msk [vmem:[#allocation2 + $0x20] sm:$0xf] %vm3177, %v3002
  %3187 = vst.msk [vmem:[#allocation2 + $0x24] sm:$0xf] %vm3177, %v3004
  %3188 = vst.msk [vmem:[#allocation2 + $0x28] sm:$0xf] %vm3177, %v3006
  %3189 = vst.msk [vmem:[#allocation2 + $0x2c] sm:$0xf] %vm3177, %v3008
  %3190 = vst.msk [vmem:[#allocation2 + $0x30] sm:$0xf] %vm3177, %v3010
  %3191 = vst.msk [vmem:[#allocation2 + $0x34] sm:$0xf] %vm3177, %v3012
  %3192 = vst.msk [vmem:[#allocation2 + $0x38] sm:$0xf] %vm3177, %v3014
  %3193 = vst.msk [vmem:[#allocation2 + $0x3c] sm:$0xf] %vm3177, %v3016
  %3194 = vst.msk [vmem:[#allocation2 + $0x40] sm:$0xf] %vm3177, %v3018
  %3195 = vst.msk [vmem:[#allocation2 + $0x44] sm:$0xf] %vm3177, %v3020
  %3196 = vst.msk [vmem:[#allocation2 + $0x48] sm:$0xf] %vm3177, %v3022
  %3197 = vst.msk [vmem:[#allocation2 + $0x4c] sm:$0xf] %vm3177, %v3024
  %3198 = vst.msk [vmem:[#allocation2 + $0x50] sm:$0xf] %vm3177, %v3026
  %3199 = vst.msk [vmem:[#allocation2 + $0x54] sm:$0xf] %vm3177, %v3028
  %3200 = vst.msk [vmem:[#allocation2 + $0x58] sm:$0xf] %vm3177, %v3030
  %3201 = vst.msk [vmem:[#allocation2 + $0x5c] sm:$0xf] %vm3177, %v3032
  %3202 = vst.msk [vmem:[#allocation2 + $0x60] sm:$0xf] %vm3177, %v3034
  %3203 = vst.msk [vmem:[#allocation2 + $0x64] sm:$0xf] %vm3177, %v3036
  %3204 = vst.msk [vmem:[#allocation2 + $0x68] sm:$0xf] %vm3177, %v3038
  %3205 = vst.msk [vmem:[#allocation2 + $0x6c] sm:$0xf] %vm3177, %v3040
  %3206 = vst.msk [vmem:[#allocation2 + $0x70] sm:$0xf] %vm3177, %v3042
  %3207 = vst.msk [vmem:[#allocation2 + $0x74] sm:$0xf] %vm3177, %v3044
  %3208 = vst.msk [vmem:[#allocation2 + $0x78] sm:$0xf] %vm3177, %v3046
  %3209 = vst.msk [vmem:[#allocation2 + $0x7c] sm:$0xf] %vm3177, %v3048
  %3210 = vst.msk [vmem:[#allocation2 + $0x80] sm:$0xf] %vm3177, %v3050
  %3211 = vst.msk [vmem:[#allocation2 + $0x84] sm:$0xf] %vm3177, %v3052
  %3212 = vst.msk [vmem:[#allocation2 + $0x88] sm:$0xf] %vm3177, %v3054
  %3213 = vst.msk [vmem:[#allocation2 + $0x8c] sm:$0xf] %vm3177, %v3056
  %3214 = vst.msk [vmem:[#allocation2 + $0x90] sm:$0xf] %vm3177, %v3058
  %3215 = vst.msk [vmem:[#allocation2 + $0x94] sm:$0xf] %vm3177, %v3060
  %3216 = vst.msk [vmem:[#allocation2 + $0x98] sm:$0xf] %vm3177, %v3062
  %3217 = vst.msk [vmem:[#allocation2 + $0x9c] sm:$0xf] %vm3177, %v3064
  %3218 = vst.msk [vmem:[#allocation2 + $0xa0] sm:$0xf] %vm3177, %v3066
  %3219 = vst.msk [vmem:[#allocation2 + $0xa4] sm:$0xf] %vm3177, %v3068
  %3220 = vst.msk [vmem:[#allocation2 + $0xa8] sm:$0xf] %vm3177, %v3070
  %3221 = vst.msk [vmem:[#allocation2 + $0xac] sm:$0xf] %vm3177, %v3072
  %3222 = vst.msk [vmem:[#allocation2 + $0xb0] sm:$0xf] %vm3177, %v3074
  %3223 = vst.msk [vmem:[#allocation2 + $0xb4] sm:$0xf] %vm3177, %v3076
  %3224 = vst.msk [vmem:[#allocation2 + $0xb8] sm:$0xf] %vm3177, %v3078
  %3225 = vst.msk [vmem:[#allocation2 + $0xbc] sm:$0xf] %vm3177, %v3080
  %3226 = vst.msk [vmem:[#allocation2 + $0xc0] sm:$0xf] %vm3177, %v3082
  %3227 = vst.msk [vmem:[#allocation2 + $0xc4] sm:$0xf] %vm3177, %v3084
  %3228 = vst.msk [vmem:[#allocation2 + $0xc8] sm:$0xf] %vm3177, %v3086
  %3229 = vst.msk [vmem:[#allocation2 + $0xcc] sm:$0xf] %vm3177, %v3088
  %3230 = vst.msk [vmem:[#allocation2 + $0xd0] sm:$0xf] %vm3177, %v3090
  %3231 = vst.msk [vmem:[#allocation2 + $0xd4] sm:$0xf] %vm3177, %v3092
  %3232 = vst.msk [vmem:[#allocation2 + $0xd8] sm:$0xf] %vm3177, %v3094
  %3233 = vst.msk [vmem:[#allocation2 + $0xdc] sm:$0xf] %vm3177, %v3096
  %3234 = vst.msk [vmem:[#allocation2 + $0xe0] sm:$0xf] %vm3177, %v3098
  %3235 = vst.msk [vmem:[#allocation2 + $0xe4] sm:$0xf] %vm3177, %v3100
  %3236 = vst.msk [vmem:[#allocation2 + $0xe8] sm:$0xf] %vm3177, %v3102
  %3237 = vst.msk [vmem:[#allocation2 + $0xec] sm:$0xf] %vm3177, %v3104
  %3238 = vst.msk [vmem:[#allocation2 + $0xf0] sm:$0xf] %vm3177, %v3106
  %3239 = vst.msk [vmem:[#allocation2 + $0xf4] sm:$0xf] %vm3177, %v3108
  %3240 = vst.msk [vmem:[#allocation2 + $0xf8] sm:$0xf] %vm3177, %v3110
  %3241 = vst.msk [vmem:[#allocation2 + $0xfc] sm:$0xf] %vm3177, %v3112
  %v3242 = vld [vmem:[%s2792 + $0x1] sm:$0xff]
  %v3243 = vld [vmem:[%s2792 + $0x9] sm:$0xff]
  %v3244 = vld [vmem:[%s2792 + $0x19] sm:$0xff]
  %v3245 = vld [vmem:[%s2792 + $0x21] sm:$0xff]
  %v3246 = vld [vmem:[%s2792 + $0x31] sm:$0xff]
  %v3247 = vld [vmem:[%s2792 + $0x39] sm:$0xff]
  %v3248 = vld [vmem:[%s2792 + $0x49] sm:$0xff]
  %v3249 = vld [vmem:[%s2792 + $0x51] sm:$0xff]
  %v3250 = vld [vmem:[%s2792 + $0x61] sm:$0xff]
  %v3251 = vld [vmem:[%s2792 + $0x69] sm:$0xff]
  %v3252 = vld [vmem:[%s2792 + $0x79] sm:$0xff]
  %v3253 = vld [vmem:[%s2792 + $0x81] sm:$0xff]
  %v3254 = vld [vmem:[%s2792 + $0x91] sm:$0xff]
  %v3255 = vld [vmem:[%s2792 + $0x99] sm:$0xff]
  %v3256 = vld [vmem:[%s2792 + $0xa9] sm:$0xff]
  %v3257 = vld [vmem:[%s2792 + $0xb1] sm:$0xff]
  %v3258 = vld [vmem:[%s2792 + $0xc1] sm:$0xff]
  %v3259 = vld [vmem:[%s2792 + $0xc9] sm:$0xff]
  %v3260 = vld [vmem:[%s2792 + $0xd9] sm:$0xff]
  %v3261 = vld [vmem:[%s2792 + $0xe1] sm:$0xff]
  %v3262 = vld [vmem:[%s2792 + $0xf1] sm:$0xff]
  %v3263 = vld [vmem:[%s2792 + $0xf9] sm:$0xff]
  %v3264 = vld [vmem:[%s2792 + $0x109] sm:$0xff]
  %v3265 = vld [vmem:[%s2792 + $0x111] sm:$0xff]
  %v3266 = vld [vmem:[%s2792 + $0x121] sm:$0xff]
  %v3267 = vld [vmem:[%s2792 + $0x129] sm:$0xff]
  %v3268 = vld [vmem:[%s2792 + $0x139] sm:$0xff]
  %v3269 = vld [vmem:[%s2792 + $0x141] sm:$0xff]
  %v3270 = vld [vmem:[%s2792 + $0x151] sm:$0xff]
  %v3271 = vld [vmem:[%s2792 + $0x159] sm:$0xff]
  %v3272 = vld [vmem:[%s2792 + $0x169] sm:$0xff]
  %v3273 = vld [vmem:[%s2792 + $0x171] sm:$0xff]
  %v3274 = vld [vmem:[%s2792 + $0x1b1] sm:$0xff]
  %v3275 = vld [vmem:[%s2792 + $0x1b9] sm:$0xff]
  %v3276 = vld [vmem:[%s2792 + $0x1c9] sm:$0xff]
  %v3277 = vld [vmem:[%s2792 + $0x1d1] sm:$0xff]
  %v3278 = vld [vmem:[%s2792 + $0x1e1] sm:$0xff]
  %v3279 = vld [vmem:[%s2792 + $0x1e9] sm:$0xff]
  %v3280 = vld [vmem:[%s2792 + $0x1f9] sm:$0xff]
  %v3281 = vld [vmem:[%s2792 + $0x201] sm:$0xff]
  %v3282 = vld [vmem:[%s2792 + $0x211] sm:$0xff]
  %v3283 = vld [vmem:[%s2792 + $0x219] sm:$0xff]
  %v3284 = vld [vmem:[%s2792 + $0x229] sm:$0xff]
  %v3285 = vld [vmem:[%s2792 + $0x231] sm:$0xff]
  %v3286 = vld [vmem:[%s2792 + $0x241] sm:$0xff]
  %v3287 = vld [vmem:[%s2792 + $0x249] sm:$0xff]
  %v3288 = vld [vmem:[%s2792 + $0x259] sm:$0xff]
  %v3289 = vld [vmem:[%s2792 + $0x261] sm:$0xff]
  %v3290 = vld [vmem:[%s2792 + $0x271] sm:$0xff]
  %v3291 = vld [vmem:[%s2792 + $0x279] sm:$0xff]
  %v3292 = vld [vmem:[%s2792 + $0x289] sm:$0xff]
  %v3293 = vld [vmem:[%s2792 + $0x291] sm:$0xff]
  %v3294 = vld [vmem:[%s2792 + $0x2a1] sm:$0xff]
  %v3295 = vld [vmem:[%s2792 + $0x2a9] sm:$0xff]
  %v3296 = vld [vmem:[%s2792 + $0x2b9] sm:$0xff]
  %v3297 = vld [vmem:[%s2792 + $0x2c1] sm:$0xff]
  %v3298 = vld [vmem:[%s2792 + $0x2d1] sm:$0xff]
  %v3299 = vld [vmem:[%s2792 + $0x2d9] sm:$0xff]
  %v3300 = vld [vmem:[%s2792 + $0x2e9] sm:$0xff]
  %v3301 = vld [vmem:[%s2792 + $0x2f1] sm:$0xff]
  %v3302 = vld [vmem:[%s2792 + $0x301] sm:$0xff]
  %v3303 = vld [vmem:[%s2792 + $0x309] sm:$0xff]
  %v3304 = vld [vmem:[%s2792 + $0x319] sm:$0xff]
  %v3305 = vld [vmem:[%s2792 + $0x321] sm:$0xff]
  %v3306 = vpack.c.bf16 %v3242, %v3242
  %v3307 = vpack.c.bf16 %v3243, %v3243
  %v3308 = vpack.c.bf16 %v3244, %v3244
  %v3309 = vpack.c.bf16 %v3245, %v3245
  %v3310 = vpack.c.bf16 %v3246, %v3246
  %v3311 = vpack.c.bf16 %v3247, %v3247
  %v3312 = vpack.c.bf16 %v3248, %v3248
  %v3313 = vpack.c.bf16 %v3249, %v3249
  %v3314 = vpack.c.bf16 %v3250, %v3250
  %v3315 = vpack.c.bf16 %v3251, %v3251
  %v3316 = vpack.c.bf16 %v3252, %v3252
  %v3317 = vpack.c.bf16 %v3253, %v3253
  %v3318 = vpack.c.bf16 %v3254, %v3254
  %v3319 = vpack.c.bf16 %v3255, %v3255
  %v3320 = vpack.c.bf16 %v3256, %v3256
  %v3321 = vpack.c.bf16 %v3257, %v3257
  %v3322 = vpack.c.bf16 %v3258, %v3258
  %v3323 = vpack.c.bf16 %v3259, %v3259
  %v3324 = vpack.c.bf16 %v3260, %v3260
  %v3325 = vpack.c.bf16 %v3261, %v3261
  %v3326 = vpack.c.bf16 %v3262, %v3262
  %v3327 = vpack.c.bf16 %v3263, %v3263
  %v3328 = vpack.c.bf16 %v3264, %v3264
  %v3329 = vpack.c.bf16 %v3265, %v3265
  %v3330 = vpack.c.bf16 %v3266, %v3266
  %v3331 = vpack.c.bf16 %v3267, %v3267
  %v3332 = vpack.c.bf16 %v3268, %v3268
  %v3333 = vpack.c.bf16 %v3269, %v3269
  %v3334 = vpack.c.bf16 %v3270, %v3270
  %v3335 = vpack.c.bf16 %v3271, %v3271
  %v3336 = vpack.c.bf16 %v3272, %v3272
  %v3337 = vpack.c.bf16 %v3273, %v3273
  %v3338 = vpack.c.bf16 %v3274, %v3274
  %v3339 = vpack.c.bf16 %v3275, %v3275
  %v3340 = vpack.c.bf16 %v3276, %v3276
  %v3341 = vpack.c.bf16 %v3277, %v3277
  %v3342 = vpack.c.bf16 %v3278, %v3278
  %v3343 = vpack.c.bf16 %v3279, %v3279
  %v3344 = vpack.c.bf16 %v3280, %v3280
  %v3345 = vpack.c.bf16 %v3281, %v3281
  %v3346 = vpack.c.bf16 %v3282, %v3282
  %v3347 = vpack.c.bf16 %v3283, %v3283
  %v3348 = vpack.c.bf16 %v3284, %v3284
  %v3349 = vpack.c.bf16 %v3285, %v3285
  %v3350 = vpack.c.bf16 %v3286, %v3286
  %v3351 = vpack.c.bf16 %v3287, %v3287
  %v3352 = vpack.c.bf16 %v3288, %v3288
  %v3353 = vpack.c.bf16 %v3289, %v3289
  %v3354 = vpack.c.bf16 %v3290, %v3290
  %v3355 = vpack.c.bf16 %v3291, %v3291
  %v3356 = vpack.c.bf16 %v3292, %v3292
  %v3357 = vpack.c.bf16 %v3293, %v3293
  %v3358 = vpack.c.bf16 %v3294, %v3294
  %v3359 = vpack.c.bf16 %v3295, %v3295
  %v3360 = vpack.c.bf16 %v3296, %v3296
  %v3361 = vpack.c.bf16 %v3297, %v3297
  %v3362 = vpack.c.bf16 %v3298, %v3298
  %v3363 = vpack.c.bf16 %v3299, %v3299
  %v3364 = vpack.c.bf16 %v3300, %v3300
  %v3365 = vpack.c.bf16 %v3301, %v3301
  %v3366 = vpack.c.bf16 %v3302, %v3302
  %v3367 = vpack.c.bf16 %v3303, %v3303
  %v3368 = vpack.c.bf16 %v3304, %v3304
  %v3369 = vpack.c.bf16 %v3305, %v3305
  %3434 = vrot.lane.b32.xlu0 %v3306, 21
  %v3435 = vpop.permute.xlu0 %3434
  %3436 = vrot.lane.b32.xlu0 %v3307, 21
  %v3437 = vpop.permute.xlu0 %3436
  %3438 = vrot.lane.b32.xlu0 %v3308, 21
  %v3439 = vpop.permute.xlu0 %3438
  %3440 = vrot.lane.b32.xlu0 %v3309, 21
  %v3441 = vpop.permute.xlu0 %3440
  %3442 = vrot.lane.b32.xlu0 %v3310, 21
  %v3443 = vpop.permute.xlu0 %3442
  %3444 = vrot.lane.b32.xlu0 %v3311, 21
  %v3445 = vpop.permute.xlu0 %3444
  %3446 = vrot.lane.b32.xlu0 %v3312, 21
  %v3447 = vpop.permute.xlu0 %3446
  %3448 = vrot.lane.b32.xlu0 %v3313, 21
  %v3449 = vpop.permute.xlu0 %3448
  %3450 = vrot.lane.b32.xlu0 %v3314, 21
  %v3451 = vpop.permute.xlu0 %3450
  %3452 = vrot.lane.b32.xlu0 %v3315, 21
  %v3453 = vpop.permute.xlu0 %3452
  %3454 = vrot.lane.b32.xlu0 %v3316, 21
  %v3455 = vpop.permute.xlu0 %3454
  %3456 = vrot.lane.b32.xlu0 %v3317, 21
  %v3457 = vpop.permute.xlu0 %3456
  %3458 = vrot.lane.b32.xlu0 %v3318, 21
  %v3459 = vpop.permute.xlu0 %3458
  %3460 = vrot.lane.b32.xlu0 %v3319, 21
  %v3461 = vpop.permute.xlu0 %3460
  %3462 = vrot.lane.b32.xlu0 %v3320, 21
  %v3463 = vpop.permute.xlu0 %3462
  %3464 = vrot.lane.b32.xlu0 %v3321, 21
  %v3465 = vpop.permute.xlu0 %3464
  %3466 = vrot.lane.b32.xlu0 %v3322, 21
  %v3467 = vpop.permute.xlu0 %3466
  %3468 = vrot.lane.b32.xlu0 %v3323, 21
  %v3469 = vpop.permute.xlu0 %3468
  %3470 = vrot.lane.b32.xlu0 %v3324, 21
  %v3471 = vpop.permute.xlu0 %3470
  %3472 = vrot.lane.b32.xlu0 %v3325, 21
  %v3473 = vpop.permute.xlu0 %3472
  %3474 = vrot.lane.b32.xlu0 %v3326, 21
  %v3475 = vpop.permute.xlu0 %3474
  %3476 = vrot.lane.b32.xlu0 %v3327, 21
  %v3477 = vpop.permute.xlu0 %3476
  %3478 = vrot.lane.b32.xlu0 %v3328, 21
  %v3479 = vpop.permute.xlu0 %3478
  %3480 = vrot.lane.b32.xlu0 %v3329, 21
  %v3481 = vpop.permute.xlu0 %3480
  %3482 = vrot.lane.b32.xlu0 %v3330, 21
  %v3483 = vpop.permute.xlu0 %3482
  %3484 = vrot.lane.b32.xlu0 %v3331, 21
  %v3485 = vpop.permute.xlu0 %3484
  %3486 = vrot.lane.b32.xlu0 %v3332, 21
  %v3487 = vpop.permute.xlu0 %3486
  %3488 = vrot.lane.b32.xlu0 %v3333, 21
  %v3489 = vpop.permute.xlu0 %3488
  %3490 = vrot.lane.b32.xlu0 %v3334, 21
  %v3491 = vpop.permute.xlu0 %3490
  %3492 = vrot.lane.b32.xlu0 %v3335, 21
  %v3493 = vpop.permute.xlu0 %3492
  %3494 = vrot.lane.b32.xlu0 %v3336, 21
  %v3495 = vpop.permute.xlu0 %3494
  %3496 = vrot.lane.b32.xlu0 %v3337, 21
  %v3497 = vpop.permute.xlu0 %3496
  %3498 = vrot.lane.b32.xlu0 %v3338, 21
  %v3499 = vpop.permute.xlu0 %3498
  %3500 = vrot.lane.b32.xlu0 %v3339, 21
  %v3501 = vpop.permute.xlu0 %3500
  %3502 = vrot.lane.b32.xlu0 %v3340, 21
  %v3503 = vpop.permute.xlu0 %3502
  %3504 = vrot.lane.b32.xlu0 %v3341, 21
  %v3505 = vpop.permute.xlu0 %3504
  %3506 = vrot.lane.b32.xlu0 %v3342, 21
  %v3507 = vpop.permute.xlu0 %3506
  %3508 = vrot.lane.b32.xlu0 %v3343, 21
  %v3509 = vpop.permute.xlu0 %3508
  %3510 = vrot.lane.b32.xlu0 %v3344, 21
  %v3511 = vpop.permute.xlu0 %3510
  %3512 = vrot.lane.b32.xlu0 %v3345, 21
  %v3513 = vpop.permute.xlu0 %3512
  %3514 = vrot.lane.b32.xlu0 %v3346, 21
  %v3515 = vpop.permute.xlu0 %3514
  %3516 = vrot.lane.b32.xlu0 %v3347, 21
  %v3517 = vpop.permute.xlu0 %3516
  %3518 = vrot.lane.b32.xlu0 %v3348, 21
  %v3519 = vpop.permute.xlu0 %3518
  %3520 = vrot.lane.b32.xlu0 %v3349, 21
  %v3521 = vpop.permute.xlu0 %3520
  %3522 = vrot.lane.b32.xlu0 %v3350, 21
  %v3523 = vpop.permute.xlu0 %3522
  %3524 = vrot.lane.b32.xlu0 %v3351, 21
  %v3525 = vpop.permute.xlu0 %3524
  %3526 = vrot.lane.b32.xlu0 %v3352, 21
  %v3527 = vpop.permute.xlu0 %3526
  %3528 = vrot.lane.b32.xlu0 %v3353, 21
  %v3529 = vpop.permute.xlu0 %3528
  %3530 = vrot.lane.b32.xlu0 %v3354, 21
  %v3531 = vpop.permute.xlu0 %3530
  %3532 = vrot.lane.b32.xlu0 %v3355, 21
  %v3533 = vpop.permute.xlu0 %3532
  %3534 = vrot.lane.b32.xlu0 %v3356, 21
  %v3535 = vpop.permute.xlu0 %3534
  %3536 = vrot.lane.b32.xlu0 %v3357, 21
  %v3537 = vpop.permute.xlu0 %3536
  %3538 = vrot.lane.b32.xlu0 %v3358, 21
  %v3539 = vpop.permute.xlu0 %3538
  %3540 = vrot.lane.b32.xlu0 %v3359, 21
  %v3541 = vpop.permute.xlu0 %3540
  %3542 = vrot.lane.b32.xlu0 %v3360, 21
  %v3543 = vpop.permute.xlu0 %3542
  %3544 = vrot.lane.b32.xlu0 %v3361, 21
  %v3545 = vpop.permute.xlu0 %3544
  %3546 = vrot.lane.b32.xlu0 %v3362, 21
  %v3547 = vpop.permute.xlu0 %3546
  %3548 = vrot.lane.b32.xlu0 %v3363, 21
  %v3549 = vpop.permute.xlu0 %3548
  %3550 = vrot.lane.b32.xlu0 %v3364, 21
  %v3551 = vpop.permute.xlu0 %3550
  %3552 = vrot.lane.b32.xlu0 %v3365, 21
  %v3553 = vpop.permute.xlu0 %3552
  %3554 = vrot.lane.b32.xlu0 %v3366, 21
  %v3555 = vpop.permute.xlu0 %3554
  %3556 = vrot.lane.b32.xlu0 %v3367, 21
  %v3557 = vpop.permute.xlu0 %3556
  %3558 = vrot.lane.b32.xlu0 %v3368, 21
  %v3559 = vpop.permute.xlu0 %3558
  %3560 = vrot.lane.b32.xlu0 %v3369, 21
  %v3561 = vpop.permute.xlu0 %3560
  %vm3626 = vcmask 191656
  %3627 = vst.msk [vmem:[#allocation2] sm:$0xf] %vm3626, %v3435
  %3628 = vst.msk [vmem:[#allocation2 + $0x4] sm:$0xf] %vm3626, %v3437
  %3629 = vst.msk [vmem:[#allocation2 + $0x8] sm:$0xf] %vm3626, %v3439
  %3630 = vst.msk [vmem:[#allocation2 + $0xc] sm:$0xf] %vm3626, %v3441
  %3631 = vst.msk [vmem:[#allocation2 + $0x10] sm:$0xf] %vm3626, %v3443
  %3632 = vst.msk [vmem:[#allocation2 + $0x14] sm:$0xf] %vm3626, %v3445
  %3633 = vst.msk [vmem:[#allocation2 + $0x18] sm:$0xf] %vm3626, %v3447
  %3634 = vst.msk [vmem:[#allocation2 + $0x1c] sm:$0xf] %vm3626, %v3449
  %3635 = vst.msk [vmem:[#allocation2 + $0x20] sm:$0xf] %vm3626, %v3451
  %3636 = vst.msk [vmem:[#allocation2 + $0x24] sm:$0xf] %vm3626, %v3453
  %3637 = vst.msk [vmem:[#allocation2 + $0x28] sm:$0xf] %vm3626, %v3455
  %3638 = vst.msk [vmem:[#allocation2 + $0x2c] sm:$0xf] %vm3626, %v3457
  %3639 = vst.msk [vmem:[#allocation2 + $0x30] sm:$0xf] %vm3626, %v3459
  %3640 = vst.msk [vmem:[#allocation2 + $0x34] sm:$0xf] %vm3626, %v3461
  %3641 = vst.msk [vmem:[#allocation2 + $0x38] sm:$0xf] %vm3626, %v3463
  %3642 = vst.msk [vmem:[#allocation2 + $0x3c] sm:$0xf] %vm3626, %v3465
  %3643 = vst.msk [vmem:[#allocation2 + $0x40] sm:$0xf] %vm3626, %v3467
  %3644 = vst.msk [vmem:[#allocation2 + $0x44] sm:$0xf] %vm3626, %v3469
  %3645 = vst.msk [vmem:[#allocation2 + $0x48] sm:$0xf] %vm3626, %v3471
  %3646 = vst.msk [vmem:[#allocation2 + $0x4c] sm:$0xf] %vm3626, %v3473
  %3647 = vst.msk [vmem:[#allocation2 + $0x50] sm:$0xf] %vm3626, %v3475
  %3648 = vst.msk [vmem:[#allocation2 + $0x54] sm:$0xf] %vm3626, %v3477
  %3649 = vst.msk [vmem:[#allocation2 + $0x58] sm:$0xf] %vm3626, %v3479
  %3650 = vst.msk [vmem:[#allocation2 + $0x5c] sm:$0xf] %vm3626, %v3481
  %3651 = vst.msk [vmem:[#allocation2 + $0x60] sm:$0xf] %vm3626, %v3483
  %3652 = vst.msk [vmem:[#allocation2 + $0x64] sm:$0xf] %vm3626, %v3485
  %3653 = vst.msk [vmem:[#allocation2 + $0x68] sm:$0xf] %vm3626, %v3487
  %3654 = vst.msk [vmem:[#allocation2 + $0x6c] sm:$0xf] %vm3626, %v3489
  %3655 = vst.msk [vmem:[#allocation2 + $0x70] sm:$0xf] %vm3626, %v3491
  %3656 = vst.msk [vmem:[#allocation2 + $0x74] sm:$0xf] %vm3626, %v3493
  %3657 = vst.msk [vmem:[#allocation2 + $0x78] sm:$0xf] %vm3626, %v3495
  %3658 = vst.msk [vmem:[#allocation2 + $0x7c] sm:$0xf] %vm3626, %v3497
  %3659 = vst.msk [vmem:[#allocation2 + $0x80] sm:$0xf] %vm3626, %v3499
  %3660 = vst.msk [vmem:[#allocation2 + $0x84] sm:$0xf] %vm3626, %v3501
  %3661 = vst.msk [vmem:[#allocation2 + $0x88] sm:$0xf] %vm3626, %v3503
  %3662 = vst.msk [vmem:[#allocation2 + $0x8c] sm:$0xf] %vm3626, %v3505
  %3663 = vst.msk [vmem:[#allocation2 + $0x90] sm:$0xf] %vm3626, %v3507
  %3664 = vst.msk [vmem:[#allocation2 + $0x94] sm:$0xf] %vm3626, %v3509
  %3665 = vst.msk [vmem:[#allocation2 + $0x98] sm:$0xf] %vm3626, %v3511
  %3666 = vst.msk [vmem:[#allocation2 + $0x9c] sm:$0xf] %vm3626, %v3513
  %3667 = vst.msk [vmem:[#allocation2 + $0xa0] sm:$0xf] %vm3626, %v3515
  %3668 = vst.msk [vmem:[#allocation2 + $0xa4] sm:$0xf] %vm3626, %v3517
  %3669 = vst.msk [vmem:[#allocation2 + $0xa8] sm:$0xf] %vm3626, %v3519
  %3670 = vst.msk [vmem:[#allocation2 + $0xac] sm:$0xf] %vm3626, %v3521
  %3671 = vst.msk [vmem:[#allocation2 + $0xb0] sm:$0xf] %vm3626, %v3523
  %3672 = vst.msk [vmem:[#allocation2 + $0xb4] sm:$0xf] %vm3626, %v3525
  %3673 = vst.msk [vmem:[#allocation2 + $0xb8] sm:$0xf] %vm3626, %v3527
  %3674 = vst.msk [vmem:[#allocation2 + $0xbc] sm:$0xf] %vm3626, %v3529
  %3675 = vst.msk [vmem:[#allocation2 + $0xc0] sm:$0xf] %vm3626, %v3531
  %3676 = vst.msk [vmem:[#allocation2 + $0xc4] sm:$0xf] %vm3626, %v3533
  %3677 = vst.msk [vmem:[#allocation2 + $0xc8] sm:$0xf] %vm3626, %v3535
  %3678 = vst.msk [vmem:[#allocation2 + $0xcc] sm:$0xf] %vm3626, %v3537
  %3679 = vst.msk [vmem:[#allocation2 + $0xd0] sm:$0xf] %vm3626, %v3539
  %3680 = vst.msk [vmem:[#allocation2 + $0xd4] sm:$0xf] %vm3626, %v3541
  %3681 = vst.msk [vmem:[#allocation2 + $0xd8] sm:$0xf] %vm3626, %v3543
  %3682 = vst.msk [vmem:[#allocation2 + $0xdc] sm:$0xf] %vm3626, %v3545
  %3683 = vst.msk [vmem:[#allocation2 + $0xe0] sm:$0xf] %vm3626, %v3547
  %3684 = vst.msk [vmem:[#allocation2 + $0xe4] sm:$0xf] %vm3626, %v3549
  %3685 = vst.msk [vmem:[#allocation2 + $0xe8] sm:$0xf] %vm3626, %v3551
  %3686 = vst.msk [vmem:[#allocation2 + $0xec] sm:$0xf] %vm3626, %v3553
  %3687 = vst.msk [vmem:[#allocation2 + $0xf0] sm:$0xf] %vm3626, %v3555
  %3688 = vst.msk [vmem:[#allocation2 + $0xf4] sm:$0xf] %vm3626, %v3557
  %3689 = vst.msk [vmem:[#allocation2 + $0xf8] sm:$0xf] %vm3626, %v3559
  %3690 = vst.msk [vmem:[#allocation2 + $0xfc] sm:$0xf] %vm3626, %v3561
  %v3691 = vld [vmem:[%s2792 + $0x2] sm:$0xff]
  %v3692 = vld [vmem:[%s2792 + $0xa] sm:$0xff]
  %v3693 = vld [vmem:[%s2792 + $0x1a] sm:$0xff]
  %v3694 = vld [vmem:[%s2792 + $0x22] sm:$0xff]
  %v3695 = vld [vmem:[%s2792 + $0x32] sm:$0xff]
  %v3696 = vld [vmem:[%s2792 + $0x3a] sm:$0xff]
  %v3697 = vld [vmem:[%s2792 + $0x4a] sm:$0xff]
  %v3698 = vld [vmem:[%s2792 + $0x52] sm:$0xff]
  %v3699 = vld [vmem:[%s2792 + $0x62] sm:$0xff]
  %v3700 = vld [vmem:[%s2792 + $0x6a] sm:$0xff]
  %v3701 = vld [vmem:[%s2792 + $0x7a] sm:$0xff]
  %v3702 = vld [vmem:[%s2792 + $0x82] sm:$0xff]
  %v3703 = vld [vmem:[%s2792 + $0x92] sm:$0xff]
  %v3704 = vld [vmem:[%s2792 + $0x9a] sm:$0xff]
  %v3705 = vld [vmem:[%s2792 + $0xaa] sm:$0xff]
  %v3706 = vld [vmem:[%s2792 + $0xb2] sm:$0xff]
  %v3707 = vld [vmem:[%s2792 + $0xc2] sm:$0xff]
  %v3708 = vld [vmem:[%s2792 + $0xca] sm:$0xff]
  %v3709 = vld [vmem:[%s2792 + $0xda] sm:$0xff]
  %v3710 = vld [vmem:[%s2792 + $0xe2] sm:$0xff]
  %v3711 = vld [vmem:[%s2792 + $0xf2] sm:$0xff]
  %v3712 = vld [vmem:[%s2792 + $0xfa] sm:$0xff]
  %v3713 = vld [vmem:[%s2792 + $0x10a] sm:$0xff]
  %v3714 = vld [vmem:[%s2792 + $0x112] sm:$0xff]
  %v3715 = vld [vmem:[%s2792 + $0x122] sm:$0xff]
  %v3716 = vld [vmem:[%s2792 + $0x12a] sm:$0xff]
  %v3717 = vld [vmem:[%s2792 + $0x13a] sm:$0xff]
  %v3718 = vld [vmem:[%s2792 + $0x142] sm:$0xff]
  %v3719 = vld [vmem:[%s2792 + $0x152] sm:$0xff]
  %v3720 = vld [vmem:[%s2792 + $0x15a] sm:$0xff]
  %v3721 = vld [vmem:[%s2792 + $0x16a] sm:$0xff]
  %v3722 = vld [vmem:[%s2792 + $0x172] sm:$0xff]
  %v3723 = vld [vmem:[%s2792 + $0x1b2] sm:$0xff]
  %v3724 = vld [vmem:[%s2792 + $0x1ba] sm:$0xff]
  %v3725 = vld [vmem:[%s2792 + $0x1ca] sm:$0xff]
  %v3726 = vld [vmem:[%s2792 + $0x1d2] sm:$0xff]
  %v3727 = vld [vmem:[%s2792 + $0x1e2] sm:$0xff]
  %v3728 = vld [vmem:[%s2792 + $0x1ea] sm:$0xff]
  %v3729 = vld [vmem:[%s2792 + $0x1fa] sm:$0xff]
  %v3730 = vld [vmem:[%s2792 + $0x202] sm:$0xff]
  %v3731 = vld [vmem:[%s2792 + $0x212] sm:$0xff]
  %v3732 = vld [vmem:[%s2792 + $0x21a] sm:$0xff]
  %v3733 = vld [vmem:[%s2792 + $0x22a] sm:$0xff]
  %v3734 = vld [vmem:[%s2792 + $0x232] sm:$0xff]
  %v3735 = vld [vmem:[%s2792 + $0x242] sm:$0xff]
  %v3736 = vld [vmem:[%s2792 + $0x24a] sm:$0xff]
  %v3737 = vld [vmem:[%s2792 + $0x25a] sm:$0xff]
  %v3738 = vld [vmem:[%s2792 + $0x262] sm:$0xff]
  %v3739 = vld [vmem:[%s2792 + $0x272] sm:$0xff]
  %v3740 = vld [vmem:[%s2792 + $0x27a] sm:$0xff]
  %v3741 = vld [vmem:[%s2792 + $0x28a] sm:$0xff]
  %v3742 = vld [vmem:[%s2792 + $0x292] sm:$0xff]
  %v3743 = vld [vmem:[%s2792 + $0x2a2] sm:$0xff]
  %v3744 = vld [vmem:[%s2792 + $0x2aa] sm:$0xff]
  %v3745 = vld [vmem:[%s2792 + $0x2ba] sm:$0xff]
  %v3746 = vld [vmem:[%s2792 + $0x2c2] sm:$0xff]
  %v3747 = vld [vmem:[%s2792 + $0x2d2] sm:$0xff]
  %v3748 = vld [vmem:[%s2792 + $0x2da] sm:$0xff]
  %v3749 = vld [vmem:[%s2792 + $0x2ea] sm:$0xff]
  %v3750 = vld [vmem:[%s2792 + $0x2f2] sm:$0xff]
  %v3751 = vld [vmem:[%s2792 + $0x302] sm:$0xff]
  %v3752 = vld [vmem:[%s2792 + $0x30a] sm:$0xff]
  %v3753 = vld [vmem:[%s2792 + $0x31a] sm:$0xff]
  %v3754 = vld [vmem:[%s2792 + $0x322] sm:$0xff]
  %v3755 = vpack.c.bf16 %v3691, %v3691
  %v3756 = vpack.c.bf16 %v3692, %v3692
  %v3757 = vpack.c.bf16 %v3693, %v3693
  %v3758 = vpack.c.bf16 %v3694, %v3694
  %v3759 = vpack.c.bf16 %v3695, %v3695
  %v3760 = vpack.c.bf16 %v3696, %v3696
  %v3761 = vpack.c.bf16 %v3697, %v3697
  %v3762 = vpack.c.bf16 %v3698, %v3698
  %v3763 = vpack.c.bf16 %v3699, %v3699
  %v3764 = vpack.c.bf16 %v3700, %v3700
  %v3765 = vpack.c.bf16 %v3701, %v3701
  %v3766 = vpack.c.bf16 %v3702, %v3702
  %v3767 = vpack.c.bf16 %v3703, %v3703
  %v3768 = vpack.c.bf16 %v3704, %v3704
  %v3769 = vpack.c.bf16 %v3705, %v3705
  %v3770 = vpack.c.bf16 %v3706, %v3706
  %v3771 = vpack.c.bf16 %v3707, %v3707
  %v3772 = vpack.c.bf16 %v3708, %v3708
  %v3773 = vpack.c.bf16 %v3709, %v3709
  %v3774 = vpack.c.bf16 %v3710, %v3710
  %v3775 = vpack.c.bf16 %v3711, %v3711
  %v3776 = vpack.c.bf16 %v3712, %v3712
  %v3777 = vpack.c.bf16 %v3713, %v3713
  %v3778 = vpack.c.bf16 %v3714, %v3714
  %v3779 = vpack.c.bf16 %v3715, %v3715
  %v3780 = vpack.c.bf16 %v3716, %v3716
  %v3781 = vpack.c.bf16 %v3717, %v3717
  %v3782 = vpack.c.bf16 %v3718, %v3718
  %v3783 = vpack.c.bf16 %v3719, %v3719
  %v3784 = vpack.c.bf16 %v3720, %v3720
  %v3785 = vpack.c.bf16 %v3721, %v3721
  %v3786 = vpack.c.bf16 %v3722, %v3722
  %v3787 = vpack.c.bf16 %v3723, %v3723
  %v3788 = vpack.c.bf16 %v3724, %v3724
  %v3789 = vpack.c.bf16 %v3725, %v3725
  %v3790 = vpack.c.bf16 %v3726, %v3726
  %v3791 = vpack.c.bf16 %v3727, %v3727
  %v3792 = vpack.c.bf16 %v3728, %v3728
  %v3793 = vpack.c.bf16 %v3729, %v3729
  %v3794 = vpack.c.bf16 %v3730, %v3730
  %v3795 = vpack.c.bf16 %v3731, %v3731
  %v3796 = vpack.c.bf16 %v3732, %v3732
  %v3797 = vpack.c.bf16 %v3733, %v3733
  %v3798 = vpack.c.bf16 %v3734, %v3734
  %v3799 = vpack.c.bf16 %v3735, %v3735
  %v3800 = vpack.c.bf16 %v3736, %v3736
  %v3801 = vpack.c.bf16 %v3737, %v3737
  %v3802 = vpack.c.bf16 %v3738, %v3738
  %v3803 = vpack.c.bf16 %v3739, %v3739
  %v3804 = vpack.c.bf16 %v3740, %v3740
  %v3805 = vpack.c.bf16 %v3741, %v3741
  %v3806 = vpack.c.bf16 %v3742, %v3742
  %v3807 = vpack.c.bf16 %v3743, %v3743
  %v3808 = vpack.c.bf16 %v3744, %v3744
  %v3809 = vpack.c.bf16 %v3745, %v3745
  %v3810 = vpack.c.bf16 %v3746, %v3746
  %v3811 = vpack.c.bf16 %v3747, %v3747
  %v3812 = vpack.c.bf16 %v3748, %v3748
  %v3813 = vpack.c.bf16 %v3749, %v3749
  %v3814 = vpack.c.bf16 %v3750, %v3750
  %v3815 = vpack.c.bf16 %v3751, %v3751
  %v3816 = vpack.c.bf16 %v3752, %v3752
  %v3817 = vpack.c.bf16 %v3753, %v3753
  %v3818 = vpack.c.bf16 %v3754, %v3754
  %3883 = vrot.lane.b32.xlu0 %v3755, 24
  %v3884 = vpop.permute.xlu0 %3883
  %3885 = vrot.lane.b32.xlu0 %v3756, 24
  %v3886 = vpop.permute.xlu0 %3885
  %3887 = vrot.lane.b32.xlu0 %v3757, 24
  %v3888 = vpop.permute.xlu0 %3887
  %3889 = vrot.lane.b32.xlu0 %v3758, 24
  %v3890 = vpop.permute.xlu0 %3889
  %3891 = vrot.lane.b32.xlu0 %v3759, 24
  %v3892 = vpop.permute.xlu0 %3891
  %3893 = vrot.lane.b32.xlu0 %v3760, 24
  %v3894 = vpop.permute.xlu0 %3893
  %3895 = vrot.lane.b32.xlu0 %v3761, 24
  %v3896 = vpop.permute.xlu0 %3895
  %3897 = vrot.lane.b32.xlu0 %v3762, 24
  %v3898 = vpop.permute.xlu0 %3897
  %3899 = vrot.lane.b32.xlu0 %v3763, 24
  %v3900 = vpop.permute.xlu0 %3899
  %3901 = vrot.lane.b32.xlu0 %v3764, 24
  %v3902 = vpop.permute.xlu0 %3901
  %3903 = vrot.lane.b32.xlu0 %v3765, 24
  %v3904 = vpop.permute.xlu0 %3903
  %3905 = vrot.lane.b32.xlu0 %v3766, 24
  %v3906 = vpop.permute.xlu0 %3905
  %3907 = vrot.lane.b32.xlu0 %v3767, 24
  %v3908 = vpop.permute.xlu0 %3907
  %3909 = vrot.lane.b32.xlu0 %v3768, 24
  %v3910 = vpop.permute.xlu0 %3909
  %3911 = vrot.lane.b32.xlu0 %v3769, 24
  %v3912 = vpop.permute.xlu0 %3911
  %3913 = vrot.lane.b32.xlu0 %v3770, 24
  %v3914 = vpop.permute.xlu0 %3913
  %3915 = vrot.lane.b32.xlu0 %v3771, 24
  %v3916 = vpop.permute.xlu0 %3915
  %3917 = vrot.lane.b32.xlu0 %v3772, 24
  %v3918 = vpop.permute.xlu0 %3917
  %3919 = vrot.lane.b32.xlu0 %v3773, 24
  %v3920 = vpop.permute.xlu0 %3919
  %3921 = vrot.lane.b32.xlu0 %v3774, 24
  %v3922 = vpop.permute.xlu0 %3921
  %3923 = vrot.lane.b32.xlu0 %v3775, 24
  %v3924 = vpop.permute.xlu0 %3923
  %3925 = vrot.lane.b32.xlu0 %v3776, 24
  %v3926 = vpop.permute.xlu0 %3925
  %3927 = vrot.lane.b32.xlu0 %v3777, 24
  %v3928 = vpop.permute.xlu0 %3927
  %3929 = vrot.lane.b32.xlu0 %v3778, 24
  %v3930 = vpop.permute.xlu0 %3929
  %3931 = vrot.lane.b32.xlu0 %v3779, 24
  %v3932 = vpop.permute.xlu0 %3931
  %3933 = vrot.lane.b32.xlu0 %v3780, 24
  %v3934 = vpop.permute.xlu0 %3933
  %3935 = vrot.lane.b32.xlu0 %v3781, 24
  %v3936 = vpop.permute.xlu0 %3935
  %3937 = vrot.lane.b32.xlu0 %v3782, 24
  %v3938 = vpop.permute.xlu0 %3937
  %3939 = vrot.lane.b32.xlu0 %v3783, 24
  %v3940 = vpop.permute.xlu0 %3939
  %3941 = vrot.lane.b32.xlu0 %v3784, 24
  %v3942 = vpop.permute.xlu0 %3941
  %3943 = vrot.lane.b32.xlu0 %v3785, 24
  %v3944 = vpop.permute.xlu0 %3943
  %3945 = vrot.lane.b32.xlu0 %v3786, 24
  %v3946 = vpop.permute.xlu0 %3945
  %3947 = vrot.lane.b32.xlu0 %v3787, 24
  %v3948 = vpop.permute.xlu0 %3947
  %3949 = vrot.lane.b32.xlu0 %v3788, 24
  %v3950 = vpop.permute.xlu0 %3949
  %3951 = vrot.lane.b32.xlu0 %v3789, 24
  %v3952 = vpop.permute.xlu0 %3951
  %3953 = vrot.lane.b32.xlu0 %v3790, 24
  %v3954 = vpop.permute.xlu0 %3953
  %3955 = vrot.lane.b32.xlu0 %v3791, 24
  %v3956 = vpop.permute.xlu0 %3955
  %3957 = vrot.lane.b32.xlu0 %v3792, 24
  %v3958 = vpop.permute.xlu0 %3957
  %3959 = vrot.lane.b32.xlu0 %v3793, 24
  %v3960 = vpop.permute.xlu0 %3959
  %3961 = vrot.lane.b32.xlu0 %v3794, 24
  %v3962 = vpop.permute.xlu0 %3961
  %3963 = vrot.lane.b32.xlu0 %v3795, 24
  %v3964 = vpop.permute.xlu0 %3963
  %3965 = vrot.lane.b32.xlu0 %v3796, 24
  %v3966 = vpop.permute.xlu0 %3965
  %3967 = vrot.lane.b32.xlu0 %v3797, 24
  %v3968 = vpop.permute.xlu0 %3967
  %3969 = vrot.lane.b32.xlu0 %v3798, 24
  %v3970 = vpop.permute.xlu0 %3969
  %3971 = vrot.lane.b32.xlu0 %v3799, 24
  %v3972 = vpop.permute.xlu0 %3971
  %3973 = vrot.lane.b32.xlu0 %v3800, 24
  %v3974 = vpop.permute.xlu0 %3973
  %3975 = vrot.lane.b32.xlu0 %v3801, 24
  %v3976 = vpop.permute.xlu0 %3975
  %3977 = vrot.lane.b32.xlu0 %v3802, 24
  %v3978 = vpop.permute.xlu0 %3977
  %3979 = vrot.lane.b32.xlu0 %v3803, 24
  %v3980 = vpop.permute.xlu0 %3979
  %3981 = vrot.lane.b32.xlu0 %v3804, 24
  %v3982 = vpop.permute.xlu0 %3981
  %3983 = vrot.lane.b32.xlu0 %v3805, 24
  %v3984 = vpop.permute.xlu0 %3983
  %3985 = vrot.lane.b32.xlu0 %v3806, 24
  %v3986 = vpop.permute.xlu0 %3985
  %3987 = vrot.lane.b32.xlu0 %v3807, 24
  %v3988 = vpop.permute.xlu0 %3987
  %3989 = vrot.lane.b32.xlu0 %v3808, 24
  %v3990 = vpop.permute.xlu0 %3989
  %3991 = vrot.lane.b32.xlu0 %v3809, 24
  %v3992 = vpop.permute.xlu0 %3991
  %3993 = vrot.lane.b32.xlu0 %v3810, 24
  %v3994 = vpop.permute.xlu0 %3993
  %3995 = vrot.lane.b32.xlu0 %v3811, 24
  %v3996 = vpop.permute.xlu0 %3995
  %3997 = vrot.lane.b32.xlu0 %v3812, 24
  %v3998 = vpop.permute.xlu0 %3997
  %3999 = vrot.lane.b32.xlu0 %v3813, 24
  %v4000 = vpop.permute.xlu0 %3999
  %4001 = vrot.lane.b32.xlu0 %v3814, 24
  %v4002 = vpop.permute.xlu0 %4001
  %4003 = vrot.lane.b32.xlu0 %v3815, 24
  %v4004 = vpop.permute.xlu0 %4003
  %4005 = vrot.lane.b32.xlu0 %v3816, 24
  %v4006 = vpop.permute.xlu0 %4005
  %4007 = vrot.lane.b32.xlu0 %v3817, 24
  %v4008 = vpop.permute.xlu0 %4007
  %4009 = vrot.lane.b32.xlu0 %v3818, 24
  %v4010 = vpop.permute.xlu0 %4009
  %vm4075 = vcmask 216256
  %4076 = vst.msk [vmem:[#allocation2] sm:$0xf] %vm4075, %v3884
  %4077 = vst.msk [vmem:[#allocation2 + $0x4] sm:$0xf] %vm4075, %v3886
  %4078 = vst.msk [vmem:[#allocation2 + $0x8] sm:$0xf] %vm4075, %v3888
  %4079 = vst.msk [vmem:[#allocation2 + $0xc] sm:$0xf] %vm4075, %v3890
  %4080 = vst.msk [vmem:[#allocation2 + $0x10] sm:$0xf] %vm4075, %v3892
  %4081 = vst.msk [vmem:[#allocation2 + $0x14] sm:$0xf] %vm4075, %v3894
  %4082 = vst.msk [vmem:[#allocation2 + $0x18] sm:$0xf] %vm4075, %v3896
  %4083 = vst.msk [vmem:[#allocation2 + $0x1c] sm:$0xf] %vm4075, %v3898
  %4084 = vst.msk [vmem:[#allocation2 + $0x20] sm:$0xf] %vm4075, %v3900
  %4085 = vst.msk [vmem:[#allocation2 + $0x24] sm:$0xf] %vm4075, %v3902
  %4086 = vst.msk [vmem:[#allocation2 + $0x28] sm:$0xf] %vm4075, %v3904
  %4087 = vst.msk [vmem:[#allocation2 + $0x2c] sm:$0xf] %vm4075, %v3906
  %4088 = vst.msk [vmem:[#allocation2 + $0x30] sm:$0xf] %vm4075, %v3908
  %4089 = vst.msk [vmem:[#allocation2 + $0x34] sm:$0xf] %vm4075, %v3910
  %4090 = vst.msk [vmem:[#allocation2 + $0x38] sm:$0xf] %vm4075, %v3912
  %4091 = vst.msk [vmem:[#allocation2 + $0x3c] sm:$0xf] %vm4075, %v3914
  %4092 = vst.msk [vmem:[#allocation2 + $0x40] sm:$0xf] %vm4075, %v3916
  %4093 = vst.msk [vmem:[#allocation2 + $0x44] sm:$0xf] %vm4075, %v3918
  %4094 = vst.msk [vmem:[#allocation2 + $0x48] sm:$0xf] %vm4075, %v3920
  %4095 = vst.msk [vmem:[#allocation2 + $0x4c] sm:$0xf] %vm4075, %v3922
  %4096 = vst.msk [vmem:[#allocation2 + $0x50] sm:$0xf] %vm4075, %v3924
  %4097 = vst.msk [vmem:[#allocation2 + $0x54] sm:$0xf] %vm4075, %v3926
  %4098 = vst.msk [vmem:[#allocation2 + $0x58] sm:$0xf] %vm4075, %v3928
  %4099 = vst.msk [vmem:[#allocation2 + $0x5c] sm:$0xf] %vm4075, %v3930
  %4100 = vst.msk [vmem:[#allocation2 + $0x60] sm:$0xf] %vm4075, %v3932
  %4101 = vst.msk [vmem:[#allocation2 + $0x64] sm:$0xf] %vm4075, %v3934
  %4102 = vst.msk [vmem:[#allocation2 + $0x68] sm:$0xf] %vm4075, %v3936
  %4103 = vst.msk [vmem:[#allocation2 + $0x6c] sm:$0xf] %vm4075, %v3938
  %4104 = vst.msk [vmem:[#allocation2 + $0x70] sm:$0xf] %vm4075, %v3940
  %4105 = vst.msk [vmem:[#allocation2 + $0x74] sm:$0xf] %vm4075, %v3942
  %4106 = vst.msk [vmem:[#allocation2 + $0x78] sm:$0xf] %vm4075, %v3944
  %4107 = vst.msk [vmem:[#allocation2 + $0x7c] sm:$0xf] %vm4075, %v3946
  %4108 = vst.msk [vmem:[#allocation2 + $0x80] sm:$0xf] %vm4075, %v3948
  %4109 = vst.msk [vmem:[#allocation2 + $0x84] sm:$0xf] %vm4075, %v3950
  %4110 = vst.msk [vmem:[#allocation2 + $0x88] sm:$0xf] %vm4075, %v3952
  %4111 = vst.msk [vmem:[#allocation2 + $0x8c] sm:$0xf] %vm4075, %v3954
  %4112 = vst.msk [vmem:[#allocation2 + $0x90] sm:$0xf] %vm4075, %v3956
  %4113 = vst.msk [vmem:[#allocation2 + $0x94] sm:$0xf] %vm4075, %v3958
  %4114 = vst.msk [vmem:[#allocation2 + $0x98] sm:$0xf] %vm4075, %v3960
  %4115 = vst.msk [vmem:[#allocation2 + $0x9c] sm:$0xf] %vm4075, %v3962
  %4116 = vst.msk [vmem:[#allocation2 + $0xa0] sm:$0xf] %vm4075, %v3964
  %4117 = vst.msk [vmem:[#allocation2 + $0xa4] sm:$0xf] %vm4075, %v3966
  %4118 = vst.msk [vmem:[#allocation2 + $0xa8] sm:$0xf] %vm4075, %v3968
  %4119 = vst.msk [vmem:[#allocation2 + $0xac] sm:$0xf] %vm4075, %v3970
  %4120 = vst.msk [vmem:[#allocation2 + $0xb0] sm:$0xf] %vm4075, %v3972
  %4121 = vst.msk [vmem:[#allocation2 + $0xb4] sm:$0xf] %vm4075, %v3974
  %4122 = vst.msk [vmem:[#allocation2 + $0xb8] sm:$0xf] %vm4075, %v3976
  %4123 = vst.msk [vmem:[#allocation2 + $0xbc] sm:$0xf] %vm4075, %v3978
  %4124 = vst.msk [vmem:[#allocation2 + $0xc0] sm:$0xf] %vm4075, %v3980
  %4125 = vst.msk [vmem:[#allocation2 + $0xc4] sm:$0xf] %vm4075, %v3982
  %4126 = vst.msk [vmem:[#allocation2 + $0xc8] sm:$0xf] %vm4075, %v3984
  %4127 = vst.msk [vmem:[#allocation2 + $0xcc] sm:$0xf] %vm4075, %v3986
  %4128 = vst.msk [vmem:[#allocation2 + $0xd0] sm:$0xf] %vm4075, %v3988
  %4129 = vst.msk [vmem:[#allocation2 + $0xd4] sm:$0xf] %vm4075, %v3990
  %4130 = vst.msk [vmem:[#allocation2 + $0xd8] sm:$0xf] %vm4075, %v3992
  %4131 = vst.msk [vmem:[#allocation2 + $0xdc] sm:$0xf] %vm4075, %v3994
  %4132 = vst.msk [vmem:[#allocation2 + $0xe0] sm:$0xf] %vm4075, %v3996
  %4133 = vst.msk [vmem:[#allocation2 + $0xe4] sm:$0xf] %vm4075, %v3998
  %4134 = vst.msk [vmem:[#allocation2 + $0xe8] sm:$0xf] %vm4075, %v4000
  %4135 = vst.msk [vmem:[#allocation2 + $0xec] sm:$0xf] %vm4075, %v4002
  %4136 = vst.msk [vmem:[#allocation2 + $0xf0] sm:$0xf] %vm4075, %v4004
  %4137 = vst.msk [vmem:[#allocation2 + $0xf4] sm:$0xf] %vm4075, %v4006
  %4138 = vst.msk [vmem:[#allocation2 + $0xf8] sm:$0xf] %vm4075, %v4008
  %4139 = vst.msk [vmem:[#allocation2 + $0xfc] sm:$0xf] %vm4075, %v4010
  %v4140 = vld [vmem:[#allocation2] sm:$0xf]
  %v4141 = vld [vmem:[#allocation2 + $0x4] sm:$0xf]
  %v4142 = vld [vmem:[#allocation2 + $0x8] sm:$0xf]
  %v4143 = vld [vmem:[#allocation2 + $0xc] sm:$0xf]
  %v4144 = vld [vmem:[#allocation2 + $0x10] sm:$0xf]
  %v4145 = vld [vmem:[#allocation2 + $0x14] sm:$0xf]
  %v4146 = vld [vmem:[#allocation2 + $0x18] sm:$0xf]
  %v4147 = vld [vmem:[#allocation2 + $0x1c] sm:$0xf]
  %v4148 = vld [vmem:[#allocation2 + $0x20] sm:$0xf]
  %v4149 = vld [vmem:[#allocation2 + $0x24] sm:$0xf]
  %v4150 = vld [vmem:[#allocation2 + $0x28] sm:$0xf]
  %v4151 = vld [vmem:[#allocation2 + $0x2c] sm:$0xf]
  %v4152 = vld [vmem:[#allocation2 + $0x30] sm:$0xf]
  %v4153 = vld [vmem:[#allocation2 + $0x34] sm:$0xf]
  %v4154 = vld [vmem:[#allocation2 + $0x38] sm:$0xf]
  %v4155 = vld [vmem:[#allocation2 + $0x3c] sm:$0xf]
  %v4156 = vld [vmem:[#allocation2 + $0x40] sm:$0xf]
  %v4157 = vld [vmem:[#allocation2 + $0x44] sm:$0xf]
  %v4158 = vld [vmem:[#allocation2 + $0x48] sm:$0xf]
  %v4159 = vld [vmem:[#allocation2 + $0x4c] sm:$0xf]
  %v4160 = vld [vmem:[#allocation2 + $0x50] sm:$0xf]
  %v4161 = vld [vmem:[#allocation2 + $0x54] sm:$0xf]
  %v4162 = vld [vmem:[#allocation2 + $0x58] sm:$0xf]
  %v4163 = vld [vmem:[#allocation2 + $0x5c] sm:$0xf]
  %v4164 = vld [vmem:[#allocation2 + $0x60] sm:$0xf]
  %v4165 = vld [vmem:[#allocation2 + $0x64] sm:$0xf]
  %v4166 = vld [vmem:[#allocation2 + $0x68] sm:$0xf]
  %v4167 = vld [vmem:[#allocation2 + $0x6c] sm:$0xf]
  %v4168 = vld [vmem:[#allocation2 + $0x70] sm:$0xf]
  %v4169 = vld [vmem:[#allocation2 + $0x74] sm:$0xf]
  %v4170 = vld [vmem:[#allocation2 + $0x78] sm:$0xf]
  %v4171 = vld [vmem:[#allocation2 + $0x7c] sm:$0xf]
  %v4172 = vld [vmem:[#allocation2 + $0x80] sm:$0xf]
  %v4173 = vld [vmem:[#allocation2 + $0x84] sm:$0xf]
  %v4174 = vld [vmem:[#allocation2 + $0x88] sm:$0xf]
  %v4175 = vld [vmem:[#allocation2 + $0x8c] sm:$0xf]
  %v4176 = vld [vmem:[#allocation2 + $0x90] sm:$0xf]
  %v4177 = vld [vmem:[#allocation2 + $0x94] sm:$0xf]
  %v4178 = vld [vmem:[#allocation2 + $0x98] sm:$0xf]
  %v4179 = vld [vmem:[#allocation2 + $0x9c] sm:$0xf]
  %v4180 = vld [vmem:[#allocation2 + $0xa0] sm:$0xf]
  %v4181 = vld [vmem:[#allocation2 + $0xa4] sm:$0xf]
  %v4182 = vld [vmem:[#allocation2 + $0xa8] sm:$0xf]
  %v4183 = vld [vmem:[#allocation2 + $0xac] sm:$0xf]
  %v4184 = vld [vmem:[#allocation2 + $0xb0] sm:$0xf]
  %v4185 = vld [vmem:[#allocation2 + $0xb4] sm:$0xf]
  %v4186 = vld [vmem:[#allocation2 + $0xb8] sm:$0xf]
  %v4187 = vld [vmem:[#allocation2 + $0xbc] sm:$0xf]
  %v4188 = vld [vmem:[#allocation2 + $0xc0] sm:$0xf]
  %v4189 = vld [vmem:[#allocation2 + $0xc4] sm:$0xf]
  %v4190 = vld [vmem:[#allocation2 + $0xc8] sm:$0xf]
  %v4191 = vld [vmem:[#allocation2 + $0xcc] sm:$0xf]
  %v4192 = vld [vmem:[#allocation2 + $0xd0] sm:$0xf]
  %v4193 = vld [vmem:[#allocation2 + $0xd4] sm:$0xf]
  %v4194 = vld [vmem:[#allocation2 + $0xd8] sm:$0xf]
  %v4195 = vld [vmem:[#allocation2 + $0xdc] sm:$0xf]
  %v4196 = vld [vmem:[#allocation2 + $0xe0] sm:$0xf]
  %v4197 = vld [vmem:[#allocation2 + $0xe4] sm:$0xf]
  %v4198 = vld [vmem:[#allocation2 + $0xe8] sm:$0xf]
  %v4199 = vld [vmem:[#allocation2 + $0xec] sm:$0xf]
  %v4200 = vld [vmem:[#allocation2 + $0xf0] sm:$0xf]
  %v4201 = vld [vmem:[#allocation2 + $0xf4] sm:$0xf]
  %v4202 = vld [vmem:[#allocation2 + $0xf8] sm:$0xf]
  %v4203 = vld [vmem:[#allocation2 + $0xfc] sm:$0xf]
  %v4204 = vld [vmem:[%s1] sm:$0xf]
  %v4205 = vld [vmem:[%s1 + $0x4] sm:$0xf]
  %v4206 = vld [vmem:[%s1 + $0x8] sm:$0xf]
  %v4207 = vld [vmem:[%s1 + $0xc] sm:$0x3]
  %v4272 = vunpack.c.l.b16 %v4140
  %v4273 = vunpack.c.l.b16 %v4141
  %v4274 = vunpack.c.l.b16 %v4142
  %v4275 = vunpack.c.l.b16 %v4143
  %v4276 = vunpack.c.l.b16 %v4144
  %v4277 = vunpack.c.l.b16 %v4145
  %v4278 = vunpack.c.l.b16 %v4146
  %v4279 = vunpack.c.l.b16 %v4147
  %v4280 = vunpack.c.l.b16 %v4148
  %v4281 = vunpack.c.l.b16 %v4149
  %v4282 = vunpack.c.l.b16 %v4150
  %v4283 = vunpack.c.l.b16 %v4151
  %v4284 = vunpack.c.l.b16 %v4152
  %v4285 = vunpack.c.l.b16 %v4153
  %v4286 = vunpack.c.l.b16 %v4154
  %v4287 = vunpack.c.l.b16 %v4155
  %v4288 = vunpack.c.l.b16 %v4156
  %v4289 = vunpack.c.l.b16 %v4157
  %v4290 = vunpack.c.l.b16 %v4158
  %v4291 = vunpack.c.l.b16 %v4159
  %v4292 = vunpack.c.l.b16 %v4160
  %v4293 = vunpack.c.l.b16 %v4161
  %v4294 = vunpack.c.l.b16 %v4162
  %v4295 = vunpack.c.l.b16 %v4163
  %v4296 = vunpack.c.l.b16 %v4164
  %v4297 = vunpack.c.l.b16 %v4165
  %v4298 = vunpack.c.l.b16 %v4166
  %v4299 = vunpack.c.l.b16 %v4167
  %v4300 = vunpack.c.l.b16 %v4168
  %v4301 = vunpack.c.l.b16 %v4169
  %v4302 = vunpack.c.l.b16 %v4170
  %v4303 = vunpack.c.l.b16 %v4171
  %v4304 = vunpack.c.l.b16 %v4172
  %v4305 = vunpack.c.l.b16 %v4173
  %v4306 = vunpack.c.l.b16 %v4174
  %v4307 = vunpack.c.l.b16 %v4175
  %v4308 = vunpack.c.l.b16 %v4176
  %v4309 = vunpack.c.l.b16 %v4177
  %v4310 = vunpack.c.l.b16 %v4178
  %v4311 = vunpack.c.l.b16 %v4179
  %v4312 = vunpack.c.l.b16 %v4180
  %v4313 = vunpack.c.l.b16 %v4181
  %v4314 = vunpack.c.l.b16 %v4182
  %v4315 = vunpack.c.l.b16 %v4183
  %v4316 = vunpack.c.l.b16 %v4184
  %v4317 = vunpack.c.l.b16 %v4185
  %v4318 = vunpack.c.l.b16 %v4186
  %v4319 = vunpack.c.l.b16 %v4187
  %v4320 = vunpack.c.l.b16 %v4188
  %v4321 = vunpack.c.l.b16 %v4189
  %v4322 = vunpack.c.l.b16 %v4190
  %v4323 = vunpack.c.l.b16 %v4191
  %v4324 = vunpack.c.l.b16 %v4192
  %v4325 = vunpack.c.l.b16 %v4193
  %v4326 = vunpack.c.l.b16 %v4194
  %v4327 = vunpack.c.l.b16 %v4195
  %v4328 = vunpack.c.l.b16 %v4196
  %v4329 = vunpack.c.l.b16 %v4197
  %v4330 = vunpack.c.l.b16 %v4198
  %v4331 = vunpack.c.l.b16 %v4199
  %v4332 = vunpack.c.l.b16 %v4200
  %v4333 = vunpack.c.l.b16 %v4201
  %v4334 = vunpack.c.l.b16 %v4202
  %v4335 = vunpack.c.l.b16 %v4203
  %v4336 = vpack.c.b16 %v4273, %v4272
  %v4337 = vpack.c.b16 %v4275, %v4274
  %v4338 = vpack.c.b16 %v4277, %v4276
  %v4339 = vpack.c.b16 %v4279, %v4278
  %v4340 = vpack.c.b16 %v4281, %v4280
  %v4341 = vpack.c.b16 %v4283, %v4282
  %v4342 = vpack.c.b16 %v4285, %v4284
  %v4343 = vpack.c.b16 %v4287, %v4286
  %v4344 = vpack.c.b16 %v4289, %v4288
  %v4345 = vpack.c.b16 %v4291, %v4290
  %v4346 = vpack.c.b16 %v4293, %v4292
  %v4347 = vpack.c.b16 %v4295, %v4294
  %v4348 = vpack.c.b16 %v4297, %v4296
  %v4349 = vpack.c.b16 %v4299, %v4298
  %v4350 = vpack.c.b16 %v4301, %v4300
  %v4351 = vpack.c.b16 %v4303, %v4302
  %v4352 = vpack.c.b16 %v4305, %v4304
  %v4353 = vpack.c.b16 %v4307, %v4306
  %v4354 = vpack.c.b16 %v4309, %v4308
  %v4355 = vpack.c.b16 %v4311, %v4310
  %v4356 = vpack.c.b16 %v4313, %v4312
  %v4357 = vpack.c.b16 %v4315, %v4314
  %v4358 = vpack.c.b16 %v4317, %v4316
  %v4359 = vpack.c.b16 %v4319, %v4318
  %v4360 = vpack.c.b16 %v4321, %v4320
  %v4361 = vpack.c.b16 %v4323, %v4322
  %v4362 = vpack.c.b16 %v4325, %v4324
  %v4363 = vpack.c.b16 %v4327, %v4326
  %v4364 = vpack.c.b16 %v4329, %v4328
  %v4365 = vpack.c.b16 %v4331, %v4330
  %v4366 = vpack.c.b16 %v4333, %v4332
  %v4367 = vpack.c.b16 %v4335, %v4334
  %v4372 = vunpack.c.l.b16 %v4204
  %v4373 = vunpack.c.l.b16 %v4205
  %v4374 = vunpack.c.l.b16 %v4206
  %v4375 = vunpack.c.l.b16 %v4207
  %v4376 = vpack.c.b16 %v4373, %v4372
  %v4377 = vpack.c.b16 %v4375, %v4374
  %vm4379 = vcmask 220160
  %v4381 = vsel %vm4379, %v4336, 0
  %v4384 = vsel %vm4379, %v4337, 0
  %v4387 = vsel %vm4379, %v4338, 0
  %v4390 = vsel %vm4379, %v4339, 0
  %v4393 = vsel %vm4379, %v4340, 0
  %v4396 = vsel %vm4379, %v4341, 0
  %v4399 = vsel %vm4379, %v4342, 0
  %v4402 = vsel %vm4379, %v4343, 0
  %v4405 = vsel %vm4379, %v4344, 0
  %v4408 = vsel %vm4379, %v4345, 0
  %v4411 = vsel %vm4379, %v4346, 0
  %v4414 = vsel %vm4379, %v4347, 0
  %v4417 = vsel %vm4379, %v4348, 0
  %v4420 = vsel %vm4379, %v4349, 0
  %v4423 = vsel %vm4379, %v4350, 0
  %v4426 = vsel %vm4379, %v4351, 0
  %v4429 = vsel %vm4379, %v4352, 0
  %v4432 = vsel %vm4379, %v4353, 0
  %v4435 = vsel %vm4379, %v4354, 0
  %v4438 = vsel %vm4379, %v4355, 0
  %v4441 = vsel %vm4379, %v4356, 0
  %v4444 = vsel %vm4379, %v4357, 0
  %v4447 = vsel %vm4379, %v4358, 0
  %v4450 = vsel %vm4379, %v4359, 0
  %v4453 = vsel %vm4379, %v4360, 0
  %v4456 = vsel %vm4379, %v4361, 0
  %v4459 = vsel %vm4379, %v4362, 0
  %v4462 = vsel %vm4379, %v4363, 0
  %v4465 = vsel %vm4379, %v4364, 0
  %v4468 = vsel %vm4379, %v4365, 0
  %v4471 = vsel %vm4379, %v4366, 0
  %v4474 = vsel %vm4379, %v4367, 0
  %vm4476 = vcmask 1044480
  %vm4477 = vcmask 1045504
  %v4478 = vsel %vm4476, 4294967295, 65535
  %v4479 = vsel %vm4477, %v4478, 0
  %v4481 = vand.u32 %v4377, %v4479
  %4483 = vmatpush.bf16.msra.mxu0 0
  %4484 = vmatpush.bf16.msra.mxu0 0
  %4485 = vmatpush.bf16.msra.mxu0 0
  %4486 = vmatpush.bf16.msra.mxu0 0
  %4487 = vmatpush.bf16.msra.mxu0 0
  %4488 = vmatpush.bf16.msra.mxu0 0
  %4489 = vmatpush.bf16.msra.mxu0 %v4481
  %4490 = vmatpush.bf16.msra.mxu0 %v4376
  %4491 = vmatmul.bf16.gmra.mxu0 %v4381
  %v4492 = vpop.f32.mrf.mxu0
  %v4493 = vadd.f32 0.0, %v4492
  %v4494 = vpop.f32.mrf.mxu0
  %v4495 = vadd.f32 0.0, %v4494
  %4496 = vmatmul.bf16.gmra.mxu0 %v4384
  %v4497 = vpop.f32.mrf.mxu0
  %v4498 = vadd.f32 0.0, %v4497
  %v4499 = vpop.f32.mrf.mxu0
  %v4500 = vadd.f32 0.0, %v4499
  %4501 = vmatmul.bf16.gmra.mxu0 %v4387
  %v4502 = vpop.f32.mrf.mxu0
  %v4503 = vadd.f32 0.0, %v4502
  %v4504 = vpop.f32.mrf.mxu0
  %v4505 = vadd.f32 0.0, %v4504
  %4506 = vmatmul.bf16.gmra.mxu0 %v4390
  %v4507 = vpop.f32.mrf.mxu0
  %v4508 = vadd.f32 0.0, %v4507
  %v4509 = vpop.f32.mrf.mxu0
  %v4510 = vadd.f32 0.0, %v4509
  %4511 = vmatmul.bf16.gmra.mxu0 %v4393
  %v4512 = vpop.f32.mrf.mxu0
  %v4513 = vadd.f32 0.0, %v4512
  %v4514 = vpop.f32.mrf.mxu0
  %v4515 = vadd.f32 0.0, %v4514
  %4516 = vmatmul.bf16.gmra.mxu0 %v4396
  %v4517 = vpop.f32.mrf.mxu0
  %v4518 = vadd.f32 0.0, %v4517
  %v4519 = vpop.f32.mrf.mxu0
  %v4520 = vadd.f32 0.0, %v4519
  %4521 = vmatmul.bf16.gmra.mxu0 %v4399
  %v4522 = vpop.f32.mrf.mxu0
  %v4523 = vadd.f32 0.0, %v4522
  %v4524 = vpop.f32.mrf.mxu0
  %v4525 = vadd.f32 0.0, %v4524
  %4526 = vmatmul.bf16.gmra.mxu0 %v4402
  %v4527 = vpop.f32.mrf.mxu0
  %v4528 = vadd.f32 0.0, %v4527
  %v4529 = vpop.f32.mrf.mxu0
  %v4530 = vadd.f32 0.0, %v4529
  %4531 = vmatmul.bf16.gmra.mxu0 %v4405
  %v4532 = vpop.f32.mrf.mxu0
  %v4533 = vadd.f32 0.0, %v4532
  %v4534 = vpop.f32.mrf.mxu0
  %v4535 = vadd.f32 0.0, %v4534
  %4536 = vmatmul.bf16.gmra.mxu0 %v4408
  %v4537 = vpop.f32.mrf.mxu0
  %v4538 = vadd.f32 0.0, %v4537
  %v4539 = vpop.f32.mrf.mxu0
  %v4540 = vadd.f32 0.0, %v4539
  %4541 = vmatmul.bf16.gmra.mxu0 %v4411
  %v4542 = vpop.f32.mrf.mxu0
  %v4543 = vadd.f32 0.0, %v4542
  %v4544 = vpop.f32.mrf.mxu0
  %v4545 = vadd.f32 0.0, %v4544
  %4546 = vmatmul.bf16.gmra.mxu0 %v4414
  %v4547 = vpop.f32.mrf.mxu0
  %v4548 = vadd.f32 0.0, %v4547
  %v4549 = vpop.f32.mrf.mxu0
  %v4550 = vadd.f32 0.0, %v4549
  %4551 = vmatmul.bf16.gmra.mxu0 %v4417
  %v4552 = vpop.f32.mrf.mxu0
  %v4553 = vadd.f32 0.0, %v4552
  %v4554 = vpop.f32.mrf.mxu0
  %v4555 = vadd.f32 0.0, %v4554
  %4556 = vmatmul.bf16.gmra.mxu0 %v4420
  %v4557 = vpop.f32.mrf.mxu0
  %v4558 = vadd.f32 0.0, %v4557
  %v4559 = vpop.f32.mrf.mxu0
  %v4560 = vadd.f32 0.0, %v4559
  %4561 = vmatmul.bf16.gmra.mxu0 %v4423
  %v4562 = vpop.f32.mrf.mxu0
  %v4563 = vadd.f32 0.0, %v4562
  %v4564 = vpop.f32.mrf.mxu0
  %v4565 = vadd.f32 0.0, %v4564
  %4566 = vmatmul.bf16.gmra.mxu0 %v4426
  %v4567 = vpop.f32.mrf.mxu0
  %v4568 = vadd.f32 0.0, %v4567
  %v4569 = vpop.f32.mrf.mxu0
  %v4570 = vadd.f32 0.0, %v4569
  %4571 = vmatmul.bf16.gmra.mxu0 %v4429
  %v4572 = vpop.f32.mrf.mxu0
  %v4573 = vadd.f32 0.0, %v4572
  %v4574 = vpop.f32.mrf.mxu0
  %v4575 = vadd.f32 0.0, %v4574
  %4576 = vmatmul.bf16.gmra.mxu0 %v4432
  %v4577 = vpop.f32.mrf.mxu0
  %v4578 = vadd.f32 0.0, %v4577
  %v4579 = vpop.f32.mrf.mxu0
  %v4580 = vadd.f32 0.0, %v4579
  %4581 = vmatmul.bf16.gmra.mxu0 %v4435
  %v4582 = vpop.f32.mrf.mxu0
  %v4583 = vadd.f32 0.0, %v4582
  %v4584 = vpop.f32.mrf.mxu0
  %v4585 = vadd.f32 0.0, %v4584
  %4586 = vmatmul.bf16.gmra.mxu0 %v4438
  %v4587 = vpop.f32.mrf.mxu0
  %v4588 = vadd.f32 0.0, %v4587
  %v4589 = vpop.f32.mrf.mxu0
  %v4590 = vadd.f32 0.0, %v4589
  %4591 = vmatmul.bf16.gmra.mxu0 %v4441
  %v4592 = vpop.f32.mrf.mxu0
  %v4593 = vadd.f32 0.0, %v4592
  %v4594 = vpop.f32.mrf.mxu0
  %v4595 = vadd.f32 0.0, %v4594
  %4596 = vmatmul.bf16.gmra.mxu0 %v4444
  %v4597 = vpop.f32.mrf.mxu0
  %v4598 = vadd.f32 0.0, %v4597
  %v4599 = vpop.f32.mrf.mxu0
  %v4600 = vadd.f32 0.0, %v4599
  %4601 = vmatmul.bf16.gmra.mxu0 %v4447
  %v4602 = vpop.f32.mrf.mxu0
  %v4603 = vadd.f32 0.0, %v4602
  %v4604 = vpop.f32.mrf.mxu0
  %v4605 = vadd.f32 0.0, %v4604
  %4606 = vmatmul.bf16.gmra.mxu0 %v4450
  %v4607 = vpop.f32.mrf.mxu0
  %v4608 = vadd.f32 0.0, %v4607
  %v4609 = vpop.f32.mrf.mxu0
  %v4610 = vadd.f32 0.0, %v4609
  %4611 = vmatmul.bf16.gmra.mxu0 %v4453
  %v4612 = vpop.f32.mrf.mxu0
  %v4613 = vadd.f32 0.0, %v4612
  %v4614 = vpop.f32.mrf.mxu0
  %v4615 = vadd.f32 0.0, %v4614
  %4616 = vmatmul.bf16.gmra.mxu0 %v4456
  %v4617 = vpop.f32.mrf.mxu0
  %v4618 = vadd.f32 0.0, %v4617
  %v4619 = vpop.f32.mrf.mxu0
  %v4620 = vadd.f32 0.0, %v4619
  %4621 = vmatmul.bf16.gmra.mxu0 %v4459
  %v4622 = vpop.f32.mrf.mxu0
  %v4623 = vadd.f32 0.0, %v4622
  %v4624 = vpop.f32.mrf.mxu0
  %v4625 = vadd.f32 0.0, %v4624
  %4626 = vmatmul.bf16.gmra.mxu0 %v4462
  %v4627 = vpop.f32.mrf.mxu0
  %v4628 = vadd.f32 0.0, %v4627
  %v4629 = vpop.f32.mrf.mxu0
  %v4630 = vadd.f32 0.0, %v4629
  %4631 = vmatmul.bf16.gmra.mxu0 %v4465
  %v4632 = vpop.f32.mrf.mxu0
  %v4633 = vadd.f32 0.0, %v4632
  %v4634 = vpop.f32.mrf.mxu0
  %v4635 = vadd.f32 0.0, %v4634
  %4636 = vmatmul.bf16.gmra.mxu0 %v4468
  %v4637 = vpop.f32.mrf.mxu0
  %v4638 = vadd.f32 0.0, %v4637
  %v4639 = vpop.f32.mrf.mxu0
  %v4640 = vadd.f32 0.0, %v4639
  %4641 = vmatmul.bf16.gmra.mxu0 %v4471
  %v4642 = vpop.f32.mrf.mxu0
  %v4643 = vadd.f32 0.0, %v4642
  %v4644 = vpop.f32.mrf.mxu0
  %v4645 = vadd.f32 0.0, %v4644
  %4646 = vmatmul.bf16.gmra.mxu0 %v4474
  %v4647 = vpop.f32.mrf.mxu0
  %v4648 = vadd.f32 0.0, %v4647
  %v4649 = vpop.f32.mrf.mxu0
  %v4650 = vadd.f32 0.0, %v4649
  %4651 = vdwg.mxu0
  %v4652 = vld [vmem:[%s2] sm:$0x1]
  %v4654 = vperm.slane %v4652, 0
  %v4656 = vmul.f32 %v4493, %v4654
  %v4657 = vmul.f32 %v4495, %v4654
  %v4658 = vmul.f32 %v4498, %v4654
  %v4659 = vmul.f32 %v4500, %v4654
  %v4660 = vmul.f32 %v4503, %v4654
  %v4661 = vmul.f32 %v4505, %v4654
  %v4662 = vmul.f32 %v4508, %v4654
  %v4663 = vmul.f32 %v4510, %v4654
  %v4664 = vmul.f32 %v4513, %v4654
  %v4665 = vmul.f32 %v4515, %v4654
  %v4666 = vmul.f32 %v4518, %v4654
  %v4667 = vmul.f32 %v4520, %v4654
  %v4668 = vmul.f32 %v4523, %v4654
  %v4669 = vmul.f32 %v4525, %v4654
  %v4670 = vmul.f32 %v4528, %v4654
  %v4671 = vmul.f32 %v4530, %v4654
  %v4672 = vmul.f32 %v4533, %v4654
  %v4673 = vmul.f32 %v4535, %v4654
  %v4674 = vmul.f32 %v4538, %v4654
  %v4675 = vmul.f32 %v4540, %v4654
  %v4676 = vmul.f32 %v4543, %v4654
  %v4677 = vmul.f32 %v4545, %v4654
  %v4678 = vmul.f32 %v4548, %v4654
  %v4679 = vmul.f32 %v4550, %v4654
  %v4680 = vmul.f32 %v4553, %v4654
  %v4681 = vmul.f32 %v4555, %v4654
  %v4682 = vmul.f32 %v4558, %v4654
  %v4683 = vmul.f32 %v4560, %v4654
  %v4684 = vmul.f32 %v4563, %v4654
  %v4685 = vmul.f32 %v4565, %v4654
  %v4686 = vmul.f32 %v4568, %v4654
  %v4687 = vmul.f32 %v4570, %v4654
  %v4688 = vmul.f32 %v4573, %v4654
  %v4689 = vmul.f32 %v4575, %v4654
  %v4690 = vmul.f32 %v4578, %v4654
  %v4691 = vmul.f32 %v4580, %v4654
  %v4692 = vmul.f32 %v4583, %v4654
  %v4693 = vmul.f32 %v4585, %v4654
  %v4694 = vmul.f32 %v4588, %v4654
  %v4695 = vmul.f32 %v4590, %v4654
  %v4696 = vmul.f32 %v4593, %v4654
  %v4697 = vmul.f32 %v4595, %v4654
  %v4698 = vmul.f32 %v4598, %v4654
  %v4699 = vmul.f32 %v4600, %v4654
  %v4700 = vmul.f32 %v4603, %v4654
  %v4701 = vmul.f32 %v4605, %v4654
  %v4702 = vmul.f32 %v4608, %v4654
  %v4703 = vmul.f32 %v4610, %v4654
  %v4704 = vmul.f32 %v4613, %v4654
  %v4705 = vmul.f32 %v4615, %v4654
  %v4706 = vmul.f32 %v4618, %v4654
  %v4707 = vmul.f32 %v4620, %v4654
  %v4708 = vmul.f32 %v4623, %v4654
  %v4709 = vmul.f32 %v4625, %v4654
  %v4710 = vmul.f32 %v4628, %v4654
  %v4711 = vmul.f32 %v4630, %v4654
  %v4712 = vmul.f32 %v4633, %v4654
  %v4713 = vmul.f32 %v4635, %v4654
  %v4714 = vmul.f32 %v4638, %v4654
  %v4715 = vmul.f32 %v4640, %v4654
  %v4716 = vmul.f32 %v4643, %v4654
  %v4717 = vmul.f32 %v4645, %v4654
  %v4718 = vmul.f32 %v4648, %v4654
  %v4719 = vmul.f32 %v4650, %v4654
  %v4720 = vld [vmem:[%s3] sm:$0x1]
  %v4722 = vperm.slane %v4720, 0
  %v4724 = vadd.f32 %v4656, %v4722
  %v4725 = vadd.f32 %v4657, %v4722
  %v4726 = vadd.f32 %v4658, %v4722
  %v4727 = vadd.f32 %v4659, %v4722
  %v4728 = vadd.f32 %v4660, %v4722
  %v4729 = vadd.f32 %v4661, %v4722
  %v4730 = vadd.f32 %v4662, %v4722
  %v4731 = vadd.f32 %v4663, %v4722
  %v4732 = vadd.f32 %v4664, %v4722
  %v4733 = vadd.f32 %v4665, %v4722
  %v4734 = vadd.f32 %v4666, %v4722
  %v4735 = vadd.f32 %v4667, %v4722
  %v4736 = vadd.f32 %v4668, %v4722
  %v4737 = vadd.f32 %v4669, %v4722
  %v4738 = vadd.f32 %v4670, %v4722
  %v4739 = vadd.f32 %v4671, %v4722
  %v4740 = vadd.f32 %v4672, %v4722
  %v4741 = vadd.f32 %v4673, %v4722
  %v4742 = vadd.f32 %v4674, %v4722
  %v4743 = vadd.f32 %v4675, %v4722
  %v4744 = vadd.f32 %v4676, %v4722
  %v4745 = vadd.f32 %v4677, %v4722
  %v4746 = vadd.f32 %v4678, %v4722
  %v4747 = vadd.f32 %v4679, %v4722
  %v4748 = vadd.f32 %v4680, %v4722
  %v4749 = vadd.f32 %v4681, %v4722
  %v4750 = vadd.f32 %v4682, %v4722
  %v4751 = vadd.f32 %v4683, %v4722
  %v4752 = vadd.f32 %v4684, %v4722
  %v4753 = vadd.f32 %v4685, %v4722
  %v4754 = vadd.f32 %v4686, %v4722
  %v4755 = vadd.f32 %v4687, %v4722
  %v4756 = vadd.f32 %v4688, %v4722
  %v4757 = vadd.f32 %v4689, %v4722
  %v4758 = vadd.f32 %v4690, %v4722
  %v4759 = vadd.f32 %v4691, %v4722
  %v4760 = vadd.f32 %v4692, %v4722
  %v4761 = vadd.f32 %v4693, %v4722
  %v4762 = vadd.f32 %v4694, %v4722
  %v4763 = vadd.f32 %v4695, %v4722
  %v4764 = vadd.f32 %v4696, %v4722
  %v4765 = vadd.f32 %v4697, %v4722
  %v4766 = vadd.f32 %v4698, %v4722
  %v4767 = vadd.f32 %v4699, %v4722
  %v4768 = vadd.f32 %v4700, %v4722
  %v4769 = vadd.f32 %v4701, %v4722
  %v4770 = vadd.f32 %v4702, %v4722
  %v4771 = vadd.f32 %v4703, %v4722
  %v4772 = vadd.f32 %v4704, %v4722
  %v4773 = vadd.f32 %v4705, %v4722
  %v4774 = vadd.f32 %v4706, %v4722
  %v4775 = vadd.f32 %v4707, %v4722
  %v4776 = vadd.f32 %v4708, %v4722
  %v4777 = vadd.f32 %v4709, %v4722
  %v4778 = vadd.f32 %v4710, %v4722
  %v4779 = vadd.f32 %v4711, %v4722
  %v4780 = vadd.f32 %v4712, %v4722
  %v4781 = vadd.f32 %v4713, %v4722
  %v4782 = vadd.f32 %v4714, %v4722
  %v4783 = vadd.f32 %v4715, %v4722
  %v4784 = vadd.f32 %v4716, %v4722
  %v4785 = vadd.f32 %v4717, %v4722
  %v4786 = vadd.f32 %v4718, %v4722
  %v4787 = vadd.f32 %v4719, %v4722
  %v4788 = vmax.f32 %v4724, 0.0
  %v4789 = vmax.f32 %v4725, 0.0
  %v4790 = vmax.f32 %v4726, 0.0
  %v4791 = vmax.f32 %v4727, 0.0
  %v4792 = vmax.f32 %v4728, 0.0
  %v4793 = vmax.f32 %v4729, 0.0
  %v4794 = vmax.f32 %v4730, 0.0
  %v4795 = vmax.f32 %v4731, 0.0
  %v4796 = vmax.f32 %v4732, 0.0
  %v4797 = vmax.f32 %v4733, 0.0
  %v4798 = vmax.f32 %v4734, 0.0
  %v4799 = vmax.f32 %v4735, 0.0
  %v4800 = vmax.f32 %v4736, 0.0
  %v4801 = vmax.f32 %v4737, 0.0
  %v4802 = vmax.f32 %v4738, 0.0
  %v4803 = vmax.f32 %v4739, 0.0
  %v4804 = vmax.f32 %v4740, 0.0
  %v4805 = vmax.f32 %v4741, 0.0
  %v4806 = vmax.f32 %v4742, 0.0
  %v4807 = vmax.f32 %v4743, 0.0
  %v4808 = vmax.f32 %v4744, 0.0
  %v4809 = vmax.f32 %v4745, 0.0
  %v4810 = vmax.f32 %v4746, 0.0
  %v4811 = vmax.f32 %v4747, 0.0
  %v4812 = vmax.f32 %v4748, 0.0
  %v4813 = vmax.f32 %v4749, 0.0
  %v4814 = vmax.f32 %v4750, 0.0
  %v4815 = vmax.f32 %v4751, 0.0
  %v4816 = vmax.f32 %v4752, 0.0
  %v4817 = vmax.f32 %v4753, 0.0
  %v4818 = vmax.f32 %v4754, 0.0
  %v4819 = vmax.f32 %v4755, 0.0
  %v4820 = vmax.f32 %v4756, 0.0
  %v4821 = vmax.f32 %v4757, 0.0
  %v4822 = vmax.f32 %v4758, 0.0
  %v4823 = vmax.f32 %v4759, 0.0
  %v4824 = vmax.f32 %v4760, 0.0
  %v4825 = vmax.f32 %v4761, 0.0
  %v4826 = vmax.f32 %v4762, 0.0
  %v4827 = vmax.f32 %v4763, 0.0
  %v4828 = vmax.f32 %v4764, 0.0
  %v4829 = vmax.f32 %v4765, 0.0
  %v4830 = vmax.f32 %v4766, 0.0
  %v4831 = vmax.f32 %v4767, 0.0
  %v4832 = vmax.f32 %v4768, 0.0
  %v4833 = vmax.f32 %v4769, 0.0
  %v4834 = vmax.f32 %v4770, 0.0
  %v4835 = vmax.f32 %v4771, 0.0
  %v4836 = vmax.f32 %v4772, 0.0
  %v4837 = vmax.f32 %v4773, 0.0
  %v4838 = vmax.f32 %v4774, 0.0
  %v4839 = vmax.f32 %v4775, 0.0
  %v4840 = vmax.f32 %v4776, 0.0
  %v4841 = vmax.f32 %v4777, 0.0
  %v4842 = vmax.f32 %v4778, 0.0
  %v4843 = vmax.f32 %v4779, 0.0
  %v4844 = vmax.f32 %v4780, 0.0
  %v4845 = vmax.f32 %v4781, 0.0
  %v4846 = vmax.f32 %v4782, 0.0
  %v4847 = vmax.f32 %v4783, 0.0
  %v4848 = vmax.f32 %v4784, 0.0
  %v4849 = vmax.f32 %v4785, 0.0
  %v4850 = vmax.f32 %v4786, 0.0
  %v4851 = vmax.f32 %v4787, 0.0
  %4852 = vst.msk [vmem:[#allocation8] sm:$0xff] %vm121, %v4788
  %4853 = vst.msk [vmem:[#allocation8 + $0x8] sm:$0xff] %vm121, %v4789
  %4854 = vst.msk [vmem:[#allocation8 + $0x10] sm:$0xff] %vm121, %v4790
  %4855 = vst.msk [vmem:[#allocation8 + $0x18] sm:$0xff] %vm121, %v4791
  %4856 = vst.msk [vmem:[#allocation8 + $0x20] sm:$0xff] %vm121, %v4792
  %4857 = vst.msk [vmem:[#allocation8 + $0x28] sm:$0xff] %vm121, %v4793
  %4858 = vst.msk [vmem:[#allocation8 + $0x30] sm:$0xff] %vm121, %v4794
  %4859 = vst.msk [vmem:[#allocation8 + $0x38] sm:$0xff] %vm121, %v4795
  %4860 = vst.msk [vmem:[#allocation8 + $0x40] sm:$0xff] %vm121, %v4796
  %4861 = vst.msk [vmem:[#allocation8 + $0x48] sm:$0xff] %vm121, %v4797
  %4862 = vst.msk [vmem:[#allocation8 + $0x50] sm:$0xff] %vm121, %v4798
  %4863 = vst.msk [vmem:[#allocation8 + $0x58] sm:$0xff] %vm121, %v4799
  %4864 = vst.msk [vmem:[#allocation8 + $0x60] sm:$0xff] %vm121, %v4800
  %4865 = vst.msk [vmem:[#allocation8 + $0x68] sm:$0xff] %vm121, %v4801
  %4866 = vst.msk [vmem:[#allocation8 + $0x70] sm:$0xff] %vm121, %v4802
  %4867 = vst.msk [vmem:[#allocation8 + $0x78] sm:$0xff] %vm121, %v4803
  %4868 = vst.msk [vmem:[#allocation8 + $0x80] sm:$0xff] %vm121, %v4804
  %4869 = vst.msk [vmem:[#allocation8 + $0x88] sm:$0xff] %vm121, %v4805
  %4870 = vst.msk [vmem:[#allocation8 + $0x90] sm:$0xff] %vm121, %v4806
  %4871 = vst.msk [vmem:[#allocation8 + $0x98] sm:$0xff] %vm121, %v4807
  %4872 = vst.msk [vmem:[#allocation8 + $0xa0] sm:$0xff] %vm121, %v4808
  %4873 = vst.msk [vmem:[#allocation8 + $0xa8] sm:$0xff] %vm121, %v4809
  %4874 = vst.msk [vmem:[#allocation8 + $0xb0] sm:$0xff] %vm121, %v4810
  %4875 = vst.msk [vmem:[#allocation8 + $0xb8] sm:$0xff] %vm121, %v4811
  %4876 = vst.msk [vmem:[#allocation8 + $0xc0] sm:$0xff] %vm121, %v4812
  %4877 = vst.msk [vmem:[#allocation8 + $0xc8] sm:$0xff] %vm121, %v4813
  %4878 = vst.msk [vmem:[#allocation8 + $0xd0] sm:$0xff] %vm121, %v4814
  %4879 = vst.msk [vmem:[#allocation8 + $0xd8] sm:$0xff] %vm121, %v4815
  %4880 = vst.msk [vmem:[#allocation8 + $0xe0] sm:$0xff] %vm121, %v4816
  %4881 = vst.msk [vmem:[#allocation8 + $0xe8] sm:$0xff] %vm121, %v4817
  %4882 = vst.msk [vmem:[#allocation8 + $0xf0] sm:$0xff] %vm121, %v4818
  %4883 = vst.msk [vmem:[#allocation8 + $0xf8] sm:$0xff] %vm121, %v4819
  %4884 = vst.msk [vmem:[#allocation8 + $0x100] sm:$0xff] %vm121, %v4820
  %4885 = vst.msk [vmem:[#allocation8 + $0x108] sm:$0xff] %vm121, %v4821
  %4886 = vst.msk [vmem:[#allocation8 + $0x110] sm:$0xff] %vm121, %v4822
  %4887 = vst.msk [vmem:[#allocation8 + $0x118] sm:$0xff] %vm121, %v4823
  %4888 = vst.msk [vmem:[#allocation8 + $0x120] sm:$0xff] %vm121, %v4824
  %4889 = vst.msk [vmem:[#allocation8 + $0x128] sm:$0xff] %vm121, %v4825
  %4890 = vst.msk [vmem:[#allocation8 + $0x130] sm:$0xff] %vm121, %v4826
  %4891 = vst.msk [vmem:[#allocation8 + $0x138] sm:$0xff] %vm121, %v4827
  %4892 = vst.msk [vmem:[#allocation8 + $0x140] sm:$0xff] %vm121, %v4828
  %4893 = vst.msk [vmem:[#allocation8 + $0x148] sm:$0xff] %vm121, %v4829
  %4894 = vst.msk [vmem:[#allocation8 + $0x150] sm:$0xff] %vm121, %v4830
  %4895 = vst.msk [vmem:[#allocation8 + $0x158] sm:$0xff] %vm121, %v4831
  %4896 = vst.msk [vmem:[#allocation8 + $0x160] sm:$0xff] %vm121, %v4832
  %4897 = vst.msk [vmem:[#allocation8 + $0x168] sm:$0xff] %vm121, %v4833
  %4898 = vst.msk [vmem:[#allocation8 + $0x170] sm:$0xff] %vm121, %v4834
  %4899 = vst.msk [vmem:[#allocation8 + $0x178] sm:$0xff] %vm121, %v4835
  %4900 = vst.msk [vmem:[#allocation8 + $0x180] sm:$0xff] %vm121, %v4836
  %4901 = vst.msk [vmem:[#allocation8 + $0x188] sm:$0xff] %vm121, %v4837
  %4902 = vst.msk [vmem:[#allocation8 + $0x190] sm:$0xff] %vm121, %v4838
  %4903 = vst.msk [vmem:[#allocation8 + $0x198] sm:$0xff] %vm121, %v4839
  %4904 = vst.msk [vmem:[#allocation8 + $0x1a0] sm:$0xff] %vm121, %v4840
  %4905 = vst.msk [vmem:[#allocation8 + $0x1a8] sm:$0xff] %vm121, %v4841
  %4906 = vst.msk [vmem:[#allocation8 + $0x1b0] sm:$0xff] %vm121, %v4842
  %4907 = vst.msk [vmem:[#allocation8 + $0x1b8] sm:$0xff] %vm121, %v4843
  %4908 = vst.msk [vmem:[#allocation8 + $0x1c0] sm:$0xff] %vm121, %v4844
  %4909 = vst.msk [vmem:[#allocation8 + $0x1c8] sm:$0xff] %vm121, %v4845
  %4910 = vst.msk [vmem:[#allocation8 + $0x1d0] sm:$0xff] %vm121, %v4846
  %4911 = vst.msk [vmem:[#allocation8 + $0x1d8] sm:$0xff] %vm121, %v4847
  %4912 = vst.msk [vmem:[#allocation8 + $0x1e0] sm:$0xff] %vm121, %v4848
  %4913 = vst.msk [vmem:[#allocation8 + $0x1e8] sm:$0xff] %vm121, %v4849
  %4914 = vst.msk [vmem:[#allocation8 + $0x1f0] sm:$0xff] %vm121, %v4850
  %4915 = vst.msk [vmem:[#allocation8 + $0x1f8] sm:$0xff] %vm121, %v4851
  %v4916 = vld [vmem:[#allocation8] ss:$2 sm:$0xff]
  %s4917 = scalar_lea.vmem [#allocation8], 16
  %v4918 = vld [vmem:[%s4917] ss:$2 sm:$0xff]
  %s4919 = scalar_lea.vmem [#allocation8], 32
  %v4920 = vld [vmem:[%s4919] ss:$2 sm:$0xff]
  %s4921 = scalar_lea.vmem [#allocation8], 48
  %v4922 = vld [vmem:[%s4921] ss:$2 sm:$0xff]
  %s4923 = scalar_lea.vmem [#allocation8], 64
  %v4924 = vld [vmem:[%s4923] ss:$2 sm:$0xff]
  %s4925 = scalar_lea.vmem [#allocation8], 80
  %v4926 = vld [vmem:[%s4925] ss:$2 sm:$0xff]
  %s4927 = scalar_lea.vmem [#allocation8], 96
  %v4928 = vld [vmem:[%s4927] ss:$2 sm:$0xff]
  %s4929 = scalar_lea.vmem [#allocation8], 112
  %v4930 = vld [vmem:[%s4929] ss:$2 sm:$0xff]
  %s4931 = scalar_lea.vmem [#allocation8], 128
  %v4932 = vld [vmem:[%s4931] ss:$2 sm:$0xff]
  %s4933 = scalar_lea.vmem [#allocation8], 144
  %v4934 = vld [vmem:[%s4933] ss:$2 sm:$0xff]
  %s4935 = scalar_lea.vmem [#allocation8], 160
  %v4936 = vld [vmem:[%s4935] ss:$2 sm:$0xff]
  %s4937 = scalar_lea.vmem [#allocation8], 176
  %v4938 = vld [vmem:[%s4937] ss:$2 sm:$0xff]
  %s4939 = scalar_lea.vmem [#allocation8], 192
  %v4940 = vld [vmem:[%s4939] ss:$2 sm:$0xff]
  %s4941 = scalar_lea.vmem [#allocation8], 208
  %v4942 = vld [vmem:[%s4941] ss:$2 sm:$0xff]
  %s4943 = scalar_lea.vmem [#allocation8], 224
  %v4944 = vld [vmem:[%s4943] ss:$2 sm:$0xff]
  %s4945 = scalar_lea.vmem [#allocation8], 240
  %v4946 = vld [vmem:[%s4945] ss:$2 sm:$0xff]
  %s4947 = scalar_lea.vmem [#allocation8], 256
  %v4948 = vld [vmem:[%s4947] ss:$2 sm:$0xff]
  %s4949 = scalar_lea.vmem [#allocation8], 272
  %v4950 = vld [vmem:[%s4949] ss:$2 sm:$0xff]
  %s4951 = scalar_lea.vmem [#allocation8], 288
  %v4952 = vld [vmem:[%s4951] ss:$2 sm:$0xff]
  %s4953 = scalar_lea.vmem [#allocation8], 304
  %v4954 = vld [vmem:[%s4953] ss:$2 sm:$0xff]
  %s4955 = scalar_lea.vmem [#allocation8], 320
  %v4956 = vld [vmem:[%s4955] ss:$2 sm:$0xff]
  %s4957 = scalar_lea.vmem [#allocation8], 336
  %v4958 = vld [vmem:[%s4957] ss:$2 sm:$0xff]
  %s4959 = scalar_lea.vmem [#allocation8], 352
  %v4960 = vld [vmem:[%s4959] ss:$2 sm:$0xff]
  %s4961 = scalar_lea.vmem [#allocation8], 368
  %v4962 = vld [vmem:[%s4961] ss:$2 sm:$0xff]
  %s4963 = scalar_lea.vmem [#allocation8], 384
  %v4964 = vld [vmem:[%s4963] ss:$2 sm:$0xff]
  %s4965 = scalar_lea.vmem [#allocation8], 400
  %v4966 = vld [vmem:[%s4965] ss:$2 sm:$0xff]
  %s4967 = scalar_lea.vmem [#allocation8], 416
  %v4968 = vld [vmem:[%s4967] ss:$2 sm:$0xff]
  %s4969 = scalar_lea.vmem [#allocation8], 432
  %v4970 = vld [vmem:[%s4969] ss:$2 sm:$0xff]
  %s4971 = scalar_lea.vmem [#allocation8], 448
  %v4972 = vld [vmem:[%s4971] ss:$2 sm:$0xff]
  %s4973 = scalar_lea.vmem [#allocation8], 464
  %v4974 = vld [vmem:[%s4973] ss:$2 sm:$0xff]
  %s4975 = scalar_lea.vmem [#allocation8], 480
  %v4976 = vld [vmem:[%s4975] ss:$2 sm:$0xff]
  %s4977 = scalar_lea.vmem [#allocation8], 496
  %v4978 = vld [vmem:[%s4977] ss:$2 sm:$0xff]
  %s4979 = scalar_lea.vmem [#allocation8], 1
  %v4980 = vld [vmem:[%s4979] ss:$2 sm:$0xff]
  %s4981 = scalar_lea.vmem [#allocation8], 17
  %v4982 = vld [vmem:[%s4981] ss:$2 sm:$0xff]
  %s4983 = scalar_lea.vmem [#allocation8], 33
  %v4984 = vld [vmem:[%s4983] ss:$2 sm:$0xff]
  %s4985 = scalar_lea.vmem [#allocation8], 49
  %v4986 = vld [vmem:[%s4985] ss:$2 sm:$0xff]
  %s4987 = scalar_lea.vmem [#allocation8], 65
  %v4988 = vld [vmem:[%s4987] ss:$2 sm:$0xff]
  %s4989 = scalar_lea.vmem [#allocation8], 81
  %v4990 = vld [vmem:[%s4989] ss:$2 sm:$0xff]
  %s4991 = scalar_lea.vmem [#allocation8], 97
  %v4992 = vld [vmem:[%s4991] ss:$2 sm:$0xff]
  %s4993 = scalar_lea.vmem [#allocation8], 113
  %v4994 = vld [vmem:[%s4993] ss:$2 sm:$0xff]
  %s4995 = scalar_lea.vmem [#allocation8], 129
  %v4996 = vld [vmem:[%s4995] ss:$2 sm:$0xff]
  %s4997 = scalar_lea.vmem [#allocation8], 145
  %v4998 = vld [vmem:[%s4997] ss:$2 sm:$0xff]
  %s4999 = scalar_lea.vmem [#allocation8], 161
  %v5000 = vld [vmem:[%s4999] ss:$2 sm:$0xff]
  %s5001 = scalar_lea.vmem [#allocation8], 177
  %v5002 = vld [vmem:[%s5001] ss:$2 sm:$0xff]
  %s5003 = scalar_lea.vmem [#allocation8], 193
  %v5004 = vld [vmem:[%s5003] ss:$2 sm:$0xff]
  %s5005 = scalar_lea.vmem [#allocation8], 209
  %v5006 = vld [vmem:[%s5005] ss:$2 sm:$0xff]
  %s5007 = scalar_lea.vmem [#allocation8], 225
  %v5008 = vld [vmem:[%s5007] ss:$2 sm:$0xff]
  %s5009 = scalar_lea.vmem [#allocation8], 241
  %v5010 = vld [vmem:[%s5009] ss:$2 sm:$0xff]
  %s5011 = scalar_lea.vmem [#allocation8], 257
  %v5012 = vld [vmem:[%s5011] ss:$2 sm:$0xff]
  %s5013 = scalar_lea.vmem [#allocation8], 273
  %v5014 = vld [vmem:[%s5013] ss:$2 sm:$0xff]
  %s5015 = scalar_lea.vmem [#allocation8], 289
  %v5016 = vld [vmem:[%s5015] ss:$2 sm:$0xff]
  %s5017 = scalar_lea.vmem [#allocation8], 305
  %v5018 = vld [vmem:[%s5017] ss:$2 sm:$0xff]
  %s5019 = scalar_lea.vmem [#allocation8], 321
  %v5020 = vld [vmem:[%s5019] ss:$2 sm:$0xff]
  %s5021 = scalar_lea.vmem [#allocation8], 337
  %v5022 = vld [vmem:[%s5021] ss:$2 sm:$0xff]
  %s5023 = scalar_lea.vmem [#allocation8], 353
  %v5024 = vld [vmem:[%s5023] ss:$2 sm:$0xff]
  %s5025 = scalar_lea.vmem [#allocation8], 369
  %v5026 = vld [vmem:[%s5025] ss:$2 sm:$0xff]
  %s5027 = scalar_lea.vmem [#allocation8], 385
  %v5028 = vld [vmem:[%s5027] ss:$2 sm:$0xff]
  %s5029 = scalar_lea.vmem [#allocation8], 401
  %v5030 = vld [vmem:[%s5029] ss:$2 sm:$0xff]
  %s5031 = scalar_lea.vmem [#allocation8], 417
  %v5032 = vld [vmem:[%s5031] ss:$2 sm:$0xff]
  %s5033 = scalar_lea.vmem [#allocation8], 433
  %v5034 = vld [vmem:[%s5033] ss:$2 sm:$0xff]
  %s5035 = scalar_lea.vmem [#allocation8], 449
  %v5036 = vld [vmem:[%s5035] ss:$2 sm:$0xff]
  %s5037 = scalar_lea.vmem [#allocation8], 465
  %v5038 = vld [vmem:[%s5037] ss:$2 sm:$0xff]
  %s5039 = scalar_lea.vmem [#allocation8], 481
  %v5040 = vld [vmem:[%s5039] ss:$2 sm:$0xff]
  %s5041 = scalar_lea.vmem [#allocation8], 497
  %v5042 = vld [vmem:[%s5041] ss:$2 sm:$0xff]
  %v5043 = vmax.f32 %v4916, %v4980
  %v5044 = vmax.f32 %v4918, %v4982
  %v5045 = vmax.f32 %v4920, %v4984
  %v5046 = vmax.f32 %v4922, %v4986
  %v5047 = vmax.f32 %v4924, %v4988
  %v5048 = vmax.f32 %v4926, %v4990
  %v5049 = vmax.f32 %v4928, %v4992
  %v5050 = vmax.f32 %v4930, %v4994
  %v5051 = vmax.f32 %v4932, %v4996
  %v5052 = vmax.f32 %v4934, %v4998
  %v5053 = vmax.f32 %v4936, %v5000
  %v5054 = vmax.f32 %v4938, %v5002
  %v5055 = vmax.f32 %v4940, %v5004
  %v5056 = vmax.f32 %v4942, %v5006
  %v5057 = vmax.f32 %v4944, %v5008
  %v5058 = vmax.f32 %v4946, %v5010
  %v5059 = vmax.f32 %v4948, %v5012
  %v5060 = vmax.f32 %v4950, %v5014
  %v5061 = vmax.f32 %v4952, %v5016
  %v5062 = vmax.f32 %v4954, %v5018
  %v5063 = vmax.f32 %v4956, %v5020
  %v5064 = vmax.f32 %v4958, %v5022
  %v5065 = vmax.f32 %v4960, %v5024
  %v5066 = vmax.f32 %v4962, %v5026
  %v5067 = vmax.f32 %v4964, %v5028
  %v5068 = vmax.f32 %v4966, %v5030
  %v5069 = vmax.f32 %v4968, %v5032
  %v5070 = vmax.f32 %v4970, %v5034
  %v5071 = vmax.f32 %v4972, %v5036
  %v5072 = vmax.f32 %v4974, %v5038
  %v5073 = vmax.f32 %v4976, %v5040
  %v5074 = vmax.f32 %v4978, %v5042
  %v5075 = vmax.f32 %v5043, %v5044
  %v5076 = vmax.f32 %v5045, %v5046
  %v5077 = vmax.f32 %v5047, %v5048
  %v5078 = vmax.f32 %v5049, %v5050
  %v5079 = vmax.f32 %v5051, %v5052
  %v5080 = vmax.f32 %v5053, %v5054
  %v5081 = vmax.f32 %v5055, %v5056
  %v5082 = vmax.f32 %v5057, %v5058
  %v5083 = vmax.f32 %v5059, %v5060
  %v5084 = vmax.f32 %v5061, %v5062
  %v5085 = vmax.f32 %v5063, %v5064
  %v5086 = vmax.f32 %v5065, %v5066
  %v5087 = vmax.f32 %v5067, %v5068
  %v5088 = vmax.f32 %v5069, %v5070
  %v5089 = vmax.f32 %v5071, %v5072
  %v5090 = vmax.f32 %v5073, %v5074
  %s5091 = scalar_lea.vmem [#allocation6], 16
  %5092 = vst.msk [vmem:[%s5091 + $0x1] sm:$0xff] %vm121, %v5075
  %5093 = vst.msk [vmem:[%s5091 + $0x11] sm:$0xff] %vm121, %v5076
  %5094 = vst.msk [vmem:[%s5091 + $0x21] sm:$0xff] %vm121, %v5077
  %5095 = vst.msk [vmem:[%s5091 + $0x31] sm:$0xff] %vm121, %v5078
  %5096 = vst.msk [vmem:[%s5091 + $0x41] sm:$0xff] %vm121, %v5079
  %5097 = vst.msk [vmem:[%s5091 + $0x51] sm:$0xff] %vm121, %v5080
  %5098 = vst.msk [vmem:[%s5091 + $0x61] sm:$0xff] %vm121, %v5081
  %5099 = vst.msk [vmem:[%s5091 + $0x71] sm:$0xff] %vm121, %v5082
  %5100 = vst.msk [vmem:[%s5091 + $0xa1] sm:$0xff] %vm121, %v5083
  %5101 = vst.msk [vmem:[%s5091 + $0xb1] sm:$0xff] %vm121, %v5084
  %5102 = vst.msk [vmem:[%s5091 + $0xc1] sm:$0xff] %vm121, %v5085
  %5103 = vst.msk [vmem:[%s5091 + $0xd1] sm:$0xff] %vm121, %v5086
  %5104 = vst.msk [vmem:[%s5091 + $0xe1] sm:$0xff] %vm121, %v5087
  %5105 = vst.msk [vmem:[%s5091 + $0xf1] sm:$0xff] %vm121, %v5088
  %5106 = vst.msk [vmem:[%s5091 + $0x101] sm:$0xff] %vm121, %v5089
  %5107 = vst.msk [vmem:[%s5091 + $0x111] sm:$0xff] %vm121, %v5090
  %v5108 = vld [vmem:[#allocation6] sm:$0xff]
  %v5109 = vld [vmem:[#allocation6 + $0x10] sm:$0xff]
  %v5110 = vld [vmem:[#allocation6 + $0x20] sm:$0xff]
  %v5111 = vld [vmem:[#allocation6 + $0x30] sm:$0xff]
  %v5112 = vld [vmem:[#allocation6 + $0x40] sm:$0xff]
  %v5113 = vld [vmem:[#allocation6 + $0x50] sm:$0xff]
  %v5114 = vld [vmem:[#allocation6 + $0x60] sm:$0xff]
  %v5115 = vld [vmem:[#allocation6 + $0x70] sm:$0xff]
  %v5116 = vld [vmem:[#allocation6 + $0xa0] sm:$0xff]
  %v5117 = vld [vmem:[#allocation6 + $0xb0] sm:$0xff]
  %v5118 = vld [vmem:[#allocation6 + $0xc0] sm:$0xff]
  %v5119 = vld [vmem:[#allocation6 + $0xd0] sm:$0xff]
  %v5120 = vld [vmem:[#allocation6 + $0xe0] sm:$0xff]
  %v5121 = vld [vmem:[#allocation6 + $0xf0] sm:$0xff]
  %v5122 = vld [vmem:[#allocation6 + $0x100] sm:$0xff]
  %v5123 = vld [vmem:[#allocation6 + $0x110] sm:$0xff]
  %v5124 = vpack.c.bf16 %v5108, %v5108
  %v5125 = vpack.c.bf16 %v5109, %v5109
  %v5126 = vpack.c.bf16 %v5110, %v5110
  %v5127 = vpack.c.bf16 %v5111, %v5111
  %v5128 = vpack.c.bf16 %v5112, %v5112
  %v5129 = vpack.c.bf16 %v5113, %v5113
  %v5130 = vpack.c.bf16 %v5114, %v5114
  %v5131 = vpack.c.bf16 %v5115, %v5115
  %v5132 = vpack.c.bf16 %v5116, %v5116
  %v5133 = vpack.c.bf16 %v5117, %v5117
  %v5134 = vpack.c.bf16 %v5118, %v5118
  %v5135 = vpack.c.bf16 %v5119, %v5119
  %v5136 = vpack.c.bf16 %v5120, %v5120
  %v5137 = vpack.c.bf16 %v5121, %v5121
  %v5138 = vpack.c.bf16 %v5122, %v5122
  %v5139 = vpack.c.bf16 %v5123, %v5123
  %vm5140 = vcmask 93184
  %5141 = vst.msk [vmem:[#allocation3] sm:$0xf] %vm5140, %v5124
  %5142 = vst.msk [vmem:[#allocation3 + $0x4] sm:$0xf] %vm5140, %v5125
  %5143 = vst.msk [vmem:[#allocation3 + $0x8] sm:$0xf] %vm5140, %v5126
  %5144 = vst.msk [vmem:[#allocation3 + $0xc] sm:$0xf] %vm5140, %v5127
  %5145 = vst.msk [vmem:[#allocation3 + $0x10] sm:$0xf] %vm5140, %v5128
  %5146 = vst.msk [vmem:[#allocation3 + $0x14] sm:$0xf] %vm5140, %v5129
  %5147 = vst.msk [vmem:[#allocation3 + $0x18] sm:$0xf] %vm5140, %v5130
  %5148 = vst.msk [vmem:[#allocation3 + $0x1c] sm:$0xf] %vm5140, %v5131
  %5149 = vst.msk [vmem:[#allocation3 + $0x20] sm:$0xf] %vm5140, %v5132
  %5150 = vst.msk [vmem:[#allocation3 + $0x24] sm:$0xf] %vm5140, %v5133
  %5151 = vst.msk [vmem:[#allocation3 + $0x28] sm:$0xf] %vm5140, %v5134
  %5152 = vst.msk [vmem:[#allocation3 + $0x2c] sm:$0xf] %vm5140, %v5135
  %5153 = vst.msk [vmem:[#allocation3 + $0x30] sm:$0xf] %vm5140, %v5136
  %5154 = vst.msk [vmem:[#allocation3 + $0x34] sm:$0xf] %vm5140, %v5137
  %5155 = vst.msk [vmem:[#allocation3 + $0x38] sm:$0xf] %vm5140, %v5138
  %5156 = vst.msk [vmem:[#allocation3 + $0x3c] sm:$0xf] %vm5140, %v5139
  %v5157 = vld [vmem:[#allocation6 + $0x1] sm:$0xff]
  %v5158 = vld [vmem:[#allocation6 + $0x11] sm:$0xff]
  %v5159 = vld [vmem:[#allocation6 + $0x21] sm:$0xff]
  %v5160 = vld [vmem:[#allocation6 + $0x31] sm:$0xff]
  %v5161 = vld [vmem:[#allocation6 + $0x41] sm:$0xff]
  %v5162 = vld [vmem:[#allocation6 + $0x51] sm:$0xff]
  %v5163 = vld [vmem:[#allocation6 + $0x61] sm:$0xff]
  %v5164 = vld [vmem:[#allocation6 + $0x71] sm:$0xff]
  %v5165 = vld [vmem:[#allocation6 + $0xa1] sm:$0xff]
  %v5166 = vld [vmem:[#allocation6 + $0xb1] sm:$0xff]
  %v5167 = vld [vmem:[#allocation6 + $0xc1] sm:$0xff]
  %v5168 = vld [vmem:[#allocation6 + $0xd1] sm:$0xff]
  %v5169 = vld [vmem:[#allocation6 + $0xe1] sm:$0xff]
  %v5170 = vld [vmem:[#allocation6 + $0xf1] sm:$0xff]
  %v5171 = vld [vmem:[#allocation6 + $0x101] sm:$0xff]
  %v5172 = vld [vmem:[#allocation6 + $0x111] sm:$0xff]
  %v5173 = vpack.c.bf16 %v5157, %v5157
  %v5174 = vpack.c.bf16 %v5158, %v5158
  %v5175 = vpack.c.bf16 %v5159, %v5159
  %v5176 = vpack.c.bf16 %v5160, %v5160
  %v5177 = vpack.c.bf16 %v5161, %v5161
  %v5178 = vpack.c.bf16 %v5162, %v5162
  %v5179 = vpack.c.bf16 %v5163, %v5163
  %v5180 = vpack.c.bf16 %v5164, %v5164
  %v5181 = vpack.c.bf16 %v5165, %v5165
  %v5182 = vpack.c.bf16 %v5166, %v5166
  %v5183 = vpack.c.bf16 %v5167, %v5167
  %v5184 = vpack.c.bf16 %v5168, %v5168
  %v5185 = vpack.c.bf16 %v5169, %v5169
  %v5186 = vpack.c.bf16 %v5170, %v5170
  %v5187 = vpack.c.bf16 %v5171, %v5171
  %v5188 = vpack.c.bf16 %v5172, %v5172
  %5205 = vrot.lane.b32.xlu0 %v5173, 12
  %v5206 = vpop.permute.xlu0 %5205
  %5207 = vrot.lane.b32.xlu0 %v5174, 12
  %v5208 = vpop.permute.xlu0 %5207
  %5209 = vrot.lane.b32.xlu0 %v5175, 12
  %v5210 = vpop.permute.xlu0 %5209
  %5211 = vrot.lane.b32.xlu0 %v5176, 12
  %v5212 = vpop.permute.xlu0 %5211
  %5213 = vrot.lane.b32.xlu0 %v5177, 12
  %v5214 = vpop.permute.xlu0 %5213
  %5215 = vrot.lane.b32.xlu0 %v5178, 12
  %v5216 = vpop.permute.xlu0 %5215
  %5217 = vrot.lane.b32.xlu0 %v5179, 12
  %v5218 = vpop.permute.xlu0 %5217
  %5219 = vrot.lane.b32.xlu0 %v5180, 12
  %v5220 = vpop.permute.xlu0 %5219
  %5221 = vrot.lane.b32.xlu0 %v5181, 12
  %v5222 = vpop.permute.xlu0 %5221
  %5223 = vrot.lane.b32.xlu0 %v5182, 12
  %v5224 = vpop.permute.xlu0 %5223
  %5225 = vrot.lane.b32.xlu0 %v5183, 12
  %v5226 = vpop.permute.xlu0 %5225
  %5227 = vrot.lane.b32.xlu0 %v5184, 12
  %v5228 = vpop.permute.xlu0 %5227
  %5229 = vrot.lane.b32.xlu0 %v5185, 12
  %v5230 = vpop.permute.xlu0 %5229
  %5231 = vrot.lane.b32.xlu0 %v5186, 12
  %v5232 = vpop.permute.xlu0 %5231
  %5233 = vrot.lane.b32.xlu0 %v5187, 12
  %v5234 = vpop.permute.xlu0 %5233
  %5235 = vrot.lane.b32.xlu0 %v5188, 12
  %v5236 = vpop.permute.xlu0 %5235
  %vm5253 = vcmask 191584
  %5254 = vst.msk [vmem:[#allocation3] sm:$0xf] %vm5253, %v5206
  %5255 = vst.msk [vmem:[#allocation3 + $0x4] sm:$0xf] %vm5253, %v5208
  %5256 = vst.msk [vmem:[#allocation3 + $0x8] sm:$0xf] %vm5253, %v5210
  %5257 = vst.msk [vmem:[#allocation3 + $0xc] sm:$0xf] %vm5253, %v5212
  %5258 = vst.msk [vmem:[#allocation3 + $0x10] sm:$0xf] %vm5253, %v5214
  %5259 = vst.msk [vmem:[#allocation3 + $0x14] sm:$0xf] %vm5253, %v5216
  %5260 = vst.msk [vmem:[#allocation3 + $0x18] sm:$0xf] %vm5253, %v5218
  %5261 = vst.msk [vmem:[#allocation3 + $0x1c] sm:$0xf] %vm5253, %v5220
  %5262 = vst.msk [vmem:[#allocation3 + $0x20] sm:$0xf] %vm5253, %v5222
  %5263 = vst.msk [vmem:[#allocation3 + $0x24] sm:$0xf] %vm5253, %v5224
  %5264 = vst.msk [vmem:[#allocation3 + $0x28] sm:$0xf] %vm5253, %v5226
  %5265 = vst.msk [vmem:[#allocation3 + $0x2c] sm:$0xf] %vm5253, %v5228
  %5266 = vst.msk [vmem:[#allocation3 + $0x30] sm:$0xf] %vm5253, %v5230
  %5267 = vst.msk [vmem:[#allocation3 + $0x34] sm:$0xf] %vm5253, %v5232
  %5268 = vst.msk [vmem:[#allocation3 + $0x38] sm:$0xf] %vm5253, %v5234
  %5269 = vst.msk [vmem:[#allocation3 + $0x3c] sm:$0xf] %vm5253, %v5236
  %v5270 = vld [vmem:[#allocation6 + $0x2] sm:$0xff]
  %v5271 = vld [vmem:[#allocation6 + $0x12] sm:$0xff]
  %v5272 = vld [vmem:[#allocation6 + $0x22] sm:$0xff]
  %v5273 = vld [vmem:[#allocation6 + $0x32] sm:$0xff]
  %v5274 = vld [vmem:[#allocation6 + $0x42] sm:$0xff]
  %v5275 = vld [vmem:[#allocation6 + $0x52] sm:$0xff]
  %v5276 = vld [vmem:[#allocation6 + $0x62] sm:$0xff]
  %v5277 = vld [vmem:[#allocation6 + $0x72] sm:$0xff]
  %v5278 = vld [vmem:[#allocation6 + $0xa2] sm:$0xff]
  %v5279 = vld [vmem:[#allocation6 + $0xb2] sm:$0xff]
  %v5280 = vld [vmem:[#allocation6 + $0xc2] sm:$0xff]
  %v5281 = vld [vmem:[#allocation6 + $0xd2] sm:$0xff]
  %v5282 = vld [vmem:[#allocation6 + $0xe2] sm:$0xff]
  %v5283 = vld [vmem:[#allocation6 + $0xf2] sm:$0xff]
  %v5284 = vld [vmem:[#allocation6 + $0x102] sm:$0xff]
  %v5285 = vld [vmem:[#allocation6 + $0x112] sm:$0xff]
  %v5286 = vpack.c.bf16 %v5270, %v5270
  %v5287 = vpack.c.bf16 %v5271, %v5271
  %v5288 = vpack.c.bf16 %v5272, %v5272
  %v5289 = vpack.c.bf16 %v5273, %v5273
  %v5290 = vpack.c.bf16 %v5274, %v5274
  %v5291 = vpack.c.bf16 %v5275, %v5275
  %v5292 = vpack.c.bf16 %v5276, %v5276
  %v5293 = vpack.c.bf16 %v5277, %v5277
  %v5294 = vpack.c.bf16 %v5278, %v5278
  %v5295 = vpack.c.bf16 %v5279, %v5279
  %v5296 = vpack.c.bf16 %v5280, %v5280
  %v5297 = vpack.c.bf16 %v5281, %v5281
  %v5298 = vpack.c.bf16 %v5282, %v5282
  %v5299 = vpack.c.bf16 %v5283, %v5283
  %v5300 = vpack.c.bf16 %v5284, %v5284
  %v5301 = vpack.c.bf16 %v5285, %v5285
  %5318 = vrot.lane.b32.xlu0 %v5286, 24
  %v5319 = vpop.permute.xlu0 %5318
  %5320 = vrot.lane.b32.xlu0 %v5287, 24
  %v5321 = vpop.permute.xlu0 %5320
  %5322 = vrot.lane.b32.xlu0 %v5288, 24
  %v5323 = vpop.permute.xlu0 %5322
  %5324 = vrot.lane.b32.xlu0 %v5289, 24
  %v5325 = vpop.permute.xlu0 %5324
  %5326 = vrot.lane.b32.xlu0 %v5290, 24
  %v5327 = vpop.permute.xlu0 %5326
  %5328 = vrot.lane.b32.xlu0 %v5291, 24
  %v5329 = vpop.permute.xlu0 %5328
  %5330 = vrot.lane.b32.xlu0 %v5292, 24
  %v5331 = vpop.permute.xlu0 %5330
  %5332 = vrot.lane.b32.xlu0 %v5293, 24
  %v5333 = vpop.permute.xlu0 %5332
  %5334 = vrot.lane.b32.xlu0 %v5294, 24
  %v5335 = vpop.permute.xlu0 %5334
  %5336 = vrot.lane.b32.xlu0 %v5295, 24
  %v5337 = vpop.permute.xlu0 %5336
  %5338 = vrot.lane.b32.xlu0 %v5296, 24
  %v5339 = vpop.permute.xlu0 %5338
  %5340 = vrot.lane.b32.xlu0 %v5297, 24
  %v5341 = vpop.permute.xlu0 %5340
  %5342 = vrot.lane.b32.xlu0 %v5298, 24
  %v5343 = vpop.permute.xlu0 %5342
  %5344 = vrot.lane.b32.xlu0 %v5299, 24
  %v5345 = vpop.permute.xlu0 %5344
  %5346 = vrot.lane.b32.xlu0 %v5300, 24
  %v5347 = vpop.permute.xlu0 %5346
  %5348 = vrot.lane.b32.xlu0 %v5301, 24
  %v5349 = vpop.permute.xlu0 %5348
  %vm5366 = vcmask 289984
  %5367 = vst.msk [vmem:[#allocation3] sm:$0xf] %vm5366, %v5319
  %5368 = vst.msk [vmem:[#allocation3 + $0x4] sm:$0xf] %vm5366, %v5321
  %5369 = vst.msk [vmem:[#allocation3 + $0x8] sm:$0xf] %vm5366, %v5323
  %5370 = vst.msk [vmem:[#allocation3 + $0xc] sm:$0xf] %vm5366, %v5325
  %5371 = vst.msk [vmem:[#allocation3 + $0x10] sm:$0xf] %vm5366, %v5327
  %5372 = vst.msk [vmem:[#allocation3 + $0x14] sm:$0xf] %vm5366, %v5329
  %5373 = vst.msk [vmem:[#allocation3 + $0x18] sm:$0xf] %vm5366, %v5331
  %5374 = vst.msk [vmem:[#allocation3 + $0x1c] sm:$0xf] %vm5366, %v5333
  %5375 = vst.msk [vmem:[#allocation3 + $0x20] sm:$0xf] %vm5366, %v5335
  %5376 = vst.msk [vmem:[#allocation3 + $0x24] sm:$0xf] %vm5366, %v5337
  %5377 = vst.msk [vmem:[#allocation3 + $0x28] sm:$0xf] %vm5366, %v5339
  %5378 = vst.msk [vmem:[#allocation3 + $0x2c] sm:$0xf] %vm5366, %v5341
  %5379 = vst.msk [vmem:[#allocation3 + $0x30] sm:$0xf] %vm5366, %v5343
  %5380 = vst.msk [vmem:[#allocation3 + $0x34] sm:$0xf] %vm5366, %v5345
  %5381 = vst.msk [vmem:[#allocation3 + $0x38] sm:$0xf] %vm5366, %v5347
  %5382 = vst.msk [vmem:[#allocation3 + $0x3c] sm:$0xf] %vm5366, %v5349
  %v5383 = vld [vmem:[%s5091] sm:$0xff]
  %v5384 = vld [vmem:[%s5091 + $0x10] sm:$0xff]
  %v5385 = vld [vmem:[%s5091 + $0x20] sm:$0xff]
  %v5386 = vld [vmem:[%s5091 + $0x30] sm:$0xff]
  %v5387 = vld [vmem:[%s5091 + $0x40] sm:$0xff]
  %v5388 = vld [vmem:[%s5091 + $0x50] sm:$0xff]
  %v5389 = vld [vmem:[%s5091 + $0x60] sm:$0xff]
  %v5390 = vld [vmem:[%s5091 + $0x70] sm:$0xff]
  %v5391 = vld [vmem:[%s5091 + $0xa0] sm:$0xff]
  %v5392 = vld [vmem:[%s5091 + $0xb0] sm:$0xff]
  %v5393 = vld [vmem:[%s5091 + $0xc0] sm:$0xff]
  %v5394 = vld [vmem:[%s5091 + $0xd0] sm:$0xff]
  %v5395 = vld [vmem:[%s5091 + $0xe0] sm:$0xff]
  %v5396 = vld [vmem:[%s5091 + $0xf0] sm:$0xff]
  %v5397 = vld [vmem:[%s5091 + $0x100] sm:$0xff]
  %v5398 = vld [vmem:[%s5091 + $0x110] sm:$0xff]
  %v5399 = vpack.c.bf16 %v5383, %v5383
  %v5400 = vpack.c.bf16 %v5384, %v5384
  %v5401 = vpack.c.bf16 %v5385, %v5385
  %v5402 = vpack.c.bf16 %v5386, %v5386
  %v5403 = vpack.c.bf16 %v5387, %v5387
  %v5404 = vpack.c.bf16 %v5388, %v5388
  %v5405 = vpack.c.bf16 %v5389, %v5389
  %v5406 = vpack.c.bf16 %v5390, %v5390
  %v5407 = vpack.c.bf16 %v5391, %v5391
  %v5408 = vpack.c.bf16 %v5392, %v5392
  %v5409 = vpack.c.bf16 %v5393, %v5393
  %v5410 = vpack.c.bf16 %v5394, %v5394
  %v5411 = vpack.c.bf16 %v5395, %v5395
  %v5412 = vpack.c.bf16 %v5396, %v5396
  %v5413 = vpack.c.bf16 %v5397, %v5397
  %v5414 = vpack.c.bf16 %v5398, %v5398
  %5431 = vrot.lane.b32.xlu0 %v5399, 36
  %v5432 = vpop.permute.xlu0 %5431
  %5433 = vrot.lane.b32.xlu0 %v5400, 36
  %v5434 = vpop.permute.xlu0 %5433
  %5435 = vrot.lane.b32.xlu0 %v5401, 36
  %v5436 = vpop.permute.xlu0 %5435
  %5437 = vrot.lane.b32.xlu0 %v5402, 36
  %v5438 = vpop.permute.xlu0 %5437
  %5439 = vrot.lane.b32.xlu0 %v5403, 36
  %v5440 = vpop.permute.xlu0 %5439
  %5441 = vrot.lane.b32.xlu0 %v5404, 36
  %v5442 = vpop.permute.xlu0 %5441
  %5443 = vrot.lane.b32.xlu0 %v5405, 36
  %v5444 = vpop.permute.xlu0 %5443
  %5445 = vrot.lane.b32.xlu0 %v5406, 36
  %v5446 = vpop.permute.xlu0 %5445
  %5447 = vrot.lane.b32.xlu0 %v5407, 36
  %v5448 = vpop.permute.xlu0 %5447
  %5449 = vrot.lane.b32.xlu0 %v5408, 36
  %v5450 = vpop.permute.xlu0 %5449
  %5451 = vrot.lane.b32.xlu0 %v5409, 36
  %v5452 = vpop.permute.xlu0 %5451
  %5453 = vrot.lane.b32.xlu0 %v5410, 36
  %v5454 = vpop.permute.xlu0 %5453
  %5455 = vrot.lane.b32.xlu0 %v5411, 36
  %v5456 = vpop.permute.xlu0 %5455
  %5457 = vrot.lane.b32.xlu0 %v5412, 36
  %v5458 = vpop.permute.xlu0 %5457
  %5459 = vrot.lane.b32.xlu0 %v5413, 36
  %v5460 = vpop.permute.xlu0 %5459
  %5461 = vrot.lane.b32.xlu0 %v5414, 36
  %v5462 = vpop.permute.xlu0 %5461
  %vm5479 = vcmask 388384
  %5480 = vst.msk [vmem:[#allocation3] sm:$0xf] %vm5479, %v5432
  %5481 = vst.msk [vmem:[#allocation3 + $0x4] sm:$0xf] %vm5479, %v5434
  %5482 = vst.msk [vmem:[#allocation3 + $0x8] sm:$0xf] %vm5479, %v5436
  %5483 = vst.msk [vmem:[#allocation3 + $0xc] sm:$0xf] %vm5479, %v5438
  %5484 = vst.msk [vmem:[#allocation3 + $0x10] sm:$0xf] %vm5479, %v5440
  %5485 = vst.msk [vmem:[#allocation3 + $0x14] sm:$0xf] %vm5479, %v5442
  %5486 = vst.msk [vmem:[#allocation3 + $0x18] sm:$0xf] %vm5479, %v5444
  %5487 = vst.msk [vmem:[#allocation3 + $0x1c] sm:$0xf] %vm5479, %v5446
  %5488 = vst.msk [vmem:[#allocation3 + $0x20] sm:$0xf] %vm5479, %v5448
  %5489 = vst.msk [vmem:[#allocation3 + $0x24] sm:$0xf] %vm5479, %v5450
  %5490 = vst.msk [vmem:[#allocation3 + $0x28] sm:$0xf] %vm5479, %v5452
  %5491 = vst.msk [vmem:[#allocation3 + $0x2c] sm:$0xf] %vm5479, %v5454
  %5492 = vst.msk [vmem:[#allocation3 + $0x30] sm:$0xf] %vm5479, %v5456
  %5493 = vst.msk [vmem:[#allocation3 + $0x34] sm:$0xf] %vm5479, %v5458
  %5494 = vst.msk [vmem:[#allocation3 + $0x38] sm:$0xf] %vm5479, %v5460
  %5495 = vst.msk [vmem:[#allocation3 + $0x3c] sm:$0xf] %vm5479, %v5462
  %v5496 = vld [vmem:[%s5091 + $0x1] sm:$0xff]
  %v5497 = vld [vmem:[%s5091 + $0x11] sm:$0xff]
  %v5498 = vld [vmem:[%s5091 + $0x21] sm:$0xff]
  %v5499 = vld [vmem:[%s5091 + $0x31] sm:$0xff]
  %v5500 = vld [vmem:[%s5091 + $0x41] sm:$0xff]
  %v5501 = vld [vmem:[%s5091 + $0x51] sm:$0xff]
  %v5502 = vld [vmem:[%s5091 + $0x61] sm:$0xff]
  %v5503 = vld [vmem:[%s5091 + $0x71] sm:$0xff]
  %v5504 = vld [vmem:[%s5091 + $0xa1] sm:$0xff]
  %v5505 = vld [vmem:[%s5091 + $0xb1] sm:$0xff]
  %v5506 = vld [vmem:[%s5091 + $0xc1] sm:$0xff]
  %v5507 = vld [vmem:[%s5091 + $0xd1] sm:$0xff]
  %v5508 = vld [vmem:[%s5091 + $0xe1] sm:$0xff]
  %v5509 = vld [vmem:[%s5091 + $0xf1] sm:$0xff]
  %v5510 = vld [vmem:[%s5091 + $0x101] sm:$0xff]
  %v5511 = vld [vmem:[%s5091 + $0x111] sm:$0xff]
  %v5512 = vpack.c.bf16 %v5496, %v5496
  %v5513 = vpack.c.bf16 %v5497, %v5497
  %v5514 = vpack.c.bf16 %v5498, %v5498
  %v5515 = vpack.c.bf16 %v5499, %v5499
  %v5516 = vpack.c.bf16 %v5500, %v5500
  %v5517 = vpack.c.bf16 %v5501, %v5501
  %v5518 = vpack.c.bf16 %v5502, %v5502
  %v5519 = vpack.c.bf16 %v5503, %v5503
  %v5520 = vpack.c.bf16 %v5504, %v5504
  %v5521 = vpack.c.bf16 %v5505, %v5505
  %v5522 = vpack.c.bf16 %v5506, %v5506
  %v5523 = vpack.c.bf16 %v5507, %v5507
  %v5524 = vpack.c.bf16 %v5508, %v5508
  %v5525 = vpack.c.bf16 %v5509, %v5509
  %v5526 = vpack.c.bf16 %v5510, %v5510
  %v5527 = vpack.c.bf16 %v5511, %v5511
  %5544 = vrot.lane.b32.xlu0 %v5512, 48
  %v5545 = vpop.permute.xlu0 %5544
  %5546 = vrot.lane.b32.xlu0 %v5513, 48
  %v5547 = vpop.permute.xlu0 %5546
  %5548 = vrot.lane.b32.xlu0 %v5514, 48
  %v5549 = vpop.permute.xlu0 %5548
  %5550 = vrot.lane.b32.xlu0 %v5515, 48
  %v5551 = vpop.permute.xlu0 %5550
  %5552 = vrot.lane.b32.xlu0 %v5516, 48
  %v5553 = vpop.permute.xlu0 %5552
  %5554 = vrot.lane.b32.xlu0 %v5517, 48
  %v5555 = vpop.permute.xlu0 %5554
  %5556 = vrot.lane.b32.xlu0 %v5518, 48
  %v5557 = vpop.permute.xlu0 %5556
  %5558 = vrot.lane.b32.xlu0 %v5519, 48
  %v5559 = vpop.permute.xlu0 %5558
  %5560 = vrot.lane.b32.xlu0 %v5520, 48
  %v5561 = vpop.permute.xlu0 %5560
  %5562 = vrot.lane.b32.xlu0 %v5521, 48
  %v5563 = vpop.permute.xlu0 %5562
  %5564 = vrot.lane.b32.xlu0 %v5522, 48
  %v5565 = vpop.permute.xlu0 %5564
  %5566 = vrot.lane.b32.xlu0 %v5523, 48
  %v5567 = vpop.permute.xlu0 %5566
  %5568 = vrot.lane.b32.xlu0 %v5524, 48
  %v5569 = vpop.permute.xlu0 %5568
  %5570 = vrot.lane.b32.xlu0 %v5525, 48
  %v5571 = vpop.permute.xlu0 %5570
  %5572 = vrot.lane.b32.xlu0 %v5526, 48
  %v5573 = vpop.permute.xlu0 %5572
  %5574 = vrot.lane.b32.xlu0 %v5527, 48
  %v5575 = vpop.permute.xlu0 %5574
  %vm5592 = vcmask 486784
  %5593 = vst.msk [vmem:[#allocation3] sm:$0xf] %vm5592, %v5545
  %5594 = vst.msk [vmem:[#allocation3 + $0x4] sm:$0xf] %vm5592, %v5547
  %5595 = vst.msk [vmem:[#allocation3 + $0x8] sm:$0xf] %vm5592, %v5549
  %5596 = vst.msk [vmem:[#allocation3 + $0xc] sm:$0xf] %vm5592, %v5551
  %5597 = vst.msk [vmem:[#allocation3 + $0x10] sm:$0xf] %vm5592, %v5553
  %5598 = vst.msk [vmem:[#allocation3 + $0x14] sm:$0xf] %vm5592, %v5555
  %5599 = vst.msk [vmem:[#allocation3 + $0x18] sm:$0xf] %vm5592, %v5557
  %5600 = vst.msk [vmem:[#allocation3 + $0x1c] sm:$0xf] %vm5592, %v5559
  %5601 = vst.msk [vmem:[#allocation3 + $0x20] sm:$0xf] %vm5592, %v5561
  %5602 = vst.msk [vmem:[#allocation3 + $0x24] sm:$0xf] %vm5592, %v5563
  %5603 = vst.msk [vmem:[#allocation3 + $0x28] sm:$0xf] %vm5592, %v5565
  %5604 = vst.msk [vmem:[#allocation3 + $0x2c] sm:$0xf] %vm5592, %v5567
  %5605 = vst.msk [vmem:[#allocation3 + $0x30] sm:$0xf] %vm5592, %v5569
  %5606 = vst.msk [vmem:[#allocation3 + $0x34] sm:$0xf] %vm5592, %v5571
  %5607 = vst.msk [vmem:[#allocation3 + $0x38] sm:$0xf] %vm5592, %v5573
  %5608 = vst.msk [vmem:[#allocation3 + $0x3c] sm:$0xf] %vm5592, %v5575
  %v5609 = vld [vmem:[%s5091 + $0x2] sm:$0xff]
  %v5610 = vld [vmem:[%s5091 + $0x12] sm:$0xff]
  %v5611 = vld [vmem:[%s5091 + $0x22] sm:$0xff]
  %v5612 = vld [vmem:[%s5091 + $0x32] sm:$0xff]
  %v5613 = vld [vmem:[%s5091 + $0x42] sm:$0xff]
  %v5614 = vld [vmem:[%s5091 + $0x52] sm:$0xff]
  %v5615 = vld [vmem:[%s5091 + $0x62] sm:$0xff]
  %v5616 = vld [vmem:[%s5091 + $0x72] sm:$0xff]
  %v5617 = vld [vmem:[%s5091 + $0xa2] sm:$0xff]
  %v5618 = vld [vmem:[%s5091 + $0xb2] sm:$0xff]
  %v5619 = vld [vmem:[%s5091 + $0xc2] sm:$0xff]
  %v5620 = vld [vmem:[%s5091 + $0xd2] sm:$0xff]
  %v5621 = vld [vmem:[%s5091 + $0xe2] sm:$0xff]
  %v5622 = vld [vmem:[%s5091 + $0xf2] sm:$0xff]
  %v5623 = vld [vmem:[%s5091 + $0x102] sm:$0xff]
  %v5624 = vld [vmem:[%s5091 + $0x112] sm:$0xff]
  %v5625 = vpack.c.bf16 %v5609, %v5609
  %v5626 = vpack.c.bf16 %v5610, %v5610
  %v5627 = vpack.c.bf16 %v5611, %v5611
  %v5628 = vpack.c.bf16 %v5612, %v5612
  %v5629 = vpack.c.bf16 %v5613, %v5613
  %v5630 = vpack.c.bf16 %v5614, %v5614
  %v5631 = vpack.c.bf16 %v5615, %v5615
  %v5632 = vpack.c.bf16 %v5616, %v5616
  %v5633 = vpack.c.bf16 %v5617, %v5617
  %v5634 = vpack.c.bf16 %v5618, %v5618
  %v5635 = vpack.c.bf16 %v5619, %v5619
  %v5636 = vpack.c.bf16 %v5620, %v5620
  %v5637 = vpack.c.bf16 %v5621, %v5621
  %v5638 = vpack.c.bf16 %v5622, %v5622
  %v5639 = vpack.c.bf16 %v5623, %v5623
  %v5640 = vpack.c.bf16 %v5624, %v5624
  %5657 = vrot.lane.b32.xlu0 %v5625, 60
  %v5658 = vpop.permute.xlu0 %5657
  %5659 = vrot.lane.b32.xlu0 %v5626, 60
  %v5660 = vpop.permute.xlu0 %5659
  %5661 = vrot.lane.b32.xlu0 %v5627, 60
  %v5662 = vpop.permute.xlu0 %5661
  %5663 = vrot.lane.b32.xlu0 %v5628, 60
  %v5664 = vpop.permute.xlu0 %5663
  %5665 = vrot.lane.b32.xlu0 %v5629, 60
  %v5666 = vpop.permute.xlu0 %5665
  %5667 = vrot.lane.b32.xlu0 %v5630, 60
  %v5668 = vpop.permute.xlu0 %5667
  %5669 = vrot.lane.b32.xlu0 %v5631, 60
  %v5670 = vpop.permute.xlu0 %5669
  %5671 = vrot.lane.b32.xlu0 %v5632, 60
  %v5672 = vpop.permute.xlu0 %5671
  %5673 = vrot.lane.b32.xlu0 %v5633, 60
  %v5674 = vpop.permute.xlu0 %5673
  %5675 = vrot.lane.b32.xlu0 %v5634, 60
  %v5676 = vpop.permute.xlu0 %5675
  %5677 = vrot.lane.b32.xlu0 %v5635, 60
  %v5678 = vpop.permute.xlu0 %5677
  %5679 = vrot.lane.b32.xlu0 %v5636, 60
  %v5680 = vpop.permute.xlu0 %5679
  %5681 = vrot.lane.b32.xlu0 %v5637, 60
  %v5682 = vpop.permute.xlu0 %5681
  %5683 = vrot.lane.b32.xlu0 %v5638, 60
  %v5684 = vpop.permute.xlu0 %5683
  %5685 = vrot.lane.b32.xlu0 %v5639, 60
  %v5686 = vpop.permute.xlu0 %5685
  %5687 = vrot.lane.b32.xlu0 %v5640, 60
  %v5688 = vpop.permute.xlu0 %5687
  %vm5705 = vcmask 585184
  %5706 = vst.msk [vmem:[#allocation3] sm:$0xf] %vm5705, %v5658
  %5707 = vst.msk [vmem:[#allocation3 + $0x4] sm:$0xf] %vm5705, %v5660
  %5708 = vst.msk [vmem:[#allocation3 + $0x8] sm:$0xf] %vm5705, %v5662
  %5709 = vst.msk [vmem:[#allocation3 + $0xc] sm:$0xf] %vm5705, %v5664
  %5710 = vst.msk [vmem:[#allocation3 + $0x10] sm:$0xf] %vm5705, %v5666
  %5711 = vst.msk [vmem:[#allocation3 + $0x14] sm:$0xf] %vm5705, %v5668
  %5712 = vst.msk [vmem:[#allocation3 + $0x18] sm:$0xf] %vm5705, %v5670
  %5713 = vst.msk [vmem:[#allocation3 + $0x1c] sm:$0xf] %vm5705, %v5672
  %5714 = vst.msk [vmem:[#allocation3 + $0x20] sm:$0xf] %vm5705, %v5674
  %5715 = vst.msk [vmem:[#allocation3 + $0x24] sm:$0xf] %vm5705, %v5676
  %5716 = vst.msk [vmem:[#allocation3 + $0x28] sm:$0xf] %vm5705, %v5678
  %5717 = vst.msk [vmem:[#allocation3 + $0x2c] sm:$0xf] %vm5705, %v5680
  %5718 = vst.msk [vmem:[#allocation3 + $0x30] sm:$0xf] %vm5705, %v5682
  %5719 = vst.msk [vmem:[#allocation3 + $0x34] sm:$0xf] %vm5705, %v5684
  %5720 = vst.msk [vmem:[#allocation3 + $0x38] sm:$0xf] %vm5705, %v5686
  %5721 = vst.msk [vmem:[#allocation3 + $0x3c] sm:$0xf] %vm5705, %v5688
  %s5722 = scalar_lea.vmem [#allocation6], 32
  %v5723 = vld [vmem:[%s5722] sm:$0xff]
  %v5724 = vld [vmem:[%s5722 + $0x10] sm:$0xff]
  %v5725 = vld [vmem:[%s5722 + $0x20] sm:$0xff]
  %v5726 = vld [vmem:[%s5722 + $0x30] sm:$0xff]
  %v5727 = vld [vmem:[%s5722 + $0x40] sm:$0xff]
  %v5728 = vld [vmem:[%s5722 + $0x50] sm:$0xff]
  %v5729 = vld [vmem:[%s5722 + $0x60] sm:$0xff]
  %v5730 = vld [vmem:[%s5722 + $0x70] sm:$0xff]
  %v5731 = vld [vmem:[%s5722 + $0xa0] sm:$0xff]
  %v5732 = vld [vmem:[%s5722 + $0xb0] sm:$0xff]
  %v5733 = vld [vmem:[%s5722 + $0xc0] sm:$0xff]
  %v5734 = vld [vmem:[%s5722 + $0xd0] sm:$0xff]
  %v5735 = vld [vmem:[%s5722 + $0xe0] sm:$0xff]
  %v5736 = vld [vmem:[%s5722 + $0xf0] sm:$0xff]
  %v5737 = vld [vmem:[%s5722 + $0x100] sm:$0xff]
  %v5738 = vld [vmem:[%s5722 + $0x110] sm:$0xff]
  %v5739 = vpack.c.bf16 %v5723, %v5723
  %v5740 = vpack.c.bf16 %v5724, %v5724
  %v5741 = vpack.c.bf16 %v5725, %v5725
  %v5742 = vpack.c.bf16 %v5726, %v5726
  %v5743 = vpack.c.bf16 %v5727, %v5727
  %v5744 = vpack.c.bf16 %v5728, %v5728
  %v5745 = vpack.c.bf16 %v5729, %v5729
  %v5746 = vpack.c.bf16 %v5730, %v5730
  %v5747 = vpack.c.bf16 %v5731, %v5731
  %v5748 = vpack.c.bf16 %v5732, %v5732
  %v5749 = vpack.c.bf16 %v5733, %v5733
  %v5750 = vpack.c.bf16 %v5734, %v5734
  %v5751 = vpack.c.bf16 %v5735, %v5735
  %v5752 = vpack.c.bf16 %v5736, %v5736
  %v5753 = vpack.c.bf16 %v5737, %v5737
  %v5754 = vpack.c.bf16 %v5738, %v5738
  %5771 = vrot.lane.b32.xlu0 %v5739, 72
  %v5772 = vpop.permute.xlu0 %5771
  %5773 = vrot.lane.b32.xlu0 %v5740, 72
  %v5774 = vpop.permute.xlu0 %5773
  %5775 = vrot.lane.b32.xlu0 %v5741, 72
  %v5776 = vpop.permute.xlu0 %5775
  %5777 = vrot.lane.b32.xlu0 %v5742, 72
  %v5778 = vpop.permute.xlu0 %5777
  %5779 = vrot.lane.b32.xlu0 %v5743, 72
  %v5780 = vpop.permute.xlu0 %5779
  %5781 = vrot.lane.b32.xlu0 %v5744, 72
  %v5782 = vpop.permute.xlu0 %5781
  %5783 = vrot.lane.b32.xlu0 %v5745, 72
  %v5784 = vpop.permute.xlu0 %5783
  %5785 = vrot.lane.b32.xlu0 %v5746, 72
  %v5786 = vpop.permute.xlu0 %5785
  %5787 = vrot.lane.b32.xlu0 %v5747, 72
  %v5788 = vpop.permute.xlu0 %5787
  %5789 = vrot.lane.b32.xlu0 %v5748, 72
  %v5790 = vpop.permute.xlu0 %5789
  %5791 = vrot.lane.b32.xlu0 %v5749, 72
  %v5792 = vpop.permute.xlu0 %5791
  %5793 = vrot.lane.b32.xlu0 %v5750, 72
  %v5794 = vpop.permute.xlu0 %5793
  %5795 = vrot.lane.b32.xlu0 %v5751, 72
  %v5796 = vpop.permute.xlu0 %5795
  %5797 = vrot.lane.b32.xlu0 %v5752, 72
  %v5798 = vpop.permute.xlu0 %5797
  %5799 = vrot.lane.b32.xlu0 %v5753, 72
  %v5800 = vpop.permute.xlu0 %5799
  %5801 = vrot.lane.b32.xlu0 %v5754, 72
  %v5802 = vpop.permute.xlu0 %5801
  %vm5819 = vcmask 683584
  %5820 = vst.msk [vmem:[#allocation3] sm:$0xf] %vm5819, %v5772
  %5821 = vst.msk [vmem:[#allocation3 + $0x4] sm:$0xf] %vm5819, %v5774
  %5822 = vst.msk [vmem:[#allocation3 + $0x8] sm:$0xf] %vm5819, %v5776
  %5823 = vst.msk [vmem:[#allocation3 + $0xc] sm:$0xf] %vm5819, %v5778
  %5824 = vst.msk [vmem:[#allocation3 + $0x10] sm:$0xf] %vm5819, %v5780
  %5825 = vst.msk [vmem:[#allocation3 + $0x14] sm:$0xf] %vm5819, %v5782
  %5826 = vst.msk [vmem:[#allocation3 + $0x18] sm:$0xf] %vm5819, %v5784
  %5827 = vst.msk [vmem:[#allocation3 + $0x1c] sm:$0xf] %vm5819, %v5786
  %5828 = vst.msk [vmem:[#allocation3 + $0x20] sm:$0xf] %vm5819, %v5788
  %5829 = vst.msk [vmem:[#allocation3 + $0x24] sm:$0xf] %vm5819, %v5790
  %5830 = vst.msk [vmem:[#allocation3 + $0x28] sm:$0xf] %vm5819, %v5792
  %5831 = vst.msk [vmem:[#allocation3 + $0x2c] sm:$0xf] %vm5819, %v5794
  %5832 = vst.msk [vmem:[#allocation3 + $0x30] sm:$0xf] %vm5819, %v5796
  %5833 = vst.msk [vmem:[#allocation3 + $0x34] sm:$0xf] %vm5819, %v5798
  %5834 = vst.msk [vmem:[#allocation3 + $0x38] sm:$0xf] %vm5819, %v5800
  %5835 = vst.msk [vmem:[#allocation3 + $0x3c] sm:$0xf] %vm5819, %v5802
  %v5836 = vld [vmem:[%s5722 + $0x1] sm:$0xff]
  %v5837 = vld [vmem:[%s5722 + $0x11] sm:$0xff]
  %v5838 = vld [vmem:[%s5722 + $0x21] sm:$0xff]
  %v5839 = vld [vmem:[%s5722 + $0x31] sm:$0xff]
  %v5840 = vld [vmem:[%s5722 + $0x41] sm:$0xff]
  %v5841 = vld [vmem:[%s5722 + $0x51] sm:$0xff]
  %v5842 = vld [vmem:[%s5722 + $0x61] sm:$0xff]
  %v5843 = vld [vmem:[%s5722 + $0x71] sm:$0xff]
  %v5844 = vld [vmem:[%s5722 + $0xa1] sm:$0xff]
  %v5845 = vld [vmem:[%s5722 + $0xb1] sm:$0xff]
  %v5846 = vld [vmem:[%s5722 + $0xc1] sm:$0xff]
  %v5847 = vld [vmem:[%s5722 + $0xd1] sm:$0xff]
  %v5848 = vld [vmem:[%s5722 + $0xe1] sm:$0xff]
  %v5849 = vld [vmem:[%s5722 + $0xf1] sm:$0xff]
  %v5850 = vld [vmem:[%s5722 + $0x101] sm:$0xff]
  %v5851 = vld [vmem:[%s5722 + $0x111] sm:$0xff]
  %v5852 = vpack.c.bf16 %v5836, %v5836
  %v5853 = vpack.c.bf16 %v5837, %v5837
  %v5854 = vpack.c.bf16 %v5838, %v5838
  %v5855 = vpack.c.bf16 %v5839, %v5839
  %v5856 = vpack.c.bf16 %v5840, %v5840
  %v5857 = vpack.c.bf16 %v5841, %v5841
  %v5858 = vpack.c.bf16 %v5842, %v5842
  %v5859 = vpack.c.bf16 %v5843, %v5843
  %v5860 = vpack.c.bf16 %v5844, %v5844
  %v5861 = vpack.c.bf16 %v5845, %v5845
  %v5862 = vpack.c.bf16 %v5846, %v5846
  %v5863 = vpack.c.bf16 %v5847, %v5847
  %v5864 = vpack.c.bf16 %v5848, %v5848
  %v5865 = vpack.c.bf16 %v5849, %v5849
  %v5866 = vpack.c.bf16 %v5850, %v5850
  %v5867 = vpack.c.bf16 %v5851, %v5851
  %5884 = vrot.lane.b32.xlu0 %v5852, 84
  %v5885 = vpop.permute.xlu0 %5884
  %5886 = vrot.lane.b32.xlu0 %v5853, 84
  %v5887 = vpop.permute.xlu0 %5886
  %5888 = vrot.lane.b32.xlu0 %v5854, 84
  %v5889 = vpop.permute.xlu0 %5888
  %5890 = vrot.lane.b32.xlu0 %v5855, 84
  %v5891 = vpop.permute.xlu0 %5890
  %5892 = vrot.lane.b32.xlu0 %v5856, 84
  %v5893 = vpop.permute.xlu0 %5892
  %5894 = vrot.lane.b32.xlu0 %v5857, 84
  %v5895 = vpop.permute.xlu0 %5894
  %5896 = vrot.lane.b32.xlu0 %v5858, 84
  %v5897 = vpop.permute.xlu0 %5896
  %5898 = vrot.lane.b32.xlu0 %v5859, 84
  %v5899 = vpop.permute.xlu0 %5898
  %5900 = vrot.lane.b32.xlu0 %v5860, 84
  %v5901 = vpop.permute.xlu0 %5900
  %5902 = vrot.lane.b32.xlu0 %v5861, 84
  %v5903 = vpop.permute.xlu0 %5902
  %5904 = vrot.lane.b32.xlu0 %v5862, 84
  %v5905 = vpop.permute.xlu0 %5904
  %5906 = vrot.lane.b32.xlu0 %v5863, 84
  %v5907 = vpop.permute.xlu0 %5906
  %5908 = vrot.lane.b32.xlu0 %v5864, 84
  %v5909 = vpop.permute.xlu0 %5908
  %5910 = vrot.lane.b32.xlu0 %v5865, 84
  %v5911 = vpop.permute.xlu0 %5910
  %5912 = vrot.lane.b32.xlu0 %v5866, 84
  %v5913 = vpop.permute.xlu0 %5912
  %5914 = vrot.lane.b32.xlu0 %v5867, 84
  %v5915 = vpop.permute.xlu0 %5914
  %vm5932 = vcmask 781984
  %5933 = vst.msk [vmem:[#allocation3] sm:$0xf] %vm5932, %v5885
  %5934 = vst.msk [vmem:[#allocation3 + $0x4] sm:$0xf] %vm5932, %v5887
  %5935 = vst.msk [vmem:[#allocation3 + $0x8] sm:$0xf] %vm5932, %v5889
  %5936 = vst.msk [vmem:[#allocation3 + $0xc] sm:$0xf] %vm5932, %v5891
  %5937 = vst.msk [vmem:[#allocation3 + $0x10] sm:$0xf] %vm5932, %v5893
  %5938 = vst.msk [vmem:[#allocation3 + $0x14] sm:$0xf] %vm5932, %v5895
  %5939 = vst.msk [vmem:[#allocation3 + $0x18] sm:$0xf] %vm5932, %v5897
  %5940 = vst.msk [vmem:[#allocation3 + $0x1c] sm:$0xf] %vm5932, %v5899
  %5941 = vst.msk [vmem:[#allocation3 + $0x20] sm:$0xf] %vm5932, %v5901
  %5942 = vst.msk [vmem:[#allocation3 + $0x24] sm:$0xf] %vm5932, %v5903
  %5943 = vst.msk [vmem:[#allocation3 + $0x28] sm:$0xf] %vm5932, %v5905
  %5944 = vst.msk [vmem:[#allocation3 + $0x2c] sm:$0xf] %vm5932, %v5907
  %5945 = vst.msk [vmem:[#allocation3 + $0x30] sm:$0xf] %vm5932, %v5909
  %5946 = vst.msk [vmem:[#allocation3 + $0x34] sm:$0xf] %vm5932, %v5911
  %5947 = vst.msk [vmem:[#allocation3 + $0x38] sm:$0xf] %vm5932, %v5913
  %5948 = vst.msk [vmem:[#allocation3 + $0x3c] sm:$0xf] %vm5932, %v5915
  %v5949 = vld [vmem:[%s5722 + $0x2] sm:$0xff]
  %v5950 = vld [vmem:[%s5722 + $0x12] sm:$0xff]
  %v5951 = vld [vmem:[%s5722 + $0x22] sm:$0xff]
  %v5952 = vld [vmem:[%s5722 + $0x32] sm:$0xff]
  %v5953 = vld [vmem:[%s5722 + $0x42] sm:$0xff]
  %v5954 = vld [vmem:[%s5722 + $0x52] sm:$0xff]
  %v5955 = vld [vmem:[%s5722 + $0x62] sm:$0xff]
  %v5956 = vld [vmem:[%s5722 + $0x72] sm:$0xff]
  %v5957 = vld [vmem:[%s5722 + $0xa2] sm:$0xff]
  %v5958 = vld [vmem:[%s5722 + $0xb2] sm:$0xff]
  %v5959 = vld [vmem:[%s5722 + $0xc2] sm:$0xff]
  %v5960 = vld [vmem:[%s5722 + $0xd2] sm:$0xff]
  %v5961 = vld [vmem:[%s5722 + $0xe2] sm:$0xff]
  %v5962 = vld [vmem:[%s5722 + $0xf2] sm:$0xff]
  %v5963 = vld [vmem:[%s5722 + $0x102] sm:$0xff]
  %v5964 = vld [vmem:[%s5722 + $0x112] sm:$0xff]
  %v5965 = vpack.c.bf16 %v5949, %v5949
  %v5966 = vpack.c.bf16 %v5950, %v5950
  %v5967 = vpack.c.bf16 %v5951, %v5951
  %v5968 = vpack.c.bf16 %v5952, %v5952
  %v5969 = vpack.c.bf16 %v5953, %v5953
  %v5970 = vpack.c.bf16 %v5954, %v5954
  %v5971 = vpack.c.bf16 %v5955, %v5955
  %v5972 = vpack.c.bf16 %v5956, %v5956
  %v5973 = vpack.c.bf16 %v5957, %v5957
  %v5974 = vpack.c.bf16 %v5958, %v5958
  %v5975 = vpack.c.bf16 %v5959, %v5959
  %v5976 = vpack.c.bf16 %v5960, %v5960
  %v5977 = vpack.c.bf16 %v5961, %v5961
  %v5978 = vpack.c.bf16 %v5962, %v5962
  %v5979 = vpack.c.bf16 %v5963, %v5963
  %v5980 = vpack.c.bf16 %v5964, %v5964
  %5997 = vrot.lane.b32.xlu0 %v5965, 96
  %v5998 = vpop.permute.xlu0 %5997
  %5999 = vrot.lane.b32.xlu0 %v5966, 96
  %v6000 = vpop.permute.xlu0 %5999
  %6001 = vrot.lane.b32.xlu0 %v5967, 96
  %v6002 = vpop.permute.xlu0 %6001
  %6003 = vrot.lane.b32.xlu0 %v5968, 96
  %v6004 = vpop.permute.xlu0 %6003
  %6005 = vrot.lane.b32.xlu0 %v5969, 96
  %v6006 = vpop.permute.xlu0 %6005
  %6007 = vrot.lane.b32.xlu0 %v5970, 96
  %v6008 = vpop.permute.xlu0 %6007
  %6009 = vrot.lane.b32.xlu0 %v5971, 96
  %v6010 = vpop.permute.xlu0 %6009
  %6011 = vrot.lane.b32.xlu0 %v5972, 96
  %v6012 = vpop.permute.xlu0 %6011
  %6013 = vrot.lane.b32.xlu0 %v5973, 96
  %v6014 = vpop.permute.xlu0 %6013
  %6015 = vrot.lane.b32.xlu0 %v5974, 96
  %v6016 = vpop.permute.xlu0 %6015
  %6017 = vrot.lane.b32.xlu0 %v5975, 96
  %v6018 = vpop.permute.xlu0 %6017
  %6019 = vrot.lane.b32.xlu0 %v5976, 96
  %v6020 = vpop.permute.xlu0 %6019
  %6021 = vrot.lane.b32.xlu0 %v5977, 96
  %v6022 = vpop.permute.xlu0 %6021
  %6023 = vrot.lane.b32.xlu0 %v5978, 96
  %v6024 = vpop.permute.xlu0 %6023
  %6025 = vrot.lane.b32.xlu0 %v5979, 96
  %v6026 = vpop.permute.xlu0 %6025
  %6027 = vrot.lane.b32.xlu0 %v5980, 96
  %v6028 = vpop.permute.xlu0 %6027
  %vm6045 = vcmask 880384
  %6046 = vst.msk [vmem:[#allocation3] sm:$0xf] %vm6045, %v5998
  %6047 = vst.msk [vmem:[#allocation3 + $0x4] sm:$0xf] %vm6045, %v6000
  %6048 = vst.msk [vmem:[#allocation3 + $0x8] sm:$0xf] %vm6045, %v6002
  %6049 = vst.msk [vmem:[#allocation3 + $0xc] sm:$0xf] %vm6045, %v6004
  %6050 = vst.msk [vmem:[#allocation3 + $0x10] sm:$0xf] %vm6045, %v6006
  %6051 = vst.msk [vmem:[#allocation3 + $0x14] sm:$0xf] %vm6045, %v6008
  %6052 = vst.msk [vmem:[#allocation3 + $0x18] sm:$0xf] %vm6045, %v6010
  %6053 = vst.msk [vmem:[#allocation3 + $0x1c] sm:$0xf] %vm6045, %v6012
  %6054 = vst.msk [vmem:[#allocation3 + $0x20] sm:$0xf] %vm6045, %v6014
  %6055 = vst.msk [vmem:[#allocation3 + $0x24] sm:$0xf] %vm6045, %v6016
  %6056 = vst.msk [vmem:[#allocation3 + $0x28] sm:$0xf] %vm6045, %v6018
  %6057 = vst.msk [vmem:[#allocation3 + $0x2c] sm:$0xf] %vm6045, %v6020
  %6058 = vst.msk [vmem:[#allocation3 + $0x30] sm:$0xf] %vm6045, %v6022
  %6059 = vst.msk [vmem:[#allocation3 + $0x34] sm:$0xf] %vm6045, %v6024
  %6060 = vst.msk [vmem:[#allocation3 + $0x38] sm:$0xf] %vm6045, %v6026
  %6061 = vst.msk [vmem:[#allocation3 + $0x3c] sm:$0xf] %vm6045, %v6028
  %v6062 = vld [vmem:[#allocation3] sm:$0xf]
  %v6063 = vld [vmem:[#allocation3 + $0x4] sm:$0xf]
  %v6064 = vld [vmem:[#allocation3 + $0x8] sm:$0xf]
  %v6065 = vld [vmem:[#allocation3 + $0xc] sm:$0xf]
  %v6066 = vld [vmem:[#allocation3 + $0x10] sm:$0xf]
  %v6067 = vld [vmem:[#allocation3 + $0x14] sm:$0xf]
  %v6068 = vld [vmem:[#allocation3 + $0x18] sm:$0xf]
  %v6069 = vld [vmem:[#allocation3 + $0x1c] sm:$0xf]
  %v6070 = vld [vmem:[#allocation3 + $0x20] sm:$0xf]
  %v6071 = vld [vmem:[#allocation3 + $0x24] sm:$0xf]
  %v6072 = vld [vmem:[#allocation3 + $0x28] sm:$0xf]
  %v6073 = vld [vmem:[#allocation3 + $0x2c] sm:$0xf]
  %v6074 = vld [vmem:[#allocation3 + $0x30] sm:$0xf]
  %v6075 = vld [vmem:[#allocation3 + $0x34] sm:$0xf]
  %v6076 = vld [vmem:[#allocation3 + $0x38] sm:$0xf]
  %v6077 = vld [vmem:[#allocation3 + $0x3c] sm:$0xf]
  %v6078 = vld [vmem:[%s4] sm:$0xf]
  %v6079 = vld [vmem:[%s4 + $0x4] sm:$0xf]
  %v6080 = vld [vmem:[%s4 + $0x8] sm:$0xf]
  %v6081 = vld [vmem:[%s4 + $0xc] sm:$0xf]
  %v6082 = vld [vmem:[%s4 + $0x10] sm:$0xf]
  %v6083 = vld [vmem:[%s4 + $0x14] sm:$0xf]
  %v6084 = vld [vmem:[%s4 + $0x18] sm:$0xf]
  %v6085 = vld [vmem:[%s4 + $0x1c] sm:$0xf]
  %v6086 = vld [vmem:[%s4 + $0x20] sm:$0xf]
  %v6087 = vld [vmem:[%s4 + $0x24] sm:$0xf]
  %v6088 = vld [vmem:[%s4 + $0x28] sm:$0xf]
  %v6089 = vld [vmem:[%s4 + $0x2c] sm:$0xf]
  %v6090 = vld [vmem:[%s4 + $0x30] sm:$0xf]
  %v6091 = vld [vmem:[%s4 + $0x34] sm:$0x3]
  %v6092 = vld [vmem:[%s5] sm:$0x1]
  %v6094 = vperm.slane %v6092, 0
  %v6112 = vunpack.c.l.b16 %v6062
  %v6113 = vunpack.c.l.b16 %v6063
  %v6114 = vunpack.c.l.b16 %v6064
  %v6115 = vunpack.c.l.b16 %v6065
  %v6116 = vunpack.c.l.b16 %v6066
  %v6117 = vunpack.c.l.b16 %v6067
  %v6118 = vunpack.c.l.b16 %v6068
  %v6119 = vunpack.c.l.b16 %v6069
  %v6120 = vunpack.c.l.b16 %v6070
  %v6121 = vunpack.c.l.b16 %v6071
  %v6122 = vunpack.c.l.b16 %v6072
  %v6123 = vunpack.c.l.b16 %v6073
  %v6124 = vunpack.c.l.b16 %v6074
  %v6125 = vunpack.c.l.b16 %v6075
  %v6126 = vunpack.c.l.b16 %v6076
  %v6127 = vunpack.c.l.b16 %v6077
  %v6128 = vpack.c.b16 %v6113, %v6112
  %v6129 = vpack.c.b16 %v6115, %v6114
  %v6130 = vpack.c.b16 %v6117, %v6116
  %v6131 = vpack.c.b16 %v6119, %v6118
  %v6132 = vpack.c.b16 %v6121, %v6120
  %v6133 = vpack.c.b16 %v6123, %v6122
  %v6134 = vpack.c.b16 %v6125, %v6124
  %v6135 = vpack.c.b16 %v6127, %v6126
  %v6150 = vunpack.c.l.b16 %v6078
  %v6151 = vunpack.c.l.b16 %v6079
  %v6152 = vunpack.c.l.b16 %v6080
  %v6153 = vunpack.c.l.b16 %v6081
  %v6154 = vunpack.c.l.b16 %v6082
  %v6155 = vunpack.c.l.b16 %v6083
  %v6156 = vunpack.c.l.b16 %v6084
  %v6157 = vunpack.c.l.b16 %v6085
  %v6158 = vunpack.c.l.b16 %v6086
  %v6159 = vunpack.c.l.b16 %v6087
  %v6160 = vunpack.c.l.b16 %v6088
  %v6161 = vunpack.c.l.b16 %v6089
  %v6162 = vunpack.c.l.b16 %v6090
  %v6163 = vunpack.c.l.b16 %v6091
  %v6164 = vpack.c.b16 %v6151, %v6150
  %v6165 = vpack.c.b16 %v6153, %v6152
  %v6166 = vpack.c.b16 %v6155, %v6154
  %v6167 = vpack.c.b16 %v6157, %v6156
  %v6168 = vpack.c.b16 %v6159, %v6158
  %v6169 = vpack.c.b16 %v6161, %v6160
  %v6170 = vpack.c.b16 %v6163, %v6162
  %vm6177 = vcmask 883712
  %v6179 = vsel %vm6177, %v6128, 0
  %v6182 = vsel %vm6177, %v6129, 0
  %v6185 = vsel %vm6177, %v6130, 0
  %v6188 = vsel %vm6177, %v6131, 0
  %v6191 = vsel %vm6177, %v6132, 0
  %v6194 = vsel %vm6177, %v6133, 0
  %v6197 = vsel %vm6177, %v6134, 0
  %v6200 = vsel %vm6177, %v6135, 0
  %v6203 = vsel %vm4477, %v6170, 0
  %6205 = vmatpush.bf16.msra.mxu0 0
  %6206 = vmatpush.bf16.msra.mxu0 %v6203
  %6207 = vmatpush.bf16.msra.mxu0 %v6169
  %6208 = vmatpush.bf16.msra.mxu0 %v6168
  %6209 = vmatpush.bf16.msra.mxu0 %v6167
  %6210 = vmatpush.bf16.msra.mxu0 %v6166
  %6211 = vmatpush.bf16.msra.mxu0 %v6165
  %6212 = vmatpush.bf16.msra.mxu0 %v6164
  %6213 = vmatmul.bf16.gmra.mxu0 %v6179
  %v6214 = vpop.f32.mrf.mxu0
  %v6215 = vadd.f32 %v6094, %v6214
  %v6216 = vpop.f32.mrf.mxu0
  %v6217 = vadd.f32 %v6094, %v6216
  %6218 = vmatmul.bf16.gmra.mxu0 %v6182
  %v6219 = vpop.f32.mrf.mxu0
  %v6220 = vadd.f32 %v6094, %v6219
  %v6221 = vpop.f32.mrf.mxu0
  %v6222 = vadd.f32 %v6094, %v6221
  %6223 = vmatmul.bf16.gmra.mxu0 %v6185
  %v6224 = vpop.f32.mrf.mxu0
  %v6225 = vadd.f32 %v6094, %v6224
  %v6226 = vpop.f32.mrf.mxu0
  %v6227 = vadd.f32 %v6094, %v6226
  %6228 = vmatmul.bf16.gmra.mxu0 %v6188
  %v6229 = vpop.f32.mrf.mxu0
  %v6230 = vadd.f32 %v6094, %v6229
  %v6231 = vpop.f32.mrf.mxu0
  %v6232 = vadd.f32 %v6094, %v6231
  %6233 = vmatmul.bf16.gmra.mxu0 %v6191
  %v6234 = vpop.f32.mrf.mxu0
  %v6235 = vadd.f32 %v6094, %v6234
  %v6236 = vpop.f32.mrf.mxu0
  %v6237 = vadd.f32 %v6094, %v6236
  %6238 = vmatmul.bf16.gmra.mxu0 %v6194
  %v6239 = vpop.f32.mrf.mxu0
  %v6240 = vadd.f32 %v6094, %v6239
  %v6241 = vpop.f32.mrf.mxu0
  %v6242 = vadd.f32 %v6094, %v6241
  %6243 = vmatmul.bf16.gmra.mxu0 %v6197
  %v6244 = vpop.f32.mrf.mxu0
  %v6245 = vadd.f32 %v6094, %v6244
  %v6246 = vpop.f32.mrf.mxu0
  %v6247 = vadd.f32 %v6094, %v6246
  %6248 = vmatmul.bf16.gmra.mxu0 %v6200
  %v6249 = vpop.f32.mrf.mxu0
  %v6250 = vadd.f32 %v6094, %v6249
  %v6251 = vpop.f32.mrf.mxu0
  %v6252 = vadd.f32 %v6094, %v6251
  %6253 = vdwg.mxu0
  %v6254 = vmax.f32 %v6215, 0.0
  %v6255 = vmax.f32 %v6217, 0.0
  %v6256 = vmax.f32 %v6220, 0.0
  %v6257 = vmax.f32 %v6222, 0.0
  %v6258 = vmax.f32 %v6225, 0.0
  %v6259 = vmax.f32 %v6227, 0.0
  %v6260 = vmax.f32 %v6230, 0.0
  %v6261 = vmax.f32 %v6232, 0.0
  %v6262 = vmax.f32 %v6235, 0.0
  %v6263 = vmax.f32 %v6237, 0.0
  %v6264 = vmax.f32 %v6240, 0.0
  %v6265 = vmax.f32 %v6242, 0.0
  %v6266 = vmax.f32 %v6245, 0.0
  %v6267 = vmax.f32 %v6247, 0.0
  %v6268 = vmax.f32 %v6250, 0.0
  %v6269 = vmax.f32 %v6252, 0.0
  %s6270 = scalar_lea.vmem [#allocation7], 16
  %6271 = vst.msk [vmem:[%s6270 + $0x1] sm:$0xff] %vm173, %v6254
  %6272 = vst.msk [vmem:[%s6270 + $0x11] sm:$0xff] %vm173, %v6255
  %6273 = vst.msk [vmem:[%s6270 + $0x21] sm:$0xff] %vm173, %v6256
  %6274 = vst.msk [vmem:[%s6270 + $0x31] sm:$0xff] %vm173, %v6257
  %6275 = vst.msk [vmem:[%s6270 + $0x41] sm:$0xff] %vm173, %v6258
  %6276 = vst.msk [vmem:[%s6270 + $0x51] sm:$0xff] %vm173, %v6259
  %6277 = vst.msk [vmem:[%s6270 + $0x61] sm:$0xff] %vm173, %v6260
  %6278 = vst.msk [vmem:[%s6270 + $0x71] sm:$0xff] %vm173, %v6261
  %6279 = vst.msk [vmem:[%s6270 + $0xa1] sm:$0xff] %vm173, %v6262
  %6280 = vst.msk [vmem:[%s6270 + $0xb1] sm:$0xff] %vm173, %v6263
  %6281 = vst.msk [vmem:[%s6270 + $0xc1] sm:$0xff] %vm173, %v6264
  %6282 = vst.msk [vmem:[%s6270 + $0xd1] sm:$0xff] %vm173, %v6265
  %6283 = vst.msk [vmem:[%s6270 + $0xe1] sm:$0xff] %vm173, %v6266
  %6284 = vst.msk [vmem:[%s6270 + $0xf1] sm:$0xff] %vm173, %v6267
  %6285 = vst.msk [vmem:[%s6270 + $0x101] sm:$0xff] %vm173, %v6268
  %6286 = vst.msk [vmem:[%s6270 + $0x111] sm:$0xff] %vm173, %v6269
  %v6287 = vld [vmem:[#allocation7] sm:$0xff]
  %v6288 = vld [vmem:[#allocation7 + $0x10] sm:$0xff]
  %v6289 = vld [vmem:[#allocation7 + $0x20] sm:$0xff]
  %v6290 = vld [vmem:[#allocation7 + $0x30] sm:$0xff]
  %v6291 = vld [vmem:[#allocation7 + $0x40] sm:$0xff]
  %v6292 = vld [vmem:[#allocation7 + $0x50] sm:$0xff]
  %v6293 = vld [vmem:[#allocation7 + $0x60] sm:$0xff]
  %v6294 = vld [vmem:[#allocation7 + $0x70] sm:$0xff]
  %v6295 = vld [vmem:[#allocation7 + $0xa0] sm:$0xff]
  %v6296 = vld [vmem:[#allocation7 + $0xb0] sm:$0xff]
  %v6297 = vld [vmem:[#allocation7 + $0xc0] sm:$0xff]
  %v6298 = vld [vmem:[#allocation7 + $0xd0] sm:$0xff]
  %v6299 = vld [vmem:[#allocation7 + $0xe0] sm:$0xff]
  %v6300 = vld [vmem:[#allocation7 + $0xf0] sm:$0xff]
  %v6301 = vld [vmem:[#allocation7 + $0x100] sm:$0xff]
  %v6302 = vld [vmem:[#allocation7 + $0x110] sm:$0xff]
  %v6303 = vpack.c.bf16 %v6287, %v6287
  %v6304 = vpack.c.bf16 %v6288, %v6288
  %v6305 = vpack.c.bf16 %v6289, %v6289
  %v6306 = vpack.c.bf16 %v6290, %v6290
  %v6307 = vpack.c.bf16 %v6291, %v6291
  %v6308 = vpack.c.bf16 %v6292, %v6292
  %v6309 = vpack.c.bf16 %v6293, %v6293
  %v6310 = vpack.c.bf16 %v6294, %v6294
  %v6311 = vpack.c.bf16 %v6295, %v6295
  %v6312 = vpack.c.bf16 %v6296, %v6296
  %v6313 = vpack.c.bf16 %v6297, %v6297
  %v6314 = vpack.c.bf16 %v6298, %v6298
  %v6315 = vpack.c.bf16 %v6299, %v6299
  %v6316 = vpack.c.bf16 %v6300, %v6300
  %v6317 = vpack.c.bf16 %v6301, %v6301
  %v6318 = vpack.c.bf16 %v6302, %v6302
  %vm6319 = vcmask 158720
  %6320 = vst.msk [vmem:[#allocation4] sm:$0xf] %vm6319, %v6303
  %6321 = vst.msk [vmem:[#allocation4 + $0x8] sm:$0xf] %vm6319, %v6304
  %6322 = vst.msk [vmem:[#allocation4 + $0x10] sm:$0xf] %vm6319, %v6305
  %6323 = vst.msk [vmem:[#allocation4 + $0x18] sm:$0xf] %vm6319, %v6306
  %6324 = vst.msk [vmem:[#allocation4 + $0x20] sm:$0xf] %vm6319, %v6307
  %6325 = vst.msk [vmem:[#allocation4 + $0x28] sm:$0xf] %vm6319, %v6308
  %6326 = vst.msk [vmem:[#allocation4 + $0x30] sm:$0xf] %vm6319, %v6309
  %6327 = vst.msk [vmem:[#allocation4 + $0x38] sm:$0xf] %vm6319, %v6310
  %6328 = vst.msk [vmem:[#allocation4 + $0x40] sm:$0xf] %vm6319, %v6311
  %6329 = vst.msk [vmem:[#allocation4 + $0x48] sm:$0xf] %vm6319, %v6312
  %6330 = vst.msk [vmem:[#allocation4 + $0x50] sm:$0xf] %vm6319, %v6313
  %6331 = vst.msk [vmem:[#allocation4 + $0x58] sm:$0xf] %vm6319, %v6314
  %6332 = vst.msk [vmem:[#allocation4 + $0x60] sm:$0xf] %vm6319, %v6315
  %6333 = vst.msk [vmem:[#allocation4 + $0x68] sm:$0xf] %vm6319, %v6316
  %6334 = vst.msk [vmem:[#allocation4 + $0x70] sm:$0xf] %vm6319, %v6317
  %6335 = vst.msk [vmem:[#allocation4 + $0x78] sm:$0xf] %vm6319, %v6318
  %v6336 = vld [vmem:[#allocation7 + $0x1] sm:$0xff]
  %v6337 = vld [vmem:[#allocation7 + $0x11] sm:$0xff]
  %v6338 = vld [vmem:[#allocation7 + $0x21] sm:$0xff]
  %v6339 = vld [vmem:[#allocation7 + $0x31] sm:$0xff]
  %v6340 = vld [vmem:[#allocation7 + $0x41] sm:$0xff]
  %v6341 = vld [vmem:[#allocation7 + $0x51] sm:$0xff]
  %v6342 = vld [vmem:[#allocation7 + $0x61] sm:$0xff]
  %v6343 = vld [vmem:[#allocation7 + $0x71] sm:$0xff]
  %v6344 = vld [vmem:[#allocation7 + $0xa1] sm:$0xff]
  %v6345 = vld [vmem:[#allocation7 + $0xb1] sm:$0xff]
  %v6346 = vld [vmem:[#allocation7 + $0xc1] sm:$0xff]
  %v6347 = vld [vmem:[#allocation7 + $0xd1] sm:$0xff]
  %v6348 = vld [vmem:[#allocation7 + $0xe1] sm:$0xff]
  %v6349 = vld [vmem:[#allocation7 + $0xf1] sm:$0xff]
  %v6350 = vld [vmem:[#allocation7 + $0x101] sm:$0xff]
  %v6351 = vld [vmem:[#allocation7 + $0x111] sm:$0xff]
  %v6352 = vpack.c.bf16 %v6336, %v6336
  %v6353 = vpack.c.bf16 %v6337, %v6337
  %v6354 = vpack.c.bf16 %v6338, %v6338
  %v6355 = vpack.c.bf16 %v6339, %v6339
  %v6356 = vpack.c.bf16 %v6340, %v6340
  %v6357 = vpack.c.bf16 %v6341, %v6341
  %v6358 = vpack.c.bf16 %v6342, %v6342
  %v6359 = vpack.c.bf16 %v6343, %v6343
  %v6360 = vpack.c.bf16 %v6344, %v6344
  %v6361 = vpack.c.bf16 %v6345, %v6345
  %v6362 = vpack.c.bf16 %v6346, %v6346
  %v6363 = vpack.c.bf16 %v6347, %v6347
  %v6364 = vpack.c.bf16 %v6348, %v6348
  %v6365 = vpack.c.bf16 %v6349, %v6349
  %v6366 = vpack.c.bf16 %v6350, %v6350
  %v6367 = vpack.c.bf16 %v6351, %v6351
  %6384 = vrot.lane.b32.xlu0 %v6352, 20
  %v6385 = vpop.permute.xlu0 %6384
  %6386 = vrot.lane.b32.xlu0 %v6353, 20
  %v6387 = vpop.permute.xlu0 %6386
  %6388 = vrot.lane.b32.xlu0 %v6354, 20
  %v6389 = vpop.permute.xlu0 %6388
  %6390 = vrot.lane.b32.xlu0 %v6355, 20
  %v6391 = vpop.permute.xlu0 %6390
  %6392 = vrot.lane.b32.xlu0 %v6356, 20
  %v6393 = vpop.permute.xlu0 %6392
  %6394 = vrot.lane.b32.xlu0 %v6357, 20
  %v6395 = vpop.permute.xlu0 %6394
  %6396 = vrot.lane.b32.xlu0 %v6358, 20
  %v6397 = vpop.permute.xlu0 %6396
  %6398 = vrot.lane.b32.xlu0 %v6359, 20
  %v6399 = vpop.permute.xlu0 %6398
  %6400 = vrot.lane.b32.xlu0 %v6360, 20
  %v6401 = vpop.permute.xlu0 %6400
  %6402 = vrot.lane.b32.xlu0 %v6361, 20
  %v6403 = vpop.permute.xlu0 %6402
  %6404 = vrot.lane.b32.xlu0 %v6362, 20
  %v6405 = vpop.permute.xlu0 %6404
  %6406 = vrot.lane.b32.xlu0 %v6363, 20
  %v6407 = vpop.permute.xlu0 %6406
  %6408 = vrot.lane.b32.xlu0 %v6364, 20
  %v6409 = vpop.permute.xlu0 %6408
  %6410 = vrot.lane.b32.xlu0 %v6365, 20
  %v6411 = vpop.permute.xlu0 %6410
  %6412 = vrot.lane.b32.xlu0 %v6366, 20
  %v6413 = vpop.permute.xlu0 %6412
  %6414 = vrot.lane.b32.xlu0 %v6367, 20
  %v6415 = vpop.permute.xlu0 %6414
  %vm6432 = vcmask 322720
  %6433 = vst.msk [vmem:[#allocation4] sm:$0xf] %vm6432, %v6385
  %6434 = vst.msk [vmem:[#allocation4 + $0x8] sm:$0xf] %vm6432, %v6387
  %6435 = vst.msk [vmem:[#allocation4 + $0x10] sm:$0xf] %vm6432, %v6389
  %6436 = vst.msk [vmem:[#allocation4 + $0x18] sm:$0xf] %vm6432, %v6391
  %6437 = vst.msk [vmem:[#allocation4 + $0x20] sm:$0xf] %vm6432, %v6393
  %6438 = vst.msk [vmem:[#allocation4 + $0x28] sm:$0xf] %vm6432, %v6395
  %6439 = vst.msk [vmem:[#allocation4 + $0x30] sm:$0xf] %vm6432, %v6397
  %6440 = vst.msk [vmem:[#allocation4 + $0x38] sm:$0xf] %vm6432, %v6399
  %6441 = vst.msk [vmem:[#allocation4 + $0x40] sm:$0xf] %vm6432, %v6401
  %6442 = vst.msk [vmem:[#allocation4 + $0x48] sm:$0xf] %vm6432, %v6403
  %6443 = vst.msk [vmem:[#allocation4 + $0x50] sm:$0xf] %vm6432, %v6405
  %6444 = vst.msk [vmem:[#allocation4 + $0x58] sm:$0xf] %vm6432, %v6407
  %6445 = vst.msk [vmem:[#allocation4 + $0x60] sm:$0xf] %vm6432, %v6409
  %6446 = vst.msk [vmem:[#allocation4 + $0x68] sm:$0xf] %vm6432, %v6411
  %6447 = vst.msk [vmem:[#allocation4 + $0x70] sm:$0xf] %vm6432, %v6413
  %6448 = vst.msk [vmem:[#allocation4 + $0x78] sm:$0xf] %vm6432, %v6415
  %v6449 = vld [vmem:[#allocation7 + $0x2] sm:$0xff]
  %v6450 = vld [vmem:[#allocation7 + $0x12] sm:$0xff]
  %v6451 = vld [vmem:[#allocation7 + $0x22] sm:$0xff]
  %v6452 = vld [vmem:[#allocation7 + $0x32] sm:$0xff]
  %v6453 = vld [vmem:[#allocation7 + $0x42] sm:$0xff]
  %v6454 = vld [vmem:[#allocation7 + $0x52] sm:$0xff]
  %v6455 = vld [vmem:[#allocation7 + $0x62] sm:$0xff]
  %v6456 = vld [vmem:[#allocation7 + $0x72] sm:$0xff]
  %v6457 = vld [vmem:[#allocation7 + $0xa2] sm:$0xff]
  %v6458 = vld [vmem:[#allocation7 + $0xb2] sm:$0xff]
  %v6459 = vld [vmem:[#allocation7 + $0xc2] sm:$0xff]
  %v6460 = vld [vmem:[#allocation7 + $0xd2] sm:$0xff]
  %v6461 = vld [vmem:[#allocation7 + $0xe2] sm:$0xff]
  %v6462 = vld [vmem:[#allocation7 + $0xf2] sm:$0xff]
  %v6463 = vld [vmem:[#allocation7 + $0x102] sm:$0xff]
  %v6464 = vld [vmem:[#allocation7 + $0x112] sm:$0xff]
  %v6465 = vpack.c.bf16 %v6449, %v6449
  %v6466 = vpack.c.bf16 %v6450, %v6450
  %v6467 = vpack.c.bf16 %v6451, %v6451
  %v6468 = vpack.c.bf16 %v6452, %v6452
  %v6469 = vpack.c.bf16 %v6453, %v6453
  %v6470 = vpack.c.bf16 %v6454, %v6454
  %v6471 = vpack.c.bf16 %v6455, %v6455
  %v6472 = vpack.c.bf16 %v6456, %v6456
  %v6473 = vpack.c.bf16 %v6457, %v6457
  %v6474 = vpack.c.bf16 %v6458, %v6458
  %v6475 = vpack.c.bf16 %v6459, %v6459
  %v6476 = vpack.c.bf16 %v6460, %v6460
  %v6477 = vpack.c.bf16 %v6461, %v6461
  %v6478 = vpack.c.bf16 %v6462, %v6462
  %v6479 = vpack.c.bf16 %v6463, %v6463
  %v6480 = vpack.c.bf16 %v6464, %v6464
  %6497 = vrot.lane.b32.xlu0 %v6465, 40
  %v6498 = vpop.permute.xlu0 %6497
  %6499 = vrot.lane.b32.xlu0 %v6466, 40
  %v6500 = vpop.permute.xlu0 %6499
  %6501 = vrot.lane.b32.xlu0 %v6467, 40
  %v6502 = vpop.permute.xlu0 %6501
  %6503 = vrot.lane.b32.xlu0 %v6468, 40
  %v6504 = vpop.permute.xlu0 %6503
  %6505 = vrot.lane.b32.xlu0 %v6469, 40
  %v6506 = vpop.permute.xlu0 %6505
  %6507 = vrot.lane.b32.xlu0 %v6470, 40
  %v6508 = vpop.permute.xlu0 %6507
  %6509 = vrot.lane.b32.xlu0 %v6471, 40
  %v6510 = vpop.permute.xlu0 %6509
  %6511 = vrot.lane.b32.xlu0 %v6472, 40
  %v6512 = vpop.permute.xlu0 %6511
  %6513 = vrot.lane.b32.xlu0 %v6473, 40
  %v6514 = vpop.permute.xlu0 %6513
  %6515 = vrot.lane.b32.xlu0 %v6474, 40
  %v6516 = vpop.permute.xlu0 %6515
  %6517 = vrot.lane.b32.xlu0 %v6475, 40
  %v6518 = vpop.permute.xlu0 %6517
  %6519 = vrot.lane.b32.xlu0 %v6476, 40
  %v6520 = vpop.permute.xlu0 %6519
  %6521 = vrot.lane.b32.xlu0 %v6477, 40
  %v6522 = vpop.permute.xlu0 %6521
  %6523 = vrot.lane.b32.xlu0 %v6478, 40
  %v6524 = vpop.permute.xlu0 %6523
  %6525 = vrot.lane.b32.xlu0 %v6479, 40
  %v6526 = vpop.permute.xlu0 %6525
  %6527 = vrot.lane.b32.xlu0 %v6480, 40
  %v6528 = vpop.permute.xlu0 %6527
  %vm6545 = vcmask 486720
  %6546 = vst.msk [vmem:[#allocation4] sm:$0xf] %vm6545, %v6498
  %6547 = vst.msk [vmem:[#allocation4 + $0x8] sm:$0xf] %vm6545, %v6500
  %6548 = vst.msk [vmem:[#allocation4 + $0x10] sm:$0xf] %vm6545, %v6502
  %6549 = vst.msk [vmem:[#allocation4 + $0x18] sm:$0xf] %vm6545, %v6504
  %6550 = vst.msk [vmem:[#allocation4 + $0x20] sm:$0xf] %vm6545, %v6506
  %6551 = vst.msk [vmem:[#allocation4 + $0x28] sm:$0xf] %vm6545, %v6508
  %6552 = vst.msk [vmem:[#allocation4 + $0x30] sm:$0xf] %vm6545, %v6510
  %6553 = vst.msk [vmem:[#allocation4 + $0x38] sm:$0xf] %vm6545, %v6512
  %6554 = vst.msk [vmem:[#allocation4 + $0x40] sm:$0xf] %vm6545, %v6514
  %6555 = vst.msk [vmem:[#allocation4 + $0x48] sm:$0xf] %vm6545, %v6516
  %6556 = vst.msk [vmem:[#allocation4 + $0x50] sm:$0xf] %vm6545, %v6518
  %6557 = vst.msk [vmem:[#allocation4 + $0x58] sm:$0xf] %vm6545, %v6520
  %6558 = vst.msk [vmem:[#allocation4 + $0x60] sm:$0xf] %vm6545, %v6522
  %6559 = vst.msk [vmem:[#allocation4 + $0x68] sm:$0xf] %vm6545, %v6524
  %6560 = vst.msk [vmem:[#allocation4 + $0x70] sm:$0xf] %vm6545, %v6526
  %6561 = vst.msk [vmem:[#allocation4 + $0x78] sm:$0xf] %vm6545, %v6528
  %v6562 = vld [vmem:[%s6270] sm:$0xff]
  %v6563 = vld [vmem:[%s6270 + $0x10] sm:$0xff]
  %v6564 = vld [vmem:[%s6270 + $0x20] sm:$0xff]
  %v6565 = vld [vmem:[%s6270 + $0x30] sm:$0xff]
  %v6566 = vld [vmem:[%s6270 + $0x40] sm:$0xff]
  %v6567 = vld [vmem:[%s6270 + $0x50] sm:$0xff]
  %v6568 = vld [vmem:[%s6270 + $0x60] sm:$0xff]
  %v6569 = vld [vmem:[%s6270 + $0x70] sm:$0xff]
  %v6570 = vld [vmem:[%s6270 + $0xa0] sm:$0xff]
  %v6571 = vld [vmem:[%s6270 + $0xb0] sm:$0xff]
  %v6572 = vld [vmem:[%s6270 + $0xc0] sm:$0xff]
  %v6573 = vld [vmem:[%s6270 + $0xd0] sm:$0xff]
  %v6574 = vld [vmem:[%s6270 + $0xe0] sm:$0xff]
  %v6575 = vld [vmem:[%s6270 + $0xf0] sm:$0xff]
  %v6576 = vld [vmem:[%s6270 + $0x100] sm:$0xff]
  %v6577 = vld [vmem:[%s6270 + $0x110] sm:$0xff]
  %v6578 = vpack.c.bf16 %v6562, %v6562
  %v6579 = vpack.c.bf16 %v6563, %v6563
  %v6580 = vpack.c.bf16 %v6564, %v6564
  %v6581 = vpack.c.bf16 %v6565, %v6565
  %v6582 = vpack.c.bf16 %v6566, %v6566
  %v6583 = vpack.c.bf16 %v6567, %v6567
  %v6584 = vpack.c.bf16 %v6568, %v6568
  %v6585 = vpack.c.bf16 %v6569, %v6569
  %v6586 = vpack.c.bf16 %v6570, %v6570
  %v6587 = vpack.c.bf16 %v6571, %v6571
  %v6588 = vpack.c.bf16 %v6572, %v6572
  %v6589 = vpack.c.bf16 %v6573, %v6573
  %v6590 = vpack.c.bf16 %v6574, %v6574
  %v6591 = vpack.c.bf16 %v6575, %v6575
  %v6592 = vpack.c.bf16 %v6576, %v6576
  %v6593 = vpack.c.bf16 %v6577, %v6577
  %6610 = vrot.lane.b32.xlu0 %v6578, 60
  %v6611 = vpop.permute.xlu0 %6610
  %6612 = vrot.lane.b32.xlu0 %v6579, 60
  %v6613 = vpop.permute.xlu0 %6612
  %6614 = vrot.lane.b32.xlu0 %v6580, 60
  %v6615 = vpop.permute.xlu0 %6614
  %6616 = vrot.lane.b32.xlu0 %v6581, 60
  %v6617 = vpop.permute.xlu0 %6616
  %6618 = vrot.lane.b32.xlu0 %v6582, 60
  %v6619 = vpop.permute.xlu0 %6618
  %6620 = vrot.lane.b32.xlu0 %v6583, 60
  %v6621 = vpop.permute.xlu0 %6620
  %6622 = vrot.lane.b32.xlu0 %v6584, 60
  %v6623 = vpop.permute.xlu0 %6622
  %6624 = vrot.lane.b32.xlu0 %v6585, 60
  %v6625 = vpop.permute.xlu0 %6624
  %6626 = vrot.lane.b32.xlu0 %v6586, 60
  %v6627 = vpop.permute.xlu0 %6626
  %6628 = vrot.lane.b32.xlu0 %v6587, 60
  %v6629 = vpop.permute.xlu0 %6628
  %6630 = vrot.lane.b32.xlu0 %v6588, 60
  %v6631 = vpop.permute.xlu0 %6630
  %6632 = vrot.lane.b32.xlu0 %v6589, 60
  %v6633 = vpop.permute.xlu0 %6632
  %6634 = vrot.lane.b32.xlu0 %v6590, 60
  %v6635 = vpop.permute.xlu0 %6634
  %6636 = vrot.lane.b32.xlu0 %v6591, 60
  %v6637 = vpop.permute.xlu0 %6636
  %6638 = vrot.lane.b32.xlu0 %v6592, 60
  %v6639 = vpop.permute.xlu0 %6638
  %6640 = vrot.lane.b32.xlu0 %v6593, 60
  %v6641 = vpop.permute.xlu0 %6640
  %vm6658 = vcmask 650720
  %6659 = vst.msk [vmem:[#allocation4] sm:$0xf] %vm6658, %v6611
  %6660 = vst.msk [vmem:[#allocation4 + $0x8] sm:$0xf] %vm6658, %v6613
  %6661 = vst.msk [vmem:[#allocation4 + $0x10] sm:$0xf] %vm6658, %v6615
  %6662 = vst.msk [vmem:[#allocation4 + $0x18] sm:$0xf] %vm6658, %v6617
  %6663 = vst.msk [vmem:[#allocation4 + $0x20] sm:$0xf] %vm6658, %v6619
  %6664 = vst.msk [vmem:[#allocation4 + $0x28] sm:$0xf] %vm6658, %v6621
  %6665 = vst.msk [vmem:[#allocation4 + $0x30] sm:$0xf] %vm6658, %v6623
  %6666 = vst.msk [vmem:[#allocation4 + $0x38] sm:$0xf] %vm6658, %v6625
  %6667 = vst.msk [vmem:[#allocation4 + $0x40] sm:$0xf] %vm6658, %v6627
  %6668 = vst.msk [vmem:[#allocation4 + $0x48] sm:$0xf] %vm6658, %v6629
  %6669 = vst.msk [vmem:[#allocation4 + $0x50] sm:$0xf] %vm6658, %v6631
  %6670 = vst.msk [vmem:[#allocation4 + $0x58] sm:$0xf] %vm6658, %v6633
  %6671 = vst.msk [vmem:[#allocation4 + $0x60] sm:$0xf] %vm6658, %v6635
  %6672 = vst.msk [vmem:[#allocation4 + $0x68] sm:$0xf] %vm6658, %v6637
  %6673 = vst.msk [vmem:[#allocation4 + $0x70] sm:$0xf] %vm6658, %v6639
  %6674 = vst.msk [vmem:[#allocation4 + $0x78] sm:$0xf] %vm6658, %v6641
  %v6675 = vld [vmem:[%s6270 + $0x1] sm:$0xff]
  %v6676 = vld [vmem:[%s6270 + $0x11] sm:$0xff]
  %v6677 = vld [vmem:[%s6270 + $0x21] sm:$0xff]
  %v6678 = vld [vmem:[%s6270 + $0x31] sm:$0xff]
  %v6679 = vld [vmem:[%s6270 + $0x41] sm:$0xff]
  %v6680 = vld [vmem:[%s6270 + $0x51] sm:$0xff]
  %v6681 = vld [vmem:[%s6270 + $0x61] sm:$0xff]
  %v6682 = vld [vmem:[%s6270 + $0x71] sm:$0xff]
  %v6683 = vld [vmem:[%s6270 + $0xa1] sm:$0xff]
  %v6684 = vld [vmem:[%s6270 + $0xb1] sm:$0xff]
  %v6685 = vld [vmem:[%s6270 + $0xc1] sm:$0xff]
  %v6686 = vld [vmem:[%s6270 + $0xd1] sm:$0xff]
  %v6687 = vld [vmem:[%s6270 + $0xe1] sm:$0xff]
  %v6688 = vld [vmem:[%s6270 + $0xf1] sm:$0xff]
  %v6689 = vld [vmem:[%s6270 + $0x101] sm:$0xff]
  %v6690 = vld [vmem:[%s6270 + $0x111] sm:$0xff]
  %v6691 = vpack.c.bf16 %v6675, %v6675
  %v6692 = vpack.c.bf16 %v6676, %v6676
  %v6693 = vpack.c.bf16 %v6677, %v6677
  %v6694 = vpack.c.bf16 %v6678, %v6678
  %v6695 = vpack.c.bf16 %v6679, %v6679
  %v6696 = vpack.c.bf16 %v6680, %v6680
  %v6697 = vpack.c.bf16 %v6681, %v6681
  %v6698 = vpack.c.bf16 %v6682, %v6682
  %v6699 = vpack.c.bf16 %v6683, %v6683
  %v6700 = vpack.c.bf16 %v6684, %v6684
  %v6701 = vpack.c.bf16 %v6685, %v6685
  %v6702 = vpack.c.bf16 %v6686, %v6686
  %v6703 = vpack.c.bf16 %v6687, %v6687
  %v6704 = vpack.c.bf16 %v6688, %v6688
  %v6705 = vpack.c.bf16 %v6689, %v6689
  %v6706 = vpack.c.bf16 %v6690, %v6690
  %6723 = vrot.lane.b32.xlu0 %v6691, 80
  %v6724 = vpop.permute.xlu0 %6723
  %6725 = vrot.lane.b32.xlu0 %v6692, 80
  %v6726 = vpop.permute.xlu0 %6725
  %6727 = vrot.lane.b32.xlu0 %v6693, 80
  %v6728 = vpop.permute.xlu0 %6727
  %6729 = vrot.lane.b32.xlu0 %v6694, 80
  %v6730 = vpop.permute.xlu0 %6729
  %6731 = vrot.lane.b32.xlu0 %v6695, 80
  %v6732 = vpop.permute.xlu0 %6731
  %6733 = vrot.lane.b32.xlu0 %v6696, 80
  %v6734 = vpop.permute.xlu0 %6733
  %6735 = vrot.lane.b32.xlu0 %v6697, 80
  %v6736 = vpop.permute.xlu0 %6735
  %6737 = vrot.lane.b32.xlu0 %v6698, 80
  %v6738 = vpop.permute.xlu0 %6737
  %6739 = vrot.lane.b32.xlu0 %v6699, 80
  %v6740 = vpop.permute.xlu0 %6739
  %6741 = vrot.lane.b32.xlu0 %v6700, 80
  %v6742 = vpop.permute.xlu0 %6741
  %6743 = vrot.lane.b32.xlu0 %v6701, 80
  %v6744 = vpop.permute.xlu0 %6743
  %6745 = vrot.lane.b32.xlu0 %v6702, 80
  %v6746 = vpop.permute.xlu0 %6745
  %6747 = vrot.lane.b32.xlu0 %v6703, 80
  %v6748 = vpop.permute.xlu0 %6747
  %6749 = vrot.lane.b32.xlu0 %v6704, 80
  %v6750 = vpop.permute.xlu0 %6749
  %6751 = vrot.lane.b32.xlu0 %v6705, 80
  %v6752 = vpop.permute.xlu0 %6751
  %6753 = vrot.lane.b32.xlu0 %v6706, 80
  %v6754 = vpop.permute.xlu0 %6753
  %vm6771 = vcmask 814720
  %6772 = vst.msk [vmem:[#allocation4] sm:$0xf] %vm6771, %v6724
  %6773 = vst.msk [vmem:[#allocation4 + $0x8] sm:$0xf] %vm6771, %v6726
  %6774 = vst.msk [vmem:[#allocation4 + $0x10] sm:$0xf] %vm6771, %v6728
  %6775 = vst.msk [vmem:[#allocation4 + $0x18] sm:$0xf] %vm6771, %v6730
  %6776 = vst.msk [vmem:[#allocation4 + $0x20] sm:$0xf] %vm6771, %v6732
  %6777 = vst.msk [vmem:[#allocation4 + $0x28] sm:$0xf] %vm6771, %v6734
  %6778 = vst.msk [vmem:[#allocation4 + $0x30] sm:$0xf] %vm6771, %v6736
  %6779 = vst.msk [vmem:[#allocation4 + $0x38] sm:$0xf] %vm6771, %v6738
  %6780 = vst.msk [vmem:[#allocation4 + $0x40] sm:$0xf] %vm6771, %v6740
  %6781 = vst.msk [vmem:[#allocation4 + $0x48] sm:$0xf] %vm6771, %v6742
  %6782 = vst.msk [vmem:[#allocation4 + $0x50] sm:$0xf] %vm6771, %v6744
  %6783 = vst.msk [vmem:[#allocation4 + $0x58] sm:$0xf] %vm6771, %v6746
  %6784 = vst.msk [vmem:[#allocation4 + $0x60] sm:$0xf] %vm6771, %v6748
  %6785 = vst.msk [vmem:[#allocation4 + $0x68] sm:$0xf] %vm6771, %v6750
  %6786 = vst.msk [vmem:[#allocation4 + $0x70] sm:$0xf] %vm6771, %v6752
  %6787 = vst.msk [vmem:[#allocation4 + $0x78] sm:$0xf] %vm6771, %v6754
  %v6788 = vld [vmem:[%s6270 + $0x2] sm:$0xff]
  %v6789 = vld [vmem:[%s6270 + $0x12] sm:$0xff]
  %v6790 = vld [vmem:[%s6270 + $0x22] sm:$0xff]
  %v6791 = vld [vmem:[%s6270 + $0x32] sm:$0xff]
  %v6792 = vld [vmem:[%s6270 + $0x42] sm:$0xff]
  %v6793 = vld [vmem:[%s6270 + $0x52] sm:$0xff]
  %v6794 = vld [vmem:[%s6270 + $0x62] sm:$0xff]
  %v6795 = vld [vmem:[%s6270 + $0x72] sm:$0xff]
  %v6796 = vld [vmem:[%s6270 + $0xa2] sm:$0xff]
  %v6797 = vld [vmem:[%s6270 + $0xb2] sm:$0xff]
  %v6798 = vld [vmem:[%s6270 + $0xc2] sm:$0xff]
  %v6799 = vld [vmem:[%s6270 + $0xd2] sm:$0xff]
  %v6800 = vld [vmem:[%s6270 + $0xe2] sm:$0xff]
  %v6801 = vld [vmem:[%s6270 + $0xf2] sm:$0xff]
  %v6802 = vld [vmem:[%s6270 + $0x102] sm:$0xff]
  %v6803 = vld [vmem:[%s6270 + $0x112] sm:$0xff]
  %v6804 = vpack.c.bf16 %v6788, %v6788
  %v6805 = vpack.c.bf16 %v6789, %v6789
  %v6806 = vpack.c.bf16 %v6790, %v6790
  %v6807 = vpack.c.bf16 %v6791, %v6791
  %v6808 = vpack.c.bf16 %v6792, %v6792
  %v6809 = vpack.c.bf16 %v6793, %v6793
  %v6810 = vpack.c.bf16 %v6794, %v6794
  %v6811 = vpack.c.bf16 %v6795, %v6795
  %v6812 = vpack.c.bf16 %v6796, %v6796
  %v6813 = vpack.c.bf16 %v6797, %v6797
  %v6814 = vpack.c.bf16 %v6798, %v6798
  %v6815 = vpack.c.bf16 %v6799, %v6799
  %v6816 = vpack.c.bf16 %v6800, %v6800
  %v6817 = vpack.c.bf16 %v6801, %v6801
  %v6818 = vpack.c.bf16 %v6802, %v6802
  %v6819 = vpack.c.bf16 %v6803, %v6803
  %6836 = vrot.lane.b32.xlu0 %v6804, 100
  %v6837 = vpop.permute.xlu0 %6836
  %6838 = vrot.lane.b32.xlu0 %v6805, 100
  %v6839 = vpop.permute.xlu0 %6838
  %6840 = vrot.lane.b32.xlu0 %v6806, 100
  %v6841 = vpop.permute.xlu0 %6840
  %6842 = vrot.lane.b32.xlu0 %v6807, 100
  %v6843 = vpop.permute.xlu0 %6842
  %6844 = vrot.lane.b32.xlu0 %v6808, 100
  %v6845 = vpop.permute.xlu0 %6844
  %6846 = vrot.lane.b32.xlu0 %v6809, 100
  %v6847 = vpop.permute.xlu0 %6846
  %6848 = vrot.lane.b32.xlu0 %v6810, 100
  %v6849 = vpop.permute.xlu0 %6848
  %6850 = vrot.lane.b32.xlu0 %v6811, 100
  %v6851 = vpop.permute.xlu0 %6850
  %6852 = vrot.lane.b32.xlu0 %v6812, 100
  %v6853 = vpop.permute.xlu0 %6852
  %6854 = vrot.lane.b32.xlu0 %v6813, 100
  %v6855 = vpop.permute.xlu0 %6854
  %6856 = vrot.lane.b32.xlu0 %v6814, 100
  %v6857 = vpop.permute.xlu0 %6856
  %6858 = vrot.lane.b32.xlu0 %v6815, 100
  %v6859 = vpop.permute.xlu0 %6858
  %6860 = vrot.lane.b32.xlu0 %v6816, 100
  %v6861 = vpop.permute.xlu0 %6860
  %6862 = vrot.lane.b32.xlu0 %v6817, 100
  %v6863 = vpop.permute.xlu0 %6862
  %6864 = vrot.lane.b32.xlu0 %v6818, 100
  %v6865 = vpop.permute.xlu0 %6864
  %6866 = vrot.lane.b32.xlu0 %v6819, 100
  %v6867 = vpop.permute.xlu0 %6866
  %vm6884 = vcmask 978720
  %6885 = vst.msk [vmem:[#allocation4] sm:$0xf] %vm6884, %v6837
  %6886 = vst.msk [vmem:[#allocation4 + $0x8] sm:$0xf] %vm6884, %v6839
  %6887 = vst.msk [vmem:[#allocation4 + $0x10] sm:$0xf] %vm6884, %v6841
  %6888 = vst.msk [vmem:[#allocation4 + $0x18] sm:$0xf] %vm6884, %v6843
  %6889 = vst.msk [vmem:[#allocation4 + $0x20] sm:$0xf] %vm6884, %v6845
  %6890 = vst.msk [vmem:[#allocation4 + $0x28] sm:$0xf] %vm6884, %v6847
  %6891 = vst.msk [vmem:[#allocation4 + $0x30] sm:$0xf] %vm6884, %v6849
  %6892 = vst.msk [vmem:[#allocation4 + $0x38] sm:$0xf] %vm6884, %v6851
  %6893 = vst.msk [vmem:[#allocation4 + $0x40] sm:$0xf] %vm6884, %v6853
  %6894 = vst.msk [vmem:[#allocation4 + $0x48] sm:$0xf] %vm6884, %v6855
  %6895 = vst.msk [vmem:[#allocation4 + $0x50] sm:$0xf] %vm6884, %v6857
  %6896 = vst.msk [vmem:[#allocation4 + $0x58] sm:$0xf] %vm6884, %v6859
  %6897 = vst.msk [vmem:[#allocation4 + $0x60] sm:$0xf] %vm6884, %v6861
  %6898 = vst.msk [vmem:[#allocation4 + $0x68] sm:$0xf] %vm6884, %v6863
  %6899 = vst.msk [vmem:[#allocation4 + $0x70] sm:$0xf] %vm6884, %v6865
  %6900 = vst.msk [vmem:[#allocation4 + $0x78] sm:$0xf] %vm6884, %v6867
  %s6901 = scalar_lea.vmem [#allocation7], 32
  %v6902 = vld [vmem:[%s6901] sm:$0xff]
  %v6903 = vld [vmem:[%s6901 + $0x10] sm:$0xff]
  %v6904 = vld [vmem:[%s6901 + $0x20] sm:$0xff]
  %v6905 = vld [vmem:[%s6901 + $0x30] sm:$0xff]
  %v6906 = vld [vmem:[%s6901 + $0x40] sm:$0xff]
  %v6907 = vld [vmem:[%s6901 + $0x50] sm:$0xff]
  %v6908 = vld [vmem:[%s6901 + $0x60] sm:$0xff]
  %v6909 = vld [vmem:[%s6901 + $0x70] sm:$0xff]
  %v6910 = vld [vmem:[%s6901 + $0xa0] sm:$0xff]
  %v6911 = vld [vmem:[%s6901 + $0xb0] sm:$0xff]
  %v6912 = vld [vmem:[%s6901 + $0xc0] sm:$0xff]
  %v6913 = vld [vmem:[%s6901 + $0xd0] sm:$0xff]
  %v6914 = vld [vmem:[%s6901 + $0xe0] sm:$0xff]
  %v6915 = vld [vmem:[%s6901 + $0xf0] sm:$0xff]
  %v6916 = vld [vmem:[%s6901 + $0x100] sm:$0xff]
  %v6917 = vld [vmem:[%s6901 + $0x110] sm:$0xff]
  %v6918 = vpack.c.bf16 %v6902, %v6902
  %v6919 = vpack.c.bf16 %v6903, %v6903
  %v6920 = vpack.c.bf16 %v6904, %v6904
  %v6921 = vpack.c.bf16 %v6905, %v6905
  %v6922 = vpack.c.bf16 %v6906, %v6906
  %v6923 = vpack.c.bf16 %v6907, %v6907
  %v6924 = vpack.c.bf16 %v6908, %v6908
  %v6925 = vpack.c.bf16 %v6909, %v6909
  %v6926 = vpack.c.bf16 %v6910, %v6910
  %v6927 = vpack.c.bf16 %v6911, %v6911
  %v6928 = vpack.c.bf16 %v6912, %v6912
  %v6929 = vpack.c.bf16 %v6913, %v6913
  %v6930 = vpack.c.bf16 %v6914, %v6914
  %v6931 = vpack.c.bf16 %v6915, %v6915
  %v6932 = vpack.c.bf16 %v6916, %v6916
  %v6933 = vpack.c.bf16 %v6917, %v6917
  %6950 = vrot.lane.b32.xlu0 %v6918, 120
  %v6951 = vpop.permute.xlu0 %6950
  %6952 = vrot.lane.b32.xlu0 %v6919, 120
  %v6953 = vpop.permute.xlu0 %6952
  %6954 = vrot.lane.b32.xlu0 %v6920, 120
  %v6955 = vpop.permute.xlu0 %6954
  %6956 = vrot.lane.b32.xlu0 %v6921, 120
  %v6957 = vpop.permute.xlu0 %6956
  %6958 = vrot.lane.b32.xlu0 %v6922, 120
  %v6959 = vpop.permute.xlu0 %6958
  %6960 = vrot.lane.b32.xlu0 %v6923, 120
  %v6961 = vpop.permute.xlu0 %6960
  %6962 = vrot.lane.b32.xlu0 %v6924, 120
  %v6963 = vpop.permute.xlu0 %6962
  %6964 = vrot.lane.b32.xlu0 %v6925, 120
  %v6965 = vpop.permute.xlu0 %6964
  %6966 = vrot.lane.b32.xlu0 %v6926, 120
  %v6967 = vpop.permute.xlu0 %6966
  %6968 = vrot.lane.b32.xlu0 %v6927, 120
  %v6969 = vpop.permute.xlu0 %6968
  %6970 = vrot.lane.b32.xlu0 %v6928, 120
  %v6971 = vpop.permute.xlu0 %6970
  %6972 = vrot.lane.b32.xlu0 %v6929, 120
  %v6973 = vpop.permute.xlu0 %6972
  %6974 = vrot.lane.b32.xlu0 %v6930, 120
  %v6975 = vpop.permute.xlu0 %6974
  %6976 = vrot.lane.b32.xlu0 %v6931, 120
  %v6977 = vpop.permute.xlu0 %6976
  %6978 = vrot.lane.b32.xlu0 %v6932, 120
  %v6979 = vpop.permute.xlu0 %6978
  %6980 = vrot.lane.b32.xlu0 %v6933, 120
  %v6981 = vpop.permute.xlu0 %6980
  %v6982 = vrot.slane %v6951, 4
  %v6983 = vrot.slane %v6953, 4
  %v6984 = vrot.slane %v6955, 4
  %v6985 = vrot.slane %v6957, 4
  %v6986 = vrot.slane %v6959, 4
  %v6987 = vrot.slane %v6961, 4
  %v6988 = vrot.slane %v6963, 4
  %v6989 = vrot.slane %v6965, 4
  %v6990 = vrot.slane %v6967, 4
  %v6991 = vrot.slane %v6969, 4
  %v6992 = vrot.slane %v6971, 4
  %v6993 = vrot.slane %v6973, 4
  %v6994 = vrot.slane %v6975, 4
  %v6995 = vrot.slane %v6977, 4
  %v6996 = vrot.slane %v6979, 4
  %v6997 = vrot.slane %v6981, 4
  %vm6998 = vcmask 982016
  %v6999 = vsel %vm6998, %v6982, %v6951
  %v7000 = vsel %vm6998, %v6983, %v6953
  %v7001 = vsel %vm6998, %v6984, %v6955
  %v7002 = vsel %vm6998, %v6985, %v6957
  %v7003 = vsel %vm6998, %v6986, %v6959
  %v7004 = vsel %vm6998, %v6987, %v6961
  %v7005 = vsel %vm6998, %v6988, %v6963
  %v7006 = vsel %vm6998, %v6989, %v6965
  %v7007 = vsel %vm6998, %v6990, %v6967
  %v7008 = vsel %vm6998, %v6991, %v6969
  %v7009 = vsel %vm6998, %v6992, %v6971
  %v7010 = vsel %vm6998, %v6993, %v6973
  %v7011 = vsel %vm6998, %v6994, %v6975
  %v7012 = vsel %vm6998, %v6995, %v6977
  %v7013 = vsel %vm6998, %v6996, %v6979
  %v7014 = vsel %vm6998, %v6997, %v6981
  %vm7031 = vcmask 1044416
  %vm7032 = vcmask 97284
  %vm7033 = vmor %vm7032, %vm7031
  %7034 = vst.msk [vmem:[#allocation4] sm:$0xff] %vm7033, %v6999
  %7035 = vst.msk [vmem:[#allocation4 + $0x8] sm:$0xff] %vm7033, %v7000
  %7036 = vst.msk [vmem:[#allocation4 + $0x10] sm:$0xff] %vm7033, %v7001
  %7037 = vst.msk [vmem:[#allocation4 + $0x18] sm:$0xff] %vm7033, %v7002
  %7038 = vst.msk [vmem:[#allocation4 + $0x20] sm:$0xff] %vm7033, %v7003
  %7039 = vst.msk [vmem:[#allocation4 + $0x28] sm:$0xff] %vm7033, %v7004
  %7040 = vst.msk [vmem:[#allocation4 + $0x30] sm:$0xff] %vm7033, %v7005
  %7041 = vst.msk [vmem:[#allocation4 + $0x38] sm:$0xff] %vm7033, %v7006
  %7042 = vst.msk [vmem:[#allocation4 + $0x40] sm:$0xff] %vm7033, %v7007
  %7043 = vst.msk [vmem:[#allocation4 + $0x48] sm:$0xff] %vm7033, %v7008
  %7044 = vst.msk [vmem:[#allocation4 + $0x50] sm:$0xff] %vm7033, %v7009
  %7045 = vst.msk [vmem:[#allocation4 + $0x58] sm:$0xff] %vm7033, %v7010
  %7046 = vst.msk [vmem:[#allocation4 + $0x60] sm:$0xff] %vm7033, %v7011
  %7047 = vst.msk [vmem:[#allocation4 + $0x68] sm:$0xff] %vm7033, %v7012
  %7048 = vst.msk [vmem:[#allocation4 + $0x70] sm:$0xff] %vm7033, %v7013
  %7049 = vst.msk [vmem:[#allocation4 + $0x78] sm:$0xff] %vm7033, %v7014
  %v7050 = vld [vmem:[%s6901 + $0x1] sm:$0xff]
  %v7051 = vld [vmem:[%s6901 + $0x11] sm:$0xff]
  %v7052 = vld [vmem:[%s6901 + $0x21] sm:$0xff]
  %v7053 = vld [vmem:[%s6901 + $0x31] sm:$0xff]
  %v7054 = vld [vmem:[%s6901 + $0x41] sm:$0xff]
  %v7055 = vld [vmem:[%s6901 + $0x51] sm:$0xff]
  %v7056 = vld [vmem:[%s6901 + $0x61] sm:$0xff]
  %v7057 = vld [vmem:[%s6901 + $0x71] sm:$0xff]
  %v7058 = vld [vmem:[%s6901 + $0xa1] sm:$0xff]
  %v7059 = vld [vmem:[%s6901 + $0xb1] sm:$0xff]
  %v7060 = vld [vmem:[%s6901 + $0xc1] sm:$0xff]
  %v7061 = vld [vmem:[%s6901 + $0xd1] sm:$0xff]
  %v7062 = vld [vmem:[%s6901 + $0xe1] sm:$0xff]
  %v7063 = vld [vmem:[%s6901 + $0xf1] sm:$0xff]
  %v7064 = vld [vmem:[%s6901 + $0x101] sm:$0xff]
  %v7065 = vld [vmem:[%s6901 + $0x111] sm:$0xff]
  %v7066 = vpack.c.bf16 %v7050, %v7050
  %v7067 = vpack.c.bf16 %v7051, %v7051
  %v7068 = vpack.c.bf16 %v7052, %v7052
  %v7069 = vpack.c.bf16 %v7053, %v7053
  %v7070 = vpack.c.bf16 %v7054, %v7054
  %v7071 = vpack.c.bf16 %v7055, %v7055
  %v7072 = vpack.c.bf16 %v7056, %v7056
  %v7073 = vpack.c.bf16 %v7057, %v7057
  %v7074 = vpack.c.bf16 %v7058, %v7058
  %v7075 = vpack.c.bf16 %v7059, %v7059
  %v7076 = vpack.c.bf16 %v7060, %v7060
  %v7077 = vpack.c.bf16 %v7061, %v7061
  %v7078 = vpack.c.bf16 %v7062, %v7062
  %v7079 = vpack.c.bf16 %v7063, %v7063
  %v7080 = vpack.c.bf16 %v7064, %v7064
  %v7081 = vpack.c.bf16 %v7065, %v7065
  %7098 = vrot.lane.b32.xlu0 %v7066, 12
  %v7099 = vpop.permute.xlu0 %7098
  %7100 = vrot.lane.b32.xlu0 %v7067, 12
  %v7101 = vpop.permute.xlu0 %7100
  %7102 = vrot.lane.b32.xlu0 %v7068, 12
  %v7103 = vpop.permute.xlu0 %7102
  %7104 = vrot.lane.b32.xlu0 %v7069, 12
  %v7105 = vpop.permute.xlu0 %7104
  %7106 = vrot.lane.b32.xlu0 %v7070, 12
  %v7107 = vpop.permute.xlu0 %7106
  %7108 = vrot.lane.b32.xlu0 %v7071, 12
  %v7109 = vpop.permute.xlu0 %7108
  %7110 = vrot.lane.b32.xlu0 %v7072, 12
  %v7111 = vpop.permute.xlu0 %7110
  %7112 = vrot.lane.b32.xlu0 %v7073, 12
  %v7113 = vpop.permute.xlu0 %7112
  %7114 = vrot.lane.b32.xlu0 %v7074, 12
  %v7115 = vpop.permute.xlu0 %7114
  %7116 = vrot.lane.b32.xlu0 %v7075, 12
  %v7117 = vpop.permute.xlu0 %7116
  %7118 = vrot.lane.b32.xlu0 %v7076, 12
  %v7119 = vpop.permute.xlu0 %7118
  %7120 = vrot.lane.b32.xlu0 %v7077, 12
  %v7121 = vpop.permute.xlu0 %7120
  %7122 = vrot.lane.b32.xlu0 %v7078, 12
  %v7123 = vpop.permute.xlu0 %7122
  %7124 = vrot.lane.b32.xlu0 %v7079, 12
  %v7125 = vpop.permute.xlu0 %7124
  %7126 = vrot.lane.b32.xlu0 %v7080, 12
  %v7127 = vpop.permute.xlu0 %7126
  %7128 = vrot.lane.b32.xlu0 %v7081, 12
  %v7129 = vpop.permute.xlu0 %7128
  %vm7146 = vcmask 257120
  %7147 = vst.msk [vmem:[#allocation4 + $0x4] sm:$0xf] %vm7146, %v7099
  %7148 = vst.msk [vmem:[#allocation4 + $0xc] sm:$0xf] %vm7146, %v7101
  %7149 = vst.msk [vmem:[#allocation4 + $0x14] sm:$0xf] %vm7146, %v7103
  %7150 = vst.msk [vmem:[#allocation4 + $0x1c] sm:$0xf] %vm7146, %v7105
  %7151 = vst.msk [vmem:[#allocation4 + $0x24] sm:$0xf] %vm7146, %v7107
  %7152 = vst.msk [vmem:[#allocation4 + $0x2c] sm:$0xf] %vm7146, %v7109
  %7153 = vst.msk [vmem:[#allocation4 + $0x34] sm:$0xf] %vm7146, %v7111
  %7154 = vst.msk [vmem:[#allocation4 + $0x3c] sm:$0xf] %vm7146, %v7113
  %7155 = vst.msk [vmem:[#allocation4 + $0x44] sm:$0xf] %vm7146, %v7115
  %7156 = vst.msk [vmem:[#allocation4 + $0x4c] sm:$0xf] %vm7146, %v7117
  %7157 = vst.msk [vmem:[#allocation4 + $0x54] sm:$0xf] %vm7146, %v7119
  %7158 = vst.msk [vmem:[#allocation4 + $0x5c] sm:$0xf] %vm7146, %v7121
  %7159 = vst.msk [vmem:[#allocation4 + $0x64] sm:$0xf] %vm7146, %v7123
  %7160 = vst.msk [vmem:[#allocation4 + $0x6c] sm:$0xf] %vm7146, %v7125
  %7161 = vst.msk [vmem:[#allocation4 + $0x74] sm:$0xf] %vm7146, %v7127
  %7162 = vst.msk [vmem:[#allocation4 + $0x7c] sm:$0xf] %vm7146, %v7129
  %v7163 = vld [vmem:[%s6901 + $0x2] sm:$0xff]
  %v7164 = vld [vmem:[%s6901 + $0x12] sm:$0xff]
  %v7165 = vld [vmem:[%s6901 + $0x22] sm:$0xff]
  %v7166 = vld [vmem:[%s6901 + $0x32] sm:$0xff]
  %v7167 = vld [vmem:[%s6901 + $0x42] sm:$0xff]
  %v7168 = vld [vmem:[%s6901 + $0x52] sm:$0xff]
  %v7169 = vld [vmem:[%s6901 + $0x62] sm:$0xff]
  %v7170 = vld [vmem:[%s6901 + $0x72] sm:$0xff]
  %v7171 = vld [vmem:[%s6901 + $0xa2] sm:$0xff]
  %v7172 = vld [vmem:[%s6901 + $0xb2] sm:$0xff]
  %v7173 = vld [vmem:[%s6901 + $0xc2] sm:$0xff]
  %v7174 = vld [vmem:[%s6901 + $0xd2] sm:$0xff]
  %v7175 = vld [vmem:[%s6901 + $0xe2] sm:$0xff]
  %v7176 = vld [vmem:[%s6901 + $0xf2] sm:$0xff]
  %v7177 = vld [vmem:[%s6901 + $0x102] sm:$0xff]
  %v7178 = vld [vmem:[%s6901 + $0x112] sm:$0xff]
  %v7179 = vpack.c.bf16 %v7163, %v7163
  %v7180 = vpack.c.bf16 %v7164, %v7164
  %v7181 = vpack.c.bf16 %v7165, %v7165
  %v7182 = vpack.c.bf16 %v7166, %v7166
  %v7183 = vpack.c.bf16 %v7167, %v7167
  %v7184 = vpack.c.bf16 %v7168, %v7168
  %v7185 = vpack.c.bf16 %v7169, %v7169
  %v7186 = vpack.c.bf16 %v7170, %v7170
  %v7187 = vpack.c.bf16 %v7171, %v7171
  %v7188 = vpack.c.bf16 %v7172, %v7172
  %v7189 = vpack.c.bf16 %v7173, %v7173
  %v7190 = vpack.c.bf16 %v7174, %v7174
  %v7191 = vpack.c.bf16 %v7175, %v7175
  %v7192 = vpack.c.bf16 %v7176, %v7176
  %v7193 = vpack.c.bf16 %v7177, %v7177
  %v7194 = vpack.c.bf16 %v7178, %v7178
  %7211 = vrot.lane.b32.xlu0 %v7179, 32
  %v7212 = vpop.permute.xlu0 %7211
  %7213 = vrot.lane.b32.xlu0 %v7180, 32
  %v7214 = vpop.permute.xlu0 %7213
  %7215 = vrot.lane.b32.xlu0 %v7181, 32
  %v7216 = vpop.permute.xlu0 %7215
  %7217 = vrot.lane.b32.xlu0 %v7182, 32
  %v7218 = vpop.permute.xlu0 %7217
  %7219 = vrot.lane.b32.xlu0 %v7183, 32
  %v7220 = vpop.permute.xlu0 %7219
  %7221 = vrot.lane.b32.xlu0 %v7184, 32
  %v7222 = vpop.permute.xlu0 %7221
  %7223 = vrot.lane.b32.xlu0 %v7185, 32
  %v7224 = vpop.permute.xlu0 %7223
  %7225 = vrot.lane.b32.xlu0 %v7186, 32
  %v7226 = vpop.permute.xlu0 %7225
  %7227 = vrot.lane.b32.xlu0 %v7187, 32
  %v7228 = vpop.permute.xlu0 %7227
  %7229 = vrot.lane.b32.xlu0 %v7188, 32
  %v7230 = vpop.permute.xlu0 %7229
  %7231 = vrot.lane.b32.xlu0 %v7189, 32
  %v7232 = vpop.permute.xlu0 %7231
  %7233 = vrot.lane.b32.xlu0 %v7190, 32
  %v7234 = vpop.permute.xlu0 %7233
  %7235 = vrot.lane.b32.xlu0 %v7191, 32
  %v7236 = vpop.permute.xlu0 %7235
  %7237 = vrot.lane.b32.xlu0 %v7192, 32
  %v7238 = vpop.permute.xlu0 %7237
  %7239 = vrot.lane.b32.xlu0 %v7193, 32
  %v7240 = vpop.permute.xlu0 %7239
  %7241 = vrot.lane.b32.xlu0 %v7194, 32
  %v7242 = vpop.permute.xlu0 %7241
  %vm7259 = vcmask 421120
  %7260 = vst.msk [vmem:[#allocation4 + $0x4] sm:$0xf] %vm7259, %v7212
  %7261 = vst.msk [vmem:[#allocation4 + $0xc] sm:$0xf] %vm7259, %v7214
  %7262 = vst.msk [vmem:[#allocation4 + $0x14] sm:$0xf] %vm7259, %v7216
  %7263 = vst.msk [vmem:[#allocation4 + $0x1c] sm:$0xf] %vm7259, %v7218
  %7264 = vst.msk [vmem:[#allocation4 + $0x24] sm:$0xf] %vm7259, %v7220
  %7265 = vst.msk [vmem:[#allocation4 + $0x2c] sm:$0xf] %vm7259, %v7222
  %7266 = vst.msk [vmem:[#allocation4 + $0x34] sm:$0xf] %vm7259, %v7224
  %7267 = vst.msk [vmem:[#allocation4 + $0x3c] sm:$0xf] %vm7259, %v7226
  %7268 = vst.msk [vmem:[#allocation4 + $0x44] sm:$0xf] %vm7259, %v7228
  %7269 = vst.msk [vmem:[#allocation4 + $0x4c] sm:$0xf] %vm7259, %v7230
  %7270 = vst.msk [vmem:[#allocation4 + $0x54] sm:$0xf] %vm7259, %v7232
  %7271 = vst.msk [vmem:[#allocation4 + $0x5c] sm:$0xf] %vm7259, %v7234
  %7272 = vst.msk [vmem:[#allocation4 + $0x64] sm:$0xf] %vm7259, %v7236
  %7273 = vst.msk [vmem:[#allocation4 + $0x6c] sm:$0xf] %vm7259, %v7238
  %7274 = vst.msk [vmem:[#allocation4 + $0x74] sm:$0xf] %vm7259, %v7240
  %7275 = vst.msk [vmem:[#allocation4 + $0x7c] sm:$0xf] %vm7259, %v7242
  %v7276 = vld [vmem:[#allocation4] sm:$0xff]
  %v7277 = vld [vmem:[#allocation4 + $0x8] sm:$0xff]
  %v7278 = vld [vmem:[#allocation4 + $0x10] sm:$0xff]
  %v7279 = vld [vmem:[#allocation4 + $0x18] sm:$0xff]
  %v7280 = vld [vmem:[#allocation4 + $0x20] sm:$0xff]
  %v7281 = vld [vmem:[#allocation4 + $0x28] sm:$0xff]
  %v7282 = vld [vmem:[#allocation4 + $0x30] sm:$0xff]
  %v7283 = vld [vmem:[#allocation4 + $0x38] sm:$0xff]
  %v7284 = vld [vmem:[#allocation4 + $0x40] sm:$0xff]
  %v7285 = vld [vmem:[#allocation4 + $0x48] sm:$0xff]
  %v7286 = vld [vmem:[#allocation4 + $0x50] sm:$0xff]
  %v7287 = vld [vmem:[#allocation4 + $0x58] sm:$0xff]
  %v7288 = vld [vmem:[#allocation4 + $0x60] sm:$0xff]
  %v7289 = vld [vmem:[#allocation4 + $0x68] sm:$0xff]
  %v7290 = vld [vmem:[#allocation4 + $0x70] sm:$0xff]
  %v7291 = vld [vmem:[#allocation4 + $0x78] sm:$0xff]
  %v7292 = vld [vmem:[%s6] sm:$0xf]
  %v7293 = vld [vmem:[%s6 + $0x4] sm:$0xf]
  %v7294 = vld [vmem:[%s6 + $0x8] sm:$0xf]
  %v7295 = vld [vmem:[%s6 + $0xc] sm:$0xf]
  %v7296 = vld [vmem:[%s6 + $0x10] sm:$0xf]
  %v7297 = vld [vmem:[%s6 + $0x14] sm:$0xf]
  %v7298 = vld [vmem:[%s6 + $0x18] sm:$0xf]
  %v7299 = vld [vmem:[%s6 + $0x1c] sm:$0xf]
  %v7300 = vld [vmem:[%s6 + $0x20] sm:$0xf]
  %v7301 = vld [vmem:[%s6 + $0x24] sm:$0xf]
  %v7302 = vld [vmem:[%s6 + $0x28] sm:$0xf]
  %v7303 = vld [vmem:[%s6 + $0x2c] sm:$0xf]
  %v7304 = vld [vmem:[%s6 + $0x30] sm:$0xf]
  %v7305 = vld [vmem:[%s6 + $0x34] sm:$0xf]
  %v7306 = vld [vmem:[%s6 + $0x38] sm:$0xf]
  %v7307 = vld [vmem:[%s6 + $0x3c] sm:$0xf]
  %v7308 = vld [vmem:[%s6 + $0x40] sm:$0xf]
  %v7309 = vld [vmem:[%s6 + $0x44] sm:$0xf]
  %v7310 = vld [vmem:[%s6 + $0x48] sm:$0xf]
  %v7311 = vld [vmem:[%s6 + $0x4c] sm:$0xf]
  %v7312 = vld [vmem:[%s6 + $0x50] sm:$0xf]
  %v7313 = vld [vmem:[%s6 + $0x54] sm:$0xf]
  %v7314 = vld [vmem:[%s6 + $0x58] sm:$0x3]
  %v7331 = vunpack.c.l.b16 %v7276
  %v7332 = vunpack.c.h.b16 %v7276
  %v7333 = vunpack.c.l.b16 %v7277
  %v7334 = vunpack.c.h.b16 %v7277
  %v7335 = vunpack.c.l.b16 %v7278
  %v7336 = vunpack.c.h.b16 %v7278
  %v7337 = vunpack.c.l.b16 %v7279
  %v7338 = vunpack.c.h.b16 %v7279
  %v7339 = vunpack.c.l.b16 %v7280
  %v7340 = vunpack.c.h.b16 %v7280
  %v7341 = vunpack.c.l.b16 %v7281
  %v7342 = vunpack.c.h.b16 %v7281
  %v7343 = vunpack.c.l.b16 %v7282
  %v7344 = vunpack.c.h.b16 %v7282
  %v7345 = vunpack.c.l.b16 %v7283
  %v7346 = vunpack.c.h.b16 %v7283
  %v7347 = vunpack.c.l.b16 %v7284
  %v7348 = vunpack.c.h.b16 %v7284
  %v7349 = vunpack.c.l.b16 %v7285
  %v7350 = vunpack.c.h.b16 %v7285
  %v7351 = vunpack.c.l.b16 %v7286
  %v7352 = vunpack.c.h.b16 %v7286
  %v7353 = vunpack.c.l.b16 %v7287
  %v7354 = vunpack.c.h.b16 %v7287
  %v7355 = vunpack.c.l.b16 %v7288
  %v7356 = vunpack.c.h.b16 %v7288
  %v7357 = vunpack.c.l.b16 %v7289
  %v7358 = vunpack.c.h.b16 %v7289
  %v7359 = vunpack.c.l.b16 %v7290
  %v7360 = vunpack.c.h.b16 %v7290
  %v7361 = vunpack.c.l.b16 %v7291
  %v7362 = vunpack.c.h.b16 %v7291
  %v7363 = vpack.c.b16 %v7333, %v7331
  %v7364 = vpack.c.b16 %v7334, %v7332
  %v7365 = vpack.c.b16 %v7337, %v7335
  %v7366 = vpack.c.b16 %v7338, %v7336
  %v7367 = vpack.c.b16 %v7341, %v7339
  %v7368 = vpack.c.b16 %v7342, %v7340
  %v7369 = vpack.c.b16 %v7345, %v7343
  %v7370 = vpack.c.b16 %v7346, %v7344
  %v7371 = vpack.c.b16 %v7349, %v7347
  %v7372 = vpack.c.b16 %v7350, %v7348
  %v7373 = vpack.c.b16 %v7353, %v7351
  %v7374 = vpack.c.b16 %v7354, %v7352
  %v7375 = vpack.c.b16 %v7357, %v7355
  %v7376 = vpack.c.b16 %v7358, %v7356
  %v7377 = vpack.c.b16 %v7361, %v7359
  %v7378 = vpack.c.b16 %v7362, %v7360
  %v7410 = vunpack.c.l.b16 %v7292
  %v7411 = vunpack.c.l.b16 %v7293
  %v7412 = vunpack.c.l.b16 %v7294
  %v7413 = vunpack.c.l.b16 %v7295
  %v7414 = vunpack.c.l.b16 %v7296
  %v7415 = vunpack.c.l.b16 %v7297
  %v7416 = vunpack.c.l.b16 %v7298
  %v7417 = vunpack.c.l.b16 %v7299
  %v7418 = vunpack.c.l.b16 %v7300
  %v7419 = vunpack.c.l.b16 %v7301
  %v7420 = vunpack.c.l.b16 %v7302
  %v7421 = vunpack.c.l.b16 %v7303
  %v7422 = vunpack.c.l.b16 %v7304
  %v7423 = vunpack.c.l.b16 %v7305
  %v7424 = vunpack.c.l.b16 %v7306
  %v7425 = vunpack.c.l.b16 %v7307
  %v7426 = vunpack.c.l.b16 %v7308
  %v7427 = vunpack.c.l.b16 %v7309
  %v7428 = vunpack.c.l.b16 %v7310
  %v7429 = vunpack.c.l.b16 %v7311
  %v7430 = vunpack.c.l.b16 %v7312
  %v7431 = vunpack.c.l.b16 %v7313
  %v7432 = vunpack.c.l.b16 %v7314
  %v7433 = vpack.c.b16 %v7411, %v7410
  %v7434 = vpack.c.b16 %v7413, %v7412
  %v7435 = vpack.c.b16 %v7415, %v7414
  %v7436 = vpack.c.b16 %v7417, %v7416
  %v7437 = vpack.c.b16 %v7419, %v7418
  %v7438 = vpack.c.b16 %v7421, %v7420
  %v7439 = vpack.c.b16 %v7423, %v7422
  %v7440 = vpack.c.b16 %v7425, %v7424
  %v7441 = vpack.c.b16 %v7427, %v7426
  %v7442 = vpack.c.b16 %v7429, %v7428
  %v7443 = vpack.c.b16 %v7431, %v7430
  %v7444 = vpack.c.b16 %v7432, %v7432
  %vm7456 = vcmask 424960
  %v7458 = vsel %vm7456, %v7364, 0
  %v7461 = vsel %vm7456, %v7366, 0
  %v7464 = vsel %vm7456, %v7368, 0
  %v7467 = vsel %vm7456, %v7370, 0
  %v7470 = vsel %vm7456, %v7372, 0
  %v7473 = vsel %vm7456, %v7374, 0
  %v7476 = vsel %vm7456, %v7376, 0
  %v7479 = vsel %vm7456, %v7378, 0
  %vm7481 = vcmask 1041408
  %v7483 = vsel %vm7481, %v7444, 0
  %7485 = vmatpush.bf16.msra.mxu0 %v7440
  %7486 = vmatpush.bf16.msra.mxu0 %v7439
  %7487 = vmatpush.bf16.msra.mxu0 %v7438
  %7488 = vmatpush.bf16.msra.mxu0 %v7437
  %7489 = vmatpush.bf16.msra.mxu0 %v7436
  %7490 = vmatpush.bf16.msra.mxu0 %v7435
  %7491 = vmatpush.bf16.msra.mxu0 %v7434
  %7492 = vmatpush.bf16.msra.mxu0 %v7433
  %7493 = vmatmul.bf16.gmra.mxu0 %v7363
  %v7494 = vpop.f32.mrf.mxu0
  %v7495 = vadd.f32 0.0, %v7494
  %v7496 = vpop.f32.mrf.mxu0
  %v7497 = vadd.f32 0.0, %v7496
  %7498 = vmatmul.bf16.gmra.mxu0 %v7365
  %v7499 = vpop.f32.mrf.mxu0
  %v7500 = vadd.f32 0.0, %v7499
  %v7501 = vpop.f32.mrf.mxu0
  %v7502 = vadd.f32 0.0, %v7501
  %7503 = vmatmul.bf16.gmra.mxu0 %v7367
  %v7504 = vpop.f32.mrf.mxu0
  %v7505 = vadd.f32 0.0, %v7504
  %v7506 = vpop.f32.mrf.mxu0
  %v7507 = vadd.f32 0.0, %v7506
  %7508 = vmatmul.bf16.gmra.mxu0 %v7369
  %v7509 = vpop.f32.mrf.mxu0
  %v7510 = vadd.f32 0.0, %v7509
  %v7511 = vpop.f32.mrf.mxu0
  %v7512 = vadd.f32 0.0, %v7511
  %7513 = vmatmul.bf16.gmra.mxu0 %v7371
  %v7514 = vpop.f32.mrf.mxu0
  %v7515 = vadd.f32 0.0, %v7514
  %v7516 = vpop.f32.mrf.mxu0
  %v7517 = vadd.f32 0.0, %v7516
  %7518 = vmatmul.bf16.gmra.mxu0 %v7373
  %v7519 = vpop.f32.mrf.mxu0
  %v7520 = vadd.f32 0.0, %v7519
  %v7521 = vpop.f32.mrf.mxu0
  %v7522 = vadd.f32 0.0, %v7521
  %7523 = vmatmul.bf16.gmra.mxu0 %v7375
  %v7524 = vpop.f32.mrf.mxu0
  %v7525 = vadd.f32 0.0, %v7524
  %v7526 = vpop.f32.mrf.mxu0
  %v7527 = vadd.f32 0.0, %v7526
  %7528 = vmatmul.bf16.gmra.mxu0 %v7377
  %v7529 = vpop.f32.mrf.mxu0
  %v7530 = vadd.f32 0.0, %v7529
  %v7531 = vpop.f32.mrf.mxu0
  %v7532 = vadd.f32 0.0, %v7531
  %7533 = vdwg.mxu0
  %7534 = vmatpush.bf16.msra.mxu0 0
  %7535 = vmatpush.bf16.msra.mxu0 0
  %7536 = vmatpush.bf16.msra.mxu0 0
  %7537 = vmatpush.bf16.msra.mxu0 0
  %7538 = vmatpush.bf16.msra.mxu0 %v7483
  %7539 = vmatpush.bf16.msra.mxu0 %v7443
  %7540 = vmatpush.bf16.msra.mxu0 %v7442
  %7541 = vmatpush.bf16.msra.mxu0 %v7441
  %7542 = vmatmul.bf16.gmra.mxu0 %v7458
  %v7543 = vpop.f32.mrf.mxu0
  %v7544 = vadd.f32 %v7495, %v7543
  %v7545 = vpop.f32.mrf.mxu0
  %v7546 = vadd.f32 %v7497, %v7545
  %7547 = vmatmul.bf16.gmra.mxu0 %v7461
  %v7548 = vpop.f32.mrf.mxu0
  %v7549 = vadd.f32 %v7500, %v7548
  %v7550 = vpop.f32.mrf.mxu0
  %v7551 = vadd.f32 %v7502, %v7550
  %7552 = vmatmul.bf16.gmra.mxu0 %v7464
  %v7553 = vpop.f32.mrf.mxu0
  %v7554 = vadd.f32 %v7505, %v7553
  %v7555 = vpop.f32.mrf.mxu0
  %v7556 = vadd.f32 %v7507, %v7555
  %7557 = vmatmul.bf16.gmra.mxu0 %v7467
  %v7558 = vpop.f32.mrf.mxu0
  %v7559 = vadd.f32 %v7510, %v7558
  %v7560 = vpop.f32.mrf.mxu0
  %v7561 = vadd.f32 %v7512, %v7560
  %7562 = vmatmul.bf16.gmra.mxu0 %v7470
  %v7563 = vpop.f32.mrf.mxu0
  %v7564 = vadd.f32 %v7515, %v7563
  %v7565 = vpop.f32.mrf.mxu0
  %v7566 = vadd.f32 %v7517, %v7565
  %7567 = vmatmul.bf16.gmra.mxu0 %v7473
  %v7568 = vpop.f32.mrf.mxu0
  %v7569 = vadd.f32 %v7520, %v7568
  %v7570 = vpop.f32.mrf.mxu0
  %v7571 = vadd.f32 %v7522, %v7570
  %7572 = vmatmul.bf16.gmra.mxu0 %v7476
  %v7573 = vpop.f32.mrf.mxu0
  %v7574 = vadd.f32 %v7525, %v7573
  %v7575 = vpop.f32.mrf.mxu0
  %v7576 = vadd.f32 %v7527, %v7575
  %7577 = vmatmul.bf16.gmra.mxu0 %v7479
  %v7578 = vpop.f32.mrf.mxu0
  %v7579 = vadd.f32 %v7530, %v7578
  %v7580 = vpop.f32.mrf.mxu0
  %v7581 = vadd.f32 %v7532, %v7580
  %7582 = vdwg.mxu0
  %v7583 = vld [vmem:[%s7] sm:$0x1]
  %v7585 = vperm.slane %v7583, 0
  %v7587 = vmul.f32 %v7544, %v7585
  %v7588 = vmul.f32 %v7546, %v7585
  %v7589 = vmul.f32 %v7549, %v7585
  %v7590 = vmul.f32 %v7551, %v7585
  %v7591 = vmul.f32 %v7554, %v7585
  %v7592 = vmul.f32 %v7556, %v7585
  %v7593 = vmul.f32 %v7559, %v7585
  %v7594 = vmul.f32 %v7561, %v7585
  %v7595 = vmul.f32 %v7564, %v7585
  %v7596 = vmul.f32 %v7566, %v7585
  %v7597 = vmul.f32 %v7569, %v7585
  %v7598 = vmul.f32 %v7571, %v7585
  %v7599 = vmul.f32 %v7574, %v7585
  %v7600 = vmul.f32 %v7576, %v7585
  %v7601 = vmul.f32 %v7579, %v7585
  %v7602 = vmul.f32 %v7581, %v7585
  %v7603 = vld [vmem:[%s8] sm:$0x1]
  %v7605 = vperm.slane %v7603, 0
  %v7607 = vadd.f32 %v7587, %v7605
  %v7608 = vadd.f32 %v7588, %v7605
  %v7609 = vadd.f32 %v7589, %v7605
  %v7610 = vadd.f32 %v7590, %v7605
  %v7611 = vadd.f32 %v7591, %v7605
  %v7612 = vadd.f32 %v7592, %v7605
  %v7613 = vadd.f32 %v7593, %v7605
  %v7614 = vadd.f32 %v7594, %v7605
  %v7615 = vadd.f32 %v7595, %v7605
  %v7616 = vadd.f32 %v7596, %v7605
  %v7617 = vadd.f32 %v7597, %v7605
  %v7618 = vadd.f32 %v7598, %v7605
  %v7619 = vadd.f32 %v7599, %v7605
  %v7620 = vadd.f32 %v7600, %v7605
  %v7621 = vadd.f32 %v7601, %v7605
  %v7622 = vadd.f32 %v7602, %v7605
  %v7623 = vmax.f32 %v7607, 0.0
  %v7624 = vmax.f32 %v7608, 0.0
  %v7625 = vmax.f32 %v7609, 0.0
  %v7626 = vmax.f32 %v7610, 0.0
  %v7627 = vmax.f32 %v7611, 0.0
  %v7628 = vmax.f32 %v7612, 0.0
  %v7629 = vmax.f32 %v7613, 0.0
  %v7630 = vmax.f32 %v7614, 0.0
  %v7631 = vmax.f32 %v7615, 0.0
  %v7632 = vmax.f32 %v7616, 0.0
  %v7633 = vmax.f32 %v7617, 0.0
  %v7634 = vmax.f32 %v7618, 0.0
  %v7635 = vmax.f32 %v7619, 0.0
  %v7636 = vmax.f32 %v7620, 0.0
  %v7637 = vmax.f32 %v7621, 0.0
  %v7638 = vmax.f32 %v7622, 0.0
  %v7639 = vpack.c.bf16 %v7623, %v7623
  %v7640 = vpack.c.bf16 %v7624, %v7624
  %v7641 = vpack.c.bf16 %v7625, %v7625
  %v7642 = vpack.c.bf16 %v7626, %v7626
  %v7643 = vpack.c.bf16 %v7627, %v7627
  %v7644 = vpack.c.bf16 %v7628, %v7628
  %v7645 = vpack.c.bf16 %v7629, %v7629
  %v7646 = vpack.c.bf16 %v7630, %v7630
  %v7647 = vpack.c.bf16 %v7631, %v7631
  %v7648 = vpack.c.bf16 %v7632, %v7632
  %v7649 = vpack.c.bf16 %v7633, %v7633
  %v7650 = vpack.c.bf16 %v7634, %v7634
  %v7651 = vpack.c.bf16 %v7635, %v7635
  %v7652 = vpack.c.bf16 %v7636, %v7636
  %v7653 = vpack.c.bf16 %v7637, %v7637
  %v7654 = vpack.c.bf16 %v7638, %v7638
  %vm7655 = vcmask 257024
  %7656 = vst.msk [vmem:[%s9] sm:$0xf] %vm7655, %v7639
  %7657 = vst.msk [vmem:[%s9 + $0x4] sm:$0xf] %vm7655, %v7640
  %7658 = vst.msk [vmem:[%s9 + $0x8] sm:$0xf] %vm7655, %v7641
  %7659 = vst.msk [vmem:[%s9 + $0xc] sm:$0xf] %vm7655, %v7642
  %7660 = vst.msk [vmem:[%s9 + $0x10] sm:$0xf] %vm7655, %v7643
  %7661 = vst.msk [vmem:[%s9 + $0x14] sm:$0xf] %vm7655, %v7644
  %7662 = vst.msk [vmem:[%s9 + $0x18] sm:$0xf] %vm7655, %v7645
  %7663 = vst.msk [vmem:[%s9 + $0x1c] sm:$0xf] %vm7655, %v7646
  %7664 = vst.msk [vmem:[%s9 + $0x20] sm:$0xf] %vm7655, %v7647
  %7665 = vst.msk [vmem:[%s9 + $0x24] sm:$0xf] %vm7655, %v7648
  %7666 = vst.msk [vmem:[%s9 + $0x28] sm:$0xf] %vm7655, %v7649
  %7667 = vst.msk [vmem:[%s9 + $0x2c] sm:$0xf] %vm7655, %v7650
  %7668 = vst.msk [vmem:[%s9 + $0x30] sm:$0xf] %vm7655, %v7651
  %7669 = vst.msk [vmem:[%s9 + $0x34] sm:$0xf] %vm7655, %v7652
  %7670 = vst.msk [vmem:[%s9 + $0x38] sm:$0xf] %vm7655, %v7653
  %7671 = vst.msk [vmem:[%s9 + $0x3c] sm:$0xf] %vm7655, %v7654
  // Predicated region
  $region38: #{tpu_custom_call.1} parent=0 // pred_check
    _
  $region39: #{tpu_custom_call.1} parent=0 // pred_check_branch
    %7673 = sbr.rel (0) target = $region41
  $region40: #{tpu_custom_call.1} parent=0 // pred_region
    _
  $region41: #{tpu_custom_call.1} parent=0 // pred_fallthru
    _
  // Predicated region
  $region42: #{tpu_custom_call.1} parent=0 // pred_check
    _
  $region43: #{tpu_custom_call.1} parent=0 // pred_check_branch
    %7675 = sbr.rel (0) target = $region45
  $region44: #{tpu_custom_call.1} parent=0 // pred_region
    _
  $region45: #{tpu_custom_call.1} parent=0 // pred_fallthru
    _

</llo_original>
